<compile_context>
chip_gen: v6e
topology: v6e:2x2x1
jax: 0.10.0
libtpu: 0.0.40
codegen_flags: <defaults>
</compile_context>

<pallas_src>
import functools

import jax
import jax.numpy as jnp
from jax import lax
from jax.experimental import pallas as pl
from jax.experimental.pallas import tpu as pltpu


def _gating_kernel(x_ref, wt_ref, b_ref, o_ref, *, matmul_dtype, precision):
    # x_ref : [TB, D]  rows of the flattened input (D lane-dense)
    # wt_ref: [D,  E]  gate weight, pre-transposed (experts on lanes)
    # b_ref : [1,  E]  gate bias
    # o_ref : [TB, E]  softmax probabilities
    xv = x_ref[...]
    if matmul_dtype is not None:
        xv = xv.astype(matmul_dtype)             # VPU cast; MXU then runs bf16
    logits = jnp.dot(xv, wt_ref[...],
                     preferred_element_type=jnp.float32,
                     precision=precision)
    logits = logits + b_ref[...].astype(jnp.float32)

    # Numerically-stable softmax over the expert axis (f32 math). Garbage rows of a
    # partial last block stay per-row and are masked out of the final store.
    m = jnp.max(logits, axis=-1, keepdims=True)
    p = jnp.exp(logits - m)
    denom = jnp.sum(p, axis=-1, keepdims=True)
    # Exact divide: denom is only [TB, 1], a handful of ops fully hidden under the
    # x DMA; approx reciprocal buys nothing here and costs accuracy.
    o_ref[...] = (p / denom).astype(o_ref.dtype)


def _round_up(v, m):
    return (v + m - 1) // m * m


def gating_mechanism(x, weight, bias, *, row_tile=None, matmul_dtype=None):
    """Pallas equivalent of GatingMechanism.forward.

    x:      [B, ...]                  (flattened to [B, input_dim])
    weight: [num_experts, input_dim]  (PyTorch nn.Linear layout)
    bias:   [num_experts]
    matmul_dtype: None keeps the input dtype on the MXU (HIGHEST precision for f32);
        jnp.bfloat16 trades logit precision for a 4-6x faster matmul (the right call
        on v5e / v7x when the gate need not match f32 to 1e-5).
    returns gate_weights [B, num_experts]
    """
    batch = x.shape[0]
    x_flat = x.reshape(batch, -1)                      # [B, D]
    d = x_flat.shape[1]
    e = weight.shape[0]

    # One-time parameter prep (outside the per-row hot path): transpose to [D, E] so
    # the VMEM-resident weight needs no per-step lane/sublane transpose for the MXU.
    # TODO(synk): in real use, store the gate weight pre-transposed / pre-cast so
    # this XLA op disappears entirely.
    wt = jnp.transpose(weight)                         # [D, E]
    if matmul_dtype is not None:
        wt = wt.astype(matmul_dtype)
        precision = None
    else:
        precision = lax.Precision.HIGHEST              # f32-accurate MXU passes
    b2 = bias.reshape(1, e)

    # --- tiling: dtype-aware sublane packing + generation-aware VMEM budget -------
    itemsize = jnp.dtype(x_flat.dtype).itemsize
    sublane = max(8, 32 // itemsize)                   # 8 f32 / 16 bf16 / 32 int8
    try:
        vmem_cap = pltpu.get_tpu_info().vmem_capacity_bytes
    except Exception:
        vmem_cap = 64 * 1024 * 1024                    # v7x per-TC floor; conservative
    x_row_bytes = d * itemsize
    out_row_bytes = e * jnp.dtype(x.dtype).itemsize
    w_bytes = d * e * jnp.dtype(wt.dtype).itemsize

    if row_tile is None:
        budget = min(vmem_cap // 2, 48 * 1024 * 1024)  # leave pipeline/regalloc headroom
        avail = max(budget - w_bytes, 2 * 1024 * 1024)
        row_tile = avail // (2 * (x_row_bytes + out_row_bytes))
        row_tile = max(sublane, min(2048, row_tile // sublane * sublane))

    # v7x megacore: keep >= 2 grid steps when the batch allows it.
    half_batch = _round_up(pl.cdiv(batch, 2), sublane)
    tb = min(row_tile, half_batch)
    if batch <= tb:
        tb = batch                                     # one block == full batch dim (legal)
    grid = pl.cdiv(batch, tb)                          # last block may be partial; its
                                                       # junk rows are never written back.

    vmem_use = 2 * tb * (x_row_bytes + out_row_bytes) + 2 * (w_bytes + e * 4)
    vmem_limit = int(min(max(vmem_use * 3 // 2, 16 * 1024 * 1024),
                         max(vmem_cap - 8 * 1024 * 1024, 16 * 1024 * 1024)))

    kernel = functools.partial(_gating_kernel,
                               matmul_dtype=matmul_dtype, precision=precision)

    def _call(single_buffer_resident):
        extra = {}
        if single_buffer_resident:
            extra = dict(pipeline_mode=pl.Buffered(1))  # constant index -> 1 buffer
        in_specs = [
            pl.BlockSpec((tb, d), lambda i: (i, 0)),         # x: streamed, double-buffered
            pl.BlockSpec((d, e), lambda i: (0, 0), **extra),  # W^T: VMEM-resident
            pl.BlockSpec((1, e), lambda i: (0, 0), **extra),  # bias: VMEM-resident
        ]
        return pl.pallas_call(
            kernel,
            out_shape=jax.ShapeDtypeStruct((batch, e), x.dtype),
            grid=(grid,),
            in_specs=in_specs,
            out_specs=pl.BlockSpec((tb, e), lambda i: (i, 0)),
            compiler_params=pltpu.CompilerParams(
                dimension_semantics=("parallel",),           # rows independent -> megacore
                vmem_limit_bytes=vmem_limit,
            ),
        )(x_flat, wt, b2)

    try:
        out = _call(True)
    except Exception:
        # Older JAX without pipeline_mode / Buffered(1): fall back to default buffering.
        out = _call(False)
    return out


def _reference(x, weight, bias):
    x_flat = x.reshape(x.shape[0], -1)
    logits = jnp.dot(x_flat, weight.T, precision=lax.Precision.HIGHEST) + bias
    return jax.nn.softmax(logits, axis=-1)


if __name__ == "__main__":
    key = jax.random.PRNGKey(0)
    k_x, k_w, k_b = jax.random.split(key, 3)

    # Small shapes consistent with the module: x [2, 4, 16, 16] -> input_dim = 1024
    batch, c, h, wdim = 2, 4, 16, 16
    input_dim = c * h * wdim
    num_experts = 8

    x = jax.random.normal(k_x, (batch, c, h, wdim), dtype=jnp.float32)
    # Deterministic params (mimics nn.Linear's uniform(-1/sqrt(D), 1/sqrt(D)))
    bound = 1.0 / (input_dim ** 0.5)
    weight = jax.random.uniform(k_w, (num_experts, input_dim),
                                minval=-bound, maxval=bound, dtype=jnp.float32)
    bias = jax.random.uniform(k_b, (num_experts,),
                              minval=-bound, maxval=bound, dtype=jnp.float32)

    out = jax.block_until_ready(gating_mechanism(x, weight, bias))
    ref = _reference(x, weight, bias)

    assert out.shape == (batch, num_experts)
    # Tolerance covers MXU multi-pass vs XLA accumulation-order differences in logits.
    assert jnp.allclose(out, ref, atol=1e-3, rtol=1e-3), "mismatch vs reference"
    assert jnp.allclose(jnp.sum(out, axis=-1), 1.0, atol=1e-5), "softmax rows must sum to 1"

    print("KERNEL_OK")
</pallas_src>

<mosaic_0001>
module attributes {stable_mosaic.version = 11 : i64} {
  func.func @_gating_kernel(%arg0: i32, %arg1: memref<2x1024xf32, #tpu.memory_space<vmem>>, %arg2: memref<1024x8xf32, #tpu.memory_space<vmem>>, %arg3: memref<1x8xf32, #tpu.memory_space<vmem>>, %arg4: memref<2x8xf32, #tpu.memory_space<vmem>>) attributes {dimension_semantics = [#tpu.dimension_semantics<parallel>], iteration_bounds = array<i64: 1>, scalar_prefetch = 0 : i64, scratch_operands = 0 : i64, tpu.core_type = #tpu.core_type<tc>, window_params = [{transform_indices = @transform_0, window_bounds = array<i64: 2, 1024>}, {pipeline_mode = #tpu.pipeline_mode<synchronous>, transform_indices = @transform_1, window_bounds = array<i64: 1024, 8>}, {pipeline_mode = #tpu.pipeline_mode<synchronous>, transform_indices = @transform_2, window_bounds = array<i64: 1, 8>}, {transform_indices = @transform_3, window_bounds = array<i64: 2, 8>}]} {
    %c0 = arith.constant 0 : index
    %c0_0 = arith.constant 0 : index
    %0 = vector.load %arg1[%c0, %c0_0] : memref<2x1024xf32, #tpu.memory_space<vmem>>, vector<2x1024xf32>
    %c0_1 = arith.constant 0 : index
    %c0_2 = arith.constant 0 : index
    %1 = vector.load %arg2[%c0_1, %c0_2] : memref<1024x8xf32, #tpu.memory_space<vmem>>, vector<1024x8xf32>
    %cst = arith.constant dense<0.000000e+00> : vector<2x8xf32>
    %2 = tpu.matmul %0, %1, %cst {dimension_numbers = #tpu.dot_dimension_numbers<[1], [0], [0], [1], [0, 0, 1, 1], [], []>, precision = #tpu.contract_precision<fp32>} : vector<2x1024xf32>, vector<1024x8xf32>, vector<2x8xf32> -> vector<2x8xf32>
    %c0_3 = arith.constant 0 : index
    %c0_4 = arith.constant 0 : index
    %3 = vector.load %arg3[%c0_3, %c0_4] : memref<1x8xf32, #tpu.memory_space<vmem>>, vector<1x8xf32>
    %4 = vector.broadcast %3 : vector<1x8xf32> to vector<2x8xf32>
    %5 = arith.addf %2, %4 : vector<2x8xf32>
    %cst_5 = arith.constant dense<0xFF800000> : vector<2xf32>
    %6 = vector.multi_reduction <maximumf>, %5, %cst_5 [1] : vector<2x8xf32> to vector<2xf32>
    %7 = vector.shape_cast %6 : vector<2xf32> to vector<2x1xf32>
    %8 = vector.broadcast %7 : vector<2x1xf32> to vector<2x8xf32>
    %9 = arith.subf %5, %8 : vector<2x8xf32>
    %10 = math.exp %9 : vector<2x8xf32>
    %cst_6 = arith.constant dense<0.000000e+00> : vector<2xf32>
    %11 = vector.multi_reduction <add>, %10, %cst_6 [1] : vector<2x8xf32> to vector<2xf32>
    %12 = vector.shape_cast %11 : vector<2xf32> to vector<2x1xf32>
    %13 = vector.broadcast %12 : vector<2x1xf32> to vector<2x8xf32>
    %14 = arith.divf %10, %13 : vector<2x8xf32>
    %c0_7 = arith.constant 0 : index
    %c0_8 = arith.constant 0 : index
    %15 = vector.load %arg4[%c0_7, %c0_8] : memref<2x8xf32, #tpu.memory_space<vmem>>, vector<2x8xf32>
    tpu.vector_store %arg4[%c0_7, %c0_8], %14 {strides = array<i32>} : memref<2x8xf32, #tpu.memory_space<vmem>>, vector<2x8xf32>,
    return
  }
  func.func @transform_0(%arg0: i32) -> (i32, i32) {
    %c0_i32 = arith.constant 0 : i32
    %c0_i32_0 = arith.constant 0 : i32
    return %arg0, %c0_i32 : i32, i32
  }
  func.func @transform_1(%arg0: i32) -> (i32, i32) {
    %c0_i32 = arith.constant 0 : i32
    %c0_i32_0 = arith.constant 0 : i32
    %c0_i32_1 = arith.constant 0 : i32
    return %c0_i32, %c0_i32_0 : i32, i32
  }
  func.func @transform_2(%arg0: i32) -> (i32, i32) {
    %c0_i32 = arith.constant 0 : i32
    %c0_i32_0 = arith.constant 0 : i32
    %c0_i32_1 = arith.constant 0 : i32
    return %c0_i32, %c0_i32_0 : i32, i32
  }
  func.func @transform_3(%arg0: i32) -> (i32, i32) {
    %c0_i32 = arith.constant 0 : i32
    %c0_i32_0 = arith.constant 0 : i32
    return %arg0, %c0_i32 : i32, i32
  }
}

module attributes {stable_mosaic.version = 11 : i64} {
  func.func @_gating_kernel(%arg0: i32, %arg1: memref<2x1024xf32, #tpu.memory_space<vmem>>, %arg2: memref<1024x8xf32, #tpu.memory_space<vmem>>, %arg3: memref<1x8xf32, #tpu.memory_space<vmem>>, %arg4: memref<2x8xf32, #tpu.memory_space<vmem>>) attributes {dimension_semantics = [#tpu.dimension_semantics<parallel>], iteration_bounds = array<i64: 1>, scalar_prefetch = 0 : i64, scratch_operands = 0 : i64, tpu.core_type = #tpu.core_type<tc>, window_params = [{transform_indices = @transform_0, window_bounds = array<i64: 2, 1024>}, {pipeline_mode = #tpu.pipeline_mode<synchronous>, transform_indices = @transform_1, window_bounds = array<i64: 1024, 8>}, {pipeline_mode = #tpu.pipeline_mode<synchronous>, transform_indices = @transform_2, window_bounds = array<i64: 1, 8>}, {transform_indices = @transform_3, window_bounds = array<i64: 2, 8>}]} {
    %c0 = arith.constant 0 : index
    %c0_0 = arith.constant 0 : index
    %0 = vector.load %arg1[%c0, %c0_0] : memref<2x1024xf32, #tpu.memory_space<vmem>>, vector<2x1024xf32>
    %c0_1 = arith.constant 0 : index
    %c0_2 = arith.constant 0 : index
    %1 = vector.load %arg2[%c0_1, %c0_2] : memref<1024x8xf32, #tpu.memory_space<vmem>>, vector<1024x8xf32>
    %cst = arith.constant dense<0.000000e+00> : vector<2x8xf32>
    %2 = tpu.matmul %0, %1, %cst {dimension_numbers = #tpu.dot_dimension_numbers<[1], [0], [0], [1], [0, 0, 1, 1], [], []>, precision = #tpu.contract_precision<fp32>} : vector<2x1024xf32>, vector<1024x8xf32>, vector<2x8xf32> -> vector<2x8xf32>
    %c0_3 = arith.constant 0 : index
    %c0_4 = arith.constant 0 : index
    %3 = vector.load %arg3[%c0_3, %c0_4] : memref<1x8xf32, #tpu.memory_space<vmem>>, vector<1x8xf32>
    %4 = vector.broadcast %3 : vector<1x8xf32> to vector<2x8xf32>
    %5 = arith.addf %2, %4 : vector<2x8xf32>
    %cst_5 = arith.constant dense<0xFF800000> : vector<2xf32>
    %6 = vector.multi_reduction <maximumf>, %5, %cst_5 [1] : vector<2x8xf32> to vector<2xf32>
    %7 = vector.shape_cast %6 : vector<2xf32> to vector<2x1xf32>
    %8 = vector.broadcast %7 : vector<2x1xf32> to vector<2x8xf32>
    %9 = arith.subf %5, %8 : vector<2x8xf32>
    %10 = math.exp %9 : vector<2x8xf32>
    %cst_6 = arith.constant dense<0.000000e+00> : vector<2xf32>
    %11 = vector.multi_reduction <add>, %10, %cst_6 [1] : vector<2x8xf32> to vector<2xf32>
    %12 = vector.shape_cast %11 : vector<2xf32> to vector<2x1xf32>
    %13 = vector.broadcast %12 : vector<2x1xf32> to vector<2x8xf32>
    %14 = arith.divf %10, %13 : vector<2x8xf32>
    %c0_7 = arith.constant 0 : index
    %c0_8 = arith.constant 0 : index
    %15 = vector.load %arg4[%c0_7, %c0_8] : memref<2x8xf32, #tpu.memory_space<vmem>>, vector<2x8xf32>
    tpu.vector_store %arg4[%c0_7, %c0_8], %14 {strides = array<i32>} : memref<2x8xf32, #tpu.memory_space<vmem>>, vector<2x8xf32>,
    return
  }
  func.func @transform_0(%arg0: i32) -> (i32, i32) {
    %c0_i32 = arith.constant 0 : i32
    %c0_i32_0 = arith.constant 0 : i32
    return %arg0, %c0_i32 : i32, i32
  }
  func.func @transform_1(%arg0: i32) -> (i32, i32) {
    %c0_i32 = arith.constant 0 : i32
    %c0_i32_0 = arith.constant 0 : i32
    %c0_i32_1 = arith.constant 0 : i32
    return %c0_i32, %c0_i32_0 : i32, i32
  }
  func.func @transform_2(%arg0: i32) -> (i32, i32) {
    %c0_i32 = arith.constant 0 : i32
    %c0_i32_0 = arith.constant 0 : i32
    %c0_i32_1 = arith.constant 0 : i32
    return %c0_i32, %c0_i32_0 : i32, i32
  }
  func.func @transform_3(%arg0: i32) -> (i32, i32) {
    %c0_i32 = arith.constant 0 : i32
    %c0_i32_0 = arith.constant 0 : i32
    return %arg0, %c0_i32 : i32, i32
  }
}

</mosaic_0001>

<llo_original>
// kernel: tpu_custom_call.1
$region0: #{tpu_custom_call.1}
  #allocation0 [shape = 'u32[]', space=smem, size = 0x4, offset = 0x4, fixed_abs, tag = 'smem constant byte address 0x4 - core index']
  #allocation1 [shape = 'u32[144,128]{1,0:T(1,128)}', space=vmem, size = 0x12000, scoped, tag = 'internal scratch']
  %s0 = inlined_call_operand.vmem [shape: f32[2,1024], index: 0, kind: input, shape index: {}]
  %s1 = inlined_call_operand.vmem [shape: f32[1024,8], index: 1, kind: input, shape index: {}]
  %s2 = inlined_call_operand.vmem [shape: f32[1,8], index: 2, kind: input, shape index: {}]
  %s3 = inlined_call_operand.hbm [shape: f32[2,8], index: 3, kind: output, shape index: {}]
  %s4 = sld [smem:[#allocation0]]
  $region22: #{tpu_custom_call.1} parent=0
    _
  %s6 = ssub.s32 1, %s4
  %s7 = scalar_select 0, %s6, %s4
  $region1: #{tpu_custom_call.1} parent=0
    #allocation2 [shape = 'u8[1024]{0}', space=vmem, size = 0x400, scoped, tag = 'output window, operand 0, single buffered']
    #allocation3 [shape = 's32[1]{0}', space=sflag, size = 0x4, scoped, tag = 'scoped memory for tpu_custom_call.1']
    %8 = vsyncpa [#allocation3], 0
    // Predicated region
    $region2: #{tpu_custom_call.1} parent=1 // pred_check
      _
    $region3: #{tpu_custom_call.1} parent=1 // pred_check_branch
      %10 = sbr.rel (0) target = $region5
    $region4: #{tpu_custom_call.1} parent=1 // pred_region
      _
    $region5: #{tpu_custom_call.1} parent=1 // pred_fallthru
      _
    // Predicated region
    $region6: #{tpu_custom_call.1} parent=1 // pred_check
      _
    $region7: #{tpu_custom_call.1} parent=1 // pred_check_branch
      %12 = sbr.rel (0) target = $region9
    $region8: #{tpu_custom_call.1} parent=1 // pred_region
      _
    $region9: #{tpu_custom_call.1} parent=1 // pred_fallthru
      _
    // Predicated region
    $region10: #{tpu_custom_call.1} parent=1 // pred_check
      _
    $region11: #{tpu_custom_call.1} parent=1 // pred_check_branch
      %14 = sbr.rel (0) target = $region13
    $region12: #{tpu_custom_call.1} parent=1 // pred_region
      _
    $region13: #{tpu_custom_call.1} parent=1 // pred_fallthru
      _
    %v15 = vld [vmem:[%s0] sm:$0xff]
    %v16 = vld [vmem:[%s0 + $0x8] sm:$0xff]
    %v17 = vld [vmem:[%s1] sm:$0xff]
    %v18 = vld [vmem:[%s1 + $0x8] sm:$0xff]
    %v19 = vld [vmem:[%s1 + $0x10] sm:$0xff]
    %v20 = vld [vmem:[%s1 + $0x18] sm:$0xff]
    %v21 = vld [vmem:[%s1 + $0x20] sm:$0xff]
    %v22 = vld [vmem:[%s1 + $0x28] sm:$0xff]
    %v23 = vld [vmem:[%s1 + $0x30] sm:$0xff]
    %v24 = vld [vmem:[%s1 + $0x38] sm:$0xff]
    %v25 = vld [vmem:[%s1 + $0x40] sm:$0xff]
    %v26 = vld [vmem:[%s1 + $0x48] sm:$0xff]
    %v27 = vld [vmem:[%s1 + $0x50] sm:$0xff]
    %v28 = vld [vmem:[%s1 + $0x58] sm:$0xff]
    %v29 = vld [vmem:[%s1 + $0x60] sm:$0xff]
    %v30 = vld [vmem:[%s1 + $0x68] sm:$0xff]
    %v31 = vld [vmem:[%s1 + $0x70] sm:$0xff]
    %v32 = vld [vmem:[%s1 + $0x78] sm:$0xff]
    %v33 = vld [vmem:[%s1 + $0x80] sm:$0xff]
    %v34 = vld [vmem:[%s1 + $0x88] sm:$0xff]
    %v35 = vld [vmem:[%s1 + $0x90] sm:$0xff]
    %v36 = vld [vmem:[%s1 + $0x98] sm:$0xff]
    %v37 = vld [vmem:[%s1 + $0xa0] sm:$0xff]
    %v38 = vld [vmem:[%s1 + $0xa8] sm:$0xff]
    %v39 = vld [vmem:[%s1 + $0xb0] sm:$0xff]
    %v40 = vld [vmem:[%s1 + $0xb8] sm:$0xff]
    %v41 = vld [vmem:[%s1 + $0xc0] sm:$0xff]
    %v42 = vld [vmem:[%s1 + $0xc8] sm:$0xff]
    %v43 = vld [vmem:[%s1 + $0xd0] sm:$0xff]
    %v44 = vld [vmem:[%s1 + $0xd8] sm:$0xff]
    %v45 = vld [vmem:[%s1 + $0xe0] sm:$0xff]
    %v46 = vld [vmem:[%s1 + $0xe8] sm:$0xff]
    %v47 = vld [vmem:[%s1 + $0xf0] sm:$0xff]
    %v48 = vld [vmem:[%s1 + $0xf8] sm:$0xff]
    %v49 = vld [vmem:[%s1 + $0x100] sm:$0xff]
    %v50 = vld [vmem:[%s1 + $0x108] sm:$0xff]
    %v51 = vld [vmem:[%s1 + $0x110] sm:$0xff]
    %v52 = vld [vmem:[%s1 + $0x118] sm:$0xff]
    %v53 = vld [vmem:[%s1 + $0x120] sm:$0xff]
    %v54 = vld [vmem:[%s1 + $0x128] sm:$0xff]
    %v55 = vld [vmem:[%s1 + $0x130] sm:$0xff]
    %v56 = vld [vmem:[%s1 + $0x138] sm:$0xff]
    %v57 = vld [vmem:[%s1 + $0x140] sm:$0xff]
    %v58 = vld [vmem:[%s1 + $0x148] sm:$0xff]
    %v59 = vld [vmem:[%s1 + $0x150] sm:$0xff]
    %v60 = vld [vmem:[%s1 + $0x158] sm:$0xff]
    %v61 = vld [vmem:[%s1 + $0x160] sm:$0xff]
    %v62 = vld [vmem:[%s1 + $0x168] sm:$0xff]
    %v63 = vld [vmem:[%s1 + $0x170] sm:$0xff]
    %v64 = vld [vmem:[%s1 + $0x178] sm:$0xff]
    %v65 = vld [vmem:[%s1 + $0x180] sm:$0xff]
    %v66 = vld [vmem:[%s1 + $0x188] sm:$0xff]
    %v67 = vld [vmem:[%s1 + $0x190] sm:$0xff]
    %v68 = vld [vmem:[%s1 + $0x198] sm:$0xff]
    %v69 = vld [vmem:[%s1 + $0x1a0] sm:$0xff]
    %v70 = vld [vmem:[%s1 + $0x1a8] sm:$0xff]
    %v71 = vld [vmem:[%s1 + $0x1b0] sm:$0xff]
    %v72 = vld [vmem:[%s1 + $0x1b8] sm:$0xff]
    %v73 = vld [vmem:[%s1 + $0x1c0] sm:$0xff]
    %v74 = vld [vmem:[%s1 + $0x1c8] sm:$0xff]
    %v75 = vld [vmem:[%s1 + $0x1d0] sm:$0xff]
    %v76 = vld [vmem:[%s1 + $0x1d8] sm:$0xff]
    %v77 = vld [vmem:[%s1 + $0x1e0] sm:$0xff]
    %v78 = vld [vmem:[%s1 + $0x1e8] sm:$0xff]
    %v79 = vld [vmem:[%s1 + $0x1f0] sm:$0xff]
    %v80 = vld [vmem:[%s1 + $0x1f8] sm:$0xff]
    %v81 = vld [vmem:[%s1 + $0x200] sm:$0xff]
    %v82 = vld [vmem:[%s1 + $0x208] sm:$0xff]
    %v83 = vld [vmem:[%s1 + $0x210] sm:$0xff]
    %v84 = vld [vmem:[%s1 + $0x218] sm:$0xff]
    %v85 = vld [vmem:[%s1 + $0x220] sm:$0xff]
    %v86 = vld [vmem:[%s1 + $0x228] sm:$0xff]
    %v87 = vld [vmem:[%s1 + $0x230] sm:$0xff]
    %v88 = vld [vmem:[%s1 + $0x238] sm:$0xff]
    %v89 = vld [vmem:[%s1 + $0x240] sm:$0xff]
    %v90 = vld [vmem:[%s1 + $0x248] sm:$0xff]
    %v91 = vld [vmem:[%s1 + $0x250] sm:$0xff]
    %v92 = vld [vmem:[%s1 + $0x258] sm:$0xff]
    %v93 = vld [vmem:[%s1 + $0x260] sm:$0xff]
    %v94 = vld [vmem:[%s1 + $0x268] sm:$0xff]
    %v95 = vld [vmem:[%s1 + $0x270] sm:$0xff]
    %v96 = vld [vmem:[%s1 + $0x278] sm:$0xff]
    %v97 = vld [vmem:[%s1 + $0x280] sm:$0xff]
    %v98 = vld [vmem:[%s1 + $0x288] sm:$0xff]
    %v99 = vld [vmem:[%s1 + $0x290] sm:$0xff]
    %v100 = vld [vmem:[%s1 + $0x298] sm:$0xff]
    %v101 = vld [vmem:[%s1 + $0x2a0] sm:$0xff]
    %v102 = vld [vmem:[%s1 + $0x2a8] sm:$0xff]
    %v103 = vld [vmem:[%s1 + $0x2b0] sm:$0xff]
    %v104 = vld [vmem:[%s1 + $0x2b8] sm:$0xff]
    %v105 = vld [vmem:[%s1 + $0x2c0] sm:$0xff]
    %v106 = vld [vmem:[%s1 + $0x2c8] sm:$0xff]
    %v107 = vld [vmem:[%s1 + $0x2d0] sm:$0xff]
    %v108 = vld [vmem:[%s1 + $0x2d8] sm:$0xff]
    %v109 = vld [vmem:[%s1 + $0x2e0] sm:$0xff]
    %v110 = vld [vmem:[%s1 + $0x2e8] sm:$0xff]
    %v111 = vld [vmem:[%s1 + $0x2f0] sm:$0xff]
    %v112 = vld [vmem:[%s1 + $0x2f8] sm:$0xff]
    %v113 = vld [vmem:[%s1 + $0x300] sm:$0xff]
    %v114 = vld [vmem:[%s1 + $0x308] sm:$0xff]
    %v115 = vld [vmem:[%s1 + $0x310] sm:$0xff]
    %v116 = vld [vmem:[%s1 + $0x318] sm:$0xff]
    %v117 = vld [vmem:[%s1 + $0x320] sm:$0xff]
    %v118 = vld [vmem:[%s1 + $0x328] sm:$0xff]
    %v119 = vld [vmem:[%s1 + $0x330] sm:$0xff]
    %v120 = vld [vmem:[%s1 + $0x338] sm:$0xff]
    %v121 = vld [vmem:[%s1 + $0x340] sm:$0xff]
    %v122 = vld [vmem:[%s1 + $0x348] sm:$0xff]
    %v123 = vld [vmem:[%s1 + $0x350] sm:$0xff]
    %v124 = vld [vmem:[%s1 + $0x358] sm:$0xff]
    %v125 = vld [vmem:[%s1 + $0x360] sm:$0xff]
    %v126 = vld [vmem:[%s1 + $0x368] sm:$0xff]
    %v127 = vld [vmem:[%s1 + $0x370] sm:$0xff]
    %v128 = vld [vmem:[%s1 + $0x378] sm:$0xff]
    %v129 = vld [vmem:[%s1 + $0x380] sm:$0xff]
    %v130 = vld [vmem:[%s1 + $0x388] sm:$0xff]
    %v131 = vld [vmem:[%s1 + $0x390] sm:$0xff]
    %v132 = vld [vmem:[%s1 + $0x398] sm:$0xff]
    %v133 = vld [vmem:[%s1 + $0x3a0] sm:$0xff]
    %v134 = vld [vmem:[%s1 + $0x3a8] sm:$0xff]
    %v135 = vld [vmem:[%s1 + $0x3b0] sm:$0xff]
    %v136 = vld [vmem:[%s1 + $0x3b8] sm:$0xff]
    %v137 = vld [vmem:[%s1 + $0x3c0] sm:$0xff]
    %v138 = vld [vmem:[%s1 + $0x3c8] sm:$0xff]
    %v139 = vld [vmem:[%s1 + $0x3d0] sm:$0xff]
    %v140 = vld [vmem:[%s1 + $0x3d8] sm:$0xff]
    %v141 = vld [vmem:[%s1 + $0x3e0] sm:$0xff]
    %v142 = vld [vmem:[%s1 + $0x3e8] sm:$0xff]
    %v143 = vld [vmem:[%s1 + $0x3f0] sm:$0xff]
    %v144 = vld [vmem:[%s1 + $0x3f8] sm:$0xff]
    %v145 = vld [vmem:[%s2] sm:$0x1]
    %v147 = vlaneseq
    %v148 = vshrl.u32 %v147, 7
    %v149 = vsub.s32 0, %v148
    %v150 = vrot.slane %v145, %v149
    %v154 = vcombine.high %v15, %v15
    %v156 = vunpack.c.l.s4 1983009808
    %v157 = vunpack.c.0.s8 %v156
    %v158 = vlaneseq
    %v159 = vshrl.u32 %v158, 7
    %v160 = vsub.s32 %v157, %v159
    %v161 = vrot.slane %v15, %v160
    %v163 = vunpack.c.l.s4 1983009808
    %v164 = vunpack.c.0.s8 %v163
    %v165 = vlaneseq
    %v166 = vshrl.u32 %v165, 7
    %v167 = vsub.s32 %v164, %v166
    %v168 = vrot.slane %v154, %v167
    %v169 = vcombine.high %v161, %v161
    %v170 = vcombine.high %v168, %v168
    %v171 = vcombine.high %v16, %v16
    %v173 = vunpack.c.l.s4 1983009808
    %v174 = vunpack.c.0.s8 %v173
    %v175 = vlaneseq
    %v176 = vshrl.u32 %v175, 7
    %v177 = vsub.s32 %v174, %v176
    %v178 = vrot.slane %v16, %v177
    %v180 = vunpack.c.l.s4 1983009808
    %v181 = vunpack.c.0.s8 %v180
    %v182 = vlaneseq
    %v183 = vshrl.u32 %v182, 7
    %v184 = vsub.s32 %v181, %v183
    %v185 = vrot.slane %v171, %v184
    %v186 = vcombine.high %v178, %v178
    %v187 = vcombine.high %v185, %v185
    %196 = vmatprep.subr.mxu0 0.0
    %v197 = vand.u32 %v32, 4294901760
    %198 = vmatpush1.msra.mxu0 %v197
    %199 = vmatprep.subr.mxu0 0.0
    %v200 = vand.u32 %v31, 4294901760
    %201 = vmatpush1.msra.mxu0 %v200
    %202 = vmatprep.subr.mxu0 0.0
    %v203 = vand.u32 %v30, 4294901760
    %204 = vmatpush1.msra.mxu0 %v203
    %205 = vmatprep.subr.mxu0 0.0
    %v206 = vand.u32 %v29, 4294901760
    %207 = vmatpush1.msra.mxu0 %v206
    %208 = vmatprep.subr.mxu0 0.0
    %v209 = vand.u32 %v28, 4294901760
    %210 = vmatpush1.msra.mxu0 %v209
    %211 = vmatprep.subr.mxu0 0.0
    %v212 = vand.u32 %v27, 4294901760
    %213 = vmatpush1.msra.mxu0 %v212
    %214 = vmatprep.subr.mxu0 0.0
    %v215 = vand.u32 %v26, 4294901760
    %216 = vmatpush1.msra.mxu0 %v215
    %217 = vmatprep.subr.mxu0 0.0
    %v218 = vand.u32 %v25, 4294901760
    %219 = vmatpush1.msra.mxu0 %v218
    %220 = vmatprep.subr.mxu0 0.0
    %v221 = vand.u32 %v24, 4294901760
    %222 = vmatpush1.msra.mxu0 %v221
    %223 = vmatprep.subr.mxu0 0.0
    %v224 = vand.u32 %v23, 4294901760
    %225 = vmatpush1.msra.mxu0 %v224
    %226 = vmatprep.subr.mxu0 0.0
    %v227 = vand.u32 %v22, 4294901760
    %228 = vmatpush1.msra.mxu0 %v227
    %229 = vmatprep.subr.mxu0 0.0
    %v230 = vand.u32 %v21, 4294901760
    %231 = vmatpush1.msra.mxu0 %v230
    %232 = vmatprep.subr.mxu0 0.0
    %v233 = vand.u32 %v20, 4294901760
    %234 = vmatpush1.msra.mxu0 %v233
    %235 = vmatprep.subr.mxu0 0.0
    %v236 = vand.u32 %v19, 4294901760
    %237 = vmatpush1.msra.mxu0 %v236
    %238 = vmatprep.subr.mxu0 0.0
    %v239 = vand.u32 %v18, 4294901760
    %240 = vmatpush1.msra.mxu0 %v239
    %241 = vmatprep.subr.mxu0 0.0
    %v242 = vand.u32 %v17, 4294901760
    %243 = vmatpush1.msra.mxu0 %v242
    %244 = vmatprep.subr.mxu0 0.0
    %v245 = vand.u32 %v48, 4294901760
    %246 = vmatpush2.msra.mxu0 %v245
    %247 = vmatprep.subr.mxu0 0.0
    %v248 = vand.u32 %v47, 4294901760
    %249 = vmatpush2.msra.mxu0 %v248
    %250 = vmatprep.subr.mxu0 0.0
    %v251 = vand.u32 %v46, 4294901760
    %252 = vmatpush2.msra.mxu0 %v251
    %253 = vmatprep.subr.mxu0 0.0
    %v254 = vand.u32 %v45, 4294901760
    %255 = vmatpush2.msra.mxu0 %v254
    %256 = vmatprep.subr.mxu0 0.0
    %v257 = vand.u32 %v44, 4294901760
    %258 = vmatpush2.msra.mxu0 %v257
    %259 = vmatprep.subr.mxu0 0.0
    %v260 = vand.u32 %v43, 4294901760
    %261 = vmatpush2.msra.mxu0 %v260
    %262 = vmatprep.subr.mxu0 0.0
    %v263 = vand.u32 %v42, 4294901760
    %264 = vmatpush2.msra.mxu0 %v263
    %265 = vmatprep.subr.mxu0 0.0
    %v266 = vand.u32 %v41, 4294901760
    %267 = vmatpush2.msra.mxu0 %v266
    %268 = vmatprep.subr.mxu0 0.0
    %v269 = vand.u32 %v40, 4294901760
    %270 = vmatpush2.msra.mxu0 %v269
    %271 = vmatprep.subr.mxu0 0.0
    %v272 = vand.u32 %v39, 4294901760
    %273 = vmatpush2.msra.mxu0 %v272
    %274 = vmatprep.subr.mxu0 0.0
    %v275 = vand.u32 %v38, 4294901760
    %276 = vmatpush2.msra.mxu0 %v275
    %277 = vmatprep.subr.mxu0 0.0
    %v278 = vand.u32 %v37, 4294901760
    %279 = vmatpush2.msra.mxu0 %v278
    %280 = vmatprep.subr.mxu0 0.0
    %v281 = vand.u32 %v36, 4294901760
    %282 = vmatpush2.msra.mxu0 %v281
    %283 = vmatprep.subr.mxu0 0.0
    %v284 = vand.u32 %v35, 4294901760
    %285 = vmatpush2.msra.mxu0 %v284
    %286 = vmatprep.subr.mxu0 0.0
    %v287 = vand.u32 %v34, 4294901760
    %288 = vmatpush2.msra.mxu0 %v287
    %289 = vmatprep.subr.mxu0 0.0
    %v290 = vand.u32 %v33, 4294901760
    %291 = vmatpush2.msra.mxu0 %v290
    %v292 = vand.u32 %v169, 4294901760
    %v293 = vsub.f32 %v169, %v292
    %v294 = vand.u32 %v293, 4294901760
    %v295 = vsub.f32 %v293, %v294
    %v296 = vand.u32 %v295, 4294901760
    %297 = vmatprep.mubr.f32.mxu0 %v296
    %v298 = vand.u32 %v161, 4294901760
    %v299 = vsub.f32 %v161, %v298
    %v300 = vand.u32 %v299, 4294901760
    %v301 = vsub.f32 %v299, %v300
    %v302 = vand.u32 %v301, 4294901760
    %303 = vmatmul.mubr.f32.gmra.mxu0 %v302
    %v304 = vpop.f32.mrf.mxu0
    %v305 = vadd.f32 %v150, %v304
    %v306 = vpop.f32.mrf.mxu0
    %307 = vdwg.mxu0
    %308 = vmatprep.subr.mxu0 0.0
    %v309 = vand.u32 %v32, 4294901760
    %v310 = vsub.f32 %v32, %v309
    %v311 = vand.u32 %v310, 4294901760
    %v312 = vsub.f32 %v310, %v311
    %v313 = vand.u32 %v312, 4294901760
    %314 = vmatpush1.msra.mxu0 %v313
    %315 = vmatprep.subr.mxu0 0.0
    %v316 = vand.u32 %v31, 4294901760
    %v317 = vsub.f32 %v31, %v316
    %v318 = vand.u32 %v317, 4294901760
    %v319 = vsub.f32 %v317, %v318
    %v320 = vand.u32 %v319, 4294901760
    %321 = vmatpush1.msra.mxu0 %v320
    %322 = vmatprep.subr.mxu0 0.0
    %v323 = vand.u32 %v30, 4294901760
    %v324 = vsub.f32 %v30, %v323
    %v325 = vand.u32 %v324, 4294901760
    %v326 = vsub.f32 %v324, %v325
    %v327 = vand.u32 %v326, 4294901760
    %328 = vmatpush1.msra.mxu0 %v327
    %329 = vmatprep.subr.mxu0 0.0
    %v330 = vand.u32 %v29, 4294901760
    %v331 = vsub.f32 %v29, %v330
    %v332 = vand.u32 %v331, 4294901760
    %v333 = vsub.f32 %v331, %v332
    %v334 = vand.u32 %v333, 4294901760
    %335 = vmatpush1.msra.mxu0 %v334
    %336 = vmatprep.subr.mxu0 0.0
    %v337 = vand.u32 %v28, 4294901760
    %v338 = vsub.f32 %v28, %v337
    %v339 = vand.u32 %v338, 4294901760
    %v340 = vsub.f32 %v338, %v339
    %v341 = vand.u32 %v340, 4294901760
    %342 = vmatpush1.msra.mxu0 %v341
    %343 = vmatprep.subr.mxu0 0.0
    %v344 = vand.u32 %v27, 4294901760
    %v345 = vsub.f32 %v27, %v344
    %v346 = vand.u32 %v345, 4294901760
    %v347 = vsub.f32 %v345, %v346
    %v348 = vand.u32 %v347, 4294901760
    %349 = vmatpush1.msra.mxu0 %v348
    %350 = vmatprep.subr.mxu0 0.0
    %v351 = vand.u32 %v26, 4294901760
    %v352 = vsub.f32 %v26, %v351
    %v353 = vand.u32 %v352, 4294901760
    %v354 = vsub.f32 %v352, %v353
    %v355 = vand.u32 %v354, 4294901760
    %356 = vmatpush1.msra.mxu0 %v355
    %357 = vmatprep.subr.mxu0 0.0
    %v358 = vand.u32 %v25, 4294901760
    %v359 = vsub.f32 %v25, %v358
    %v360 = vand.u32 %v359, 4294901760
    %v361 = vsub.f32 %v359, %v360
    %v362 = vand.u32 %v361, 4294901760
    %363 = vmatpush1.msra.mxu0 %v362
    %364 = vmatprep.subr.mxu0 0.0
    %v365 = vand.u32 %v24, 4294901760
    %v366 = vsub.f32 %v24, %v365
    %v367 = vand.u32 %v366, 4294901760
    %v368 = vsub.f32 %v366, %v367
    %v369 = vand.u32 %v368, 4294901760
    %370 = vmatpush1.msra.mxu0 %v369
    %371 = vmatprep.subr.mxu0 0.0
    %v372 = vand.u32 %v23, 4294901760
    %v373 = vsub.f32 %v23, %v372
    %v374 = vand.u32 %v373, 4294901760
    %v375 = vsub.f32 %v373, %v374
    %v376 = vand.u32 %v375, 4294901760
    %377 = vmatpush1.msra.mxu0 %v376
    %378 = vmatprep.subr.mxu0 0.0
    %v379 = vand.u32 %v22, 4294901760
    %v380 = vsub.f32 %v22, %v379
    %v381 = vand.u32 %v380, 4294901760
    %v382 = vsub.f32 %v380, %v381
    %v383 = vand.u32 %v382, 4294901760
    %384 = vmatpush1.msra.mxu0 %v383
    %385 = vmatprep.subr.mxu0 0.0
    %v386 = vand.u32 %v21, 4294901760
    %v387 = vsub.f32 %v21, %v386
    %v388 = vand.u32 %v387, 4294901760
    %v389 = vsub.f32 %v387, %v388
    %v390 = vand.u32 %v389, 4294901760
    %391 = vmatpush1.msra.mxu0 %v390
    %392 = vmatprep.subr.mxu0 0.0
    %v393 = vand.u32 %v20, 4294901760
    %v394 = vsub.f32 %v20, %v393
    %v395 = vand.u32 %v394, 4294901760
    %v396 = vsub.f32 %v394, %v395
    %v397 = vand.u32 %v396, 4294901760
    %398 = vmatpush1.msra.mxu0 %v397
    %399 = vmatprep.subr.mxu0 0.0
    %v400 = vand.u32 %v19, 4294901760
    %v401 = vsub.f32 %v19, %v400
    %v402 = vand.u32 %v401, 4294901760
    %v403 = vsub.f32 %v401, %v402
    %v404 = vand.u32 %v403, 4294901760
    %405 = vmatpush1.msra.mxu0 %v404
    %406 = vmatprep.subr.mxu0 0.0
    %v407 = vand.u32 %v18, 4294901760
    %v408 = vsub.f32 %v18, %v407
    %v409 = vand.u32 %v408, 4294901760
    %v410 = vsub.f32 %v408, %v409
    %v411 = vand.u32 %v410, 4294901760
    %412 = vmatpush1.msra.mxu0 %v411
    %413 = vmatprep.subr.mxu0 0.0
    %v414 = vand.u32 %v17, 4294901760
    %v415 = vsub.f32 %v17, %v414
    %v416 = vand.u32 %v415, 4294901760
    %v417 = vsub.f32 %v415, %v416
    %v418 = vand.u32 %v417, 4294901760
    %419 = vmatpush1.msra.mxu0 %v418
    %420 = vmatprep.subr.mxu0 0.0
    %v421 = vand.u32 %v48, 4294901760
    %v422 = vsub.f32 %v48, %v421
    %v423 = vand.u32 %v422, 4294901760
    %v424 = vsub.f32 %v422, %v423
    %v425 = vand.u32 %v424, 4294901760
    %426 = vmatpush2.msra.mxu0 %v425
    %427 = vmatprep.subr.mxu0 0.0
    %v428 = vand.u32 %v47, 4294901760
    %v429 = vsub.f32 %v47, %v428
    %v430 = vand.u32 %v429, 4294901760
    %v431 = vsub.f32 %v429, %v430
    %v432 = vand.u32 %v431, 4294901760
    %433 = vmatpush2.msra.mxu0 %v432
    %434 = vmatprep.subr.mxu0 0.0
    %v435 = vand.u32 %v46, 4294901760
    %v436 = vsub.f32 %v46, %v435
    %v437 = vand.u32 %v436, 4294901760
    %v438 = vsub.f32 %v436, %v437
    %v439 = vand.u32 %v438, 4294901760
    %440 = vmatpush2.msra.mxu0 %v439
    %441 = vmatprep.subr.mxu0 0.0
    %v442 = vand.u32 %v45, 4294901760
    %v443 = vsub.f32 %v45, %v442
    %v444 = vand.u32 %v443, 4294901760
    %v445 = vsub.f32 %v443, %v444
    %v446 = vand.u32 %v445, 4294901760
    %447 = vmatpush2.msra.mxu0 %v446
    %448 = vmatprep.subr.mxu0 0.0
    %v449 = vand.u32 %v44, 4294901760
    %v450 = vsub.f32 %v44, %v449
    %v451 = vand.u32 %v450, 4294901760
    %v452 = vsub.f32 %v450, %v451
    %v453 = vand.u32 %v452, 4294901760
    %454 = vmatpush2.msra.mxu0 %v453
    %455 = vmatprep.subr.mxu0 0.0
    %v456 = vand.u32 %v43, 4294901760
    %v457 = vsub.f32 %v43, %v456
    %v458 = vand.u32 %v457, 4294901760
    %v459 = vsub.f32 %v457, %v458
    %v460 = vand.u32 %v459, 4294901760
    %461 = vmatpush2.msra.mxu0 %v460
    %462 = vmatprep.subr.mxu0 0.0
    %v463 = vand.u32 %v42, 4294901760
    %v464 = vsub.f32 %v42, %v463
    %v465 = vand.u32 %v464, 4294901760
    %v466 = vsub.f32 %v464, %v465
    %v467 = vand.u32 %v466, 4294901760
    %468 = vmatpush2.msra.mxu0 %v467
    %469 = vmatprep.subr.mxu0 0.0
    %v470 = vand.u32 %v41, 4294901760
    %v471 = vsub.f32 %v41, %v470
    %v472 = vand.u32 %v471, 4294901760
    %v473 = vsub.f32 %v471, %v472
    %v474 = vand.u32 %v473, 4294901760
    %475 = vmatpush2.msra.mxu0 %v474
    %476 = vmatprep.subr.mxu0 0.0
    %v477 = vand.u32 %v40, 4294901760
    %v478 = vsub.f32 %v40, %v477
    %v479 = vand.u32 %v478, 4294901760
    %v480 = vsub.f32 %v478, %v479
    %v481 = vand.u32 %v480, 4294901760
    %482 = vmatpush2.msra.mxu0 %v481
    %483 = vmatprep.subr.mxu0 0.0
    %v484 = vand.u32 %v39, 4294901760
    %v485 = vsub.f32 %v39, %v484
    %v486 = vand.u32 %v485, 4294901760
    %v487 = vsub.f32 %v485, %v486
    %v488 = vand.u32 %v487, 4294901760
    %489 = vmatpush2.msra.mxu0 %v488
    %490 = vmatprep.subr.mxu0 0.0
    %v491 = vand.u32 %v38, 4294901760
    %v492 = vsub.f32 %v38, %v491
    %v493 = vand.u32 %v492, 4294901760
    %v494 = vsub.f32 %v492, %v493
    %v495 = vand.u32 %v494, 4294901760
    %496 = vmatpush2.msra.mxu0 %v495
    %497 = vmatprep.subr.mxu0 0.0
    %v498 = vand.u32 %v37, 4294901760
    %v499 = vsub.f32 %v37, %v498
    %v500 = vand.u32 %v499, 4294901760
    %v501 = vsub.f32 %v499, %v500
    %v502 = vand.u32 %v501, 4294901760
    %503 = vmatpush2.msra.mxu0 %v502
    %504 = vmatprep.subr.mxu0 0.0
    %v505 = vand.u32 %v36, 4294901760
    %v506 = vsub.f32 %v36, %v505
    %v507 = vand.u32 %v506, 4294901760
    %v508 = vsub.f32 %v506, %v507
    %v509 = vand.u32 %v508, 4294901760
    %510 = vmatpush2.msra.mxu0 %v509
    %511 = vmatprep.subr.mxu0 0.0
    %v512 = vand.u32 %v35, 4294901760
    %v513 = vsub.f32 %v35, %v512
    %v514 = vand.u32 %v513, 4294901760
    %v515 = vsub.f32 %v513, %v514
    %v516 = vand.u32 %v515, 4294901760
    %517 = vmatpush2.msra.mxu0 %v516
    %518 = vmatprep.subr.mxu0 0.0
    %v519 = vand.u32 %v34, 4294901760
    %v520 = vsub.f32 %v34, %v519
    %v521 = vand.u32 %v520, 4294901760
    %v522 = vsub.f32 %v520, %v521
    %v523 = vand.u32 %v522, 4294901760
    %524 = vmatpush2.msra.mxu0 %v523
    %525 = vmatprep.subr.mxu0 0.0
    %v526 = vand.u32 %v33, 4294901760
    %v527 = vsub.f32 %v33, %v526
    %v528 = vand.u32 %v527, 4294901760
    %v529 = vsub.f32 %v527, %v528
    %v530 = vand.u32 %v529, 4294901760
    %531 = vmatpush2.msra.mxu0 %v530
    %v532 = vand.u32 %v169, 4294901760
    %533 = vmatprep.mubr.f32.mxu0 %v532
    %v534 = vand.u32 %v161, 4294901760
    %535 = vmatmul.mubr.f32.gmra.mxu0 %v534
    %v536 = vpop.f32.mrf.mxu0
    %v537 = vadd.f32 %v305, %v536
    %v538 = vpop.f32.mrf.mxu0
    %539 = vdwg.mxu0
    %540 = vmatprep.subr.mxu0 0.0
    %v541 = vand.u32 %v32, 4294901760
    %v542 = vsub.f32 %v32, %v541
    %543 = vmatpush1.msra.mxu0 %v542
    %544 = vmatprep.subr.mxu0 0.0
    %v545 = vand.u32 %v31, 4294901760
    %v546 = vsub.f32 %v31, %v545
    %547 = vmatpush1.msra.mxu0 %v546
    %548 = vmatprep.subr.mxu0 0.0
    %v549 = vand.u32 %v30, 4294901760
    %v550 = vsub.f32 %v30, %v549
    %551 = vmatpush1.msra.mxu0 %v550
    %552 = vmatprep.subr.mxu0 0.0
    %v553 = vand.u32 %v29, 4294901760
    %v554 = vsub.f32 %v29, %v553
    %555 = vmatpush1.msra.mxu0 %v554
    %556 = vmatprep.subr.mxu0 0.0
    %v557 = vand.u32 %v28, 4294901760
    %v558 = vsub.f32 %v28, %v557
    %559 = vmatpush1.msra.mxu0 %v558
    %560 = vmatprep.subr.mxu0 0.0
    %v561 = vand.u32 %v27, 4294901760
    %v562 = vsub.f32 %v27, %v561
    %563 = vmatpush1.msra.mxu0 %v562
    %564 = vmatprep.subr.mxu0 0.0
    %v565 = vand.u32 %v26, 4294901760
    %v566 = vsub.f32 %v26, %v565
    %567 = vmatpush1.msra.mxu0 %v566
    %568 = vmatprep.subr.mxu0 0.0
    %v569 = vand.u32 %v25, 4294901760
    %v570 = vsub.f32 %v25, %v569
    %571 = vmatpush1.msra.mxu0 %v570
    %572 = vmatprep.subr.mxu0 0.0
    %v573 = vand.u32 %v24, 4294901760
    %v574 = vsub.f32 %v24, %v573
    %575 = vmatpush1.msra.mxu0 %v574
    %576 = vmatprep.subr.mxu0 0.0
    %v577 = vand.u32 %v23, 4294901760
    %v578 = vsub.f32 %v23, %v577
    %579 = vmatpush1.msra.mxu0 %v578
    %580 = vmatprep.subr.mxu0 0.0
    %v581 = vand.u32 %v22, 4294901760
    %v582 = vsub.f32 %v22, %v581
    %583 = vmatpush1.msra.mxu0 %v582
    %584 = vmatprep.subr.mxu0 0.0
    %v585 = vand.u32 %v21, 4294901760
    %v586 = vsub.f32 %v21, %v585
    %587 = vmatpush1.msra.mxu0 %v586
    %588 = vmatprep.subr.mxu0 0.0
    %v589 = vand.u32 %v20, 4294901760
    %v590 = vsub.f32 %v20, %v589
    %591 = vmatpush1.msra.mxu0 %v590
    %592 = vmatprep.subr.mxu0 0.0
    %v593 = vand.u32 %v19, 4294901760
    %v594 = vsub.f32 %v19, %v593
    %595 = vmatpush1.msra.mxu0 %v594
    %596 = vmatprep.subr.mxu0 0.0
    %v597 = vand.u32 %v18, 4294901760
    %v598 = vsub.f32 %v18, %v597
    %599 = vmatpush1.msra.mxu0 %v598
    %600 = vmatprep.subr.mxu0 0.0
    %v601 = vand.u32 %v17, 4294901760
    %v602 = vsub.f32 %v17, %v601
    %603 = vmatpush1.msra.mxu0 %v602
    %604 = vmatprep.subr.mxu0 0.0
    %v605 = vand.u32 %v48, 4294901760
    %v606 = vsub.f32 %v48, %v605
    %607 = vmatpush2.msra.mxu0 %v606
    %608 = vmatprep.subr.mxu0 0.0
    %v609 = vand.u32 %v47, 4294901760
    %v610 = vsub.f32 %v47, %v609
    %611 = vmatpush2.msra.mxu0 %v610
    %612 = vmatprep.subr.mxu0 0.0
    %v613 = vand.u32 %v46, 4294901760
    %v614 = vsub.f32 %v46, %v613
    %615 = vmatpush2.msra.mxu0 %v614
    %616 = vmatprep.subr.mxu0 0.0
    %v617 = vand.u32 %v45, 4294901760
    %v618 = vsub.f32 %v45, %v617
    %619 = vmatpush2.msra.mxu0 %v618
    %620 = vmatprep.subr.mxu0 0.0
    %v621 = vand.u32 %v44, 4294901760
    %v622 = vsub.f32 %v44, %v621
    %623 = vmatpush2.msra.mxu0 %v622
    %624 = vmatprep.subr.mxu0 0.0
    %v625 = vand.u32 %v43, 4294901760
    %v626 = vsub.f32 %v43, %v625
    %627 = vmatpush2.msra.mxu0 %v626
    %628 = vmatprep.subr.mxu0 0.0
    %v629 = vand.u32 %v42, 4294901760
    %v630 = vsub.f32 %v42, %v629
    %631 = vmatpush2.msra.mxu0 %v630
    %632 = vmatprep.subr.mxu0 0.0
    %v633 = vand.u32 %v41, 4294901760
    %v634 = vsub.f32 %v41, %v633
    %635 = vmatpush2.msra.mxu0 %v634
    %636 = vmatprep.subr.mxu0 0.0
    %v637 = vand.u32 %v40, 4294901760
    %v638 = vsub.f32 %v40, %v637
    %639 = vmatpush2.msra.mxu0 %v638
    %640 = vmatprep.subr.mxu0 0.0
    %v641 = vand.u32 %v39, 4294901760
    %v642 = vsub.f32 %v39, %v641
    %643 = vmatpush2.msra.mxu0 %v642
    %644 = vmatprep.subr.mxu0 0.0
    %v645 = vand.u32 %v38, 4294901760
    %v646 = vsub.f32 %v38, %v645
    %647 = vmatpush2.msra.mxu0 %v646
    %648 = vmatprep.subr.mxu0 0.0
    %v649 = vand.u32 %v37, 4294901760
    %v650 = vsub.f32 %v37, %v649
    %651 = vmatpush2.msra.mxu0 %v650
    %652 = vmatprep.subr.mxu0 0.0
    %v653 = vand.u32 %v36, 4294901760
    %v654 = vsub.f32 %v36, %v653
    %655 = vmatpush2.msra.mxu0 %v654
    %656 = vmatprep.subr.mxu0 0.0
    %v657 = vand.u32 %v35, 4294901760
    %v658 = vsub.f32 %v35, %v657
    %659 = vmatpush2.msra.mxu0 %v658
    %660 = vmatprep.subr.mxu0 0.0
    %v661 = vand.u32 %v34, 4294901760
    %v662 = vsub.f32 %v34, %v661
    %663 = vmatpush2.msra.mxu0 %v662
    %664 = vmatprep.subr.mxu0 0.0
    %v665 = vand.u32 %v33, 4294901760
    %v666 = vsub.f32 %v33, %v665
    %667 = vmatpush2.msra.mxu0 %v666
    %v668 = vand.u32 %v169, 4294901760
    %v669 = vsub.f32 %v169, %v668
    %670 = vmatprep.mubr.f32.mxu0 %v669
    %v671 = vand.u32 %v161, 4294901760
    %v672 = vsub.f32 %v161, %v671
    %673 = vmatmul.mubr.f32.gmra.mxu0 %v672
    %v674 = vpop.f32.mrf.mxu0
    %v675 = vadd.f32 %v537, %v674
    %v676 = vpop.f32.mrf.mxu0
    %677 = vdwg.mxu0
    %678 = vmatprep.subr.mxu0 0.0
    %v679 = vand.u32 %v32, 4294901760
    %680 = vmatpush1.msra.mxu0 %v679
    %681 = vmatprep.subr.mxu0 0.0
    %v682 = vand.u32 %v31, 4294901760
    %683 = vmatpush1.msra.mxu0 %v682
    %684 = vmatprep.subr.mxu0 0.0
    %v685 = vand.u32 %v30, 4294901760
    %686 = vmatpush1.msra.mxu0 %v685
    %687 = vmatprep.subr.mxu0 0.0
    %v688 = vand.u32 %v29, 4294901760
    %689 = vmatpush1.msra.mxu0 %v688
    %690 = vmatprep.subr.mxu0 0.0
    %v691 = vand.u32 %v28, 4294901760
    %692 = vmatpush1.msra.mxu0 %v691
    %693 = vmatprep.subr.mxu0 0.0
    %v694 = vand.u32 %v27, 4294901760
    %695 = vmatpush1.msra.mxu0 %v694
    %696 = vmatprep.subr.mxu0 0.0
    %v697 = vand.u32 %v26, 4294901760
    %698 = vmatpush1.msra.mxu0 %v697
    %699 = vmatprep.subr.mxu0 0.0
    %v700 = vand.u32 %v25, 4294901760
    %701 = vmatpush1.msra.mxu0 %v700
    %702 = vmatprep.subr.mxu0 0.0
    %v703 = vand.u32 %v24, 4294901760
    %704 = vmatpush1.msra.mxu0 %v703
    %705 = vmatprep.subr.mxu0 0.0
    %v706 = vand.u32 %v23, 4294901760
    %707 = vmatpush1.msra.mxu0 %v706
    %708 = vmatprep.subr.mxu0 0.0
    %v709 = vand.u32 %v22, 4294901760
    %710 = vmatpush1.msra.mxu0 %v709
    %711 = vmatprep.subr.mxu0 0.0
    %v712 = vand.u32 %v21, 4294901760
    %713 = vmatpush1.msra.mxu0 %v712
    %714 = vmatprep.subr.mxu0 0.0
    %v715 = vand.u32 %v20, 4294901760
    %716 = vmatpush1.msra.mxu0 %v715
    %717 = vmatprep.subr.mxu0 0.0
    %v718 = vand.u32 %v19, 4294901760
    %719 = vmatpush1.msra.mxu0 %v718
    %720 = vmatprep.subr.mxu0 0.0
    %v721 = vand.u32 %v18, 4294901760
    %722 = vmatpush1.msra.mxu0 %v721
    %723 = vmatprep.subr.mxu0 0.0
    %v724 = vand.u32 %v17, 4294901760
    %725 = vmatpush1.msra.mxu0 %v724
    %726 = vmatprep.subr.mxu0 0.0
    %v727 = vand.u32 %v48, 4294901760
    %728 = vmatpush2.msra.mxu0 %v727
    %729 = vmatprep.subr.mxu0 0.0
    %v730 = vand.u32 %v47, 4294901760
    %731 = vmatpush2.msra.mxu0 %v730
    %732 = vmatprep.subr.mxu0 0.0
    %v733 = vand.u32 %v46, 4294901760
    %734 = vmatpush2.msra.mxu0 %v733
    %735 = vmatprep.subr.mxu0 0.0
    %v736 = vand.u32 %v45, 4294901760
    %737 = vmatpush2.msra.mxu0 %v736
    %738 = vmatprep.subr.mxu0 0.0
    %v739 = vand.u32 %v44, 4294901760
    %740 = vmatpush2.msra.mxu0 %v739
    %741 = vmatprep.subr.mxu0 0.0
    %v742 = vand.u32 %v43, 4294901760
    %743 = vmatpush2.msra.mxu0 %v742
    %744 = vmatprep.subr.mxu0 0.0
    %v745 = vand.u32 %v42, 4294901760
    %746 = vmatpush2.msra.mxu0 %v745
    %747 = vmatprep.subr.mxu0 0.0
    %v748 = vand.u32 %v41, 4294901760
    %749 = vmatpush2.msra.mxu0 %v748
    %750 = vmatprep.subr.mxu0 0.0
    %v751 = vand.u32 %v40, 4294901760
    %752 = vmatpush2.msra.mxu0 %v751
    %753 = vmatprep.subr.mxu0 0.0
    %v754 = vand.u32 %v39, 4294901760
    %755 = vmatpush2.msra.mxu0 %v754
    %756 = vmatprep.subr.mxu0 0.0
    %v757 = vand.u32 %v38, 4294901760
    %758 = vmatpush2.msra.mxu0 %v757
    %759 = vmatprep.subr.mxu0 0.0
    %v760 = vand.u32 %v37, 4294901760
    %761 = vmatpush2.msra.mxu0 %v760
    %762 = vmatprep.subr.mxu0 0.0
    %v763 = vand.u32 %v36, 4294901760
    %764 = vmatpush2.msra.mxu0 %v763
    %765 = vmatprep.subr.mxu0 0.0
    %v766 = vand.u32 %v35, 4294901760
    %767 = vmatpush2.msra.mxu0 %v766
    %768 = vmatprep.subr.mxu0 0.0
    %v769 = vand.u32 %v34, 4294901760
    %770 = vmatpush2.msra.mxu0 %v769
    %771 = vmatprep.subr.mxu0 0.0
    %v772 = vand.u32 %v33, 4294901760
    %773 = vmatpush2.msra.mxu0 %v772
    %v774 = vand.u32 %v169, 4294901760
    %v775 = vsub.f32 %v169, %v774
    %v776 = vand.u32 %v775, 4294901760
    %777 = vmatprep.mubr.f32.mxu0 %v776
    %v778 = vand.u32 %v161, 4294901760
    %v779 = vsub.f32 %v161, %v778
    %v780 = vand.u32 %v779, 4294901760
    %781 = vmatmul.mubr.f32.gmra.mxu0 %v780
    %v782 = vpop.f32.mrf.mxu0
    %v783 = vadd.f32 %v675, %v782
    %v784 = vpop.f32.mrf.mxu0
    %785 = vdwg.mxu0
    %786 = vmatprep.subr.mxu0 0.0
    %v787 = vand.u32 %v32, 4294901760
    %v788 = vsub.f32 %v32, %v787
    %v789 = vand.u32 %v788, 4294901760
    %790 = vmatpush1.msra.mxu0 %v789
    %791 = vmatprep.subr.mxu0 0.0
    %v792 = vand.u32 %v31, 4294901760
    %v793 = vsub.f32 %v31, %v792
    %v794 = vand.u32 %v793, 4294901760
    %795 = vmatpush1.msra.mxu0 %v794
    %796 = vmatprep.subr.mxu0 0.0
    %v797 = vand.u32 %v30, 4294901760
    %v798 = vsub.f32 %v30, %v797
    %v799 = vand.u32 %v798, 4294901760
    %800 = vmatpush1.msra.mxu0 %v799
    %801 = vmatprep.subr.mxu0 0.0
    %v802 = vand.u32 %v29, 4294901760
    %v803 = vsub.f32 %v29, %v802
    %v804 = vand.u32 %v803, 4294901760
    %805 = vmatpush1.msra.mxu0 %v804
    %806 = vmatprep.subr.mxu0 0.0
    %v807 = vand.u32 %v28, 4294901760
    %v808 = vsub.f32 %v28, %v807
    %v809 = vand.u32 %v808, 4294901760
    %810 = vmatpush1.msra.mxu0 %v809
    %811 = vmatprep.subr.mxu0 0.0
    %v812 = vand.u32 %v27, 4294901760
    %v813 = vsub.f32 %v27, %v812
    %v814 = vand.u32 %v813, 4294901760
    %815 = vmatpush1.msra.mxu0 %v814
    %816 = vmatprep.subr.mxu0 0.0
    %v817 = vand.u32 %v26, 4294901760
    %v818 = vsub.f32 %v26, %v817
    %v819 = vand.u32 %v818, 4294901760
    %820 = vmatpush1.msra.mxu0 %v819
    %821 = vmatprep.subr.mxu0 0.0
    %v822 = vand.u32 %v25, 4294901760
    %v823 = vsub.f32 %v25, %v822
    %v824 = vand.u32 %v823, 4294901760
    %825 = vmatpush1.msra.mxu0 %v824
    %826 = vmatprep.subr.mxu0 0.0
    %v827 = vand.u32 %v24, 4294901760
    %v828 = vsub.f32 %v24, %v827
    %v829 = vand.u32 %v828, 4294901760
    %830 = vmatpush1.msra.mxu0 %v829
    %831 = vmatprep.subr.mxu0 0.0
    %v832 = vand.u32 %v23, 4294901760
    %v833 = vsub.f32 %v23, %v832
    %v834 = vand.u32 %v833, 4294901760
    %835 = vmatpush1.msra.mxu0 %v834
    %836 = vmatprep.subr.mxu0 0.0
    %v837 = vand.u32 %v22, 4294901760
    %v838 = vsub.f32 %v22, %v837
    %v839 = vand.u32 %v838, 4294901760
    %840 = vmatpush1.msra.mxu0 %v839
    %841 = vmatprep.subr.mxu0 0.0
    %v842 = vand.u32 %v21, 4294901760
    %v843 = vsub.f32 %v21, %v842
    %v844 = vand.u32 %v843, 4294901760
    %845 = vmatpush1.msra.mxu0 %v844
    %846 = vmatprep.subr.mxu0 0.0
    %v847 = vand.u32 %v20, 4294901760
    %v848 = vsub.f32 %v20, %v847
    %v849 = vand.u32 %v848, 4294901760
    %850 = vmatpush1.msra.mxu0 %v849
    %851 = vmatprep.subr.mxu0 0.0
    %v852 = vand.u32 %v19, 4294901760
    %v853 = vsub.f32 %v19, %v852
    %v854 = vand.u32 %v853, 4294901760
    %855 = vmatpush1.msra.mxu0 %v854
    %856 = vmatprep.subr.mxu0 0.0
    %v857 = vand.u32 %v18, 4294901760
    %v858 = vsub.f32 %v18, %v857
    %v859 = vand.u32 %v858, 4294901760
    %860 = vmatpush1.msra.mxu0 %v859
    %861 = vmatprep.subr.mxu0 0.0
    %v862 = vand.u32 %v17, 4294901760
    %v863 = vsub.f32 %v17, %v862
    %v864 = vand.u32 %v863, 4294901760
    %865 = vmatpush1.msra.mxu0 %v864
    %866 = vmatprep.subr.mxu0 0.0
    %v867 = vand.u32 %v48, 4294901760
    %v868 = vsub.f32 %v48, %v867
    %v869 = vand.u32 %v868, 4294901760
    %870 = vmatpush2.msra.mxu0 %v869
    %871 = vmatprep.subr.mxu0 0.0
    %v872 = vand.u32 %v47, 4294901760
    %v873 = vsub.f32 %v47, %v872
    %v874 = vand.u32 %v873, 4294901760
    %875 = vmatpush2.msra.mxu0 %v874
    %876 = vmatprep.subr.mxu0 0.0
    %v877 = vand.u32 %v46, 4294901760
    %v878 = vsub.f32 %v46, %v877
    %v879 = vand.u32 %v878, 4294901760
    %880 = vmatpush2.msra.mxu0 %v879
    %881 = vmatprep.subr.mxu0 0.0
    %v882 = vand.u32 %v45, 4294901760
    %v883 = vsub.f32 %v45, %v882
    %v884 = vand.u32 %v883, 4294901760
    %885 = vmatpush2.msra.mxu0 %v884
    %886 = vmatprep.subr.mxu0 0.0
    %v887 = vand.u32 %v44, 4294901760
    %v888 = vsub.f32 %v44, %v887
    %v889 = vand.u32 %v888, 4294901760
    %890 = vmatpush2.msra.mxu0 %v889
    %891 = vmatprep.subr.mxu0 0.0
    %v892 = vand.u32 %v43, 4294901760
    %v893 = vsub.f32 %v43, %v892
    %v894 = vand.u32 %v893, 4294901760
    %895 = vmatpush2.msra.mxu0 %v894
    %896 = vmatprep.subr.mxu0 0.0
    %v897 = vand.u32 %v42, 4294901760
    %v898 = vsub.f32 %v42, %v897
    %v899 = vand.u32 %v898, 4294901760
    %900 = vmatpush2.msra.mxu0 %v899
    %901 = vmatprep.subr.mxu0 0.0
    %v902 = vand.u32 %v41, 4294901760
    %v903 = vsub.f32 %v41, %v902
    %v904 = vand.u32 %v903, 4294901760
    %905 = vmatpush2.msra.mxu0 %v904
    %906 = vmatprep.subr.mxu0 0.0
    %v907 = vand.u32 %v40, 4294901760
    %v908 = vsub.f32 %v40, %v907
    %v909 = vand.u32 %v908, 4294901760
    %910 = vmatpush2.msra.mxu0 %v909
    %911 = vmatprep.subr.mxu0 0.0
    %v912 = vand.u32 %v39, 4294901760
    %v913 = vsub.f32 %v39, %v912
    %v914 = vand.u32 %v913, 4294901760
    %915 = vmatpush2.msra.mxu0 %v914
    %916 = vmatprep.subr.mxu0 0.0
    %v917 = vand.u32 %v38, 4294901760
    %v918 = vsub.f32 %v38, %v917
    %v919 = vand.u32 %v918, 4294901760
    %920 = vmatpush2.msra.mxu0 %v919
    %921 = vmatprep.subr.mxu0 0.0
    %v922 = vand.u32 %v37, 4294901760
    %v923 = vsub.f32 %v37, %v922
    %v924 = vand.u32 %v923, 4294901760
    %925 = vmatpush2.msra.mxu0 %v924
    %926 = vmatprep.subr.mxu0 0.0
    %v927 = vand.u32 %v36, 4294901760
    %v928 = vsub.f32 %v36, %v927
    %v929 = vand.u32 %v928, 4294901760
    %930 = vmatpush2.msra.mxu0 %v929
    %931 = vmatprep.subr.mxu0 0.0
    %v932 = vand.u32 %v35, 4294901760
    %v933 = vsub.f32 %v35, %v932
    %v934 = vand.u32 %v933, 4294901760
    %935 = vmatpush2.msra.mxu0 %v934
    %936 = vmatprep.subr.mxu0 0.0
    %v937 = vand.u32 %v34, 4294901760
    %v938 = vsub.f32 %v34, %v937
    %v939 = vand.u32 %v938, 4294901760
    %940 = vmatpush2.msra.mxu0 %v939
    %941 = vmatprep.subr.mxu0 0.0
    %v942 = vand.u32 %v33, 4294901760
    %v943 = vsub.f32 %v33, %v942
    %v944 = vand.u32 %v943, 4294901760
    %945 = vmatpush2.msra.mxu0 %v944
    %v946 = vand.u32 %v169, 4294901760
    %947 = vmatprep.mubr.f32.mxu0 %v946
    %v948 = vand.u32 %v161, 4294901760
    %949 = vmatmul.mubr.f32.gmra.mxu0 %v948
    %v950 = vpop.f32.mrf.mxu0
    %v951 = vadd.f32 %v783, %v950
    %v952 = vpop.f32.mrf.mxu0
    %953 = vdwg.mxu0
    %954 = vmatprep.subr.mxu0 0.0
    %v955 = vand.u32 %v32, 4294901760
    %956 = vmatpush1.msra.mxu0 %v955
    %957 = vmatprep.subr.mxu0 0.0
    %v958 = vand.u32 %v31, 4294901760
    %959 = vmatpush1.msra.mxu0 %v958
    %960 = vmatprep.subr.mxu0 0.0
    %v961 = vand.u32 %v30, 4294901760
    %962 = vmatpush1.msra.mxu0 %v961
    %963 = vmatprep.subr.mxu0 0.0
    %v964 = vand.u32 %v29, 4294901760
    %965 = vmatpush1.msra.mxu0 %v964
    %966 = vmatprep.subr.mxu0 0.0
    %v967 = vand.u32 %v28, 4294901760
    %968 = vmatpush1.msra.mxu0 %v967
    %969 = vmatprep.subr.mxu0 0.0
    %v970 = vand.u32 %v27, 4294901760
    %971 = vmatpush1.msra.mxu0 %v970
    %972 = vmatprep.subr.mxu0 0.0
    %v973 = vand.u32 %v26, 4294901760
    %974 = vmatpush1.msra.mxu0 %v973
    %975 = vmatprep.subr.mxu0 0.0
    %v976 = vand.u32 %v25, 4294901760
    %977 = vmatpush1.msra.mxu0 %v976
    %978 = vmatprep.subr.mxu0 0.0
    %v979 = vand.u32 %v24, 4294901760
    %980 = vmatpush1.msra.mxu0 %v979
    %981 = vmatprep.subr.mxu0 0.0
    %v982 = vand.u32 %v23, 4294901760
    %983 = vmatpush1.msra.mxu0 %v982
    %984 = vmatprep.subr.mxu0 0.0
    %v985 = vand.u32 %v22, 4294901760
    %986 = vmatpush1.msra.mxu0 %v985
    %987 = vmatprep.subr.mxu0 0.0
    %v988 = vand.u32 %v21, 4294901760
    %989 = vmatpush1.msra.mxu0 %v988
    %990 = vmatprep.subr.mxu0 0.0
    %v991 = vand.u32 %v20, 4294901760
    %992 = vmatpush1.msra.mxu0 %v991
    %993 = vmatprep.subr.mxu0 0.0
    %v994 = vand.u32 %v19, 4294901760
    %995 = vmatpush1.msra.mxu0 %v994
    %996 = vmatprep.subr.mxu0 0.0
    %v997 = vand.u32 %v18, 4294901760
    %998 = vmatpush1.msra.mxu0 %v997
    %999 = vmatprep.subr.mxu0 0.0
    %v1000 = vand.u32 %v17, 4294901760
    %1001 = vmatpush1.msra.mxu0 %v1000
    %1002 = vmatprep.subr.mxu0 0.0
    %v1003 = vand.u32 %v48, 4294901760
    %1004 = vmatpush2.msra.mxu0 %v1003
    %1005 = vmatprep.subr.mxu0 0.0
    %v1006 = vand.u32 %v47, 4294901760
    %1007 = vmatpush2.msra.mxu0 %v1006
    %1008 = vmatprep.subr.mxu0 0.0
    %v1009 = vand.u32 %v46, 4294901760
    %1010 = vmatpush2.msra.mxu0 %v1009
    %1011 = vmatprep.subr.mxu0 0.0
    %v1012 = vand.u32 %v45, 4294901760
    %1013 = vmatpush2.msra.mxu0 %v1012
    %1014 = vmatprep.subr.mxu0 0.0
    %v1015 = vand.u32 %v44, 4294901760
    %1016 = vmatpush2.msra.mxu0 %v1015
    %1017 = vmatprep.subr.mxu0 0.0
    %v1018 = vand.u32 %v43, 4294901760
    %1019 = vmatpush2.msra.mxu0 %v1018
    %1020 = vmatprep.subr.mxu0 0.0
    %v1021 = vand.u32 %v42, 4294901760
    %1022 = vmatpush2.msra.mxu0 %v1021
    %1023 = vmatprep.subr.mxu0 0.0
    %v1024 = vand.u32 %v41, 4294901760
    %1025 = vmatpush2.msra.mxu0 %v1024
    %1026 = vmatprep.subr.mxu0 0.0
    %v1027 = vand.u32 %v40, 4294901760
    %1028 = vmatpush2.msra.mxu0 %v1027
    %1029 = vmatprep.subr.mxu0 0.0
    %v1030 = vand.u32 %v39, 4294901760
    %1031 = vmatpush2.msra.mxu0 %v1030
    %1032 = vmatprep.subr.mxu0 0.0
    %v1033 = vand.u32 %v38, 4294901760
    %1034 = vmatpush2.msra.mxu0 %v1033
    %1035 = vmatprep.subr.mxu0 0.0
    %v1036 = vand.u32 %v37, 4294901760
    %1037 = vmatpush2.msra.mxu0 %v1036
    %1038 = vmatprep.subr.mxu0 0.0
    %v1039 = vand.u32 %v36, 4294901760
    %1040 = vmatpush2.msra.mxu0 %v1039
    %1041 = vmatprep.subr.mxu0 0.0
    %v1042 = vand.u32 %v35, 4294901760
    %1043 = vmatpush2.msra.mxu0 %v1042
    %1044 = vmatprep.subr.mxu0 0.0
    %v1045 = vand.u32 %v34, 4294901760
    %1046 = vmatpush2.msra.mxu0 %v1045
    %1047 = vmatprep.subr.mxu0 0.0
    %v1048 = vand.u32 %v33, 4294901760
    %1049 = vmatpush2.msra.mxu0 %v1048
    %v1050 = vand.u32 %v169, 4294901760
    %1051 = vmatprep.mubr.f32.mxu0 %v1050
    %v1052 = vand.u32 %v161, 4294901760
    %1053 = vmatmul.mubr.f32.gmra.mxu0 %v1052
    %v1054 = vpop.f32.mrf.mxu0
    %v1055 = vadd.f32 %v951, %v1054
    %v1056 = vpop.f32.mrf.mxu0
    %1057 = vdwg.mxu0
    %1058 = vmatprep.subr.mxu0 0.0
    %v1059 = vand.u32 %v64, 4294901760
    %1060 = vmatpush1.msra.mxu0 %v1059
    %1061 = vmatprep.subr.mxu0 0.0
    %v1062 = vand.u32 %v63, 4294901760
    %1063 = vmatpush1.msra.mxu0 %v1062
    %1064 = vmatprep.subr.mxu0 0.0
    %v1065 = vand.u32 %v62, 4294901760
    %1066 = vmatpush1.msra.mxu0 %v1065
    %1067 = vmatprep.subr.mxu0 0.0
    %v1068 = vand.u32 %v61, 4294901760
    %1069 = vmatpush1.msra.mxu0 %v1068
    %1070 = vmatprep.subr.mxu0 0.0
    %v1071 = vand.u32 %v60, 4294901760
    %1072 = vmatpush1.msra.mxu0 %v1071
    %1073 = vmatprep.subr.mxu0 0.0
    %v1074 = vand.u32 %v59, 4294901760
    %1075 = vmatpush1.msra.mxu0 %v1074
    %1076 = vmatprep.subr.mxu0 0.0
    %v1077 = vand.u32 %v58, 4294901760
    %1078 = vmatpush1.msra.mxu0 %v1077
    %1079 = vmatprep.subr.mxu0 0.0
    %v1080 = vand.u32 %v57, 4294901760
    %1081 = vmatpush1.msra.mxu0 %v1080
    %1082 = vmatprep.subr.mxu0 0.0
    %v1083 = vand.u32 %v56, 4294901760
    %1084 = vmatpush1.msra.mxu0 %v1083
    %1085 = vmatprep.subr.mxu0 0.0
    %v1086 = vand.u32 %v55, 4294901760
    %1087 = vmatpush1.msra.mxu0 %v1086
    %1088 = vmatprep.subr.mxu0 0.0
    %v1089 = vand.u32 %v54, 4294901760
    %1090 = vmatpush1.msra.mxu0 %v1089
    %1091 = vmatprep.subr.mxu0 0.0
    %v1092 = vand.u32 %v53, 4294901760
    %1093 = vmatpush1.msra.mxu0 %v1092
    %1094 = vmatprep.subr.mxu0 0.0
    %v1095 = vand.u32 %v52, 4294901760
    %1096 = vmatpush1.msra.mxu0 %v1095
    %1097 = vmatprep.subr.mxu0 0.0
    %v1098 = vand.u32 %v51, 4294901760
    %1099 = vmatpush1.msra.mxu0 %v1098
    %1100 = vmatprep.subr.mxu0 0.0
    %v1101 = vand.u32 %v50, 4294901760
    %1102 = vmatpush1.msra.mxu0 %v1101
    %1103 = vmatprep.subr.mxu0 0.0
    %v1104 = vand.u32 %v49, 4294901760
    %1105 = vmatpush1.msra.mxu0 %v1104
    %1106 = vmatprep.subr.mxu0 0.0
    %v1107 = vand.u32 %v80, 4294901760
    %1108 = vmatpush2.msra.mxu0 %v1107
    %1109 = vmatprep.subr.mxu0 0.0
    %v1110 = vand.u32 %v79, 4294901760
    %1111 = vmatpush2.msra.mxu0 %v1110
    %1112 = vmatprep.subr.mxu0 0.0
    %v1113 = vand.u32 %v78, 4294901760
    %1114 = vmatpush2.msra.mxu0 %v1113
    %1115 = vmatprep.subr.mxu0 0.0
    %v1116 = vand.u32 %v77, 4294901760
    %1117 = vmatpush2.msra.mxu0 %v1116
    %1118 = vmatprep.subr.mxu0 0.0
    %v1119 = vand.u32 %v76, 4294901760
    %1120 = vmatpush2.msra.mxu0 %v1119
    %1121 = vmatprep.subr.mxu0 0.0
    %v1122 = vand.u32 %v75, 4294901760
    %1123 = vmatpush2.msra.mxu0 %v1122
    %1124 = vmatprep.subr.mxu0 0.0
    %v1125 = vand.u32 %v74, 4294901760
    %1126 = vmatpush2.msra.mxu0 %v1125
    %1127 = vmatprep.subr.mxu0 0.0
    %v1128 = vand.u32 %v73, 4294901760
    %1129 = vmatpush2.msra.mxu0 %v1128
    %1130 = vmatprep.subr.mxu0 0.0
    %v1131 = vand.u32 %v72, 4294901760
    %1132 = vmatpush2.msra.mxu0 %v1131
    %1133 = vmatprep.subr.mxu0 0.0
    %v1134 = vand.u32 %v71, 4294901760
    %1135 = vmatpush2.msra.mxu0 %v1134
    %1136 = vmatprep.subr.mxu0 0.0
    %v1137 = vand.u32 %v70, 4294901760
    %1138 = vmatpush2.msra.mxu0 %v1137
    %1139 = vmatprep.subr.mxu0 0.0
    %v1140 = vand.u32 %v69, 4294901760
    %1141 = vmatpush2.msra.mxu0 %v1140
    %1142 = vmatprep.subr.mxu0 0.0
    %v1143 = vand.u32 %v68, 4294901760
    %1144 = vmatpush2.msra.mxu0 %v1143
    %1145 = vmatprep.subr.mxu0 0.0
    %v1146 = vand.u32 %v67, 4294901760
    %1147 = vmatpush2.msra.mxu0 %v1146
    %1148 = vmatprep.subr.mxu0 0.0
    %v1149 = vand.u32 %v66, 4294901760
    %1150 = vmatpush2.msra.mxu0 %v1149
    %1151 = vmatprep.subr.mxu0 0.0
    %v1152 = vand.u32 %v65, 4294901760
    %1153 = vmatpush2.msra.mxu0 %v1152
    %v1154 = vand.u32 %v170, 4294901760
    %v1155 = vsub.f32 %v170, %v1154
    %v1156 = vand.u32 %v1155, 4294901760
    %v1157 = vsub.f32 %v1155, %v1156
    %v1158 = vand.u32 %v1157, 4294901760
    %1159 = vmatprep.mubr.f32.mxu0 %v1158
    %v1160 = vand.u32 %v168, 4294901760
    %v1161 = vsub.f32 %v168, %v1160
    %v1162 = vand.u32 %v1161, 4294901760
    %v1163 = vsub.f32 %v1161, %v1162
    %v1164 = vand.u32 %v1163, 4294901760
    %1165 = vmatmul.mubr.f32.gmra.mxu0 %v1164
    %v1166 = vpop.f32.mrf.mxu0
    %v1167 = vadd.f32 %v1055, %v1166
    %v1168 = vpop.f32.mrf.mxu0
    %1169 = vdwg.mxu0
    %1170 = vmatprep.subr.mxu0 0.0
    %v1171 = vand.u32 %v64, 4294901760
    %v1172 = vsub.f32 %v64, %v1171
    %v1173 = vand.u32 %v1172, 4294901760
    %v1174 = vsub.f32 %v1172, %v1173
    %v1175 = vand.u32 %v1174, 4294901760
    %1176 = vmatpush1.msra.mxu0 %v1175
    %1177 = vmatprep.subr.mxu0 0.0
    %v1178 = vand.u32 %v63, 4294901760
    %v1179 = vsub.f32 %v63, %v1178
    %v1180 = vand.u32 %v1179, 4294901760
    %v1181 = vsub.f32 %v1179, %v1180
    %v1182 = vand.u32 %v1181, 4294901760
    %1183 = vmatpush1.msra.mxu0 %v1182
    %1184 = vmatprep.subr.mxu0 0.0
    %v1185 = vand.u32 %v62, 4294901760
    %v1186 = vsub.f32 %v62, %v1185
    %v1187 = vand.u32 %v1186, 4294901760
    %v1188 = vsub.f32 %v1186, %v1187
    %v1189 = vand.u32 %v1188, 4294901760
    %1190 = vmatpush1.msra.mxu0 %v1189
    %1191 = vmatprep.subr.mxu0 0.0
    %v1192 = vand.u32 %v61, 4294901760
    %v1193 = vsub.f32 %v61, %v1192
    %v1194 = vand.u32 %v1193, 4294901760
    %v1195 = vsub.f32 %v1193, %v1194
    %v1196 = vand.u32 %v1195, 4294901760
    %1197 = vmatpush1.msra.mxu0 %v1196
    %1198 = vmatprep.subr.mxu0 0.0
    %v1199 = vand.u32 %v60, 4294901760
    %v1200 = vsub.f32 %v60, %v1199
    %v1201 = vand.u32 %v1200, 4294901760
    %v1202 = vsub.f32 %v1200, %v1201
    %v1203 = vand.u32 %v1202, 4294901760
    %1204 = vmatpush1.msra.mxu0 %v1203
    %1205 = vmatprep.subr.mxu0 0.0
    %v1206 = vand.u32 %v59, 4294901760
    %v1207 = vsub.f32 %v59, %v1206
    %v1208 = vand.u32 %v1207, 4294901760
    %v1209 = vsub.f32 %v1207, %v1208
    %v1210 = vand.u32 %v1209, 4294901760
    %1211 = vmatpush1.msra.mxu0 %v1210
    %1212 = vmatprep.subr.mxu0 0.0
    %v1213 = vand.u32 %v58, 4294901760
    %v1214 = vsub.f32 %v58, %v1213
    %v1215 = vand.u32 %v1214, 4294901760
    %v1216 = vsub.f32 %v1214, %v1215
    %v1217 = vand.u32 %v1216, 4294901760
    %1218 = vmatpush1.msra.mxu0 %v1217
    %1219 = vmatprep.subr.mxu0 0.0
    %v1220 = vand.u32 %v57, 4294901760
    %v1221 = vsub.f32 %v57, %v1220
    %v1222 = vand.u32 %v1221, 4294901760
    %v1223 = vsub.f32 %v1221, %v1222
    %v1224 = vand.u32 %v1223, 4294901760
    %1225 = vmatpush1.msra.mxu0 %v1224
    %1226 = vmatprep.subr.mxu0 0.0
    %v1227 = vand.u32 %v56, 4294901760
    %v1228 = vsub.f32 %v56, %v1227
    %v1229 = vand.u32 %v1228, 4294901760
    %v1230 = vsub.f32 %v1228, %v1229
    %v1231 = vand.u32 %v1230, 4294901760
    %1232 = vmatpush1.msra.mxu0 %v1231
    %1233 = vmatprep.subr.mxu0 0.0
    %v1234 = vand.u32 %v55, 4294901760
    %v1235 = vsub.f32 %v55, %v1234
    %v1236 = vand.u32 %v1235, 4294901760
    %v1237 = vsub.f32 %v1235, %v1236
    %v1238 = vand.u32 %v1237, 4294901760
    %1239 = vmatpush1.msra.mxu0 %v1238
    %1240 = vmatprep.subr.mxu0 0.0
    %v1241 = vand.u32 %v54, 4294901760
    %v1242 = vsub.f32 %v54, %v1241
    %v1243 = vand.u32 %v1242, 4294901760
    %v1244 = vsub.f32 %v1242, %v1243
    %v1245 = vand.u32 %v1244, 4294901760
    %1246 = vmatpush1.msra.mxu0 %v1245
    %1247 = vmatprep.subr.mxu0 0.0
    %v1248 = vand.u32 %v53, 4294901760
    %v1249 = vsub.f32 %v53, %v1248
    %v1250 = vand.u32 %v1249, 4294901760
    %v1251 = vsub.f32 %v1249, %v1250
    %v1252 = vand.u32 %v1251, 4294901760
    %1253 = vmatpush1.msra.mxu0 %v1252
    %1254 = vmatprep.subr.mxu0 0.0
    %v1255 = vand.u32 %v52, 4294901760
    %v1256 = vsub.f32 %v52, %v1255
    %v1257 = vand.u32 %v1256, 4294901760
    %v1258 = vsub.f32 %v1256, %v1257
    %v1259 = vand.u32 %v1258, 4294901760
    %1260 = vmatpush1.msra.mxu0 %v1259
    %1261 = vmatprep.subr.mxu0 0.0
    %v1262 = vand.u32 %v51, 4294901760
    %v1263 = vsub.f32 %v51, %v1262
    %v1264 = vand.u32 %v1263, 4294901760
    %v1265 = vsub.f32 %v1263, %v1264
    %v1266 = vand.u32 %v1265, 4294901760
    %1267 = vmatpush1.msra.mxu0 %v1266
    %1268 = vmatprep.subr.mxu0 0.0
    %v1269 = vand.u32 %v50, 4294901760
    %v1270 = vsub.f32 %v50, %v1269
    %v1271 = vand.u32 %v1270, 4294901760
    %v1272 = vsub.f32 %v1270, %v1271
    %v1273 = vand.u32 %v1272, 4294901760
    %1274 = vmatpush1.msra.mxu0 %v1273
    %1275 = vmatprep.subr.mxu0 0.0
    %v1276 = vand.u32 %v49, 4294901760
    %v1277 = vsub.f32 %v49, %v1276
    %v1278 = vand.u32 %v1277, 4294901760
    %v1279 = vsub.f32 %v1277, %v1278
    %v1280 = vand.u32 %v1279, 4294901760
    %1281 = vmatpush1.msra.mxu0 %v1280
    %1282 = vmatprep.subr.mxu0 0.0
    %v1283 = vand.u32 %v80, 4294901760
    %v1284 = vsub.f32 %v80, %v1283
    %v1285 = vand.u32 %v1284, 4294901760
    %v1286 = vsub.f32 %v1284, %v1285
    %v1287 = vand.u32 %v1286, 4294901760
    %1288 = vmatpush2.msra.mxu0 %v1287
    %1289 = vmatprep.subr.mxu0 0.0
    %v1290 = vand.u32 %v79, 4294901760
    %v1291 = vsub.f32 %v79, %v1290
    %v1292 = vand.u32 %v1291, 4294901760
    %v1293 = vsub.f32 %v1291, %v1292
    %v1294 = vand.u32 %v1293, 4294901760
    %1295 = vmatpush2.msra.mxu0 %v1294
    %1296 = vmatprep.subr.mxu0 0.0
    %v1297 = vand.u32 %v78, 4294901760
    %v1298 = vsub.f32 %v78, %v1297
    %v1299 = vand.u32 %v1298, 4294901760
    %v1300 = vsub.f32 %v1298, %v1299
    %v1301 = vand.u32 %v1300, 4294901760
    %1302 = vmatpush2.msra.mxu0 %v1301
    %1303 = vmatprep.subr.mxu0 0.0
    %v1304 = vand.u32 %v77, 4294901760
    %v1305 = vsub.f32 %v77, %v1304
    %v1306 = vand.u32 %v1305, 4294901760
    %v1307 = vsub.f32 %v1305, %v1306
    %v1308 = vand.u32 %v1307, 4294901760
    %1309 = vmatpush2.msra.mxu0 %v1308
    %1310 = vmatprep.subr.mxu0 0.0
    %v1311 = vand.u32 %v76, 4294901760
    %v1312 = vsub.f32 %v76, %v1311
    %v1313 = vand.u32 %v1312, 4294901760
    %v1314 = vsub.f32 %v1312, %v1313
    %v1315 = vand.u32 %v1314, 4294901760
    %1316 = vmatpush2.msra.mxu0 %v1315
    %1317 = vmatprep.subr.mxu0 0.0
    %v1318 = vand.u32 %v75, 4294901760
    %v1319 = vsub.f32 %v75, %v1318
    %v1320 = vand.u32 %v1319, 4294901760
    %v1321 = vsub.f32 %v1319, %v1320
    %v1322 = vand.u32 %v1321, 4294901760
    %1323 = vmatpush2.msra.mxu0 %v1322
    %1324 = vmatprep.subr.mxu0 0.0
    %v1325 = vand.u32 %v74, 4294901760
    %v1326 = vsub.f32 %v74, %v1325
    %v1327 = vand.u32 %v1326, 4294901760
    %v1328 = vsub.f32 %v1326, %v1327
    %v1329 = vand.u32 %v1328, 4294901760
    %1330 = vmatpush2.msra.mxu0 %v1329
    %1331 = vmatprep.subr.mxu0 0.0
    %v1332 = vand.u32 %v73, 4294901760
    %v1333 = vsub.f32 %v73, %v1332
    %v1334 = vand.u32 %v1333, 4294901760
    %v1335 = vsub.f32 %v1333, %v1334
    %v1336 = vand.u32 %v1335, 4294901760
    %1337 = vmatpush2.msra.mxu0 %v1336
    %1338 = vmatprep.subr.mxu0 0.0
    %v1339 = vand.u32 %v72, 4294901760
    %v1340 = vsub.f32 %v72, %v1339
    %v1341 = vand.u32 %v1340, 4294901760
    %v1342 = vsub.f32 %v1340, %v1341
    %v1343 = vand.u32 %v1342, 4294901760
    %1344 = vmatpush2.msra.mxu0 %v1343
    %1345 = vmatprep.subr.mxu0 0.0
    %v1346 = vand.u32 %v71, 4294901760
    %v1347 = vsub.f32 %v71, %v1346
    %v1348 = vand.u32 %v1347, 4294901760
    %v1349 = vsub.f32 %v1347, %v1348
    %v1350 = vand.u32 %v1349, 4294901760
    %1351 = vmatpush2.msra.mxu0 %v1350
    %1352 = vmatprep.subr.mxu0 0.0
    %v1353 = vand.u32 %v70, 4294901760
    %v1354 = vsub.f32 %v70, %v1353
    %v1355 = vand.u32 %v1354, 4294901760
    %v1356 = vsub.f32 %v1354, %v1355
    %v1357 = vand.u32 %v1356, 4294901760
    %1358 = vmatpush2.msra.mxu0 %v1357
    %1359 = vmatprep.subr.mxu0 0.0
    %v1360 = vand.u32 %v69, 4294901760
    %v1361 = vsub.f32 %v69, %v1360
    %v1362 = vand.u32 %v1361, 4294901760
    %v1363 = vsub.f32 %v1361, %v1362
    %v1364 = vand.u32 %v1363, 4294901760
    %1365 = vmatpush2.msra.mxu0 %v1364
    %1366 = vmatprep.subr.mxu0 0.0
    %v1367 = vand.u32 %v68, 4294901760
    %v1368 = vsub.f32 %v68, %v1367
    %v1369 = vand.u32 %v1368, 4294901760
    %v1370 = vsub.f32 %v1368, %v1369
    %v1371 = vand.u32 %v1370, 4294901760
    %1372 = vmatpush2.msra.mxu0 %v1371
    %1373 = vmatprep.subr.mxu0 0.0
    %v1374 = vand.u32 %v67, 4294901760
    %v1375 = vsub.f32 %v67, %v1374
    %v1376 = vand.u32 %v1375, 4294901760
    %v1377 = vsub.f32 %v1375, %v1376
    %v1378 = vand.u32 %v1377, 4294901760
    %1379 = vmatpush2.msra.mxu0 %v1378
    %1380 = vmatprep.subr.mxu0 0.0
    %v1381 = vand.u32 %v66, 4294901760
    %v1382 = vsub.f32 %v66, %v1381
    %v1383 = vand.u32 %v1382, 4294901760
    %v1384 = vsub.f32 %v1382, %v1383
    %v1385 = vand.u32 %v1384, 4294901760
    %1386 = vmatpush2.msra.mxu0 %v1385
    %1387 = vmatprep.subr.mxu0 0.0
    %v1388 = vand.u32 %v65, 4294901760
    %v1389 = vsub.f32 %v65, %v1388
    %v1390 = vand.u32 %v1389, 4294901760
    %v1391 = vsub.f32 %v1389, %v1390
    %v1392 = vand.u32 %v1391, 4294901760
    %1393 = vmatpush2.msra.mxu0 %v1392
    %v1394 = vand.u32 %v170, 4294901760
    %1395 = vmatprep.mubr.f32.mxu0 %v1394
    %v1396 = vand.u32 %v168, 4294901760
    %1397 = vmatmul.mubr.f32.gmra.mxu0 %v1396
    %v1398 = vpop.f32.mrf.mxu0
    %v1399 = vadd.f32 %v1167, %v1398
    %v1400 = vpop.f32.mrf.mxu0
    %1401 = vdwg.mxu0
    %1402 = vmatprep.subr.mxu0 0.0
    %v1403 = vand.u32 %v64, 4294901760
    %v1404 = vsub.f32 %v64, %v1403
    %1405 = vmatpush1.msra.mxu0 %v1404
    %1406 = vmatprep.subr.mxu0 0.0
    %v1407 = vand.u32 %v63, 4294901760
    %v1408 = vsub.f32 %v63, %v1407
    %1409 = vmatpush1.msra.mxu0 %v1408
    %1410 = vmatprep.subr.mxu0 0.0
    %v1411 = vand.u32 %v62, 4294901760
    %v1412 = vsub.f32 %v62, %v1411
    %1413 = vmatpush1.msra.mxu0 %v1412
    %1414 = vmatprep.subr.mxu0 0.0
    %v1415 = vand.u32 %v61, 4294901760
    %v1416 = vsub.f32 %v61, %v1415
    %1417 = vmatpush1.msra.mxu0 %v1416
    %1418 = vmatprep.subr.mxu0 0.0
    %v1419 = vand.u32 %v60, 4294901760
    %v1420 = vsub.f32 %v60, %v1419
    %1421 = vmatpush1.msra.mxu0 %v1420
    %1422 = vmatprep.subr.mxu0 0.0
    %v1423 = vand.u32 %v59, 4294901760
    %v1424 = vsub.f32 %v59, %v1423
    %1425 = vmatpush1.msra.mxu0 %v1424
    %1426 = vmatprep.subr.mxu0 0.0
    %v1427 = vand.u32 %v58, 4294901760
    %v1428 = vsub.f32 %v58, %v1427
    %1429 = vmatpush1.msra.mxu0 %v1428
    %1430 = vmatprep.subr.mxu0 0.0
    %v1431 = vand.u32 %v57, 4294901760
    %v1432 = vsub.f32 %v57, %v1431
    %1433 = vmatpush1.msra.mxu0 %v1432
    %1434 = vmatprep.subr.mxu0 0.0
    %v1435 = vand.u32 %v56, 4294901760
    %v1436 = vsub.f32 %v56, %v1435
    %1437 = vmatpush1.msra.mxu0 %v1436
    %1438 = vmatprep.subr.mxu0 0.0
    %v1439 = vand.u32 %v55, 4294901760
    %v1440 = vsub.f32 %v55, %v1439
    %1441 = vmatpush1.msra.mxu0 %v1440
    %1442 = vmatprep.subr.mxu0 0.0
    %v1443 = vand.u32 %v54, 4294901760
    %v1444 = vsub.f32 %v54, %v1443
    %1445 = vmatpush1.msra.mxu0 %v1444
    %1446 = vmatprep.subr.mxu0 0.0
    %v1447 = vand.u32 %v53, 4294901760
    %v1448 = vsub.f32 %v53, %v1447
    %1449 = vmatpush1.msra.mxu0 %v1448
    %1450 = vmatprep.subr.mxu0 0.0
    %v1451 = vand.u32 %v52, 4294901760
    %v1452 = vsub.f32 %v52, %v1451
    %1453 = vmatpush1.msra.mxu0 %v1452
    %1454 = vmatprep.subr.mxu0 0.0
    %v1455 = vand.u32 %v51, 4294901760
    %v1456 = vsub.f32 %v51, %v1455
    %1457 = vmatpush1.msra.mxu0 %v1456
    %1458 = vmatprep.subr.mxu0 0.0
    %v1459 = vand.u32 %v50, 4294901760
    %v1460 = vsub.f32 %v50, %v1459
    %1461 = vmatpush1.msra.mxu0 %v1460
    %1462 = vmatprep.subr.mxu0 0.0
    %v1463 = vand.u32 %v49, 4294901760
    %v1464 = vsub.f32 %v49, %v1463
    %1465 = vmatpush1.msra.mxu0 %v1464
    %1466 = vmatprep.subr.mxu0 0.0
    %v1467 = vand.u32 %v80, 4294901760
    %v1468 = vsub.f32 %v80, %v1467
    %1469 = vmatpush2.msra.mxu0 %v1468
    %1470 = vmatprep.subr.mxu0 0.0
    %v1471 = vand.u32 %v79, 4294901760
    %v1472 = vsub.f32 %v79, %v1471
    %1473 = vmatpush2.msra.mxu0 %v1472
    %1474 = vmatprep.subr.mxu0 0.0
    %v1475 = vand.u32 %v78, 4294901760
    %v1476 = vsub.f32 %v78, %v1475
    %1477 = vmatpush2.msra.mxu0 %v1476
    %1478 = vmatprep.subr.mxu0 0.0
    %v1479 = vand.u32 %v77, 4294901760
    %v1480 = vsub.f32 %v77, %v1479
    %1481 = vmatpush2.msra.mxu0 %v1480
    %1482 = vmatprep.subr.mxu0 0.0
    %v1483 = vand.u32 %v76, 4294901760
    %v1484 = vsub.f32 %v76, %v1483
    %1485 = vmatpush2.msra.mxu0 %v1484
    %1486 = vmatprep.subr.mxu0 0.0
    %v1487 = vand.u32 %v75, 4294901760
    %v1488 = vsub.f32 %v75, %v1487
    %1489 = vmatpush2.msra.mxu0 %v1488
    %1490 = vmatprep.subr.mxu0 0.0
    %v1491 = vand.u32 %v74, 4294901760
    %v1492 = vsub.f32 %v74, %v1491
    %1493 = vmatpush2.msra.mxu0 %v1492
    %1494 = vmatprep.subr.mxu0 0.0
    %v1495 = vand.u32 %v73, 4294901760
    %v1496 = vsub.f32 %v73, %v1495
    %1497 = vmatpush2.msra.mxu0 %v1496
    %1498 = vmatprep.subr.mxu0 0.0
    %v1499 = vand.u32 %v72, 4294901760
    %v1500 = vsub.f32 %v72, %v1499
    %1501 = vmatpush2.msra.mxu0 %v1500
    %1502 = vmatprep.subr.mxu0 0.0
    %v1503 = vand.u32 %v71, 4294901760
    %v1504 = vsub.f32 %v71, %v1503
    %1505 = vmatpush2.msra.mxu0 %v1504
    %1506 = vmatprep.subr.mxu0 0.0
    %v1507 = vand.u32 %v70, 4294901760
    %v1508 = vsub.f32 %v70, %v1507
    %1509 = vmatpush2.msra.mxu0 %v1508
    %1510 = vmatprep.subr.mxu0 0.0
    %v1511 = vand.u32 %v69, 4294901760
    %v1512 = vsub.f32 %v69, %v1511
    %1513 = vmatpush2.msra.mxu0 %v1512
    %1514 = vmatprep.subr.mxu0 0.0
    %v1515 = vand.u32 %v68, 4294901760
    %v1516 = vsub.f32 %v68, %v1515
    %1517 = vmatpush2.msra.mxu0 %v1516
    %1518 = vmatprep.subr.mxu0 0.0
    %v1519 = vand.u32 %v67, 4294901760
    %v1520 = vsub.f32 %v67, %v1519
    %1521 = vmatpush2.msra.mxu0 %v1520
    %1522 = vmatprep.subr.mxu0 0.0
    %v1523 = vand.u32 %v66, 4294901760
    %v1524 = vsub.f32 %v66, %v1523
    %1525 = vmatpush2.msra.mxu0 %v1524
    %1526 = vmatprep.subr.mxu0 0.0
    %v1527 = vand.u32 %v65, 4294901760
    %v1528 = vsub.f32 %v65, %v1527
    %1529 = vmatpush2.msra.mxu0 %v1528
    %v1530 = vand.u32 %v170, 4294901760
    %v1531 = vsub.f32 %v170, %v1530
    %1532 = vmatprep.mubr.f32.mxu0 %v1531
    %v1533 = vand.u32 %v168, 4294901760
    %v1534 = vsub.f32 %v168, %v1533
    %1535 = vmatmul.mubr.f32.gmra.mxu0 %v1534
    %v1536 = vpop.f32.mrf.mxu0
    %v1537 = vadd.f32 %v1399, %v1536
    %v1538 = vpop.f32.mrf.mxu0
    %1539 = vdwg.mxu0
    %1540 = vmatprep.subr.mxu0 0.0
    %v1541 = vand.u32 %v64, 4294901760
    %1542 = vmatpush1.msra.mxu0 %v1541
    %1543 = vmatprep.subr.mxu0 0.0
    %v1544 = vand.u32 %v63, 4294901760
    %1545 = vmatpush1.msra.mxu0 %v1544
    %1546 = vmatprep.subr.mxu0 0.0
    %v1547 = vand.u32 %v62, 4294901760
    %1548 = vmatpush1.msra.mxu0 %v1547
    %1549 = vmatprep.subr.mxu0 0.0
    %v1550 = vand.u32 %v61, 4294901760
    %1551 = vmatpush1.msra.mxu0 %v1550
    %1552 = vmatprep.subr.mxu0 0.0
    %v1553 = vand.u32 %v60, 4294901760
    %1554 = vmatpush1.msra.mxu0 %v1553
    %1555 = vmatprep.subr.mxu0 0.0
    %v1556 = vand.u32 %v59, 4294901760
    %1557 = vmatpush1.msra.mxu0 %v1556
    %1558 = vmatprep.subr.mxu0 0.0
    %v1559 = vand.u32 %v58, 4294901760
    %1560 = vmatpush1.msra.mxu0 %v1559
    %1561 = vmatprep.subr.mxu0 0.0
    %v1562 = vand.u32 %v57, 4294901760
    %1563 = vmatpush1.msra.mxu0 %v1562
    %1564 = vmatprep.subr.mxu0 0.0
    %v1565 = vand.u32 %v56, 4294901760
    %1566 = vmatpush1.msra.mxu0 %v1565
    %1567 = vmatprep.subr.mxu0 0.0
    %v1568 = vand.u32 %v55, 4294901760
    %1569 = vmatpush1.msra.mxu0 %v1568
    %1570 = vmatprep.subr.mxu0 0.0
    %v1571 = vand.u32 %v54, 4294901760
    %1572 = vmatpush1.msra.mxu0 %v1571
    %1573 = vmatprep.subr.mxu0 0.0
    %v1574 = vand.u32 %v53, 4294901760
    %1575 = vmatpush1.msra.mxu0 %v1574
    %1576 = vmatprep.subr.mxu0 0.0
    %v1577 = vand.u32 %v52, 4294901760
    %1578 = vmatpush1.msra.mxu0 %v1577
    %1579 = vmatprep.subr.mxu0 0.0
    %v1580 = vand.u32 %v51, 4294901760
    %1581 = vmatpush1.msra.mxu0 %v1580
    %1582 = vmatprep.subr.mxu0 0.0
    %v1583 = vand.u32 %v50, 4294901760
    %1584 = vmatpush1.msra.mxu0 %v1583
    %1585 = vmatprep.subr.mxu0 0.0
    %v1586 = vand.u32 %v49, 4294901760
    %1587 = vmatpush1.msra.mxu0 %v1586
    %1588 = vmatprep.subr.mxu0 0.0
    %v1589 = vand.u32 %v80, 4294901760
    %1590 = vmatpush2.msra.mxu0 %v1589
    %1591 = vmatprep.subr.mxu0 0.0
    %v1592 = vand.u32 %v79, 4294901760
    %1593 = vmatpush2.msra.mxu0 %v1592
    %1594 = vmatprep.subr.mxu0 0.0
    %v1595 = vand.u32 %v78, 4294901760
    %1596 = vmatpush2.msra.mxu0 %v1595
    %1597 = vmatprep.subr.mxu0 0.0
    %v1598 = vand.u32 %v77, 4294901760
    %1599 = vmatpush2.msra.mxu0 %v1598
    %1600 = vmatprep.subr.mxu0 0.0
    %v1601 = vand.u32 %v76, 4294901760
    %1602 = vmatpush2.msra.mxu0 %v1601
    %1603 = vmatprep.subr.mxu0 0.0
    %v1604 = vand.u32 %v75, 4294901760
    %1605 = vmatpush2.msra.mxu0 %v1604
    %1606 = vmatprep.subr.mxu0 0.0
    %v1607 = vand.u32 %v74, 4294901760
    %1608 = vmatpush2.msra.mxu0 %v1607
    %1609 = vmatprep.subr.mxu0 0.0
    %v1610 = vand.u32 %v73, 4294901760
    %1611 = vmatpush2.msra.mxu0 %v1610
    %1612 = vmatprep.subr.mxu0 0.0
    %v1613 = vand.u32 %v72, 4294901760
    %1614 = vmatpush2.msra.mxu0 %v1613
    %1615 = vmatprep.subr.mxu0 0.0
    %v1616 = vand.u32 %v71, 4294901760
    %1617 = vmatpush2.msra.mxu0 %v1616
    %1618 = vmatprep.subr.mxu0 0.0
    %v1619 = vand.u32 %v70, 4294901760
    %1620 = vmatpush2.msra.mxu0 %v1619
    %1621 = vmatprep.subr.mxu0 0.0
    %v1622 = vand.u32 %v69, 4294901760
    %1623 = vmatpush2.msra.mxu0 %v1622
    %1624 = vmatprep.subr.mxu0 0.0
    %v1625 = vand.u32 %v68, 4294901760
    %1626 = vmatpush2.msra.mxu0 %v1625
    %1627 = vmatprep.subr.mxu0 0.0
    %v1628 = vand.u32 %v67, 4294901760
    %1629 = vmatpush2.msra.mxu0 %v1628
    %1630 = vmatprep.subr.mxu0 0.0
    %v1631 = vand.u32 %v66, 4294901760
    %1632 = vmatpush2.msra.mxu0 %v1631
    %1633 = vmatprep.subr.mxu0 0.0
    %v1634 = vand.u32 %v65, 4294901760
    %1635 = vmatpush2.msra.mxu0 %v1634
    %v1636 = vand.u32 %v170, 4294901760
    %v1637 = vsub.f32 %v170, %v1636
    %v1638 = vand.u32 %v1637, 4294901760
    %1639 = vmatprep.mubr.f32.mxu0 %v1638
    %v1640 = vand.u32 %v168, 4294901760
    %v1641 = vsub.f32 %v168, %v1640
    %v1642 = vand.u32 %v1641, 4294901760
    %1643 = vmatmul.mubr.f32.gmra.mxu0 %v1642
    %v1644 = vpop.f32.mrf.mxu0
    %v1645 = vadd.f32 %v1537, %v1644
    %v1646 = vpop.f32.mrf.mxu0
    %1647 = vdwg.mxu0
    %1648 = vmatprep.subr.mxu0 0.0
    %v1649 = vand.u32 %v64, 4294901760
    %v1650 = vsub.f32 %v64, %v1649
    %v1651 = vand.u32 %v1650, 4294901760
    %1652 = vmatpush1.msra.mxu0 %v1651
    %1653 = vmatprep.subr.mxu0 0.0
    %v1654 = vand.u32 %v63, 4294901760
    %v1655 = vsub.f32 %v63, %v1654
    %v1656 = vand.u32 %v1655, 4294901760
    %1657 = vmatpush1.msra.mxu0 %v1656
    %1658 = vmatprep.subr.mxu0 0.0
    %v1659 = vand.u32 %v62, 4294901760
    %v1660 = vsub.f32 %v62, %v1659
    %v1661 = vand.u32 %v1660, 4294901760
    %1662 = vmatpush1.msra.mxu0 %v1661
    %1663 = vmatprep.subr.mxu0 0.0
    %v1664 = vand.u32 %v61, 4294901760
    %v1665 = vsub.f32 %v61, %v1664
    %v1666 = vand.u32 %v1665, 4294901760
    %1667 = vmatpush1.msra.mxu0 %v1666
    %1668 = vmatprep.subr.mxu0 0.0
    %v1669 = vand.u32 %v60, 4294901760
    %v1670 = vsub.f32 %v60, %v1669
    %v1671 = vand.u32 %v1670, 4294901760
    %1672 = vmatpush1.msra.mxu0 %v1671
    %1673 = vmatprep.subr.mxu0 0.0
    %v1674 = vand.u32 %v59, 4294901760
    %v1675 = vsub.f32 %v59, %v1674
    %v1676 = vand.u32 %v1675, 4294901760
    %1677 = vmatpush1.msra.mxu0 %v1676
    %1678 = vmatprep.subr.mxu0 0.0
    %v1679 = vand.u32 %v58, 4294901760
    %v1680 = vsub.f32 %v58, %v1679
    %v1681 = vand.u32 %v1680, 4294901760
    %1682 = vmatpush1.msra.mxu0 %v1681
    %1683 = vmatprep.subr.mxu0 0.0
    %v1684 = vand.u32 %v57, 4294901760
    %v1685 = vsub.f32 %v57, %v1684
    %v1686 = vand.u32 %v1685, 4294901760
    %1687 = vmatpush1.msra.mxu0 %v1686
    %1688 = vmatprep.subr.mxu0 0.0
    %v1689 = vand.u32 %v56, 4294901760
    %v1690 = vsub.f32 %v56, %v1689
    %v1691 = vand.u32 %v1690, 4294901760
    %1692 = vmatpush1.msra.mxu0 %v1691
    %1693 = vmatprep.subr.mxu0 0.0
    %v1694 = vand.u32 %v55, 4294901760
    %v1695 = vsub.f32 %v55, %v1694
    %v1696 = vand.u32 %v1695, 4294901760
    %1697 = vmatpush1.msra.mxu0 %v1696
    %1698 = vmatprep.subr.mxu0 0.0
    %v1699 = vand.u32 %v54, 4294901760
    %v1700 = vsub.f32 %v54, %v1699
    %v1701 = vand.u32 %v1700, 4294901760
    %1702 = vmatpush1.msra.mxu0 %v1701
    %1703 = vmatprep.subr.mxu0 0.0
    %v1704 = vand.u32 %v53, 4294901760
    %v1705 = vsub.f32 %v53, %v1704
    %v1706 = vand.u32 %v1705, 4294901760
    %1707 = vmatpush1.msra.mxu0 %v1706
    %1708 = vmatprep.subr.mxu0 0.0
    %v1709 = vand.u32 %v52, 4294901760
    %v1710 = vsub.f32 %v52, %v1709
    %v1711 = vand.u32 %v1710, 4294901760
    %1712 = vmatpush1.msra.mxu0 %v1711
    %1713 = vmatprep.subr.mxu0 0.0
    %v1714 = vand.u32 %v51, 4294901760
    %v1715 = vsub.f32 %v51, %v1714
    %v1716 = vand.u32 %v1715, 4294901760
    %1717 = vmatpush1.msra.mxu0 %v1716
    %1718 = vmatprep.subr.mxu0 0.0
    %v1719 = vand.u32 %v50, 4294901760
    %v1720 = vsub.f32 %v50, %v1719
    %v1721 = vand.u32 %v1720, 4294901760
    %1722 = vmatpush1.msra.mxu0 %v1721
    %1723 = vmatprep.subr.mxu0 0.0
    %v1724 = vand.u32 %v49, 4294901760
    %v1725 = vsub.f32 %v49, %v1724
    %v1726 = vand.u32 %v1725, 4294901760
    %1727 = vmatpush1.msra.mxu0 %v1726
    %1728 = vmatprep.subr.mxu0 0.0
    %v1729 = vand.u32 %v80, 4294901760
    %v1730 = vsub.f32 %v80, %v1729
    %v1731 = vand.u32 %v1730, 4294901760
    %1732 = vmatpush2.msra.mxu0 %v1731
    %1733 = vmatprep.subr.mxu0 0.0
    %v1734 = vand.u32 %v79, 4294901760
    %v1735 = vsub.f32 %v79, %v1734
    %v1736 = vand.u32 %v1735, 4294901760
    %1737 = vmatpush2.msra.mxu0 %v1736
    %1738 = vmatprep.subr.mxu0 0.0
    %v1739 = vand.u32 %v78, 4294901760
    %v1740 = vsub.f32 %v78, %v1739
    %v1741 = vand.u32 %v1740, 4294901760
    %1742 = vmatpush2.msra.mxu0 %v1741
    %1743 = vmatprep.subr.mxu0 0.0
    %v1744 = vand.u32 %v77, 4294901760
    %v1745 = vsub.f32 %v77, %v1744
    %v1746 = vand.u32 %v1745, 4294901760
    %1747 = vmatpush2.msra.mxu0 %v1746
    %1748 = vmatprep.subr.mxu0 0.0
    %v1749 = vand.u32 %v76, 4294901760
    %v1750 = vsub.f32 %v76, %v1749
    %v1751 = vand.u32 %v1750, 4294901760
    %1752 = vmatpush2.msra.mxu0 %v1751
    %1753 = vmatprep.subr.mxu0 0.0
    %v1754 = vand.u32 %v75, 4294901760
    %v1755 = vsub.f32 %v75, %v1754
    %v1756 = vand.u32 %v1755, 4294901760
    %1757 = vmatpush2.msra.mxu0 %v1756
    %1758 = vmatprep.subr.mxu0 0.0
    %v1759 = vand.u32 %v74, 4294901760
    %v1760 = vsub.f32 %v74, %v1759
    %v1761 = vand.u32 %v1760, 4294901760
    %1762 = vmatpush2.msra.mxu0 %v1761
    %1763 = vmatprep.subr.mxu0 0.0
    %v1764 = vand.u32 %v73, 4294901760
    %v1765 = vsub.f32 %v73, %v1764
    %v1766 = vand.u32 %v1765, 4294901760
    %1767 = vmatpush2.msra.mxu0 %v1766
    %1768 = vmatprep.subr.mxu0 0.0
    %v1769 = vand.u32 %v72, 4294901760
    %v1770 = vsub.f32 %v72, %v1769
    %v1771 = vand.u32 %v1770, 4294901760
    %1772 = vmatpush2.msra.mxu0 %v1771
    %1773 = vmatprep.subr.mxu0 0.0
    %v1774 = vand.u32 %v71, 4294901760
    %v1775 = vsub.f32 %v71, %v1774
    %v1776 = vand.u32 %v1775, 4294901760
    %1777 = vmatpush2.msra.mxu0 %v1776
    %1778 = vmatprep.subr.mxu0 0.0
    %v1779 = vand.u32 %v70, 4294901760
    %v1780 = vsub.f32 %v70, %v1779
    %v1781 = vand.u32 %v1780, 4294901760
    %1782 = vmatpush2.msra.mxu0 %v1781
    %1783 = vmatprep.subr.mxu0 0.0
    %v1784 = vand.u32 %v69, 4294901760
    %v1785 = vsub.f32 %v69, %v1784
    %v1786 = vand.u32 %v1785, 4294901760
    %1787 = vmatpush2.msra.mxu0 %v1786
    %1788 = vmatprep.subr.mxu0 0.0
    %v1789 = vand.u32 %v68, 4294901760
    %v1790 = vsub.f32 %v68, %v1789
    %v1791 = vand.u32 %v1790, 4294901760
    %1792 = vmatpush2.msra.mxu0 %v1791
    %1793 = vmatprep.subr.mxu0 0.0
    %v1794 = vand.u32 %v67, 4294901760
    %v1795 = vsub.f32 %v67, %v1794
    %v1796 = vand.u32 %v1795, 4294901760
    %1797 = vmatpush2.msra.mxu0 %v1796
    %1798 = vmatprep.subr.mxu0 0.0
    %v1799 = vand.u32 %v66, 4294901760
    %v1800 = vsub.f32 %v66, %v1799
    %v1801 = vand.u32 %v1800, 4294901760
    %1802 = vmatpush2.msra.mxu0 %v1801
    %1803 = vmatprep.subr.mxu0 0.0
    %v1804 = vand.u32 %v65, 4294901760
    %v1805 = vsub.f32 %v65, %v1804
    %v1806 = vand.u32 %v1805, 4294901760
    %1807 = vmatpush2.msra.mxu0 %v1806
    %v1808 = vand.u32 %v170, 4294901760
    %1809 = vmatprep.mubr.f32.mxu0 %v1808
    %v1810 = vand.u32 %v168, 4294901760
    %1811 = vmatmul.mubr.f32.gmra.mxu0 %v1810
    %v1812 = vpop.f32.mrf.mxu0
    %v1813 = vadd.f32 %v1645, %v1812
    %v1814 = vpop.f32.mrf.mxu0
    %1815 = vdwg.mxu0
    %1816 = vmatprep.subr.mxu0 0.0
    %v1817 = vand.u32 %v64, 4294901760
    %1818 = vmatpush1.msra.mxu0 %v1817
    %1819 = vmatprep.subr.mxu0 0.0
    %v1820 = vand.u32 %v63, 4294901760
    %1821 = vmatpush1.msra.mxu0 %v1820
    %1822 = vmatprep.subr.mxu0 0.0
    %v1823 = vand.u32 %v62, 4294901760
    %1824 = vmatpush1.msra.mxu0 %v1823
    %1825 = vmatprep.subr.mxu0 0.0
    %v1826 = vand.u32 %v61, 4294901760
    %1827 = vmatpush1.msra.mxu0 %v1826
    %1828 = vmatprep.subr.mxu0 0.0
    %v1829 = vand.u32 %v60, 4294901760
    %1830 = vmatpush1.msra.mxu0 %v1829
    %1831 = vmatprep.subr.mxu0 0.0
    %v1832 = vand.u32 %v59, 4294901760
    %1833 = vmatpush1.msra.mxu0 %v1832
    %1834 = vmatprep.subr.mxu0 0.0
    %v1835 = vand.u32 %v58, 4294901760
    %1836 = vmatpush1.msra.mxu0 %v1835
    %1837 = vmatprep.subr.mxu0 0.0
    %v1838 = vand.u32 %v57, 4294901760
    %1839 = vmatpush1.msra.mxu0 %v1838
    %1840 = vmatprep.subr.mxu0 0.0
    %v1841 = vand.u32 %v56, 4294901760
    %1842 = vmatpush1.msra.mxu0 %v1841
    %1843 = vmatprep.subr.mxu0 0.0
    %v1844 = vand.u32 %v55, 4294901760
    %1845 = vmatpush1.msra.mxu0 %v1844
    %1846 = vmatprep.subr.mxu0 0.0
    %v1847 = vand.u32 %v54, 4294901760
    %1848 = vmatpush1.msra.mxu0 %v1847
    %1849 = vmatprep.subr.mxu0 0.0
    %v1850 = vand.u32 %v53, 4294901760
    %1851 = vmatpush1.msra.mxu0 %v1850
    %1852 = vmatprep.subr.mxu0 0.0
    %v1853 = vand.u32 %v52, 4294901760
    %1854 = vmatpush1.msra.mxu0 %v1853
    %1855 = vmatprep.subr.mxu0 0.0
    %v1856 = vand.u32 %v51, 4294901760
    %1857 = vmatpush1.msra.mxu0 %v1856
    %1858 = vmatprep.subr.mxu0 0.0
    %v1859 = vand.u32 %v50, 4294901760
    %1860 = vmatpush1.msra.mxu0 %v1859
    %1861 = vmatprep.subr.mxu0 0.0
    %v1862 = vand.u32 %v49, 4294901760
    %1863 = vmatpush1.msra.mxu0 %v1862
    %1864 = vmatprep.subr.mxu0 0.0
    %v1865 = vand.u32 %v80, 4294901760
    %1866 = vmatpush2.msra.mxu0 %v1865
    %1867 = vmatprep.subr.mxu0 0.0
    %v1868 = vand.u32 %v79, 4294901760
    %1869 = vmatpush2.msra.mxu0 %v1868
    %1870 = vmatprep.subr.mxu0 0.0
    %v1871 = vand.u32 %v78, 4294901760
    %1872 = vmatpush2.msra.mxu0 %v1871
    %1873 = vmatprep.subr.mxu0 0.0
    %v1874 = vand.u32 %v77, 4294901760
    %1875 = vmatpush2.msra.mxu0 %v1874
    %1876 = vmatprep.subr.mxu0 0.0
    %v1877 = vand.u32 %v76, 4294901760
    %1878 = vmatpush2.msra.mxu0 %v1877
    %1879 = vmatprep.subr.mxu0 0.0
    %v1880 = vand.u32 %v75, 4294901760
    %1881 = vmatpush2.msra.mxu0 %v1880
    %1882 = vmatprep.subr.mxu0 0.0
    %v1883 = vand.u32 %v74, 4294901760
    %1884 = vmatpush2.msra.mxu0 %v1883
    %1885 = vmatprep.subr.mxu0 0.0
    %v1886 = vand.u32 %v73, 4294901760
    %1887 = vmatpush2.msra.mxu0 %v1886
    %1888 = vmatprep.subr.mxu0 0.0
    %v1889 = vand.u32 %v72, 4294901760
    %1890 = vmatpush2.msra.mxu0 %v1889
    %1891 = vmatprep.subr.mxu0 0.0
    %v1892 = vand.u32 %v71, 4294901760
    %1893 = vmatpush2.msra.mxu0 %v1892
    %1894 = vmatprep.subr.mxu0 0.0
    %v1895 = vand.u32 %v70, 4294901760
    %1896 = vmatpush2.msra.mxu0 %v1895
    %1897 = vmatprep.subr.mxu0 0.0
    %v1898 = vand.u32 %v69, 4294901760
    %1899 = vmatpush2.msra.mxu0 %v1898
    %1900 = vmatprep.subr.mxu0 0.0
    %v1901 = vand.u32 %v68, 4294901760
    %1902 = vmatpush2.msra.mxu0 %v1901
    %1903 = vmatprep.subr.mxu0 0.0
    %v1904 = vand.u32 %v67, 4294901760
    %1905 = vmatpush2.msra.mxu0 %v1904
    %1906 = vmatprep.subr.mxu0 0.0
    %v1907 = vand.u32 %v66, 4294901760
    %1908 = vmatpush2.msra.mxu0 %v1907
    %1909 = vmatprep.subr.mxu0 0.0
    %v1910 = vand.u32 %v65, 4294901760
    %1911 = vmatpush2.msra.mxu0 %v1910
    %v1912 = vand.u32 %v170, 4294901760
    %1913 = vmatprep.mubr.f32.mxu0 %v1912
    %v1914 = vand.u32 %v168, 4294901760
    %1915 = vmatmul.mubr.f32.gmra.mxu0 %v1914
    %v1916 = vpop.f32.mrf.mxu0
    %v1917 = vadd.f32 %v1813, %v1916
    %v1918 = vpop.f32.mrf.mxu0
    %1919 = vdwg.mxu0
    %1920 = vmatprep.subr.mxu0 0.0
    %v1921 = vand.u32 %v96, 4294901760
    %1922 = vmatpush1.msra.mxu0 %v1921
    %1923 = vmatprep.subr.mxu0 0.0
    %v1924 = vand.u32 %v95, 4294901760
    %1925 = vmatpush1.msra.mxu0 %v1924
    %1926 = vmatprep.subr.mxu0 0.0
    %v1927 = vand.u32 %v94, 4294901760
    %1928 = vmatpush1.msra.mxu0 %v1927
    %1929 = vmatprep.subr.mxu0 0.0
    %v1930 = vand.u32 %v93, 4294901760
    %1931 = vmatpush1.msra.mxu0 %v1930
    %1932 = vmatprep.subr.mxu0 0.0
    %v1933 = vand.u32 %v92, 4294901760
    %1934 = vmatpush1.msra.mxu0 %v1933
    %1935 = vmatprep.subr.mxu0 0.0
    %v1936 = vand.u32 %v91, 4294901760
    %1937 = vmatpush1.msra.mxu0 %v1936
    %1938 = vmatprep.subr.mxu0 0.0
    %v1939 = vand.u32 %v90, 4294901760
    %1940 = vmatpush1.msra.mxu0 %v1939
    %1941 = vmatprep.subr.mxu0 0.0
    %v1942 = vand.u32 %v89, 4294901760
    %1943 = vmatpush1.msra.mxu0 %v1942
    %1944 = vmatprep.subr.mxu0 0.0
    %v1945 = vand.u32 %v88, 4294901760
    %1946 = vmatpush1.msra.mxu0 %v1945
    %1947 = vmatprep.subr.mxu0 0.0
    %v1948 = vand.u32 %v87, 4294901760
    %1949 = vmatpush1.msra.mxu0 %v1948
    %1950 = vmatprep.subr.mxu0 0.0
    %v1951 = vand.u32 %v86, 4294901760
    %1952 = vmatpush1.msra.mxu0 %v1951
    %1953 = vmatprep.subr.mxu0 0.0
    %v1954 = vand.u32 %v85, 4294901760
    %1955 = vmatpush1.msra.mxu0 %v1954
    %1956 = vmatprep.subr.mxu0 0.0
    %v1957 = vand.u32 %v84, 4294901760
    %1958 = vmatpush1.msra.mxu0 %v1957
    %1959 = vmatprep.subr.mxu0 0.0
    %v1960 = vand.u32 %v83, 4294901760
    %1961 = vmatpush1.msra.mxu0 %v1960
    %1962 = vmatprep.subr.mxu0 0.0
    %v1963 = vand.u32 %v82, 4294901760
    %1964 = vmatpush1.msra.mxu0 %v1963
    %1965 = vmatprep.subr.mxu0 0.0
    %v1966 = vand.u32 %v81, 4294901760
    %1967 = vmatpush1.msra.mxu0 %v1966
    %1968 = vmatprep.subr.mxu0 0.0
    %v1969 = vand.u32 %v112, 4294901760
    %1970 = vmatpush2.msra.mxu0 %v1969
    %1971 = vmatprep.subr.mxu0 0.0
    %v1972 = vand.u32 %v111, 4294901760
    %1973 = vmatpush2.msra.mxu0 %v1972
    %1974 = vmatprep.subr.mxu0 0.0
    %v1975 = vand.u32 %v110, 4294901760
    %1976 = vmatpush2.msra.mxu0 %v1975
    %1977 = vmatprep.subr.mxu0 0.0
    %v1978 = vand.u32 %v109, 4294901760
    %1979 = vmatpush2.msra.mxu0 %v1978
    %1980 = vmatprep.subr.mxu0 0.0
    %v1981 = vand.u32 %v108, 4294901760
    %1982 = vmatpush2.msra.mxu0 %v1981
    %1983 = vmatprep.subr.mxu0 0.0
    %v1984 = vand.u32 %v107, 4294901760
    %1985 = vmatpush2.msra.mxu0 %v1984
    %1986 = vmatprep.subr.mxu0 0.0
    %v1987 = vand.u32 %v106, 4294901760
    %1988 = vmatpush2.msra.mxu0 %v1987
    %1989 = vmatprep.subr.mxu0 0.0
    %v1990 = vand.u32 %v105, 4294901760
    %1991 = vmatpush2.msra.mxu0 %v1990
    %1992 = vmatprep.subr.mxu0 0.0
    %v1993 = vand.u32 %v104, 4294901760
    %1994 = vmatpush2.msra.mxu0 %v1993
    %1995 = vmatprep.subr.mxu0 0.0
    %v1996 = vand.u32 %v103, 4294901760
    %1997 = vmatpush2.msra.mxu0 %v1996
    %1998 = vmatprep.subr.mxu0 0.0
    %v1999 = vand.u32 %v102, 4294901760
    %2000 = vmatpush2.msra.mxu0 %v1999
    %2001 = vmatprep.subr.mxu0 0.0
    %v2002 = vand.u32 %v101, 4294901760
    %2003 = vmatpush2.msra.mxu0 %v2002
    %2004 = vmatprep.subr.mxu0 0.0
    %v2005 = vand.u32 %v100, 4294901760
    %2006 = vmatpush2.msra.mxu0 %v2005
    %2007 = vmatprep.subr.mxu0 0.0
    %v2008 = vand.u32 %v99, 4294901760
    %2009 = vmatpush2.msra.mxu0 %v2008
    %2010 = vmatprep.subr.mxu0 0.0
    %v2011 = vand.u32 %v98, 4294901760
    %2012 = vmatpush2.msra.mxu0 %v2011
    %2013 = vmatprep.subr.mxu0 0.0
    %v2014 = vand.u32 %v97, 4294901760
    %2015 = vmatpush2.msra.mxu0 %v2014
    %v2016 = vand.u32 %v186, 4294901760
    %v2017 = vsub.f32 %v186, %v2016
    %v2018 = vand.u32 %v2017, 4294901760
    %v2019 = vsub.f32 %v2017, %v2018
    %v2020 = vand.u32 %v2019, 4294901760
    %2021 = vmatprep.mubr.f32.mxu0 %v2020
    %v2022 = vand.u32 %v178, 4294901760
    %v2023 = vsub.f32 %v178, %v2022
    %v2024 = vand.u32 %v2023, 4294901760
    %v2025 = vsub.f32 %v2023, %v2024
    %v2026 = vand.u32 %v2025, 4294901760
    %2027 = vmatmul.mubr.f32.gmra.mxu0 %v2026
    %v2028 = vpop.f32.mrf.mxu0
    %v2029 = vadd.f32 %v1917, %v2028
    %v2030 = vpop.f32.mrf.mxu0
    %2031 = vdwg.mxu0
    %2032 = vmatprep.subr.mxu0 0.0
    %v2033 = vand.u32 %v96, 4294901760
    %v2034 = vsub.f32 %v96, %v2033
    %v2035 = vand.u32 %v2034, 4294901760
    %v2036 = vsub.f32 %v2034, %v2035
    %v2037 = vand.u32 %v2036, 4294901760
    %2038 = vmatpush1.msra.mxu0 %v2037
    %2039 = vmatprep.subr.mxu0 0.0
    %v2040 = vand.u32 %v95, 4294901760
    %v2041 = vsub.f32 %v95, %v2040
    %v2042 = vand.u32 %v2041, 4294901760
    %v2043 = vsub.f32 %v2041, %v2042
    %v2044 = vand.u32 %v2043, 4294901760
    %2045 = vmatpush1.msra.mxu0 %v2044
    %2046 = vmatprep.subr.mxu0 0.0
    %v2047 = vand.u32 %v94, 4294901760
    %v2048 = vsub.f32 %v94, %v2047
    %v2049 = vand.u32 %v2048, 4294901760
    %v2050 = vsub.f32 %v2048, %v2049
    %v2051 = vand.u32 %v2050, 4294901760
    %2052 = vmatpush1.msra.mxu0 %v2051
    %2053 = vmatprep.subr.mxu0 0.0
    %v2054 = vand.u32 %v93, 4294901760
    %v2055 = vsub.f32 %v93, %v2054
    %v2056 = vand.u32 %v2055, 4294901760
    %v2057 = vsub.f32 %v2055, %v2056
    %v2058 = vand.u32 %v2057, 4294901760
    %2059 = vmatpush1.msra.mxu0 %v2058
    %2060 = vmatprep.subr.mxu0 0.0
    %v2061 = vand.u32 %v92, 4294901760
    %v2062 = vsub.f32 %v92, %v2061
    %v2063 = vand.u32 %v2062, 4294901760
    %v2064 = vsub.f32 %v2062, %v2063
    %v2065 = vand.u32 %v2064, 4294901760
    %2066 = vmatpush1.msra.mxu0 %v2065
    %2067 = vmatprep.subr.mxu0 0.0
    %v2068 = vand.u32 %v91, 4294901760
    %v2069 = vsub.f32 %v91, %v2068
    %v2070 = vand.u32 %v2069, 4294901760
    %v2071 = vsub.f32 %v2069, %v2070
    %v2072 = vand.u32 %v2071, 4294901760
    %2073 = vmatpush1.msra.mxu0 %v2072
    %2074 = vmatprep.subr.mxu0 0.0
    %v2075 = vand.u32 %v90, 4294901760
    %v2076 = vsub.f32 %v90, %v2075
    %v2077 = vand.u32 %v2076, 4294901760
    %v2078 = vsub.f32 %v2076, %v2077
    %v2079 = vand.u32 %v2078, 4294901760
    %2080 = vmatpush1.msra.mxu0 %v2079
    %2081 = vmatprep.subr.mxu0 0.0
    %v2082 = vand.u32 %v89, 4294901760
    %v2083 = vsub.f32 %v89, %v2082
    %v2084 = vand.u32 %v2083, 4294901760
    %v2085 = vsub.f32 %v2083, %v2084
    %v2086 = vand.u32 %v2085, 4294901760
    %2087 = vmatpush1.msra.mxu0 %v2086
    %2088 = vmatprep.subr.mxu0 0.0
    %v2089 = vand.u32 %v88, 4294901760
    %v2090 = vsub.f32 %v88, %v2089
    %v2091 = vand.u32 %v2090, 4294901760
    %v2092 = vsub.f32 %v2090, %v2091
    %v2093 = vand.u32 %v2092, 4294901760
    %2094 = vmatpush1.msra.mxu0 %v2093
    %2095 = vmatprep.subr.mxu0 0.0
    %v2096 = vand.u32 %v87, 4294901760
    %v2097 = vsub.f32 %v87, %v2096
    %v2098 = vand.u32 %v2097, 4294901760
    %v2099 = vsub.f32 %v2097, %v2098
    %v2100 = vand.u32 %v2099, 4294901760
    %2101 = vmatpush1.msra.mxu0 %v2100
    %2102 = vmatprep.subr.mxu0 0.0
    %v2103 = vand.u32 %v86, 4294901760
    %v2104 = vsub.f32 %v86, %v2103
    %v2105 = vand.u32 %v2104, 4294901760
    %v2106 = vsub.f32 %v2104, %v2105
    %v2107 = vand.u32 %v2106, 4294901760
    %2108 = vmatpush1.msra.mxu0 %v2107
    %2109 = vmatprep.subr.mxu0 0.0
    %v2110 = vand.u32 %v85, 4294901760
    %v2111 = vsub.f32 %v85, %v2110
    %v2112 = vand.u32 %v2111, 4294901760
    %v2113 = vsub.f32 %v2111, %v2112
    %v2114 = vand.u32 %v2113, 4294901760
    %2115 = vmatpush1.msra.mxu0 %v2114
    %2116 = vmatprep.subr.mxu0 0.0
    %v2117 = vand.u32 %v84, 4294901760
    %v2118 = vsub.f32 %v84, %v2117
    %v2119 = vand.u32 %v2118, 4294901760
    %v2120 = vsub.f32 %v2118, %v2119
    %v2121 = vand.u32 %v2120, 4294901760
    %2122 = vmatpush1.msra.mxu0 %v2121
    %2123 = vmatprep.subr.mxu0 0.0
    %v2124 = vand.u32 %v83, 4294901760
    %v2125 = vsub.f32 %v83, %v2124
    %v2126 = vand.u32 %v2125, 4294901760
    %v2127 = vsub.f32 %v2125, %v2126
    %v2128 = vand.u32 %v2127, 4294901760
    %2129 = vmatpush1.msra.mxu0 %v2128
    %2130 = vmatprep.subr.mxu0 0.0
    %v2131 = vand.u32 %v82, 4294901760
    %v2132 = vsub.f32 %v82, %v2131
    %v2133 = vand.u32 %v2132, 4294901760
    %v2134 = vsub.f32 %v2132, %v2133
    %v2135 = vand.u32 %v2134, 4294901760
    %2136 = vmatpush1.msra.mxu0 %v2135
    %2137 = vmatprep.subr.mxu0 0.0
    %v2138 = vand.u32 %v81, 4294901760
    %v2139 = vsub.f32 %v81, %v2138
    %v2140 = vand.u32 %v2139, 4294901760
    %v2141 = vsub.f32 %v2139, %v2140
    %v2142 = vand.u32 %v2141, 4294901760
    %2143 = vmatpush1.msra.mxu0 %v2142
    %2144 = vmatprep.subr.mxu0 0.0
    %v2145 = vand.u32 %v112, 4294901760
    %v2146 = vsub.f32 %v112, %v2145
    %v2147 = vand.u32 %v2146, 4294901760
    %v2148 = vsub.f32 %v2146, %v2147
    %v2149 = vand.u32 %v2148, 4294901760
    %2150 = vmatpush2.msra.mxu0 %v2149
    %2151 = vmatprep.subr.mxu0 0.0
    %v2152 = vand.u32 %v111, 4294901760
    %v2153 = vsub.f32 %v111, %v2152
    %v2154 = vand.u32 %v2153, 4294901760
    %v2155 = vsub.f32 %v2153, %v2154
    %v2156 = vand.u32 %v2155, 4294901760
    %2157 = vmatpush2.msra.mxu0 %v2156
    %2158 = vmatprep.subr.mxu0 0.0
    %v2159 = vand.u32 %v110, 4294901760
    %v2160 = vsub.f32 %v110, %v2159
    %v2161 = vand.u32 %v2160, 4294901760
    %v2162 = vsub.f32 %v2160, %v2161
    %v2163 = vand.u32 %v2162, 4294901760
    %2164 = vmatpush2.msra.mxu0 %v2163
    %2165 = vmatprep.subr.mxu0 0.0
    %v2166 = vand.u32 %v109, 4294901760
    %v2167 = vsub.f32 %v109, %v2166
    %v2168 = vand.u32 %v2167, 4294901760
    %v2169 = vsub.f32 %v2167, %v2168
    %v2170 = vand.u32 %v2169, 4294901760
    %2171 = vmatpush2.msra.mxu0 %v2170
    %2172 = vmatprep.subr.mxu0 0.0
    %v2173 = vand.u32 %v108, 4294901760
    %v2174 = vsub.f32 %v108, %v2173
    %v2175 = vand.u32 %v2174, 4294901760
    %v2176 = vsub.f32 %v2174, %v2175
    %v2177 = vand.u32 %v2176, 4294901760
    %2178 = vmatpush2.msra.mxu0 %v2177
    %2179 = vmatprep.subr.mxu0 0.0
    %v2180 = vand.u32 %v107, 4294901760
    %v2181 = vsub.f32 %v107, %v2180
    %v2182 = vand.u32 %v2181, 4294901760
    %v2183 = vsub.f32 %v2181, %v2182
    %v2184 = vand.u32 %v2183, 4294901760
    %2185 = vmatpush2.msra.mxu0 %v2184
    %2186 = vmatprep.subr.mxu0 0.0
    %v2187 = vand.u32 %v106, 4294901760
    %v2188 = vsub.f32 %v106, %v2187
    %v2189 = vand.u32 %v2188, 4294901760
    %v2190 = vsub.f32 %v2188, %v2189
    %v2191 = vand.u32 %v2190, 4294901760
    %2192 = vmatpush2.msra.mxu0 %v2191
    %2193 = vmatprep.subr.mxu0 0.0
    %v2194 = vand.u32 %v105, 4294901760
    %v2195 = vsub.f32 %v105, %v2194
    %v2196 = vand.u32 %v2195, 4294901760
    %v2197 = vsub.f32 %v2195, %v2196
    %v2198 = vand.u32 %v2197, 4294901760
    %2199 = vmatpush2.msra.mxu0 %v2198
    %2200 = vmatprep.subr.mxu0 0.0
    %v2201 = vand.u32 %v104, 4294901760
    %v2202 = vsub.f32 %v104, %v2201
    %v2203 = vand.u32 %v2202, 4294901760
    %v2204 = vsub.f32 %v2202, %v2203
    %v2205 = vand.u32 %v2204, 4294901760
    %2206 = vmatpush2.msra.mxu0 %v2205
    %2207 = vmatprep.subr.mxu0 0.0
    %v2208 = vand.u32 %v103, 4294901760
    %v2209 = vsub.f32 %v103, %v2208
    %v2210 = vand.u32 %v2209, 4294901760
    %v2211 = vsub.f32 %v2209, %v2210
    %v2212 = vand.u32 %v2211, 4294901760
    %2213 = vmatpush2.msra.mxu0 %v2212
    %2214 = vmatprep.subr.mxu0 0.0
    %v2215 = vand.u32 %v102, 4294901760
    %v2216 = vsub.f32 %v102, %v2215
    %v2217 = vand.u32 %v2216, 4294901760
    %v2218 = vsub.f32 %v2216, %v2217
    %v2219 = vand.u32 %v2218, 4294901760
    %2220 = vmatpush2.msra.mxu0 %v2219
    %2221 = vmatprep.subr.mxu0 0.0
    %v2222 = vand.u32 %v101, 4294901760
    %v2223 = vsub.f32 %v101, %v2222
    %v2224 = vand.u32 %v2223, 4294901760
    %v2225 = vsub.f32 %v2223, %v2224
    %v2226 = vand.u32 %v2225, 4294901760
    %2227 = vmatpush2.msra.mxu0 %v2226
    %2228 = vmatprep.subr.mxu0 0.0
    %v2229 = vand.u32 %v100, 4294901760
    %v2230 = vsub.f32 %v100, %v2229
    %v2231 = vand.u32 %v2230, 4294901760
    %v2232 = vsub.f32 %v2230, %v2231
    %v2233 = vand.u32 %v2232, 4294901760
    %2234 = vmatpush2.msra.mxu0 %v2233
    %2235 = vmatprep.subr.mxu0 0.0
    %v2236 = vand.u32 %v99, 4294901760
    %v2237 = vsub.f32 %v99, %v2236
    %v2238 = vand.u32 %v2237, 4294901760
    %v2239 = vsub.f32 %v2237, %v2238
    %v2240 = vand.u32 %v2239, 4294901760
    %2241 = vmatpush2.msra.mxu0 %v2240
    %2242 = vmatprep.subr.mxu0 0.0
    %v2243 = vand.u32 %v98, 4294901760
    %v2244 = vsub.f32 %v98, %v2243
    %v2245 = vand.u32 %v2244, 4294901760
    %v2246 = vsub.f32 %v2244, %v2245
    %v2247 = vand.u32 %v2246, 4294901760
    %2248 = vmatpush2.msra.mxu0 %v2247
    %2249 = vmatprep.subr.mxu0 0.0
    %v2250 = vand.u32 %v97, 4294901760
    %v2251 = vsub.f32 %v97, %v2250
    %v2252 = vand.u32 %v2251, 4294901760
    %v2253 = vsub.f32 %v2251, %v2252
    %v2254 = vand.u32 %v2253, 4294901760
    %2255 = vmatpush2.msra.mxu0 %v2254
    %v2256 = vand.u32 %v186, 4294901760
    %2257 = vmatprep.mubr.f32.mxu0 %v2256
    %v2258 = vand.u32 %v178, 4294901760
    %2259 = vmatmul.mubr.f32.gmra.mxu0 %v2258
    %v2260 = vpop.f32.mrf.mxu0
    %v2261 = vadd.f32 %v2029, %v2260
    %v2262 = vpop.f32.mrf.mxu0
    %2263 = vdwg.mxu0
    %2264 = vmatprep.subr.mxu0 0.0
    %v2265 = vand.u32 %v96, 4294901760
    %v2266 = vsub.f32 %v96, %v2265
    %2267 = vmatpush1.msra.mxu0 %v2266
    %2268 = vmatprep.subr.mxu0 0.0
    %v2269 = vand.u32 %v95, 4294901760
    %v2270 = vsub.f32 %v95, %v2269
    %2271 = vmatpush1.msra.mxu0 %v2270
    %2272 = vmatprep.subr.mxu0 0.0
    %v2273 = vand.u32 %v94, 4294901760
    %v2274 = vsub.f32 %v94, %v2273
    %2275 = vmatpush1.msra.mxu0 %v2274
    %2276 = vmatprep.subr.mxu0 0.0
    %v2277 = vand.u32 %v93, 4294901760
    %v2278 = vsub.f32 %v93, %v2277
    %2279 = vmatpush1.msra.mxu0 %v2278
    %2280 = vmatprep.subr.mxu0 0.0
    %v2281 = vand.u32 %v92, 4294901760
    %v2282 = vsub.f32 %v92, %v2281
    %2283 = vmatpush1.msra.mxu0 %v2282
    %2284 = vmatprep.subr.mxu0 0.0
    %v2285 = vand.u32 %v91, 4294901760
    %v2286 = vsub.f32 %v91, %v2285
    %2287 = vmatpush1.msra.mxu0 %v2286
    %2288 = vmatprep.subr.mxu0 0.0
    %v2289 = vand.u32 %v90, 4294901760
    %v2290 = vsub.f32 %v90, %v2289
    %2291 = vmatpush1.msra.mxu0 %v2290
    %2292 = vmatprep.subr.mxu0 0.0
    %v2293 = vand.u32 %v89, 4294901760
    %v2294 = vsub.f32 %v89, %v2293
    %2295 = vmatpush1.msra.mxu0 %v2294
    %2296 = vmatprep.subr.mxu0 0.0
    %v2297 = vand.u32 %v88, 4294901760
    %v2298 = vsub.f32 %v88, %v2297
    %2299 = vmatpush1.msra.mxu0 %v2298
    %2300 = vmatprep.subr.mxu0 0.0
    %v2301 = vand.u32 %v87, 4294901760
    %v2302 = vsub.f32 %v87, %v2301
    %2303 = vmatpush1.msra.mxu0 %v2302
    %2304 = vmatprep.subr.mxu0 0.0
    %v2305 = vand.u32 %v86, 4294901760
    %v2306 = vsub.f32 %v86, %v2305
    %2307 = vmatpush1.msra.mxu0 %v2306
    %2308 = vmatprep.subr.mxu0 0.0
    %v2309 = vand.u32 %v85, 4294901760
    %v2310 = vsub.f32 %v85, %v2309
    %2311 = vmatpush1.msra.mxu0 %v2310
    %2312 = vmatprep.subr.mxu0 0.0
    %v2313 = vand.u32 %v84, 4294901760
    %v2314 = vsub.f32 %v84, %v2313
    %2315 = vmatpush1.msra.mxu0 %v2314
    %2316 = vmatprep.subr.mxu0 0.0
    %v2317 = vand.u32 %v83, 4294901760
    %v2318 = vsub.f32 %v83, %v2317
    %2319 = vmatpush1.msra.mxu0 %v2318
    %2320 = vmatprep.subr.mxu0 0.0
    %v2321 = vand.u32 %v82, 4294901760
    %v2322 = vsub.f32 %v82, %v2321
    %2323 = vmatpush1.msra.mxu0 %v2322
    %2324 = vmatprep.subr.mxu0 0.0
    %v2325 = vand.u32 %v81, 4294901760
    %v2326 = vsub.f32 %v81, %v2325
    %2327 = vmatpush1.msra.mxu0 %v2326
    %2328 = vmatprep.subr.mxu0 0.0
    %v2329 = vand.u32 %v112, 4294901760
    %v2330 = vsub.f32 %v112, %v2329
    %2331 = vmatpush2.msra.mxu0 %v2330
    %2332 = vmatprep.subr.mxu0 0.0
    %v2333 = vand.u32 %v111, 4294901760
    %v2334 = vsub.f32 %v111, %v2333
    %2335 = vmatpush2.msra.mxu0 %v2334
    %2336 = vmatprep.subr.mxu0 0.0
    %v2337 = vand.u32 %v110, 4294901760
    %v2338 = vsub.f32 %v110, %v2337
    %2339 = vmatpush2.msra.mxu0 %v2338
    %2340 = vmatprep.subr.mxu0 0.0
    %v2341 = vand.u32 %v109, 4294901760
    %v2342 = vsub.f32 %v109, %v2341
    %2343 = vmatpush2.msra.mxu0 %v2342
    %2344 = vmatprep.subr.mxu0 0.0
    %v2345 = vand.u32 %v108, 4294901760
    %v2346 = vsub.f32 %v108, %v2345
    %2347 = vmatpush2.msra.mxu0 %v2346
    %2348 = vmatprep.subr.mxu0 0.0
    %v2349 = vand.u32 %v107, 4294901760
    %v2350 = vsub.f32 %v107, %v2349
    %2351 = vmatpush2.msra.mxu0 %v2350
    %2352 = vmatprep.subr.mxu0 0.0
    %v2353 = vand.u32 %v106, 4294901760
    %v2354 = vsub.f32 %v106, %v2353
    %2355 = vmatpush2.msra.mxu0 %v2354
    %2356 = vmatprep.subr.mxu0 0.0
    %v2357 = vand.u32 %v105, 4294901760
    %v2358 = vsub.f32 %v105, %v2357
    %2359 = vmatpush2.msra.mxu0 %v2358
    %2360 = vmatprep.subr.mxu0 0.0
    %v2361 = vand.u32 %v104, 4294901760
    %v2362 = vsub.f32 %v104, %v2361
    %2363 = vmatpush2.msra.mxu0 %v2362
    %2364 = vmatprep.subr.mxu0 0.0
    %v2365 = vand.u32 %v103, 4294901760
    %v2366 = vsub.f32 %v103, %v2365
    %2367 = vmatpush2.msra.mxu0 %v2366
    %2368 = vmatprep.subr.mxu0 0.0
    %v2369 = vand.u32 %v102, 4294901760
    %v2370 = vsub.f32 %v102, %v2369
    %2371 = vmatpush2.msra.mxu0 %v2370
    %2372 = vmatprep.subr.mxu0 0.0
    %v2373 = vand.u32 %v101, 4294901760
    %v2374 = vsub.f32 %v101, %v2373
    %2375 = vmatpush2.msra.mxu0 %v2374
    %2376 = vmatprep.subr.mxu0 0.0
    %v2377 = vand.u32 %v100, 4294901760
    %v2378 = vsub.f32 %v100, %v2377
    %2379 = vmatpush2.msra.mxu0 %v2378
    %2380 = vmatprep.subr.mxu0 0.0
    %v2381 = vand.u32 %v99, 4294901760
    %v2382 = vsub.f32 %v99, %v2381
    %2383 = vmatpush2.msra.mxu0 %v2382
    %2384 = vmatprep.subr.mxu0 0.0
    %v2385 = vand.u32 %v98, 4294901760
    %v2386 = vsub.f32 %v98, %v2385
    %2387 = vmatpush2.msra.mxu0 %v2386
    %2388 = vmatprep.subr.mxu0 0.0
    %v2389 = vand.u32 %v97, 4294901760
    %v2390 = vsub.f32 %v97, %v2389
    %2391 = vmatpush2.msra.mxu0 %v2390
    %v2392 = vand.u32 %v186, 4294901760
    %v2393 = vsub.f32 %v186, %v2392
    %2394 = vmatprep.mubr.f32.mxu0 %v2393
    %v2395 = vand.u32 %v178, 4294901760
    %v2396 = vsub.f32 %v178, %v2395
    %2397 = vmatmul.mubr.f32.gmra.mxu0 %v2396
    %v2398 = vpop.f32.mrf.mxu0
    %v2399 = vadd.f32 %v2261, %v2398
    %v2400 = vpop.f32.mrf.mxu0
    %2401 = vdwg.mxu0
    %2402 = vmatprep.subr.mxu0 0.0
    %v2403 = vand.u32 %v96, 4294901760
    %2404 = vmatpush1.msra.mxu0 %v2403
    %2405 = vmatprep.subr.mxu0 0.0
    %v2406 = vand.u32 %v95, 4294901760
    %2407 = vmatpush1.msra.mxu0 %v2406
    %2408 = vmatprep.subr.mxu0 0.0
    %v2409 = vand.u32 %v94, 4294901760
    %2410 = vmatpush1.msra.mxu0 %v2409
    %2411 = vmatprep.subr.mxu0 0.0
    %v2412 = vand.u32 %v93, 4294901760
    %2413 = vmatpush1.msra.mxu0 %v2412
    %2414 = vmatprep.subr.mxu0 0.0
    %v2415 = vand.u32 %v92, 4294901760
    %2416 = vmatpush1.msra.mxu0 %v2415
    %2417 = vmatprep.subr.mxu0 0.0
    %v2418 = vand.u32 %v91, 4294901760
    %2419 = vmatpush1.msra.mxu0 %v2418
    %2420 = vmatprep.subr.mxu0 0.0
    %v2421 = vand.u32 %v90, 4294901760
    %2422 = vmatpush1.msra.mxu0 %v2421
    %2423 = vmatprep.subr.mxu0 0.0
    %v2424 = vand.u32 %v89, 4294901760
    %2425 = vmatpush1.msra.mxu0 %v2424
    %2426 = vmatprep.subr.mxu0 0.0
    %v2427 = vand.u32 %v88, 4294901760
    %2428 = vmatpush1.msra.mxu0 %v2427
    %2429 = vmatprep.subr.mxu0 0.0
    %v2430 = vand.u32 %v87, 4294901760
    %2431 = vmatpush1.msra.mxu0 %v2430
    %2432 = vmatprep.subr.mxu0 0.0
    %v2433 = vand.u32 %v86, 4294901760
    %2434 = vmatpush1.msra.mxu0 %v2433
    %2435 = vmatprep.subr.mxu0 0.0
    %v2436 = vand.u32 %v85, 4294901760
    %2437 = vmatpush1.msra.mxu0 %v2436
    %2438 = vmatprep.subr.mxu0 0.0
    %v2439 = vand.u32 %v84, 4294901760
    %2440 = vmatpush1.msra.mxu0 %v2439
    %2441 = vmatprep.subr.mxu0 0.0
    %v2442 = vand.u32 %v83, 4294901760
    %2443 = vmatpush1.msra.mxu0 %v2442
    %2444 = vmatprep.subr.mxu0 0.0
    %v2445 = vand.u32 %v82, 4294901760
    %2446 = vmatpush1.msra.mxu0 %v2445
    %2447 = vmatprep.subr.mxu0 0.0
    %v2448 = vand.u32 %v81, 4294901760
    %2449 = vmatpush1.msra.mxu0 %v2448
    %2450 = vmatprep.subr.mxu0 0.0
    %v2451 = vand.u32 %v112, 4294901760
    %2452 = vmatpush2.msra.mxu0 %v2451
    %2453 = vmatprep.subr.mxu0 0.0
    %v2454 = vand.u32 %v111, 4294901760
    %2455 = vmatpush2.msra.mxu0 %v2454
    %2456 = vmatprep.subr.mxu0 0.0
    %v2457 = vand.u32 %v110, 4294901760
    %2458 = vmatpush2.msra.mxu0 %v2457
    %2459 = vmatprep.subr.mxu0 0.0
    %v2460 = vand.u32 %v109, 4294901760
    %2461 = vmatpush2.msra.mxu0 %v2460
    %2462 = vmatprep.subr.mxu0 0.0
    %v2463 = vand.u32 %v108, 4294901760
    %2464 = vmatpush2.msra.mxu0 %v2463
    %2465 = vmatprep.subr.mxu0 0.0
    %v2466 = vand.u32 %v107, 4294901760
    %2467 = vmatpush2.msra.mxu0 %v2466
    %2468 = vmatprep.subr.mxu0 0.0
    %v2469 = vand.u32 %v106, 4294901760
    %2470 = vmatpush2.msra.mxu0 %v2469
    %2471 = vmatprep.subr.mxu0 0.0
    %v2472 = vand.u32 %v105, 4294901760
    %2473 = vmatpush2.msra.mxu0 %v2472
    %2474 = vmatprep.subr.mxu0 0.0
    %v2475 = vand.u32 %v104, 4294901760
    %2476 = vmatpush2.msra.mxu0 %v2475
    %2477 = vmatprep.subr.mxu0 0.0
    %v2478 = vand.u32 %v103, 4294901760
    %2479 = vmatpush2.msra.mxu0 %v2478
    %2480 = vmatprep.subr.mxu0 0.0
    %v2481 = vand.u32 %v102, 4294901760
    %2482 = vmatpush2.msra.mxu0 %v2481
    %2483 = vmatprep.subr.mxu0 0.0
    %v2484 = vand.u32 %v101, 4294901760
    %2485 = vmatpush2.msra.mxu0 %v2484
    %2486 = vmatprep.subr.mxu0 0.0
    %v2487 = vand.u32 %v100, 4294901760
    %2488 = vmatpush2.msra.mxu0 %v2487
    %2489 = vmatprep.subr.mxu0 0.0
    %v2490 = vand.u32 %v99, 4294901760
    %2491 = vmatpush2.msra.mxu0 %v2490
    %2492 = vmatprep.subr.mxu0 0.0
    %v2493 = vand.u32 %v98, 4294901760
    %2494 = vmatpush2.msra.mxu0 %v2493
    %2495 = vmatprep.subr.mxu0 0.0
    %v2496 = vand.u32 %v97, 4294901760
    %2497 = vmatpush2.msra.mxu0 %v2496
    %v2498 = vand.u32 %v186, 4294901760
    %v2499 = vsub.f32 %v186, %v2498
    %v2500 = vand.u32 %v2499, 4294901760
    %2501 = vmatprep.mubr.f32.mxu0 %v2500
    %v2502 = vand.u32 %v178, 4294901760
    %v2503 = vsub.f32 %v178, %v2502
    %v2504 = vand.u32 %v2503, 4294901760
    %2505 = vmatmul.mubr.f32.gmra.mxu0 %v2504
    %v2506 = vpop.f32.mrf.mxu0
    %v2507 = vadd.f32 %v2399, %v2506
    %v2508 = vpop.f32.mrf.mxu0
    %2509 = vdwg.mxu0
    %2510 = vmatprep.subr.mxu0 0.0
    %v2511 = vand.u32 %v96, 4294901760
    %v2512 = vsub.f32 %v96, %v2511
    %v2513 = vand.u32 %v2512, 4294901760
    %2514 = vmatpush1.msra.mxu0 %v2513
    %2515 = vmatprep.subr.mxu0 0.0
    %v2516 = vand.u32 %v95, 4294901760
    %v2517 = vsub.f32 %v95, %v2516
    %v2518 = vand.u32 %v2517, 4294901760
    %2519 = vmatpush1.msra.mxu0 %v2518
    %2520 = vmatprep.subr.mxu0 0.0
    %v2521 = vand.u32 %v94, 4294901760
    %v2522 = vsub.f32 %v94, %v2521
    %v2523 = vand.u32 %v2522, 4294901760
    %2524 = vmatpush1.msra.mxu0 %v2523
    %2525 = vmatprep.subr.mxu0 0.0
    %v2526 = vand.u32 %v93, 4294901760
    %v2527 = vsub.f32 %v93, %v2526
    %v2528 = vand.u32 %v2527, 4294901760
    %2529 = vmatpush1.msra.mxu0 %v2528
    %2530 = vmatprep.subr.mxu0 0.0
    %v2531 = vand.u32 %v92, 4294901760
    %v2532 = vsub.f32 %v92, %v2531
    %v2533 = vand.u32 %v2532, 4294901760
    %2534 = vmatpush1.msra.mxu0 %v2533
    %2535 = vmatprep.subr.mxu0 0.0
    %v2536 = vand.u32 %v91, 4294901760
    %v2537 = vsub.f32 %v91, %v2536
    %v2538 = vand.u32 %v2537, 4294901760
    %2539 = vmatpush1.msra.mxu0 %v2538
    %2540 = vmatprep.subr.mxu0 0.0
    %v2541 = vand.u32 %v90, 4294901760
    %v2542 = vsub.f32 %v90, %v2541
    %v2543 = vand.u32 %v2542, 4294901760
    %2544 = vmatpush1.msra.mxu0 %v2543
    %2545 = vmatprep.subr.mxu0 0.0
    %v2546 = vand.u32 %v89, 4294901760
    %v2547 = vsub.f32 %v89, %v2546
    %v2548 = vand.u32 %v2547, 4294901760
    %2549 = vmatpush1.msra.mxu0 %v2548
    %2550 = vmatprep.subr.mxu0 0.0
    %v2551 = vand.u32 %v88, 4294901760
    %v2552 = vsub.f32 %v88, %v2551
    %v2553 = vand.u32 %v2552, 4294901760
    %2554 = vmatpush1.msra.mxu0 %v2553
    %2555 = vmatprep.subr.mxu0 0.0
    %v2556 = vand.u32 %v87, 4294901760
    %v2557 = vsub.f32 %v87, %v2556
    %v2558 = vand.u32 %v2557, 4294901760
    %2559 = vmatpush1.msra.mxu0 %v2558
    %2560 = vmatprep.subr.mxu0 0.0
    %v2561 = vand.u32 %v86, 4294901760
    %v2562 = vsub.f32 %v86, %v2561
    %v2563 = vand.u32 %v2562, 4294901760
    %2564 = vmatpush1.msra.mxu0 %v2563
    %2565 = vmatprep.subr.mxu0 0.0
    %v2566 = vand.u32 %v85, 4294901760
    %v2567 = vsub.f32 %v85, %v2566
    %v2568 = vand.u32 %v2567, 4294901760
    %2569 = vmatpush1.msra.mxu0 %v2568
    %2570 = vmatprep.subr.mxu0 0.0
    %v2571 = vand.u32 %v84, 4294901760
    %v2572 = vsub.f32 %v84, %v2571
    %v2573 = vand.u32 %v2572, 4294901760
    %2574 = vmatpush1.msra.mxu0 %v2573
    %2575 = vmatprep.subr.mxu0 0.0
    %v2576 = vand.u32 %v83, 4294901760
    %v2577 = vsub.f32 %v83, %v2576
    %v2578 = vand.u32 %v2577, 4294901760
    %2579 = vmatpush1.msra.mxu0 %v2578
    %2580 = vmatprep.subr.mxu0 0.0
    %v2581 = vand.u32 %v82, 4294901760
    %v2582 = vsub.f32 %v82, %v2581
    %v2583 = vand.u32 %v2582, 4294901760
    %2584 = vmatpush1.msra.mxu0 %v2583
    %2585 = vmatprep.subr.mxu0 0.0
    %v2586 = vand.u32 %v81, 4294901760
    %v2587 = vsub.f32 %v81, %v2586
    %v2588 = vand.u32 %v2587, 4294901760
    %2589 = vmatpush1.msra.mxu0 %v2588
    %2590 = vmatprep.subr.mxu0 0.0
    %v2591 = vand.u32 %v112, 4294901760
    %v2592 = vsub.f32 %v112, %v2591
    %v2593 = vand.u32 %v2592, 4294901760
    %2594 = vmatpush2.msra.mxu0 %v2593
    %2595 = vmatprep.subr.mxu0 0.0
    %v2596 = vand.u32 %v111, 4294901760
    %v2597 = vsub.f32 %v111, %v2596
    %v2598 = vand.u32 %v2597, 4294901760
    %2599 = vmatpush2.msra.mxu0 %v2598
    %2600 = vmatprep.subr.mxu0 0.0
    %v2601 = vand.u32 %v110, 4294901760
    %v2602 = vsub.f32 %v110, %v2601
    %v2603 = vand.u32 %v2602, 4294901760
    %2604 = vmatpush2.msra.mxu0 %v2603
    %2605 = vmatprep.subr.mxu0 0.0
    %v2606 = vand.u32 %v109, 4294901760
    %v2607 = vsub.f32 %v109, %v2606
    %v2608 = vand.u32 %v2607, 4294901760
    %2609 = vmatpush2.msra.mxu0 %v2608
    %2610 = vmatprep.subr.mxu0 0.0
    %v2611 = vand.u32 %v108, 4294901760
    %v2612 = vsub.f32 %v108, %v2611
    %v2613 = vand.u32 %v2612, 4294901760
    %2614 = vmatpush2.msra.mxu0 %v2613
    %2615 = vmatprep.subr.mxu0 0.0
    %v2616 = vand.u32 %v107, 4294901760
    %v2617 = vsub.f32 %v107, %v2616
    %v2618 = vand.u32 %v2617, 4294901760
    %2619 = vmatpush2.msra.mxu0 %v2618
    %2620 = vmatprep.subr.mxu0 0.0
    %v2621 = vand.u32 %v106, 4294901760
    %v2622 = vsub.f32 %v106, %v2621
    %v2623 = vand.u32 %v2622, 4294901760
    %2624 = vmatpush2.msra.mxu0 %v2623
    %2625 = vmatprep.subr.mxu0 0.0
    %v2626 = vand.u32 %v105, 4294901760
    %v2627 = vsub.f32 %v105, %v2626
    %v2628 = vand.u32 %v2627, 4294901760
    %2629 = vmatpush2.msra.mxu0 %v2628
    %2630 = vmatprep.subr.mxu0 0.0
    %v2631 = vand.u32 %v104, 4294901760
    %v2632 = vsub.f32 %v104, %v2631
    %v2633 = vand.u32 %v2632, 4294901760
    %2634 = vmatpush2.msra.mxu0 %v2633
    %2635 = vmatprep.subr.mxu0 0.0
    %v2636 = vand.u32 %v103, 4294901760
    %v2637 = vsub.f32 %v103, %v2636
    %v2638 = vand.u32 %v2637, 4294901760
    %2639 = vmatpush2.msra.mxu0 %v2638
    %2640 = vmatprep.subr.mxu0 0.0
    %v2641 = vand.u32 %v102, 4294901760
    %v2642 = vsub.f32 %v102, %v2641
    %v2643 = vand.u32 %v2642, 4294901760
    %2644 = vmatpush2.msra.mxu0 %v2643
    %2645 = vmatprep.subr.mxu0 0.0
    %v2646 = vand.u32 %v101, 4294901760
    %v2647 = vsub.f32 %v101, %v2646
    %v2648 = vand.u32 %v2647, 4294901760
    %2649 = vmatpush2.msra.mxu0 %v2648
    %2650 = vmatprep.subr.mxu0 0.0
    %v2651 = vand.u32 %v100, 4294901760
    %v2652 = vsub.f32 %v100, %v2651
    %v2653 = vand.u32 %v2652, 4294901760
    %2654 = vmatpush2.msra.mxu0 %v2653
    %2655 = vmatprep.subr.mxu0 0.0
    %v2656 = vand.u32 %v99, 4294901760
    %v2657 = vsub.f32 %v99, %v2656
    %v2658 = vand.u32 %v2657, 4294901760
    %2659 = vmatpush2.msra.mxu0 %v2658
    %2660 = vmatprep.subr.mxu0 0.0
    %v2661 = vand.u32 %v98, 4294901760
    %v2662 = vsub.f32 %v98, %v2661
    %v2663 = vand.u32 %v2662, 4294901760
    %2664 = vmatpush2.msra.mxu0 %v2663
    %2665 = vmatprep.subr.mxu0 0.0
    %v2666 = vand.u32 %v97, 4294901760
    %v2667 = vsub.f32 %v97, %v2666
    %v2668 = vand.u32 %v2667, 4294901760
    %2669 = vmatpush2.msra.mxu0 %v2668
    %v2670 = vand.u32 %v186, 4294901760
    %2671 = vmatprep.mubr.f32.mxu0 %v2670
    %v2672 = vand.u32 %v178, 4294901760
    %2673 = vmatmul.mubr.f32.gmra.mxu0 %v2672
    %v2674 = vpop.f32.mrf.mxu0
    %v2675 = vadd.f32 %v2507, %v2674
    %v2676 = vpop.f32.mrf.mxu0
    %2677 = vdwg.mxu0
    %2678 = vmatprep.subr.mxu0 0.0
    %v2679 = vand.u32 %v96, 4294901760
    %2680 = vmatpush1.msra.mxu0 %v2679
    %2681 = vmatprep.subr.mxu0 0.0
    %v2682 = vand.u32 %v95, 4294901760
    %2683 = vmatpush1.msra.mxu0 %v2682
    %2684 = vmatprep.subr.mxu0 0.0
    %v2685 = vand.u32 %v94, 4294901760
    %2686 = vmatpush1.msra.mxu0 %v2685
    %2687 = vmatprep.subr.mxu0 0.0
    %v2688 = vand.u32 %v93, 4294901760
    %2689 = vmatpush1.msra.mxu0 %v2688
    %2690 = vmatprep.subr.mxu0 0.0
    %v2691 = vand.u32 %v92, 4294901760
    %2692 = vmatpush1.msra.mxu0 %v2691
    %2693 = vmatprep.subr.mxu0 0.0
    %v2694 = vand.u32 %v91, 4294901760
    %2695 = vmatpush1.msra.mxu0 %v2694
    %2696 = vmatprep.subr.mxu0 0.0
    %v2697 = vand.u32 %v90, 4294901760
    %2698 = vmatpush1.msra.mxu0 %v2697
    %2699 = vmatprep.subr.mxu0 0.0
    %v2700 = vand.u32 %v89, 4294901760
    %2701 = vmatpush1.msra.mxu0 %v2700
    %2702 = vmatprep.subr.mxu0 0.0
    %v2703 = vand.u32 %v88, 4294901760
    %2704 = vmatpush1.msra.mxu0 %v2703
    %2705 = vmatprep.subr.mxu0 0.0
    %v2706 = vand.u32 %v87, 4294901760
    %2707 = vmatpush1.msra.mxu0 %v2706
    %2708 = vmatprep.subr.mxu0 0.0
    %v2709 = vand.u32 %v86, 4294901760
    %2710 = vmatpush1.msra.mxu0 %v2709
    %2711 = vmatprep.subr.mxu0 0.0
    %v2712 = vand.u32 %v85, 4294901760
    %2713 = vmatpush1.msra.mxu0 %v2712
    %2714 = vmatprep.subr.mxu0 0.0
    %v2715 = vand.u32 %v84, 4294901760
    %2716 = vmatpush1.msra.mxu0 %v2715
    %2717 = vmatprep.subr.mxu0 0.0
    %v2718 = vand.u32 %v83, 4294901760
    %2719 = vmatpush1.msra.mxu0 %v2718
    %2720 = vmatprep.subr.mxu0 0.0
    %v2721 = vand.u32 %v82, 4294901760
    %2722 = vmatpush1.msra.mxu0 %v2721
    %2723 = vmatprep.subr.mxu0 0.0
    %v2724 = vand.u32 %v81, 4294901760
    %2725 = vmatpush1.msra.mxu0 %v2724
    %2726 = vmatprep.subr.mxu0 0.0
    %v2727 = vand.u32 %v112, 4294901760
    %2728 = vmatpush2.msra.mxu0 %v2727
    %2729 = vmatprep.subr.mxu0 0.0
    %v2730 = vand.u32 %v111, 4294901760
    %2731 = vmatpush2.msra.mxu0 %v2730
    %2732 = vmatprep.subr.mxu0 0.0
    %v2733 = vand.u32 %v110, 4294901760
    %2734 = vmatpush2.msra.mxu0 %v2733
    %2735 = vmatprep.subr.mxu0 0.0
    %v2736 = vand.u32 %v109, 4294901760
    %2737 = vmatpush2.msra.mxu0 %v2736
    %2738 = vmatprep.subr.mxu0 0.0
    %v2739 = vand.u32 %v108, 4294901760
    %2740 = vmatpush2.msra.mxu0 %v2739
    %2741 = vmatprep.subr.mxu0 0.0
    %v2742 = vand.u32 %v107, 4294901760
    %2743 = vmatpush2.msra.mxu0 %v2742
    %2744 = vmatprep.subr.mxu0 0.0
    %v2745 = vand.u32 %v106, 4294901760
    %2746 = vmatpush2.msra.mxu0 %v2745
    %2747 = vmatprep.subr.mxu0 0.0
    %v2748 = vand.u32 %v105, 4294901760
    %2749 = vmatpush2.msra.mxu0 %v2748
    %2750 = vmatprep.subr.mxu0 0.0
    %v2751 = vand.u32 %v104, 4294901760
    %2752 = vmatpush2.msra.mxu0 %v2751
    %2753 = vmatprep.subr.mxu0 0.0
    %v2754 = vand.u32 %v103, 4294901760
    %2755 = vmatpush2.msra.mxu0 %v2754
    %2756 = vmatprep.subr.mxu0 0.0
    %v2757 = vand.u32 %v102, 4294901760
    %2758 = vmatpush2.msra.mxu0 %v2757
    %2759 = vmatprep.subr.mxu0 0.0
    %v2760 = vand.u32 %v101, 4294901760
    %2761 = vmatpush2.msra.mxu0 %v2760
    %2762 = vmatprep.subr.mxu0 0.0
    %v2763 = vand.u32 %v100, 4294901760
    %2764 = vmatpush2.msra.mxu0 %v2763
    %2765 = vmatprep.subr.mxu0 0.0
    %v2766 = vand.u32 %v99, 4294901760
    %2767 = vmatpush2.msra.mxu0 %v2766
    %2768 = vmatprep.subr.mxu0 0.0
    %v2769 = vand.u32 %v98, 4294901760
    %2770 = vmatpush2.msra.mxu0 %v2769
    %2771 = vmatprep.subr.mxu0 0.0
    %v2772 = vand.u32 %v97, 4294901760
    %2773 = vmatpush2.msra.mxu0 %v2772
    %v2774 = vand.u32 %v186, 4294901760
    %2775 = vmatprep.mubr.f32.mxu0 %v2774
    %v2776 = vand.u32 %v178, 4294901760
    %2777 = vmatmul.mubr.f32.gmra.mxu0 %v2776
    %v2778 = vpop.f32.mrf.mxu0
    %v2779 = vadd.f32 %v2675, %v2778
    %v2780 = vpop.f32.mrf.mxu0
    %2781 = vdwg.mxu0
    %2782 = vmatprep.subr.mxu0 0.0
    %v2783 = vand.u32 %v128, 4294901760
    %2784 = vmatpush1.msra.mxu0 %v2783
    %2785 = vmatprep.subr.mxu0 0.0
    %v2786 = vand.u32 %v127, 4294901760
    %2787 = vmatpush1.msra.mxu0 %v2786
    %2788 = vmatprep.subr.mxu0 0.0
    %v2789 = vand.u32 %v126, 4294901760
    %2790 = vmatpush1.msra.mxu0 %v2789
    %2791 = vmatprep.subr.mxu0 0.0
    %v2792 = vand.u32 %v125, 4294901760
    %2793 = vmatpush1.msra.mxu0 %v2792
    %2794 = vmatprep.subr.mxu0 0.0
    %v2795 = vand.u32 %v124, 4294901760
    %2796 = vmatpush1.msra.mxu0 %v2795
    %2797 = vmatprep.subr.mxu0 0.0
    %v2798 = vand.u32 %v123, 4294901760
    %2799 = vmatpush1.msra.mxu0 %v2798
    %2800 = vmatprep.subr.mxu0 0.0
    %v2801 = vand.u32 %v122, 4294901760
    %2802 = vmatpush1.msra.mxu0 %v2801
    %2803 = vmatprep.subr.mxu0 0.0
    %v2804 = vand.u32 %v121, 4294901760
    %2805 = vmatpush1.msra.mxu0 %v2804
    %2806 = vmatprep.subr.mxu0 0.0
    %v2807 = vand.u32 %v120, 4294901760
    %2808 = vmatpush1.msra.mxu0 %v2807
    %2809 = vmatprep.subr.mxu0 0.0
    %v2810 = vand.u32 %v119, 4294901760
    %2811 = vmatpush1.msra.mxu0 %v2810
    %2812 = vmatprep.subr.mxu0 0.0
    %v2813 = vand.u32 %v118, 4294901760
    %2814 = vmatpush1.msra.mxu0 %v2813
    %2815 = vmatprep.subr.mxu0 0.0
    %v2816 = vand.u32 %v117, 4294901760
    %2817 = vmatpush1.msra.mxu0 %v2816
    %2818 = vmatprep.subr.mxu0 0.0
    %v2819 = vand.u32 %v116, 4294901760
    %2820 = vmatpush1.msra.mxu0 %v2819
    %2821 = vmatprep.subr.mxu0 0.0
    %v2822 = vand.u32 %v115, 4294901760
    %2823 = vmatpush1.msra.mxu0 %v2822
    %2824 = vmatprep.subr.mxu0 0.0
    %v2825 = vand.u32 %v114, 4294901760
    %2826 = vmatpush1.msra.mxu0 %v2825
    %2827 = vmatprep.subr.mxu0 0.0
    %v2828 = vand.u32 %v113, 4294901760
    %2829 = vmatpush1.msra.mxu0 %v2828
    %2830 = vmatprep.subr.mxu0 0.0
    %v2831 = vand.u32 %v144, 4294901760
    %2832 = vmatpush2.msra.mxu0 %v2831
    %2833 = vmatprep.subr.mxu0 0.0
    %v2834 = vand.u32 %v143, 4294901760
    %2835 = vmatpush2.msra.mxu0 %v2834
    %2836 = vmatprep.subr.mxu0 0.0
    %v2837 = vand.u32 %v142, 4294901760
    %2838 = vmatpush2.msra.mxu0 %v2837
    %2839 = vmatprep.subr.mxu0 0.0
    %v2840 = vand.u32 %v141, 4294901760
    %2841 = vmatpush2.msra.mxu0 %v2840
    %2842 = vmatprep.subr.mxu0 0.0
    %v2843 = vand.u32 %v140, 4294901760
    %2844 = vmatpush2.msra.mxu0 %v2843
    %2845 = vmatprep.subr.mxu0 0.0
    %v2846 = vand.u32 %v139, 4294901760
    %2847 = vmatpush2.msra.mxu0 %v2846
    %2848 = vmatprep.subr.mxu0 0.0
    %v2849 = vand.u32 %v138, 4294901760
    %2850 = vmatpush2.msra.mxu0 %v2849
    %2851 = vmatprep.subr.mxu0 0.0
    %v2852 = vand.u32 %v137, 4294901760
    %2853 = vmatpush2.msra.mxu0 %v2852
    %2854 = vmatprep.subr.mxu0 0.0
    %v2855 = vand.u32 %v136, 4294901760
    %2856 = vmatpush2.msra.mxu0 %v2855
    %2857 = vmatprep.subr.mxu0 0.0
    %v2858 = vand.u32 %v135, 4294901760
    %2859 = vmatpush2.msra.mxu0 %v2858
    %2860 = vmatprep.subr.mxu0 0.0
    %v2861 = vand.u32 %v134, 4294901760
    %2862 = vmatpush2.msra.mxu0 %v2861
    %2863 = vmatprep.subr.mxu0 0.0
    %v2864 = vand.u32 %v133, 4294901760
    %2865 = vmatpush2.msra.mxu0 %v2864
    %2866 = vmatprep.subr.mxu0 0.0
    %v2867 = vand.u32 %v132, 4294901760
    %2868 = vmatpush2.msra.mxu0 %v2867
    %2869 = vmatprep.subr.mxu0 0.0
    %v2870 = vand.u32 %v131, 4294901760
    %2871 = vmatpush2.msra.mxu0 %v2870
    %2872 = vmatprep.subr.mxu0 0.0
    %v2873 = vand.u32 %v130, 4294901760
    %2874 = vmatpush2.msra.mxu0 %v2873
    %2875 = vmatprep.subr.mxu0 0.0
    %v2876 = vand.u32 %v129, 4294901760
    %2877 = vmatpush2.msra.mxu0 %v2876
    %v2878 = vand.u32 %v187, 4294901760
    %v2879 = vsub.f32 %v187, %v2878
    %v2880 = vand.u32 %v2879, 4294901760
    %v2881 = vsub.f32 %v2879, %v2880
    %v2882 = vand.u32 %v2881, 4294901760
    %2883 = vmatprep.mubr.f32.mxu0 %v2882
    %v2884 = vand.u32 %v185, 4294901760
    %v2885 = vsub.f32 %v185, %v2884
    %v2886 = vand.u32 %v2885, 4294901760
    %v2887 = vsub.f32 %v2885, %v2886
    %v2888 = vand.u32 %v2887, 4294901760
    %2889 = vmatmul.mubr.f32.gmra.mxu0 %v2888
    %v2890 = vpop.f32.mrf.mxu0
    %v2891 = vadd.f32 %v2779, %v2890
    %v2892 = vpop.f32.mrf.mxu0
    %2893 = vdwg.mxu0
    %2894 = vmatprep.subr.mxu0 0.0
    %v2895 = vand.u32 %v128, 4294901760
    %v2896 = vsub.f32 %v128, %v2895
    %v2897 = vand.u32 %v2896, 4294901760
    %v2898 = vsub.f32 %v2896, %v2897
    %v2899 = vand.u32 %v2898, 4294901760
    %2900 = vmatpush1.msra.mxu0 %v2899
    %2901 = vmatprep.subr.mxu0 0.0
    %v2902 = vand.u32 %v127, 4294901760
    %v2903 = vsub.f32 %v127, %v2902
    %v2904 = vand.u32 %v2903, 4294901760
    %v2905 = vsub.f32 %v2903, %v2904
    %v2906 = vand.u32 %v2905, 4294901760
    %2907 = vmatpush1.msra.mxu0 %v2906
    %2908 = vmatprep.subr.mxu0 0.0
    %v2909 = vand.u32 %v126, 4294901760
    %v2910 = vsub.f32 %v126, %v2909
    %v2911 = vand.u32 %v2910, 4294901760
    %v2912 = vsub.f32 %v2910, %v2911
    %v2913 = vand.u32 %v2912, 4294901760
    %2914 = vmatpush1.msra.mxu0 %v2913
    %2915 = vmatprep.subr.mxu0 0.0
    %v2916 = vand.u32 %v125, 4294901760
    %v2917 = vsub.f32 %v125, %v2916
    %v2918 = vand.u32 %v2917, 4294901760
    %v2919 = vsub.f32 %v2917, %v2918
    %v2920 = vand.u32 %v2919, 4294901760
    %2921 = vmatpush1.msra.mxu0 %v2920
    %2922 = vmatprep.subr.mxu0 0.0
    %v2923 = vand.u32 %v124, 4294901760
    %v2924 = vsub.f32 %v124, %v2923
    %v2925 = vand.u32 %v2924, 4294901760
    %v2926 = vsub.f32 %v2924, %v2925
    %v2927 = vand.u32 %v2926, 4294901760
    %2928 = vmatpush1.msra.mxu0 %v2927
    %2929 = vmatprep.subr.mxu0 0.0
    %v2930 = vand.u32 %v123, 4294901760
    %v2931 = vsub.f32 %v123, %v2930
    %v2932 = vand.u32 %v2931, 4294901760
    %v2933 = vsub.f32 %v2931, %v2932
    %v2934 = vand.u32 %v2933, 4294901760
    %2935 = vmatpush1.msra.mxu0 %v2934
    %2936 = vmatprep.subr.mxu0 0.0
    %v2937 = vand.u32 %v122, 4294901760
    %v2938 = vsub.f32 %v122, %v2937
    %v2939 = vand.u32 %v2938, 4294901760
    %v2940 = vsub.f32 %v2938, %v2939
    %v2941 = vand.u32 %v2940, 4294901760
    %2942 = vmatpush1.msra.mxu0 %v2941
    %2943 = vmatprep.subr.mxu0 0.0
    %v2944 = vand.u32 %v121, 4294901760
    %v2945 = vsub.f32 %v121, %v2944
    %v2946 = vand.u32 %v2945, 4294901760
    %v2947 = vsub.f32 %v2945, %v2946
    %v2948 = vand.u32 %v2947, 4294901760
    %2949 = vmatpush1.msra.mxu0 %v2948
    %2950 = vmatprep.subr.mxu0 0.0
    %v2951 = vand.u32 %v120, 4294901760
    %v2952 = vsub.f32 %v120, %v2951
    %v2953 = vand.u32 %v2952, 4294901760
    %v2954 = vsub.f32 %v2952, %v2953
    %v2955 = vand.u32 %v2954, 4294901760
    %2956 = vmatpush1.msra.mxu0 %v2955
    %2957 = vmatprep.subr.mxu0 0.0
    %v2958 = vand.u32 %v119, 4294901760
    %v2959 = vsub.f32 %v119, %v2958
    %v2960 = vand.u32 %v2959, 4294901760
    %v2961 = vsub.f32 %v2959, %v2960
    %v2962 = vand.u32 %v2961, 4294901760
    %2963 = vmatpush1.msra.mxu0 %v2962
    %2964 = vmatprep.subr.mxu0 0.0
    %v2965 = vand.u32 %v118, 4294901760
    %v2966 = vsub.f32 %v118, %v2965
    %v2967 = vand.u32 %v2966, 4294901760
    %v2968 = vsub.f32 %v2966, %v2967
    %v2969 = vand.u32 %v2968, 4294901760
    %2970 = vmatpush1.msra.mxu0 %v2969
    %2971 = vmatprep.subr.mxu0 0.0
    %v2972 = vand.u32 %v117, 4294901760
    %v2973 = vsub.f32 %v117, %v2972
    %v2974 = vand.u32 %v2973, 4294901760
    %v2975 = vsub.f32 %v2973, %v2974
    %v2976 = vand.u32 %v2975, 4294901760
    %2977 = vmatpush1.msra.mxu0 %v2976
    %2978 = vmatprep.subr.mxu0 0.0
    %v2979 = vand.u32 %v116, 4294901760
    %v2980 = vsub.f32 %v116, %v2979
    %v2981 = vand.u32 %v2980, 4294901760
    %v2982 = vsub.f32 %v2980, %v2981
    %v2983 = vand.u32 %v2982, 4294901760
    %2984 = vmatpush1.msra.mxu0 %v2983
    %2985 = vmatprep.subr.mxu0 0.0
    %v2986 = vand.u32 %v115, 4294901760
    %v2987 = vsub.f32 %v115, %v2986
    %v2988 = vand.u32 %v2987, 4294901760
    %v2989 = vsub.f32 %v2987, %v2988
    %v2990 = vand.u32 %v2989, 4294901760
    %2991 = vmatpush1.msra.mxu0 %v2990
    %2992 = vmatprep.subr.mxu0 0.0
    %v2993 = vand.u32 %v114, 4294901760
    %v2994 = vsub.f32 %v114, %v2993
    %v2995 = vand.u32 %v2994, 4294901760
    %v2996 = vsub.f32 %v2994, %v2995
    %v2997 = vand.u32 %v2996, 4294901760
    %2998 = vmatpush1.msra.mxu0 %v2997
    %2999 = vmatprep.subr.mxu0 0.0
    %v3000 = vand.u32 %v113, 4294901760
    %v3001 = vsub.f32 %v113, %v3000
    %v3002 = vand.u32 %v3001, 4294901760
    %v3003 = vsub.f32 %v3001, %v3002
    %v3004 = vand.u32 %v3003, 4294901760
    %3005 = vmatpush1.msra.mxu0 %v3004
    %3006 = vmatprep.subr.mxu0 0.0
    %v3007 = vand.u32 %v144, 4294901760
    %v3008 = vsub.f32 %v144, %v3007
    %v3009 = vand.u32 %v3008, 4294901760
    %v3010 = vsub.f32 %v3008, %v3009
    %v3011 = vand.u32 %v3010, 4294901760
    %3012 = vmatpush2.msra.mxu0 %v3011
    %3013 = vmatprep.subr.mxu0 0.0
    %v3014 = vand.u32 %v143, 4294901760
    %v3015 = vsub.f32 %v143, %v3014
    %v3016 = vand.u32 %v3015, 4294901760
    %v3017 = vsub.f32 %v3015, %v3016
    %v3018 = vand.u32 %v3017, 4294901760
    %3019 = vmatpush2.msra.mxu0 %v3018
    %3020 = vmatprep.subr.mxu0 0.0
    %v3021 = vand.u32 %v142, 4294901760
    %v3022 = vsub.f32 %v142, %v3021
    %v3023 = vand.u32 %v3022, 4294901760
    %v3024 = vsub.f32 %v3022, %v3023
    %v3025 = vand.u32 %v3024, 4294901760
    %3026 = vmatpush2.msra.mxu0 %v3025
    %3027 = vmatprep.subr.mxu0 0.0
    %v3028 = vand.u32 %v141, 4294901760
    %v3029 = vsub.f32 %v141, %v3028
    %v3030 = vand.u32 %v3029, 4294901760
    %v3031 = vsub.f32 %v3029, %v3030
    %v3032 = vand.u32 %v3031, 4294901760
    %3033 = vmatpush2.msra.mxu0 %v3032
    %3034 = vmatprep.subr.mxu0 0.0
    %v3035 = vand.u32 %v140, 4294901760
    %v3036 = vsub.f32 %v140, %v3035
    %v3037 = vand.u32 %v3036, 4294901760
    %v3038 = vsub.f32 %v3036, %v3037
    %v3039 = vand.u32 %v3038, 4294901760
    %3040 = vmatpush2.msra.mxu0 %v3039
    %3041 = vmatprep.subr.mxu0 0.0
    %v3042 = vand.u32 %v139, 4294901760
    %v3043 = vsub.f32 %v139, %v3042
    %v3044 = vand.u32 %v3043, 4294901760
    %v3045 = vsub.f32 %v3043, %v3044
    %v3046 = vand.u32 %v3045, 4294901760
    %3047 = vmatpush2.msra.mxu0 %v3046
    %3048 = vmatprep.subr.mxu0 0.0
    %v3049 = vand.u32 %v138, 4294901760
    %v3050 = vsub.f32 %v138, %v3049
    %v3051 = vand.u32 %v3050, 4294901760
    %v3052 = vsub.f32 %v3050, %v3051
    %v3053 = vand.u32 %v3052, 4294901760
    %3054 = vmatpush2.msra.mxu0 %v3053
    %3055 = vmatprep.subr.mxu0 0.0
    %v3056 = vand.u32 %v137, 4294901760
    %v3057 = vsub.f32 %v137, %v3056
    %v3058 = vand.u32 %v3057, 4294901760
    %v3059 = vsub.f32 %v3057, %v3058
    %v3060 = vand.u32 %v3059, 4294901760
    %3061 = vmatpush2.msra.mxu0 %v3060
    %3062 = vmatprep.subr.mxu0 0.0
    %v3063 = vand.u32 %v136, 4294901760
    %v3064 = vsub.f32 %v136, %v3063
    %v3065 = vand.u32 %v3064, 4294901760
    %v3066 = vsub.f32 %v3064, %v3065
    %v3067 = vand.u32 %v3066, 4294901760
    %3068 = vmatpush2.msra.mxu0 %v3067
    %3069 = vmatprep.subr.mxu0 0.0
    %v3070 = vand.u32 %v135, 4294901760
    %v3071 = vsub.f32 %v135, %v3070
    %v3072 = vand.u32 %v3071, 4294901760
    %v3073 = vsub.f32 %v3071, %v3072
    %v3074 = vand.u32 %v3073, 4294901760
    %3075 = vmatpush2.msra.mxu0 %v3074
    %3076 = vmatprep.subr.mxu0 0.0
    %v3077 = vand.u32 %v134, 4294901760
    %v3078 = vsub.f32 %v134, %v3077
    %v3079 = vand.u32 %v3078, 4294901760
    %v3080 = vsub.f32 %v3078, %v3079
    %v3081 = vand.u32 %v3080, 4294901760
    %3082 = vmatpush2.msra.mxu0 %v3081
    %3083 = vmatprep.subr.mxu0 0.0
    %v3084 = vand.u32 %v133, 4294901760
    %v3085 = vsub.f32 %v133, %v3084
    %v3086 = vand.u32 %v3085, 4294901760
    %v3087 = vsub.f32 %v3085, %v3086
    %v3088 = vand.u32 %v3087, 4294901760
    %3089 = vmatpush2.msra.mxu0 %v3088
    %3090 = vmatprep.subr.mxu0 0.0
    %v3091 = vand.u32 %v132, 4294901760
    %v3092 = vsub.f32 %v132, %v3091
    %v3093 = vand.u32 %v3092, 4294901760
    %v3094 = vsub.f32 %v3092, %v3093
    %v3095 = vand.u32 %v3094, 4294901760
    %3096 = vmatpush2.msra.mxu0 %v3095
    %3097 = vmatprep.subr.mxu0 0.0
    %v3098 = vand.u32 %v131, 4294901760
    %v3099 = vsub.f32 %v131, %v3098
    %v3100 = vand.u32 %v3099, 4294901760
    %v3101 = vsub.f32 %v3099, %v3100
    %v3102 = vand.u32 %v3101, 4294901760
    %3103 = vmatpush2.msra.mxu0 %v3102
    %3104 = vmatprep.subr.mxu0 0.0
    %v3105 = vand.u32 %v130, 4294901760
    %v3106 = vsub.f32 %v130, %v3105
    %v3107 = vand.u32 %v3106, 4294901760
    %v3108 = vsub.f32 %v3106, %v3107
    %v3109 = vand.u32 %v3108, 4294901760
    %3110 = vmatpush2.msra.mxu0 %v3109
    %3111 = vmatprep.subr.mxu0 0.0
    %v3112 = vand.u32 %v129, 4294901760
    %v3113 = vsub.f32 %v129, %v3112
    %v3114 = vand.u32 %v3113, 4294901760
    %v3115 = vsub.f32 %v3113, %v3114
    %v3116 = vand.u32 %v3115, 4294901760
    %3117 = vmatpush2.msra.mxu0 %v3116
    %v3118 = vand.u32 %v187, 4294901760
    %3119 = vmatprep.mubr.f32.mxu0 %v3118
    %v3120 = vand.u32 %v185, 4294901760
    %3121 = vmatmul.mubr.f32.gmra.mxu0 %v3120
    %v3122 = vpop.f32.mrf.mxu0
    %v3123 = vadd.f32 %v2891, %v3122
    %v3124 = vpop.f32.mrf.mxu0
    %3125 = vdwg.mxu0
    %3126 = vmatprep.subr.mxu0 0.0
    %v3127 = vand.u32 %v128, 4294901760
    %v3128 = vsub.f32 %v128, %v3127
    %3129 = vmatpush1.msra.mxu0 %v3128
    %3130 = vmatprep.subr.mxu0 0.0
    %v3131 = vand.u32 %v127, 4294901760
    %v3132 = vsub.f32 %v127, %v3131
    %3133 = vmatpush1.msra.mxu0 %v3132
    %3134 = vmatprep.subr.mxu0 0.0
    %v3135 = vand.u32 %v126, 4294901760
    %v3136 = vsub.f32 %v126, %v3135
    %3137 = vmatpush1.msra.mxu0 %v3136
    %3138 = vmatprep.subr.mxu0 0.0
    %v3139 = vand.u32 %v125, 4294901760
    %v3140 = vsub.f32 %v125, %v3139
    %3141 = vmatpush1.msra.mxu0 %v3140
    %3142 = vmatprep.subr.mxu0 0.0
    %v3143 = vand.u32 %v124, 4294901760
    %v3144 = vsub.f32 %v124, %v3143
    %3145 = vmatpush1.msra.mxu0 %v3144
    %3146 = vmatprep.subr.mxu0 0.0
    %v3147 = vand.u32 %v123, 4294901760
    %v3148 = vsub.f32 %v123, %v3147
    %3149 = vmatpush1.msra.mxu0 %v3148
    %3150 = vmatprep.subr.mxu0 0.0
    %v3151 = vand.u32 %v122, 4294901760
    %v3152 = vsub.f32 %v122, %v3151
    %3153 = vmatpush1.msra.mxu0 %v3152
    %3154 = vmatprep.subr.mxu0 0.0
    %v3155 = vand.u32 %v121, 4294901760
    %v3156 = vsub.f32 %v121, %v3155
    %3157 = vmatpush1.msra.mxu0 %v3156
    %3158 = vmatprep.subr.mxu0 0.0
    %v3159 = vand.u32 %v120, 4294901760
    %v3160 = vsub.f32 %v120, %v3159
    %3161 = vmatpush1.msra.mxu0 %v3160
    %3162 = vmatprep.subr.mxu0 0.0
    %v3163 = vand.u32 %v119, 4294901760
    %v3164 = vsub.f32 %v119, %v3163
    %3165 = vmatpush1.msra.mxu0 %v3164
    %3166 = vmatprep.subr.mxu0 0.0
    %v3167 = vand.u32 %v118, 4294901760
    %v3168 = vsub.f32 %v118, %v3167
    %3169 = vmatpush1.msra.mxu0 %v3168
    %3170 = vmatprep.subr.mxu0 0.0
    %v3171 = vand.u32 %v117, 4294901760
    %v3172 = vsub.f32 %v117, %v3171
    %3173 = vmatpush1.msra.mxu0 %v3172
    %3174 = vmatprep.subr.mxu0 0.0
    %v3175 = vand.u32 %v116, 4294901760
    %v3176 = vsub.f32 %v116, %v3175
    %3177 = vmatpush1.msra.mxu0 %v3176
    %3178 = vmatprep.subr.mxu0 0.0
    %v3179 = vand.u32 %v115, 4294901760
    %v3180 = vsub.f32 %v115, %v3179
    %3181 = vmatpush1.msra.mxu0 %v3180
    %3182 = vmatprep.subr.mxu0 0.0
    %v3183 = vand.u32 %v114, 4294901760
    %v3184 = vsub.f32 %v114, %v3183
    %3185 = vmatpush1.msra.mxu0 %v3184
    %3186 = vmatprep.subr.mxu0 0.0
    %v3187 = vand.u32 %v113, 4294901760
    %v3188 = vsub.f32 %v113, %v3187
    %3189 = vmatpush1.msra.mxu0 %v3188
    %3190 = vmatprep.subr.mxu0 0.0
    %v3191 = vand.u32 %v144, 4294901760
    %v3192 = vsub.f32 %v144, %v3191
    %3193 = vmatpush2.msra.mxu0 %v3192
    %3194 = vmatprep.subr.mxu0 0.0
    %v3195 = vand.u32 %v143, 4294901760
    %v3196 = vsub.f32 %v143, %v3195
    %3197 = vmatpush2.msra.mxu0 %v3196
    %3198 = vmatprep.subr.mxu0 0.0
    %v3199 = vand.u32 %v142, 4294901760
    %v3200 = vsub.f32 %v142, %v3199
    %3201 = vmatpush2.msra.mxu0 %v3200
    %3202 = vmatprep.subr.mxu0 0.0
    %v3203 = vand.u32 %v141, 4294901760
    %v3204 = vsub.f32 %v141, %v3203
    %3205 = vmatpush2.msra.mxu0 %v3204
    %3206 = vmatprep.subr.mxu0 0.0
    %v3207 = vand.u32 %v140, 4294901760
    %v3208 = vsub.f32 %v140, %v3207
    %3209 = vmatpush2.msra.mxu0 %v3208
    %3210 = vmatprep.subr.mxu0 0.0
    %v3211 = vand.u32 %v139, 4294901760
    %v3212 = vsub.f32 %v139, %v3211
    %3213 = vmatpush2.msra.mxu0 %v3212
    %3214 = vmatprep.subr.mxu0 0.0
    %v3215 = vand.u32 %v138, 4294901760
    %v3216 = vsub.f32 %v138, %v3215
    %3217 = vmatpush2.msra.mxu0 %v3216
    %3218 = vmatprep.subr.mxu0 0.0
    %v3219 = vand.u32 %v137, 4294901760
    %v3220 = vsub.f32 %v137, %v3219
    %3221 = vmatpush2.msra.mxu0 %v3220
    %3222 = vmatprep.subr.mxu0 0.0
    %v3223 = vand.u32 %v136, 4294901760
    %v3224 = vsub.f32 %v136, %v3223
    %3225 = vmatpush2.msra.mxu0 %v3224
    %3226 = vmatprep.subr.mxu0 0.0
    %v3227 = vand.u32 %v135, 4294901760
    %v3228 = vsub.f32 %v135, %v3227
    %3229 = vmatpush2.msra.mxu0 %v3228
    %3230 = vmatprep.subr.mxu0 0.0
    %v3231 = vand.u32 %v134, 4294901760
    %v3232 = vsub.f32 %v134, %v3231
    %3233 = vmatpush2.msra.mxu0 %v3232
    %3234 = vmatprep.subr.mxu0 0.0
    %v3235 = vand.u32 %v133, 4294901760
    %v3236 = vsub.f32 %v133, %v3235
    %3237 = vmatpush2.msra.mxu0 %v3236
    %3238 = vmatprep.subr.mxu0 0.0
    %v3239 = vand.u32 %v132, 4294901760
    %v3240 = vsub.f32 %v132, %v3239
    %3241 = vmatpush2.msra.mxu0 %v3240
    %3242 = vmatprep.subr.mxu0 0.0
    %v3243 = vand.u32 %v131, 4294901760
    %v3244 = vsub.f32 %v131, %v3243
    %3245 = vmatpush2.msra.mxu0 %v3244
    %3246 = vmatprep.subr.mxu0 0.0
    %v3247 = vand.u32 %v130, 4294901760
    %v3248 = vsub.f32 %v130, %v3247
    %3249 = vmatpush2.msra.mxu0 %v3248
    %3250 = vmatprep.subr.mxu0 0.0
    %v3251 = vand.u32 %v129, 4294901760
    %v3252 = vsub.f32 %v129, %v3251
    %3253 = vmatpush2.msra.mxu0 %v3252
    %v3254 = vand.u32 %v187, 4294901760
    %v3255 = vsub.f32 %v187, %v3254
    %3256 = vmatprep.mubr.f32.mxu0 %v3255
    %v3257 = vand.u32 %v185, 4294901760
    %v3258 = vsub.f32 %v185, %v3257
    %3259 = vmatmul.mubr.f32.gmra.mxu0 %v3258
    %v3260 = vpop.f32.mrf.mxu0
    %v3261 = vadd.f32 %v3123, %v3260
    %v3262 = vpop.f32.mrf.mxu0
    %3263 = vdwg.mxu0
    %3264 = vmatprep.subr.mxu0 0.0
    %v3265 = vand.u32 %v128, 4294901760
    %3266 = vmatpush1.msra.mxu0 %v3265
    %3267 = vmatprep.subr.mxu0 0.0
    %v3268 = vand.u32 %v127, 4294901760
    %3269 = vmatpush1.msra.mxu0 %v3268
    %3270 = vmatprep.subr.mxu0 0.0
    %v3271 = vand.u32 %v126, 4294901760
    %3272 = vmatpush1.msra.mxu0 %v3271
    %3273 = vmatprep.subr.mxu0 0.0
    %v3274 = vand.u32 %v125, 4294901760
    %3275 = vmatpush1.msra.mxu0 %v3274
    %3276 = vmatprep.subr.mxu0 0.0
    %v3277 = vand.u32 %v124, 4294901760
    %3278 = vmatpush1.msra.mxu0 %v3277
    %3279 = vmatprep.subr.mxu0 0.0
    %v3280 = vand.u32 %v123, 4294901760
    %3281 = vmatpush1.msra.mxu0 %v3280
    %3282 = vmatprep.subr.mxu0 0.0
    %v3283 = vand.u32 %v122, 4294901760
    %3284 = vmatpush1.msra.mxu0 %v3283
    %3285 = vmatprep.subr.mxu0 0.0
    %v3286 = vand.u32 %v121, 4294901760
    %3287 = vmatpush1.msra.mxu0 %v3286
    %3288 = vmatprep.subr.mxu0 0.0
    %v3289 = vand.u32 %v120, 4294901760
    %3290 = vmatpush1.msra.mxu0 %v3289
    %3291 = vmatprep.subr.mxu0 0.0
    %v3292 = vand.u32 %v119, 4294901760
    %3293 = vmatpush1.msra.mxu0 %v3292
    %3294 = vmatprep.subr.mxu0 0.0
    %v3295 = vand.u32 %v118, 4294901760
    %3296 = vmatpush1.msra.mxu0 %v3295
    %3297 = vmatprep.subr.mxu0 0.0
    %v3298 = vand.u32 %v117, 4294901760
    %3299 = vmatpush1.msra.mxu0 %v3298
    %3300 = vmatprep.subr.mxu0 0.0
    %v3301 = vand.u32 %v116, 4294901760
    %3302 = vmatpush1.msra.mxu0 %v3301
    %3303 = vmatprep.subr.mxu0 0.0
    %v3304 = vand.u32 %v115, 4294901760
    %3305 = vmatpush1.msra.mxu0 %v3304
    %3306 = vmatprep.subr.mxu0 0.0
    %v3307 = vand.u32 %v114, 4294901760
    %3308 = vmatpush1.msra.mxu0 %v3307
    %3309 = vmatprep.subr.mxu0 0.0
    %v3310 = vand.u32 %v113, 4294901760
    %3311 = vmatpush1.msra.mxu0 %v3310
    %3312 = vmatprep.subr.mxu0 0.0
    %v3313 = vand.u32 %v144, 4294901760
    %3314 = vmatpush2.msra.mxu0 %v3313
    %3315 = vmatprep.subr.mxu0 0.0
    %v3316 = vand.u32 %v143, 4294901760
    %3317 = vmatpush2.msra.mxu0 %v3316
    %3318 = vmatprep.subr.mxu0 0.0
    %v3319 = vand.u32 %v142, 4294901760
    %3320 = vmatpush2.msra.mxu0 %v3319
    %3321 = vmatprep.subr.mxu0 0.0
    %v3322 = vand.u32 %v141, 4294901760
    %3323 = vmatpush2.msra.mxu0 %v3322
    %3324 = vmatprep.subr.mxu0 0.0
    %v3325 = vand.u32 %v140, 4294901760
    %3326 = vmatpush2.msra.mxu0 %v3325
    %3327 = vmatprep.subr.mxu0 0.0
    %v3328 = vand.u32 %v139, 4294901760
    %3329 = vmatpush2.msra.mxu0 %v3328
    %3330 = vmatprep.subr.mxu0 0.0
    %v3331 = vand.u32 %v138, 4294901760
    %3332 = vmatpush2.msra.mxu0 %v3331
    %3333 = vmatprep.subr.mxu0 0.0
    %v3334 = vand.u32 %v137, 4294901760
    %3335 = vmatpush2.msra.mxu0 %v3334
    %3336 = vmatprep.subr.mxu0 0.0
    %v3337 = vand.u32 %v136, 4294901760
    %3338 = vmatpush2.msra.mxu0 %v3337
    %3339 = vmatprep.subr.mxu0 0.0
    %v3340 = vand.u32 %v135, 4294901760
    %3341 = vmatpush2.msra.mxu0 %v3340
    %3342 = vmatprep.subr.mxu0 0.0
    %v3343 = vand.u32 %v134, 4294901760
    %3344 = vmatpush2.msra.mxu0 %v3343
    %3345 = vmatprep.subr.mxu0 0.0
    %v3346 = vand.u32 %v133, 4294901760
    %3347 = vmatpush2.msra.mxu0 %v3346
    %3348 = vmatprep.subr.mxu0 0.0
    %v3349 = vand.u32 %v132, 4294901760
    %3350 = vmatpush2.msra.mxu0 %v3349
    %3351 = vmatprep.subr.mxu0 0.0
    %v3352 = vand.u32 %v131, 4294901760
    %3353 = vmatpush2.msra.mxu0 %v3352
    %3354 = vmatprep.subr.mxu0 0.0
    %v3355 = vand.u32 %v130, 4294901760
    %3356 = vmatpush2.msra.mxu0 %v3355
    %3357 = vmatprep.subr.mxu0 0.0
    %v3358 = vand.u32 %v129, 4294901760
    %3359 = vmatpush2.msra.mxu0 %v3358
    %v3360 = vand.u32 %v187, 4294901760
    %v3361 = vsub.f32 %v187, %v3360
    %v3362 = vand.u32 %v3361, 4294901760
    %3363 = vmatprep.mubr.f32.mxu0 %v3362
    %v3364 = vand.u32 %v185, 4294901760
    %v3365 = vsub.f32 %v185, %v3364
    %v3366 = vand.u32 %v3365, 4294901760
    %3367 = vmatmul.mubr.f32.gmra.mxu0 %v3366
    %v3368 = vpop.f32.mrf.mxu0
    %v3369 = vadd.f32 %v3261, %v3368
    %v3370 = vpop.f32.mrf.mxu0
    %3371 = vdwg.mxu0
    %3372 = vmatprep.subr.mxu0 0.0
    %v3373 = vand.u32 %v128, 4294901760
    %v3374 = vsub.f32 %v128, %v3373
    %v3375 = vand.u32 %v3374, 4294901760
    %3376 = vmatpush1.msra.mxu0 %v3375
    %3377 = vmatprep.subr.mxu0 0.0
    %v3378 = vand.u32 %v127, 4294901760
    %v3379 = vsub.f32 %v127, %v3378
    %v3380 = vand.u32 %v3379, 4294901760
    %3381 = vmatpush1.msra.mxu0 %v3380
    %3382 = vmatprep.subr.mxu0 0.0
    %v3383 = vand.u32 %v126, 4294901760
    %v3384 = vsub.f32 %v126, %v3383
    %v3385 = vand.u32 %v3384, 4294901760
    %3386 = vmatpush1.msra.mxu0 %v3385
    %3387 = vmatprep.subr.mxu0 0.0
    %v3388 = vand.u32 %v125, 4294901760
    %v3389 = vsub.f32 %v125, %v3388
    %v3390 = vand.u32 %v3389, 4294901760
    %3391 = vmatpush1.msra.mxu0 %v3390
    %3392 = vmatprep.subr.mxu0 0.0
    %v3393 = vand.u32 %v124, 4294901760
    %v3394 = vsub.f32 %v124, %v3393
    %v3395 = vand.u32 %v3394, 4294901760
    %3396 = vmatpush1.msra.mxu0 %v3395
    %3397 = vmatprep.subr.mxu0 0.0
    %v3398 = vand.u32 %v123, 4294901760
    %v3399 = vsub.f32 %v123, %v3398
    %v3400 = vand.u32 %v3399, 4294901760
    %3401 = vmatpush1.msra.mxu0 %v3400
    %3402 = vmatprep.subr.mxu0 0.0
    %v3403 = vand.u32 %v122, 4294901760
    %v3404 = vsub.f32 %v122, %v3403
    %v3405 = vand.u32 %v3404, 4294901760
    %3406 = vmatpush1.msra.mxu0 %v3405
    %3407 = vmatprep.subr.mxu0 0.0
    %v3408 = vand.u32 %v121, 4294901760
    %v3409 = vsub.f32 %v121, %v3408
    %v3410 = vand.u32 %v3409, 4294901760
    %3411 = vmatpush1.msra.mxu0 %v3410
    %3412 = vmatprep.subr.mxu0 0.0
    %v3413 = vand.u32 %v120, 4294901760
    %v3414 = vsub.f32 %v120, %v3413
    %v3415 = vand.u32 %v3414, 4294901760
    %3416 = vmatpush1.msra.mxu0 %v3415
    %3417 = vmatprep.subr.mxu0 0.0
    %v3418 = vand.u32 %v119, 4294901760
    %v3419 = vsub.f32 %v119, %v3418
    %v3420 = vand.u32 %v3419, 4294901760
    %3421 = vmatpush1.msra.mxu0 %v3420
    %3422 = vmatprep.subr.mxu0 0.0
    %v3423 = vand.u32 %v118, 4294901760
    %v3424 = vsub.f32 %v118, %v3423
    %v3425 = vand.u32 %v3424, 4294901760
    %3426 = vmatpush1.msra.mxu0 %v3425
    %3427 = vmatprep.subr.mxu0 0.0
    %v3428 = vand.u32 %v117, 4294901760
    %v3429 = vsub.f32 %v117, %v3428
    %v3430 = vand.u32 %v3429, 4294901760
    %3431 = vmatpush1.msra.mxu0 %v3430
    %3432 = vmatprep.subr.mxu0 0.0
    %v3433 = vand.u32 %v116, 4294901760
    %v3434 = vsub.f32 %v116, %v3433
    %v3435 = vand.u32 %v3434, 4294901760
    %3436 = vmatpush1.msra.mxu0 %v3435
    %3437 = vmatprep.subr.mxu0 0.0
    %v3438 = vand.u32 %v115, 4294901760
    %v3439 = vsub.f32 %v115, %v3438
    %v3440 = vand.u32 %v3439, 4294901760
    %3441 = vmatpush1.msra.mxu0 %v3440
    %3442 = vmatprep.subr.mxu0 0.0
    %v3443 = vand.u32 %v114, 4294901760
    %v3444 = vsub.f32 %v114, %v3443
    %v3445 = vand.u32 %v3444, 4294901760
    %3446 = vmatpush1.msra.mxu0 %v3445
    %3447 = vmatprep.subr.mxu0 0.0
    %v3448 = vand.u32 %v113, 4294901760
    %v3449 = vsub.f32 %v113, %v3448
    %v3450 = vand.u32 %v3449, 4294901760
    %3451 = vmatpush1.msra.mxu0 %v3450
    %3452 = vmatprep.subr.mxu0 0.0
    %v3453 = vand.u32 %v144, 4294901760
    %v3454 = vsub.f32 %v144, %v3453
    %v3455 = vand.u32 %v3454, 4294901760
    %3456 = vmatpush2.msra.mxu0 %v3455
    %3457 = vmatprep.subr.mxu0 0.0
    %v3458 = vand.u32 %v143, 4294901760
    %v3459 = vsub.f32 %v143, %v3458
    %v3460 = vand.u32 %v3459, 4294901760
    %3461 = vmatpush2.msra.mxu0 %v3460
    %3462 = vmatprep.subr.mxu0 0.0
    %v3463 = vand.u32 %v142, 4294901760
    %v3464 = vsub.f32 %v142, %v3463
    %v3465 = vand.u32 %v3464, 4294901760
    %3466 = vmatpush2.msra.mxu0 %v3465
    %3467 = vmatprep.subr.mxu0 0.0
    %v3468 = vand.u32 %v141, 4294901760
    %v3469 = vsub.f32 %v141, %v3468
    %v3470 = vand.u32 %v3469, 4294901760
    %3471 = vmatpush2.msra.mxu0 %v3470
    %3472 = vmatprep.subr.mxu0 0.0
    %v3473 = vand.u32 %v140, 4294901760
    %v3474 = vsub.f32 %v140, %v3473
    %v3475 = vand.u32 %v3474, 4294901760
    %3476 = vmatpush2.msra.mxu0 %v3475
    %3477 = vmatprep.subr.mxu0 0.0
    %v3478 = vand.u32 %v139, 4294901760
    %v3479 = vsub.f32 %v139, %v3478
    %v3480 = vand.u32 %v3479, 4294901760
    %3481 = vmatpush2.msra.mxu0 %v3480
    %3482 = vmatprep.subr.mxu0 0.0
    %v3483 = vand.u32 %v138, 4294901760
    %v3484 = vsub.f32 %v138, %v3483
    %v3485 = vand.u32 %v3484, 4294901760
    %3486 = vmatpush2.msra.mxu0 %v3485
    %3487 = vmatprep.subr.mxu0 0.0
    %v3488 = vand.u32 %v137, 4294901760
    %v3489 = vsub.f32 %v137, %v3488
    %v3490 = vand.u32 %v3489, 4294901760
    %3491 = vmatpush2.msra.mxu0 %v3490
    %3492 = vmatprep.subr.mxu0 0.0
    %v3493 = vand.u32 %v136, 4294901760
    %v3494 = vsub.f32 %v136, %v3493
    %v3495 = vand.u32 %v3494, 4294901760
    %3496 = vmatpush2.msra.mxu0 %v3495
    %3497 = vmatprep.subr.mxu0 0.0
    %v3498 = vand.u32 %v135, 4294901760
    %v3499 = vsub.f32 %v135, %v3498
    %v3500 = vand.u32 %v3499, 4294901760
    %3501 = vmatpush2.msra.mxu0 %v3500
    %3502 = vmatprep.subr.mxu0 0.0
    %v3503 = vand.u32 %v134, 4294901760
    %v3504 = vsub.f32 %v134, %v3503
    %v3505 = vand.u32 %v3504, 4294901760
    %3506 = vmatpush2.msra.mxu0 %v3505
    %3507 = vmatprep.subr.mxu0 0.0
    %v3508 = vand.u32 %v133, 4294901760
    %v3509 = vsub.f32 %v133, %v3508
    %v3510 = vand.u32 %v3509, 4294901760
    %3511 = vmatpush2.msra.mxu0 %v3510
    %3512 = vmatprep.subr.mxu0 0.0
    %v3513 = vand.u32 %v132, 4294901760
    %v3514 = vsub.f32 %v132, %v3513
    %v3515 = vand.u32 %v3514, 4294901760
    %3516 = vmatpush2.msra.mxu0 %v3515
    %3517 = vmatprep.subr.mxu0 0.0
    %v3518 = vand.u32 %v131, 4294901760
    %v3519 = vsub.f32 %v131, %v3518
    %v3520 = vand.u32 %v3519, 4294901760
    %3521 = vmatpush2.msra.mxu0 %v3520
    %3522 = vmatprep.subr.mxu0 0.0
    %v3523 = vand.u32 %v130, 4294901760
    %v3524 = vsub.f32 %v130, %v3523
    %v3525 = vand.u32 %v3524, 4294901760
    %3526 = vmatpush2.msra.mxu0 %v3525
    %3527 = vmatprep.subr.mxu0 0.0
    %v3528 = vand.u32 %v129, 4294901760
    %v3529 = vsub.f32 %v129, %v3528
    %v3530 = vand.u32 %v3529, 4294901760
    %3531 = vmatpush2.msra.mxu0 %v3530
    %v3532 = vand.u32 %v187, 4294901760
    %3533 = vmatprep.mubr.f32.mxu0 %v3532
    %v3534 = vand.u32 %v185, 4294901760
    %3535 = vmatmul.mubr.f32.gmra.mxu0 %v3534
    %v3536 = vpop.f32.mrf.mxu0
    %v3537 = vadd.f32 %v3369, %v3536
    %v3538 = vpop.f32.mrf.mxu0
    %3539 = vdwg.mxu0
    %3540 = vmatprep.subr.mxu0 0.0
    %v3541 = vand.u32 %v128, 4294901760
    %3542 = vmatpush1.msra.mxu0 %v3541
    %3543 = vmatprep.subr.mxu0 0.0
    %v3544 = vand.u32 %v127, 4294901760
    %3545 = vmatpush1.msra.mxu0 %v3544
    %3546 = vmatprep.subr.mxu0 0.0
    %v3547 = vand.u32 %v126, 4294901760
    %3548 = vmatpush1.msra.mxu0 %v3547
    %3549 = vmatprep.subr.mxu0 0.0
    %v3550 = vand.u32 %v125, 4294901760
    %3551 = vmatpush1.msra.mxu0 %v3550
    %3552 = vmatprep.subr.mxu0 0.0
    %v3553 = vand.u32 %v124, 4294901760
    %3554 = vmatpush1.msra.mxu0 %v3553
    %3555 = vmatprep.subr.mxu0 0.0
    %v3556 = vand.u32 %v123, 4294901760
    %3557 = vmatpush1.msra.mxu0 %v3556
    %3558 = vmatprep.subr.mxu0 0.0
    %v3559 = vand.u32 %v122, 4294901760
    %3560 = vmatpush1.msra.mxu0 %v3559
    %3561 = vmatprep.subr.mxu0 0.0
    %v3562 = vand.u32 %v121, 4294901760
    %3563 = vmatpush1.msra.mxu0 %v3562
    %3564 = vmatprep.subr.mxu0 0.0
    %v3565 = vand.u32 %v120, 4294901760
    %3566 = vmatpush1.msra.mxu0 %v3565
    %3567 = vmatprep.subr.mxu0 0.0
    %v3568 = vand.u32 %v119, 4294901760
    %3569 = vmatpush1.msra.mxu0 %v3568
    %3570 = vmatprep.subr.mxu0 0.0
    %v3571 = vand.u32 %v118, 4294901760
    %3572 = vmatpush1.msra.mxu0 %v3571
    %3573 = vmatprep.subr.mxu0 0.0
    %v3574 = vand.u32 %v117, 4294901760
    %3575 = vmatpush1.msra.mxu0 %v3574
    %3576 = vmatprep.subr.mxu0 0.0
    %v3577 = vand.u32 %v116, 4294901760
    %3578 = vmatpush1.msra.mxu0 %v3577
    %3579 = vmatprep.subr.mxu0 0.0
    %v3580 = vand.u32 %v115, 4294901760
    %3581 = vmatpush1.msra.mxu0 %v3580
    %3582 = vmatprep.subr.mxu0 0.0
    %v3583 = vand.u32 %v114, 4294901760
    %3584 = vmatpush1.msra.mxu0 %v3583
    %3585 = vmatprep.subr.mxu0 0.0
    %v3586 = vand.u32 %v113, 4294901760
    %3587 = vmatpush1.msra.mxu0 %v3586
    %3588 = vmatprep.subr.mxu0 0.0
    %v3589 = vand.u32 %v144, 4294901760
    %3590 = vmatpush2.msra.mxu0 %v3589
    %3591 = vmatprep.subr.mxu0 0.0
    %v3592 = vand.u32 %v143, 4294901760
    %3593 = vmatpush2.msra.mxu0 %v3592
    %3594 = vmatprep.subr.mxu0 0.0
    %v3595 = vand.u32 %v142, 4294901760
    %3596 = vmatpush2.msra.mxu0 %v3595
    %3597 = vmatprep.subr.mxu0 0.0
    %v3598 = vand.u32 %v141, 4294901760
    %3599 = vmatpush2.msra.mxu0 %v3598
    %3600 = vmatprep.subr.mxu0 0.0
    %v3601 = vand.u32 %v140, 4294901760
    %3602 = vmatpush2.msra.mxu0 %v3601
    %3603 = vmatprep.subr.mxu0 0.0
    %v3604 = vand.u32 %v139, 4294901760
    %3605 = vmatpush2.msra.mxu0 %v3604
    %3606 = vmatprep.subr.mxu0 0.0
    %v3607 = vand.u32 %v138, 4294901760
    %3608 = vmatpush2.msra.mxu0 %v3607
    %3609 = vmatprep.subr.mxu0 0.0
    %v3610 = vand.u32 %v137, 4294901760
    %3611 = vmatpush2.msra.mxu0 %v3610
    %3612 = vmatprep.subr.mxu0 0.0
    %v3613 = vand.u32 %v136, 4294901760
    %3614 = vmatpush2.msra.mxu0 %v3613
    %3615 = vmatprep.subr.mxu0 0.0
    %v3616 = vand.u32 %v135, 4294901760
    %3617 = vmatpush2.msra.mxu0 %v3616
    %3618 = vmatprep.subr.mxu0 0.0
    %v3619 = vand.u32 %v134, 4294901760
    %3620 = vmatpush2.msra.mxu0 %v3619
    %3621 = vmatprep.subr.mxu0 0.0
    %v3622 = vand.u32 %v133, 4294901760
    %3623 = vmatpush2.msra.mxu0 %v3622
    %3624 = vmatprep.subr.mxu0 0.0
    %v3625 = vand.u32 %v132, 4294901760
    %3626 = vmatpush2.msra.mxu0 %v3625
    %3627 = vmatprep.subr.mxu0 0.0
    %v3628 = vand.u32 %v131, 4294901760
    %3629 = vmatpush2.msra.mxu0 %v3628
    %3630 = vmatprep.subr.mxu0 0.0
    %v3631 = vand.u32 %v130, 4294901760
    %3632 = vmatpush2.msra.mxu0 %v3631
    %3633 = vmatprep.subr.mxu0 0.0
    %v3634 = vand.u32 %v129, 4294901760
    %3635 = vmatpush2.msra.mxu0 %v3634
    %v3636 = vand.u32 %v187, 4294901760
    %3637 = vmatprep.mubr.f32.mxu0 %v3636
    %v3638 = vand.u32 %v185, 4294901760
    %3639 = vmatmul.mubr.f32.gmra.mxu0 %v3638
    %v3640 = vpop.f32.mrf.mxu0
    %v3641 = vadd.f32 %v3537, %v3640
    %v3642 = vpop.f32.mrf.mxu0
    %3643 = vdwg.mxu0
    %vm3644 = vcmask 58368
    %v3645 = vsel %vm3644, %v3641, -inf
    %3646 = vmax.xlane.f32.xlu0 %v3645
    %v3647 = vpop.xlane.xlu0 %3646
    %v3648 = vsub.f32 %v3641, %v3647
    %v3649 = vmul.f32 %v3648, 1.442695
    %v3650 = vpow.pop %v3649
    %v3651 = vsel %vm3644, %v3650, 0.0
    %3652 = vadd.xlane.f32.xlu0 %v3651
    %v3653 = vpop.xlane.xlu0 %3652
    %v3654 = vrcp.pop %v3653
    %v3655 = vmul.f32 %v3650, %v3654
    %3656 = vst.msk [vmem:[#allocation2] sm:$0x3] %vm3644, %v3655
    // Predicated region
    $region14: #{tpu_custom_call.1} parent=1 // pred_check
      _
    $region15: #{tpu_custom_call.1} parent=1 // pred_check_branch
      %3658 = sbr.rel (0) target = $region17
    $region16: #{tpu_custom_call.1} parent=1 // pred_region
      %s3660 = ssub.s32 32, 32
      %3661 = vsyncadd [#allocation3], %s3660
      %s3663 = sshll.u32 [#allocation2], 4
      %s3664 = int_to_ptr.vmem [resolvable:$true] %s3663
      %3666 = dma.vmem_to_hbm [thread:$0]  %s3664, 32, %s3, [#allocation3]
    $region17: #{tpu_custom_call.1} parent=1 // pred_fallthru
      _
    // Predicated region
    $region18: #{tpu_custom_call.1} parent=1 // pred_check
      _
    $region19: #{tpu_custom_call.1} parent=1 // pred_check_branch
      %3668 = sbr.rel (0) target = $region21
    $region20: #{tpu_custom_call.1} parent=1 // pred_region
      %3669 = dma.done [#allocation3], 32
    $region21: #{tpu_custom_call.1} parent=1 // pred_fallthru
      _
    %3670 = vsyncpa [#allocation3], 1

// kernel: tpu_custom_call.1
$region0: #{tpu_custom_call.1}
  #allocation0 [shape = 'u32[]', space=smem, size = 0x4, offset = 0x4, fixed_abs, tag = 'smem constant byte address 0x4 - core index']
  #allocation1 [shape = 'u32[144,128]{1,0:T(1,128)}', space=vmem, size = 0x12000, scoped, tag = 'internal scratch']
  %s0 = inlined_call_operand.vmem [shape: f32[2,1024], index: 0, kind: input, shape index: {}]
  %s1 = inlined_call_operand.vmem [shape: f32[1024,8], index: 1, kind: input, shape index: {}]
  %s2 = inlined_call_operand.vmem [shape: f32[1,8], index: 2, kind: input, shape index: {}]
  %s3 = inlined_call_operand.hbm [shape: f32[2,8], index: 3, kind: output, shape index: {}]
  %s4 = sld [smem:[#allocation0]]
  $region22: #{tpu_custom_call.1} parent=0
    _
  %s6 = ssub.s32 1, %s4
  %s7 = scalar_select 0, %s6, %s4
  $region1: #{tpu_custom_call.1} parent=0
    #allocation2 [shape = 'u8[1024]{0}', space=vmem, size = 0x400, scoped, tag = 'output window, operand 0, single buffered']
    #allocation3 [shape = 's32[1]{0}', space=sflag, size = 0x4, scoped, tag = 'scoped memory for tpu_custom_call.1']
    %8 = vsyncpa [#allocation3], 0
    // Predicated region
    $region2: #{tpu_custom_call.1} parent=1 // pred_check
      _
    $region3: #{tpu_custom_call.1} parent=1 // pred_check_branch
      %10 = sbr.rel (0) target = $region5
    $region4: #{tpu_custom_call.1} parent=1 // pred_region
      _
    $region5: #{tpu_custom_call.1} parent=1 // pred_fallthru
      _
    // Predicated region
    $region6: #{tpu_custom_call.1} parent=1 // pred_check
      _
    $region7: #{tpu_custom_call.1} parent=1 // pred_check_branch
      %12 = sbr.rel (0) target = $region9
    $region8: #{tpu_custom_call.1} parent=1 // pred_region
      _
    $region9: #{tpu_custom_call.1} parent=1 // pred_fallthru
      _
    // Predicated region
    $region10: #{tpu_custom_call.1} parent=1 // pred_check
      _
    $region11: #{tpu_custom_call.1} parent=1 // pred_check_branch
      %14 = sbr.rel (0) target = $region13
    $region12: #{tpu_custom_call.1} parent=1 // pred_region
      _
    $region13: #{tpu_custom_call.1} parent=1 // pred_fallthru
      _
    %v15 = vld [vmem:[%s0] sm:$0xff]
    %v16 = vld [vmem:[%s0 + $0x8] sm:$0xff]
    %v17 = vld [vmem:[%s1] sm:$0xff]
    %v18 = vld [vmem:[%s1 + $0x8] sm:$0xff]
    %v19 = vld [vmem:[%s1 + $0x10] sm:$0xff]
    %v20 = vld [vmem:[%s1 + $0x18] sm:$0xff]
    %v21 = vld [vmem:[%s1 + $0x20] sm:$0xff]
    %v22 = vld [vmem:[%s1 + $0x28] sm:$0xff]
    %v23 = vld [vmem:[%s1 + $0x30] sm:$0xff]
    %v24 = vld [vmem:[%s1 + $0x38] sm:$0xff]
    %v25 = vld [vmem:[%s1 + $0x40] sm:$0xff]
    %v26 = vld [vmem:[%s1 + $0x48] sm:$0xff]
    %v27 = vld [vmem:[%s1 + $0x50] sm:$0xff]
    %v28 = vld [vmem:[%s1 + $0x58] sm:$0xff]
    %v29 = vld [vmem:[%s1 + $0x60] sm:$0xff]
    %v30 = vld [vmem:[%s1 + $0x68] sm:$0xff]
    %v31 = vld [vmem:[%s1 + $0x70] sm:$0xff]
    %v32 = vld [vmem:[%s1 + $0x78] sm:$0xff]
    %v33 = vld [vmem:[%s1 + $0x80] sm:$0xff]
    %v34 = vld [vmem:[%s1 + $0x88] sm:$0xff]
    %v35 = vld [vmem:[%s1 + $0x90] sm:$0xff]
    %v36 = vld [vmem:[%s1 + $0x98] sm:$0xff]
    %v37 = vld [vmem:[%s1 + $0xa0] sm:$0xff]
    %v38 = vld [vmem:[%s1 + $0xa8] sm:$0xff]
    %v39 = vld [vmem:[%s1 + $0xb0] sm:$0xff]
    %v40 = vld [vmem:[%s1 + $0xb8] sm:$0xff]
    %v41 = vld [vmem:[%s1 + $0xc0] sm:$0xff]
    %v42 = vld [vmem:[%s1 + $0xc8] sm:$0xff]
    %v43 = vld [vmem:[%s1 + $0xd0] sm:$0xff]
    %v44 = vld [vmem:[%s1 + $0xd8] sm:$0xff]
    %v45 = vld [vmem:[%s1 + $0xe0] sm:$0xff]
    %v46 = vld [vmem:[%s1 + $0xe8] sm:$0xff]
    %v47 = vld [vmem:[%s1 + $0xf0] sm:$0xff]
    %v48 = vld [vmem:[%s1 + $0xf8] sm:$0xff]
    %v49 = vld [vmem:[%s1 + $0x100] sm:$0xff]
    %v50 = vld [vmem:[%s1 + $0x108] sm:$0xff]
    %v51 = vld [vmem:[%s1 + $0x110] sm:$0xff]
    %v52 = vld [vmem:[%s1 + $0x118] sm:$0xff]
    %v53 = vld [vmem:[%s1 + $0x120] sm:$0xff]
    %v54 = vld [vmem:[%s1 + $0x128] sm:$0xff]
    %v55 = vld [vmem:[%s1 + $0x130] sm:$0xff]
    %v56 = vld [vmem:[%s1 + $0x138] sm:$0xff]
    %v57 = vld [vmem:[%s1 + $0x140] sm:$0xff]
    %v58 = vld [vmem:[%s1 + $0x148] sm:$0xff]
    %v59 = vld [vmem:[%s1 + $0x150] sm:$0xff]
    %v60 = vld [vmem:[%s1 + $0x158] sm:$0xff]
    %v61 = vld [vmem:[%s1 + $0x160] sm:$0xff]
    %v62 = vld [vmem:[%s1 + $0x168] sm:$0xff]
    %v63 = vld [vmem:[%s1 + $0x170] sm:$0xff]
    %v64 = vld [vmem:[%s1 + $0x178] sm:$0xff]
    %v65 = vld [vmem:[%s1 + $0x180] sm:$0xff]
    %v66 = vld [vmem:[%s1 + $0x188] sm:$0xff]
    %v67 = vld [vmem:[%s1 + $0x190] sm:$0xff]
    %v68 = vld [vmem:[%s1 + $0x198] sm:$0xff]
    %v69 = vld [vmem:[%s1 + $0x1a0] sm:$0xff]
    %v70 = vld [vmem:[%s1 + $0x1a8] sm:$0xff]
    %v71 = vld [vmem:[%s1 + $0x1b0] sm:$0xff]
    %v72 = vld [vmem:[%s1 + $0x1b8] sm:$0xff]
    %v73 = vld [vmem:[%s1 + $0x1c0] sm:$0xff]
    %v74 = vld [vmem:[%s1 + $0x1c8] sm:$0xff]
    %v75 = vld [vmem:[%s1 + $0x1d0] sm:$0xff]
    %v76 = vld [vmem:[%s1 + $0x1d8] sm:$0xff]
    %v77 = vld [vmem:[%s1 + $0x1e0] sm:$0xff]
    %v78 = vld [vmem:[%s1 + $0x1e8] sm:$0xff]
    %v79 = vld [vmem:[%s1 + $0x1f0] sm:$0xff]
    %v80 = vld [vmem:[%s1 + $0x1f8] sm:$0xff]
    %v81 = vld [vmem:[%s1 + $0x200] sm:$0xff]
    %v82 = vld [vmem:[%s1 + $0x208] sm:$0xff]
    %v83 = vld [vmem:[%s1 + $0x210] sm:$0xff]
    %v84 = vld [vmem:[%s1 + $0x218] sm:$0xff]
    %v85 = vld [vmem:[%s1 + $0x220] sm:$0xff]
    %v86 = vld [vmem:[%s1 + $0x228] sm:$0xff]
    %v87 = vld [vmem:[%s1 + $0x230] sm:$0xff]
    %v88 = vld [vmem:[%s1 + $0x238] sm:$0xff]
    %v89 = vld [vmem:[%s1 + $0x240] sm:$0xff]
    %v90 = vld [vmem:[%s1 + $0x248] sm:$0xff]
    %v91 = vld [vmem:[%s1 + $0x250] sm:$0xff]
    %v92 = vld [vmem:[%s1 + $0x258] sm:$0xff]
    %v93 = vld [vmem:[%s1 + $0x260] sm:$0xff]
    %v94 = vld [vmem:[%s1 + $0x268] sm:$0xff]
    %v95 = vld [vmem:[%s1 + $0x270] sm:$0xff]
    %v96 = vld [vmem:[%s1 + $0x278] sm:$0xff]
    %v97 = vld [vmem:[%s1 + $0x280] sm:$0xff]
    %v98 = vld [vmem:[%s1 + $0x288] sm:$0xff]
    %v99 = vld [vmem:[%s1 + $0x290] sm:$0xff]
    %v100 = vld [vmem:[%s1 + $0x298] sm:$0xff]
    %v101 = vld [vmem:[%s1 + $0x2a0] sm:$0xff]
    %v102 = vld [vmem:[%s1 + $0x2a8] sm:$0xff]
    %v103 = vld [vmem:[%s1 + $0x2b0] sm:$0xff]
    %v104 = vld [vmem:[%s1 + $0x2b8] sm:$0xff]
    %v105 = vld [vmem:[%s1 + $0x2c0] sm:$0xff]
    %v106 = vld [vmem:[%s1 + $0x2c8] sm:$0xff]
    %v107 = vld [vmem:[%s1 + $0x2d0] sm:$0xff]
    %v108 = vld [vmem:[%s1 + $0x2d8] sm:$0xff]
    %v109 = vld [vmem:[%s1 + $0x2e0] sm:$0xff]
    %v110 = vld [vmem:[%s1 + $0x2e8] sm:$0xff]
    %v111 = vld [vmem:[%s1 + $0x2f0] sm:$0xff]
    %v112 = vld [vmem:[%s1 + $0x2f8] sm:$0xff]
    %v113 = vld [vmem:[%s1 + $0x300] sm:$0xff]
    %v114 = vld [vmem:[%s1 + $0x308] sm:$0xff]
    %v115 = vld [vmem:[%s1 + $0x310] sm:$0xff]
    %v116 = vld [vmem:[%s1 + $0x318] sm:$0xff]
    %v117 = vld [vmem:[%s1 + $0x320] sm:$0xff]
    %v118 = vld [vmem:[%s1 + $0x328] sm:$0xff]
    %v119 = vld [vmem:[%s1 + $0x330] sm:$0xff]
    %v120 = vld [vmem:[%s1 + $0x338] sm:$0xff]
    %v121 = vld [vmem:[%s1 + $0x340] sm:$0xff]
    %v122 = vld [vmem:[%s1 + $0x348] sm:$0xff]
    %v123 = vld [vmem:[%s1 + $0x350] sm:$0xff]
    %v124 = vld [vmem:[%s1 + $0x358] sm:$0xff]
    %v125 = vld [vmem:[%s1 + $0x360] sm:$0xff]
    %v126 = vld [vmem:[%s1 + $0x368] sm:$0xff]
    %v127 = vld [vmem:[%s1 + $0x370] sm:$0xff]
    %v128 = vld [vmem:[%s1 + $0x378] sm:$0xff]
    %v129 = vld [vmem:[%s1 + $0x380] sm:$0xff]
    %v130 = vld [vmem:[%s1 + $0x388] sm:$0xff]
    %v131 = vld [vmem:[%s1 + $0x390] sm:$0xff]
    %v132 = vld [vmem:[%s1 + $0x398] sm:$0xff]
    %v133 = vld [vmem:[%s1 + $0x3a0] sm:$0xff]
    %v134 = vld [vmem:[%s1 + $0x3a8] sm:$0xff]
    %v135 = vld [vmem:[%s1 + $0x3b0] sm:$0xff]
    %v136 = vld [vmem:[%s1 + $0x3b8] sm:$0xff]
    %v137 = vld [vmem:[%s1 + $0x3c0] sm:$0xff]
    %v138 = vld [vmem:[%s1 + $0x3c8] sm:$0xff]
    %v139 = vld [vmem:[%s1 + $0x3d0] sm:$0xff]
    %v140 = vld [vmem:[%s1 + $0x3d8] sm:$0xff]
    %v141 = vld [vmem:[%s1 + $0x3e0] sm:$0xff]
    %v142 = vld [vmem:[%s1 + $0x3e8] sm:$0xff]
    %v143 = vld [vmem:[%s1 + $0x3f0] sm:$0xff]
    %v144 = vld [vmem:[%s1 + $0x3f8] sm:$0xff]
    %v145 = vld [vmem:[%s2] sm:$0x1]
    %v147 = vlaneseq
    %v148 = vshrl.u32 %v147, 7
    %v149 = vsub.s32 0, %v148
    %v150 = vrot.slane %v145, %v149
    %v154 = vcombine.high %v15, %v15
    %v156 = vunpack.c.l.s4 1983009808
    %v157 = vunpack.c.0.s8 %v156
    %v158 = vlaneseq
    %v159 = vshrl.u32 %v158, 7
    %v160 = vsub.s32 %v157, %v159
    %v161 = vrot.slane %v15, %v160
    %v163 = vunpack.c.l.s4 1983009808
    %v164 = vunpack.c.0.s8 %v163
    %v165 = vlaneseq
    %v166 = vshrl.u32 %v165, 7
    %v167 = vsub.s32 %v164, %v166
    %v168 = vrot.slane %v154, %v167
    %v169 = vcombine.high %v161, %v161
    %v170 = vcombine.high %v168, %v168
    %v171 = vcombine.high %v16, %v16
    %v173 = vunpack.c.l.s4 1983009808
    %v174 = vunpack.c.0.s8 %v173
    %v175 = vlaneseq
    %v176 = vshrl.u32 %v175, 7
    %v177 = vsub.s32 %v174, %v176
    %v178 = vrot.slane %v16, %v177
    %v180 = vunpack.c.l.s4 1983009808
    %v181 = vunpack.c.0.s8 %v180
    %v182 = vlaneseq
    %v183 = vshrl.u32 %v182, 7
    %v184 = vsub.s32 %v181, %v183
    %v185 = vrot.slane %v171, %v184
    %v186 = vcombine.high %v178, %v178
    %v187 = vcombine.high %v185, %v185
    %196 = vmatprep.subr.mxu0 0.0
    %v197 = vand.u32 %v32, 4294901760
    %198 = vmatpush1.msra.mxu0 %v197
    %199 = vmatprep.subr.mxu0 0.0
    %v200 = vand.u32 %v31, 4294901760
    %201 = vmatpush1.msra.mxu0 %v200
    %202 = vmatprep.subr.mxu0 0.0
    %v203 = vand.u32 %v30, 4294901760
    %204 = vmatpush1.msra.mxu0 %v203
    %205 = vmatprep.subr.mxu0 0.0
    %v206 = vand.u32 %v29, 4294901760
    %207 = vmatpush1.msra.mxu0 %v206
    %208 = vmatprep.subr.mxu0 0.0
    %v209 = vand.u32 %v28, 4294901760
    %210 = vmatpush1.msra.mxu0 %v209
    %211 = vmatprep.subr.mxu0 0.0
    %v212 = vand.u32 %v27, 4294901760
    %213 = vmatpush1.msra.mxu0 %v212
    %214 = vmatprep.subr.mxu0 0.0
    %v215 = vand.u32 %v26, 4294901760
    %216 = vmatpush1.msra.mxu0 %v215
    %217 = vmatprep.subr.mxu0 0.0
    %v218 = vand.u32 %v25, 4294901760
    %219 = vmatpush1.msra.mxu0 %v218
    %220 = vmatprep.subr.mxu0 0.0
    %v221 = vand.u32 %v24, 4294901760
    %222 = vmatpush1.msra.mxu0 %v221
    %223 = vmatprep.subr.mxu0 0.0
    %v224 = vand.u32 %v23, 4294901760
    %225 = vmatpush1.msra.mxu0 %v224
    %226 = vmatprep.subr.mxu0 0.0
    %v227 = vand.u32 %v22, 4294901760
    %228 = vmatpush1.msra.mxu0 %v227
    %229 = vmatprep.subr.mxu0 0.0
    %v230 = vand.u32 %v21, 4294901760
    %231 = vmatpush1.msra.mxu0 %v230
    %232 = vmatprep.subr.mxu0 0.0
    %v233 = vand.u32 %v20, 4294901760
    %234 = vmatpush1.msra.mxu0 %v233
    %235 = vmatprep.subr.mxu0 0.0
    %v236 = vand.u32 %v19, 4294901760
    %237 = vmatpush1.msra.mxu0 %v236
    %238 = vmatprep.subr.mxu0 0.0
    %v239 = vand.u32 %v18, 4294901760
    %240 = vmatpush1.msra.mxu0 %v239
    %241 = vmatprep.subr.mxu0 0.0
    %v242 = vand.u32 %v17, 4294901760
    %243 = vmatpush1.msra.mxu0 %v242
    %244 = vmatprep.subr.mxu0 0.0
    %v245 = vand.u32 %v48, 4294901760
    %246 = vmatpush2.msra.mxu0 %v245
    %247 = vmatprep.subr.mxu0 0.0
    %v248 = vand.u32 %v47, 4294901760
    %249 = vmatpush2.msra.mxu0 %v248
    %250 = vmatprep.subr.mxu0 0.0
    %v251 = vand.u32 %v46, 4294901760
    %252 = vmatpush2.msra.mxu0 %v251
    %253 = vmatprep.subr.mxu0 0.0
    %v254 = vand.u32 %v45, 4294901760
    %255 = vmatpush2.msra.mxu0 %v254
    %256 = vmatprep.subr.mxu0 0.0
    %v257 = vand.u32 %v44, 4294901760
    %258 = vmatpush2.msra.mxu0 %v257
    %259 = vmatprep.subr.mxu0 0.0
    %v260 = vand.u32 %v43, 4294901760
    %261 = vmatpush2.msra.mxu0 %v260
    %262 = vmatprep.subr.mxu0 0.0
    %v263 = vand.u32 %v42, 4294901760
    %264 = vmatpush2.msra.mxu0 %v263
    %265 = vmatprep.subr.mxu0 0.0
    %v266 = vand.u32 %v41, 4294901760
    %267 = vmatpush2.msra.mxu0 %v266
    %268 = vmatprep.subr.mxu0 0.0
    %v269 = vand.u32 %v40, 4294901760
    %270 = vmatpush2.msra.mxu0 %v269
    %271 = vmatprep.subr.mxu0 0.0
    %v272 = vand.u32 %v39, 4294901760
    %273 = vmatpush2.msra.mxu0 %v272
    %274 = vmatprep.subr.mxu0 0.0
    %v275 = vand.u32 %v38, 4294901760
    %276 = vmatpush2.msra.mxu0 %v275
    %277 = vmatprep.subr.mxu0 0.0
    %v278 = vand.u32 %v37, 4294901760
    %279 = vmatpush2.msra.mxu0 %v278
    %280 = vmatprep.subr.mxu0 0.0
    %v281 = vand.u32 %v36, 4294901760
    %282 = vmatpush2.msra.mxu0 %v281
    %283 = vmatprep.subr.mxu0 0.0
    %v284 = vand.u32 %v35, 4294901760
    %285 = vmatpush2.msra.mxu0 %v284
    %286 = vmatprep.subr.mxu0 0.0
    %v287 = vand.u32 %v34, 4294901760
    %288 = vmatpush2.msra.mxu0 %v287
    %289 = vmatprep.subr.mxu0 0.0
    %v290 = vand.u32 %v33, 4294901760
    %291 = vmatpush2.msra.mxu0 %v290
    %v292 = vand.u32 %v169, 4294901760
    %v293 = vsub.f32 %v169, %v292
    %v294 = vand.u32 %v293, 4294901760
    %v295 = vsub.f32 %v293, %v294
    %v296 = vand.u32 %v295, 4294901760
    %297 = vmatprep.mubr.f32.mxu0 %v296
    %v298 = vand.u32 %v161, 4294901760
    %v299 = vsub.f32 %v161, %v298
    %v300 = vand.u32 %v299, 4294901760
    %v301 = vsub.f32 %v299, %v300
    %v302 = vand.u32 %v301, 4294901760
    %303 = vmatmul.mubr.f32.gmra.mxu0 %v302
    %v304 = vpop.f32.mrf.mxu0
    %v305 = vadd.f32 %v150, %v304
    %v306 = vpop.f32.mrf.mxu0
    %307 = vdwg.mxu0
    %308 = vmatprep.subr.mxu0 0.0
    %v309 = vand.u32 %v32, 4294901760
    %v310 = vsub.f32 %v32, %v309
    %v311 = vand.u32 %v310, 4294901760
    %v312 = vsub.f32 %v310, %v311
    %v313 = vand.u32 %v312, 4294901760
    %314 = vmatpush1.msra.mxu0 %v313
    %315 = vmatprep.subr.mxu0 0.0
    %v316 = vand.u32 %v31, 4294901760
    %v317 = vsub.f32 %v31, %v316
    %v318 = vand.u32 %v317, 4294901760
    %v319 = vsub.f32 %v317, %v318
    %v320 = vand.u32 %v319, 4294901760
    %321 = vmatpush1.msra.mxu0 %v320
    %322 = vmatprep.subr.mxu0 0.0
    %v323 = vand.u32 %v30, 4294901760
    %v324 = vsub.f32 %v30, %v323
    %v325 = vand.u32 %v324, 4294901760
    %v326 = vsub.f32 %v324, %v325
    %v327 = vand.u32 %v326, 4294901760
    %328 = vmatpush1.msra.mxu0 %v327
    %329 = vmatprep.subr.mxu0 0.0
    %v330 = vand.u32 %v29, 4294901760
    %v331 = vsub.f32 %v29, %v330
    %v332 = vand.u32 %v331, 4294901760
    %v333 = vsub.f32 %v331, %v332
    %v334 = vand.u32 %v333, 4294901760
    %335 = vmatpush1.msra.mxu0 %v334
    %336 = vmatprep.subr.mxu0 0.0
    %v337 = vand.u32 %v28, 4294901760
    %v338 = vsub.f32 %v28, %v337
    %v339 = vand.u32 %v338, 4294901760
    %v340 = vsub.f32 %v338, %v339
    %v341 = vand.u32 %v340, 4294901760
    %342 = vmatpush1.msra.mxu0 %v341
    %343 = vmatprep.subr.mxu0 0.0
    %v344 = vand.u32 %v27, 4294901760
    %v345 = vsub.f32 %v27, %v344
    %v346 = vand.u32 %v345, 4294901760
    %v347 = vsub.f32 %v345, %v346
    %v348 = vand.u32 %v347, 4294901760
    %349 = vmatpush1.msra.mxu0 %v348
    %350 = vmatprep.subr.mxu0 0.0
    %v351 = vand.u32 %v26, 4294901760
    %v352 = vsub.f32 %v26, %v351
    %v353 = vand.u32 %v352, 4294901760
    %v354 = vsub.f32 %v352, %v353
    %v355 = vand.u32 %v354, 4294901760
    %356 = vmatpush1.msra.mxu0 %v355
    %357 = vmatprep.subr.mxu0 0.0
    %v358 = vand.u32 %v25, 4294901760
    %v359 = vsub.f32 %v25, %v358
    %v360 = vand.u32 %v359, 4294901760
    %v361 = vsub.f32 %v359, %v360
    %v362 = vand.u32 %v361, 4294901760
    %363 = vmatpush1.msra.mxu0 %v362
    %364 = vmatprep.subr.mxu0 0.0
    %v365 = vand.u32 %v24, 4294901760
    %v366 = vsub.f32 %v24, %v365
    %v367 = vand.u32 %v366, 4294901760
    %v368 = vsub.f32 %v366, %v367
    %v369 = vand.u32 %v368, 4294901760
    %370 = vmatpush1.msra.mxu0 %v369
    %371 = vmatprep.subr.mxu0 0.0
    %v372 = vand.u32 %v23, 4294901760
    %v373 = vsub.f32 %v23, %v372
    %v374 = vand.u32 %v373, 4294901760
    %v375 = vsub.f32 %v373, %v374
    %v376 = vand.u32 %v375, 4294901760
    %377 = vmatpush1.msra.mxu0 %v376
    %378 = vmatprep.subr.mxu0 0.0
    %v379 = vand.u32 %v22, 4294901760
    %v380 = vsub.f32 %v22, %v379
    %v381 = vand.u32 %v380, 4294901760
    %v382 = vsub.f32 %v380, %v381
    %v383 = vand.u32 %v382, 4294901760
    %384 = vmatpush1.msra.mxu0 %v383
    %385 = vmatprep.subr.mxu0 0.0
    %v386 = vand.u32 %v21, 4294901760
    %v387 = vsub.f32 %v21, %v386
    %v388 = vand.u32 %v387, 4294901760
    %v389 = vsub.f32 %v387, %v388
    %v390 = vand.u32 %v389, 4294901760
    %391 = vmatpush1.msra.mxu0 %v390
    %392 = vmatprep.subr.mxu0 0.0
    %v393 = vand.u32 %v20, 4294901760
    %v394 = vsub.f32 %v20, %v393
    %v395 = vand.u32 %v394, 4294901760
    %v396 = vsub.f32 %v394, %v395
    %v397 = vand.u32 %v396, 4294901760
    %398 = vmatpush1.msra.mxu0 %v397
    %399 = vmatprep.subr.mxu0 0.0
    %v400 = vand.u32 %v19, 4294901760
    %v401 = vsub.f32 %v19, %v400
    %v402 = vand.u32 %v401, 4294901760
    %v403 = vsub.f32 %v401, %v402
    %v404 = vand.u32 %v403, 4294901760
    %405 = vmatpush1.msra.mxu0 %v404
    %406 = vmatprep.subr.mxu0 0.0
    %v407 = vand.u32 %v18, 4294901760
    %v408 = vsub.f32 %v18, %v407
    %v409 = vand.u32 %v408, 4294901760
    %v410 = vsub.f32 %v408, %v409
    %v411 = vand.u32 %v410, 4294901760
    %412 = vmatpush1.msra.mxu0 %v411
    %413 = vmatprep.subr.mxu0 0.0
    %v414 = vand.u32 %v17, 4294901760
    %v415 = vsub.f32 %v17, %v414
    %v416 = vand.u32 %v415, 4294901760
    %v417 = vsub.f32 %v415, %v416
    %v418 = vand.u32 %v417, 4294901760
    %419 = vmatpush1.msra.mxu0 %v418
    %420 = vmatprep.subr.mxu0 0.0
    %v421 = vand.u32 %v48, 4294901760
    %v422 = vsub.f32 %v48, %v421
    %v423 = vand.u32 %v422, 4294901760
    %v424 = vsub.f32 %v422, %v423
    %v425 = vand.u32 %v424, 4294901760
    %426 = vmatpush2.msra.mxu0 %v425
    %427 = vmatprep.subr.mxu0 0.0
    %v428 = vand.u32 %v47, 4294901760
    %v429 = vsub.f32 %v47, %v428
    %v430 = vand.u32 %v429, 4294901760
    %v431 = vsub.f32 %v429, %v430
    %v432 = vand.u32 %v431, 4294901760
    %433 = vmatpush2.msra.mxu0 %v432
    %434 = vmatprep.subr.mxu0 0.0
    %v435 = vand.u32 %v46, 4294901760
    %v436 = vsub.f32 %v46, %v435
    %v437 = vand.u32 %v436, 4294901760
    %v438 = vsub.f32 %v436, %v437
    %v439 = vand.u32 %v438, 4294901760
    %440 = vmatpush2.msra.mxu0 %v439
    %441 = vmatprep.subr.mxu0 0.0
    %v442 = vand.u32 %v45, 4294901760
    %v443 = vsub.f32 %v45, %v442
    %v444 = vand.u32 %v443, 4294901760
    %v445 = vsub.f32 %v443, %v444
    %v446 = vand.u32 %v445, 4294901760
    %447 = vmatpush2.msra.mxu0 %v446
    %448 = vmatprep.subr.mxu0 0.0
    %v449 = vand.u32 %v44, 4294901760
    %v450 = vsub.f32 %v44, %v449
    %v451 = vand.u32 %v450, 4294901760
    %v452 = vsub.f32 %v450, %v451
    %v453 = vand.u32 %v452, 4294901760
    %454 = vmatpush2.msra.mxu0 %v453
    %455 = vmatprep.subr.mxu0 0.0
    %v456 = vand.u32 %v43, 4294901760
    %v457 = vsub.f32 %v43, %v456
    %v458 = vand.u32 %v457, 4294901760
    %v459 = vsub.f32 %v457, %v458
    %v460 = vand.u32 %v459, 4294901760
    %461 = vmatpush2.msra.mxu0 %v460
    %462 = vmatprep.subr.mxu0 0.0
    %v463 = vand.u32 %v42, 4294901760
    %v464 = vsub.f32 %v42, %v463
    %v465 = vand.u32 %v464, 4294901760
    %v466 = vsub.f32 %v464, %v465
    %v467 = vand.u32 %v466, 4294901760
    %468 = vmatpush2.msra.mxu0 %v467
    %469 = vmatprep.subr.mxu0 0.0
    %v470 = vand.u32 %v41, 4294901760
    %v471 = vsub.f32 %v41, %v470
    %v472 = vand.u32 %v471, 4294901760
    %v473 = vsub.f32 %v471, %v472
    %v474 = vand.u32 %v473, 4294901760
    %475 = vmatpush2.msra.mxu0 %v474
    %476 = vmatprep.subr.mxu0 0.0
    %v477 = vand.u32 %v40, 4294901760
    %v478 = vsub.f32 %v40, %v477
    %v479 = vand.u32 %v478, 4294901760
    %v480 = vsub.f32 %v478, %v479
    %v481 = vand.u32 %v480, 4294901760
    %482 = vmatpush2.msra.mxu0 %v481
    %483 = vmatprep.subr.mxu0 0.0
    %v484 = vand.u32 %v39, 4294901760
    %v485 = vsub.f32 %v39, %v484
    %v486 = vand.u32 %v485, 4294901760
    %v487 = vsub.f32 %v485, %v486
    %v488 = vand.u32 %v487, 4294901760
    %489 = vmatpush2.msra.mxu0 %v488
    %490 = vmatprep.subr.mxu0 0.0
    %v491 = vand.u32 %v38, 4294901760
    %v492 = vsub.f32 %v38, %v491
    %v493 = vand.u32 %v492, 4294901760
    %v494 = vsub.f32 %v492, %v493
    %v495 = vand.u32 %v494, 4294901760
    %496 = vmatpush2.msra.mxu0 %v495
    %497 = vmatprep.subr.mxu0 0.0
    %v498 = vand.u32 %v37, 4294901760
    %v499 = vsub.f32 %v37, %v498
    %v500 = vand.u32 %v499, 4294901760
    %v501 = vsub.f32 %v499, %v500
    %v502 = vand.u32 %v501, 4294901760
    %503 = vmatpush2.msra.mxu0 %v502
    %504 = vmatprep.subr.mxu0 0.0
    %v505 = vand.u32 %v36, 4294901760
    %v506 = vsub.f32 %v36, %v505
    %v507 = vand.u32 %v506, 4294901760
    %v508 = vsub.f32 %v506, %v507
    %v509 = vand.u32 %v508, 4294901760
    %510 = vmatpush2.msra.mxu0 %v509
    %511 = vmatprep.subr.mxu0 0.0
    %v512 = vand.u32 %v35, 4294901760
    %v513 = vsub.f32 %v35, %v512
    %v514 = vand.u32 %v513, 4294901760
    %v515 = vsub.f32 %v513, %v514
    %v516 = vand.u32 %v515, 4294901760
    %517 = vmatpush2.msra.mxu0 %v516
    %518 = vmatprep.subr.mxu0 0.0
    %v519 = vand.u32 %v34, 4294901760
    %v520 = vsub.f32 %v34, %v519
    %v521 = vand.u32 %v520, 4294901760
    %v522 = vsub.f32 %v520, %v521
    %v523 = vand.u32 %v522, 4294901760
    %524 = vmatpush2.msra.mxu0 %v523
    %525 = vmatprep.subr.mxu0 0.0
    %v526 = vand.u32 %v33, 4294901760
    %v527 = vsub.f32 %v33, %v526
    %v528 = vand.u32 %v527, 4294901760
    %v529 = vsub.f32 %v527, %v528
    %v530 = vand.u32 %v529, 4294901760
    %531 = vmatpush2.msra.mxu0 %v530
    %v532 = vand.u32 %v169, 4294901760
    %533 = vmatprep.mubr.f32.mxu0 %v532
    %v534 = vand.u32 %v161, 4294901760
    %535 = vmatmul.mubr.f32.gmra.mxu0 %v534
    %v536 = vpop.f32.mrf.mxu0
    %v537 = vadd.f32 %v305, %v536
    %v538 = vpop.f32.mrf.mxu0
    %539 = vdwg.mxu0
    %540 = vmatprep.subr.mxu0 0.0
    %v541 = vand.u32 %v32, 4294901760
    %v542 = vsub.f32 %v32, %v541
    %543 = vmatpush1.msra.mxu0 %v542
    %544 = vmatprep.subr.mxu0 0.0
    %v545 = vand.u32 %v31, 4294901760
    %v546 = vsub.f32 %v31, %v545
    %547 = vmatpush1.msra.mxu0 %v546
    %548 = vmatprep.subr.mxu0 0.0
    %v549 = vand.u32 %v30, 4294901760
    %v550 = vsub.f32 %v30, %v549
    %551 = vmatpush1.msra.mxu0 %v550
    %552 = vmatprep.subr.mxu0 0.0
    %v553 = vand.u32 %v29, 4294901760
    %v554 = vsub.f32 %v29, %v553
    %555 = vmatpush1.msra.mxu0 %v554
    %556 = vmatprep.subr.mxu0 0.0
    %v557 = vand.u32 %v28, 4294901760
    %v558 = vsub.f32 %v28, %v557
    %559 = vmatpush1.msra.mxu0 %v558
    %560 = vmatprep.subr.mxu0 0.0
    %v561 = vand.u32 %v27, 4294901760
    %v562 = vsub.f32 %v27, %v561
    %563 = vmatpush1.msra.mxu0 %v562
    %564 = vmatprep.subr.mxu0 0.0
    %v565 = vand.u32 %v26, 4294901760
    %v566 = vsub.f32 %v26, %v565
    %567 = vmatpush1.msra.mxu0 %v566
    %568 = vmatprep.subr.mxu0 0.0
    %v569 = vand.u32 %v25, 4294901760
    %v570 = vsub.f32 %v25, %v569
    %571 = vmatpush1.msra.mxu0 %v570
    %572 = vmatprep.subr.mxu0 0.0
    %v573 = vand.u32 %v24, 4294901760
    %v574 = vsub.f32 %v24, %v573
    %575 = vmatpush1.msra.mxu0 %v574
    %576 = vmatprep.subr.mxu0 0.0
    %v577 = vand.u32 %v23, 4294901760
    %v578 = vsub.f32 %v23, %v577
    %579 = vmatpush1.msra.mxu0 %v578
    %580 = vmatprep.subr.mxu0 0.0
    %v581 = vand.u32 %v22, 4294901760
    %v582 = vsub.f32 %v22, %v581
    %583 = vmatpush1.msra.mxu0 %v582
    %584 = vmatprep.subr.mxu0 0.0
    %v585 = vand.u32 %v21, 4294901760
    %v586 = vsub.f32 %v21, %v585
    %587 = vmatpush1.msra.mxu0 %v586
    %588 = vmatprep.subr.mxu0 0.0
    %v589 = vand.u32 %v20, 4294901760
    %v590 = vsub.f32 %v20, %v589
    %591 = vmatpush1.msra.mxu0 %v590
    %592 = vmatprep.subr.mxu0 0.0
    %v593 = vand.u32 %v19, 4294901760
    %v594 = vsub.f32 %v19, %v593
    %595 = vmatpush1.msra.mxu0 %v594
    %596 = vmatprep.subr.mxu0 0.0
    %v597 = vand.u32 %v18, 4294901760
    %v598 = vsub.f32 %v18, %v597
    %599 = vmatpush1.msra.mxu0 %v598
    %600 = vmatprep.subr.mxu0 0.0
    %v601 = vand.u32 %v17, 4294901760
    %v602 = vsub.f32 %v17, %v601
    %603 = vmatpush1.msra.mxu0 %v602
    %604 = vmatprep.subr.mxu0 0.0
    %v605 = vand.u32 %v48, 4294901760
    %v606 = vsub.f32 %v48, %v605
    %607 = vmatpush2.msra.mxu0 %v606
    %608 = vmatprep.subr.mxu0 0.0
    %v609 = vand.u32 %v47, 4294901760
    %v610 = vsub.f32 %v47, %v609
    %611 = vmatpush2.msra.mxu0 %v610
    %612 = vmatprep.subr.mxu0 0.0
    %v613 = vand.u32 %v46, 4294901760
    %v614 = vsub.f32 %v46, %v613
    %615 = vmatpush2.msra.mxu0 %v614
    %616 = vmatprep.subr.mxu0 0.0
    %v617 = vand.u32 %v45, 4294901760
    %v618 = vsub.f32 %v45, %v617
    %619 = vmatpush2.msra.mxu0 %v618
    %620 = vmatprep.subr.mxu0 0.0
    %v621 = vand.u32 %v44, 4294901760
    %v622 = vsub.f32 %v44, %v621
    %623 = vmatpush2.msra.mxu0 %v622
    %624 = vmatprep.subr.mxu0 0.0
    %v625 = vand.u32 %v43, 4294901760
    %v626 = vsub.f32 %v43, %v625
    %627 = vmatpush2.msra.mxu0 %v626
    %628 = vmatprep.subr.mxu0 0.0
    %v629 = vand.u32 %v42, 4294901760
    %v630 = vsub.f32 %v42, %v629
    %631 = vmatpush2.msra.mxu0 %v630
    %632 = vmatprep.subr.mxu0 0.0
    %v633 = vand.u32 %v41, 4294901760
    %v634 = vsub.f32 %v41, %v633
    %635 = vmatpush2.msra.mxu0 %v634
    %636 = vmatprep.subr.mxu0 0.0
    %v637 = vand.u32 %v40, 4294901760
    %v638 = vsub.f32 %v40, %v637
    %639 = vmatpush2.msra.mxu0 %v638
    %640 = vmatprep.subr.mxu0 0.0
    %v641 = vand.u32 %v39, 4294901760
    %v642 = vsub.f32 %v39, %v641
    %643 = vmatpush2.msra.mxu0 %v642
    %644 = vmatprep.subr.mxu0 0.0
    %v645 = vand.u32 %v38, 4294901760
    %v646 = vsub.f32 %v38, %v645
    %647 = vmatpush2.msra.mxu0 %v646
    %648 = vmatprep.subr.mxu0 0.0
    %v649 = vand.u32 %v37, 4294901760
    %v650 = vsub.f32 %v37, %v649
    %651 = vmatpush2.msra.mxu0 %v650
    %652 = vmatprep.subr.mxu0 0.0
    %v653 = vand.u32 %v36, 4294901760
    %v654 = vsub.f32 %v36, %v653
    %655 = vmatpush2.msra.mxu0 %v654
    %656 = vmatprep.subr.mxu0 0.0
    %v657 = vand.u32 %v35, 4294901760
    %v658 = vsub.f32 %v35, %v657
    %659 = vmatpush2.msra.mxu0 %v658
    %660 = vmatprep.subr.mxu0 0.0
    %v661 = vand.u32 %v34, 4294901760
    %v662 = vsub.f32 %v34, %v661
    %663 = vmatpush2.msra.mxu0 %v662
    %664 = vmatprep.subr.mxu0 0.0
    %v665 = vand.u32 %v33, 4294901760
    %v666 = vsub.f32 %v33, %v665
    %667 = vmatpush2.msra.mxu0 %v666
    %v668 = vand.u32 %v169, 4294901760
    %v669 = vsub.f32 %v169, %v668
    %670 = vmatprep.mubr.f32.mxu0 %v669
    %v671 = vand.u32 %v161, 4294901760
    %v672 = vsub.f32 %v161, %v671
    %673 = vmatmul.mubr.f32.gmra.mxu0 %v672
    %v674 = vpop.f32.mrf.mxu0
    %v675 = vadd.f32 %v537, %v674
    %v676 = vpop.f32.mrf.mxu0
    %677 = vdwg.mxu0
    %678 = vmatprep.subr.mxu0 0.0
    %v679 = vand.u32 %v32, 4294901760
    %680 = vmatpush1.msra.mxu0 %v679
    %681 = vmatprep.subr.mxu0 0.0
    %v682 = vand.u32 %v31, 4294901760
    %683 = vmatpush1.msra.mxu0 %v682
    %684 = vmatprep.subr.mxu0 0.0
    %v685 = vand.u32 %v30, 4294901760
    %686 = vmatpush1.msra.mxu0 %v685
    %687 = vmatprep.subr.mxu0 0.0
    %v688 = vand.u32 %v29, 4294901760
    %689 = vmatpush1.msra.mxu0 %v688
    %690 = vmatprep.subr.mxu0 0.0
    %v691 = vand.u32 %v28, 4294901760
    %692 = vmatpush1.msra.mxu0 %v691
    %693 = vmatprep.subr.mxu0 0.0
    %v694 = vand.u32 %v27, 4294901760
    %695 = vmatpush1.msra.mxu0 %v694
    %696 = vmatprep.subr.mxu0 0.0
    %v697 = vand.u32 %v26, 4294901760
    %698 = vmatpush1.msra.mxu0 %v697
    %699 = vmatprep.subr.mxu0 0.0
    %v700 = vand.u32 %v25, 4294901760
    %701 = vmatpush1.msra.mxu0 %v700
    %702 = vmatprep.subr.mxu0 0.0
    %v703 = vand.u32 %v24, 4294901760
    %704 = vmatpush1.msra.mxu0 %v703
    %705 = vmatprep.subr.mxu0 0.0
    %v706 = vand.u32 %v23, 4294901760
    %707 = vmatpush1.msra.mxu0 %v706
    %708 = vmatprep.subr.mxu0 0.0
    %v709 = vand.u32 %v22, 4294901760
    %710 = vmatpush1.msra.mxu0 %v709
    %711 = vmatprep.subr.mxu0 0.0
    %v712 = vand.u32 %v21, 4294901760
    %713 = vmatpush1.msra.mxu0 %v712
    %714 = vmatprep.subr.mxu0 0.0
    %v715 = vand.u32 %v20, 4294901760
    %716 = vmatpush1.msra.mxu0 %v715
    %717 = vmatprep.subr.mxu0 0.0
    %v718 = vand.u32 %v19, 4294901760
    %719 = vmatpush1.msra.mxu0 %v718
    %720 = vmatprep.subr.mxu0 0.0
    %v721 = vand.u32 %v18, 4294901760
    %722 = vmatpush1.msra.mxu0 %v721
    %723 = vmatprep.subr.mxu0 0.0
    %v724 = vand.u32 %v17, 4294901760
    %725 = vmatpush1.msra.mxu0 %v724
    %726 = vmatprep.subr.mxu0 0.0
    %v727 = vand.u32 %v48, 4294901760
    %728 = vmatpush2.msra.mxu0 %v727
    %729 = vmatprep.subr.mxu0 0.0
    %v730 = vand.u32 %v47, 4294901760
    %731 = vmatpush2.msra.mxu0 %v730
    %732 = vmatprep.subr.mxu0 0.0
    %v733 = vand.u32 %v46, 4294901760
    %734 = vmatpush2.msra.mxu0 %v733
    %735 = vmatprep.subr.mxu0 0.0
    %v736 = vand.u32 %v45, 4294901760
    %737 = vmatpush2.msra.mxu0 %v736
    %738 = vmatprep.subr.mxu0 0.0
    %v739 = vand.u32 %v44, 4294901760
    %740 = vmatpush2.msra.mxu0 %v739
    %741 = vmatprep.subr.mxu0 0.0
    %v742 = vand.u32 %v43, 4294901760
    %743 = vmatpush2.msra.mxu0 %v742
    %744 = vmatprep.subr.mxu0 0.0
    %v745 = vand.u32 %v42, 4294901760
    %746 = vmatpush2.msra.mxu0 %v745
    %747 = vmatprep.subr.mxu0 0.0
    %v748 = vand.u32 %v41, 4294901760
    %749 = vmatpush2.msra.mxu0 %v748
    %750 = vmatprep.subr.mxu0 0.0
    %v751 = vand.u32 %v40, 4294901760
    %752 = vmatpush2.msra.mxu0 %v751
    %753 = vmatprep.subr.mxu0 0.0
    %v754 = vand.u32 %v39, 4294901760
    %755 = vmatpush2.msra.mxu0 %v754
    %756 = vmatprep.subr.mxu0 0.0
    %v757 = vand.u32 %v38, 4294901760
    %758 = vmatpush2.msra.mxu0 %v757
    %759 = vmatprep.subr.mxu0 0.0
    %v760 = vand.u32 %v37, 4294901760
    %761 = vmatpush2.msra.mxu0 %v760
    %762 = vmatprep.subr.mxu0 0.0
    %v763 = vand.u32 %v36, 4294901760
    %764 = vmatpush2.msra.mxu0 %v763
    %765 = vmatprep.subr.mxu0 0.0
    %v766 = vand.u32 %v35, 4294901760
    %767 = vmatpush2.msra.mxu0 %v766
    %768 = vmatprep.subr.mxu0 0.0
    %v769 = vand.u32 %v34, 4294901760
    %770 = vmatpush2.msra.mxu0 %v769
    %771 = vmatprep.subr.mxu0 0.0
    %v772 = vand.u32 %v33, 4294901760
    %773 = vmatpush2.msra.mxu0 %v772
    %v774 = vand.u32 %v169, 4294901760
    %v775 = vsub.f32 %v169, %v774
    %v776 = vand.u32 %v775, 4294901760
    %777 = vmatprep.mubr.f32.mxu0 %v776
    %v778 = vand.u32 %v161, 4294901760
    %v779 = vsub.f32 %v161, %v778
    %v780 = vand.u32 %v779, 4294901760
    %781 = vmatmul.mubr.f32.gmra.mxu0 %v780
    %v782 = vpop.f32.mrf.mxu0
    %v783 = vadd.f32 %v675, %v782
    %v784 = vpop.f32.mrf.mxu0
    %785 = vdwg.mxu0
    %786 = vmatprep.subr.mxu0 0.0
    %v787 = vand.u32 %v32, 4294901760
    %v788 = vsub.f32 %v32, %v787
    %v789 = vand.u32 %v788, 4294901760
    %790 = vmatpush1.msra.mxu0 %v789
    %791 = vmatprep.subr.mxu0 0.0
    %v792 = vand.u32 %v31, 4294901760
    %v793 = vsub.f32 %v31, %v792
    %v794 = vand.u32 %v793, 4294901760
    %795 = vmatpush1.msra.mxu0 %v794
    %796 = vmatprep.subr.mxu0 0.0
    %v797 = vand.u32 %v30, 4294901760
    %v798 = vsub.f32 %v30, %v797
    %v799 = vand.u32 %v798, 4294901760
    %800 = vmatpush1.msra.mxu0 %v799
    %801 = vmatprep.subr.mxu0 0.0
    %v802 = vand.u32 %v29, 4294901760
    %v803 = vsub.f32 %v29, %v802
    %v804 = vand.u32 %v803, 4294901760
    %805 = vmatpush1.msra.mxu0 %v804
    %806 = vmatprep.subr.mxu0 0.0
    %v807 = vand.u32 %v28, 4294901760
    %v808 = vsub.f32 %v28, %v807
    %v809 = vand.u32 %v808, 4294901760
    %810 = vmatpush1.msra.mxu0 %v809
    %811 = vmatprep.subr.mxu0 0.0
    %v812 = vand.u32 %v27, 4294901760
    %v813 = vsub.f32 %v27, %v812
    %v814 = vand.u32 %v813, 4294901760
    %815 = vmatpush1.msra.mxu0 %v814
    %816 = vmatprep.subr.mxu0 0.0
    %v817 = vand.u32 %v26, 4294901760
    %v818 = vsub.f32 %v26, %v817
    %v819 = vand.u32 %v818, 4294901760
    %820 = vmatpush1.msra.mxu0 %v819
    %821 = vmatprep.subr.mxu0 0.0
    %v822 = vand.u32 %v25, 4294901760
    %v823 = vsub.f32 %v25, %v822
    %v824 = vand.u32 %v823, 4294901760
    %825 = vmatpush1.msra.mxu0 %v824
    %826 = vmatprep.subr.mxu0 0.0
    %v827 = vand.u32 %v24, 4294901760
    %v828 = vsub.f32 %v24, %v827
    %v829 = vand.u32 %v828, 4294901760
    %830 = vmatpush1.msra.mxu0 %v829
    %831 = vmatprep.subr.mxu0 0.0
    %v832 = vand.u32 %v23, 4294901760
    %v833 = vsub.f32 %v23, %v832
    %v834 = vand.u32 %v833, 4294901760
    %835 = vmatpush1.msra.mxu0 %v834
    %836 = vmatprep.subr.mxu0 0.0
    %v837 = vand.u32 %v22, 4294901760
    %v838 = vsub.f32 %v22, %v837
    %v839 = vand.u32 %v838, 4294901760
    %840 = vmatpush1.msra.mxu0 %v839
    %841 = vmatprep.subr.mxu0 0.0
    %v842 = vand.u32 %v21, 4294901760
    %v843 = vsub.f32 %v21, %v842
    %v844 = vand.u32 %v843, 4294901760
    %845 = vmatpush1.msra.mxu0 %v844
    %846 = vmatprep.subr.mxu0 0.0
    %v847 = vand.u32 %v20, 4294901760
    %v848 = vsub.f32 %v20, %v847
    %v849 = vand.u32 %v848, 4294901760
    %850 = vmatpush1.msra.mxu0 %v849
    %851 = vmatprep.subr.mxu0 0.0
    %v852 = vand.u32 %v19, 4294901760
    %v853 = vsub.f32 %v19, %v852
    %v854 = vand.u32 %v853, 4294901760
    %855 = vmatpush1.msra.mxu0 %v854
    %856 = vmatprep.subr.mxu0 0.0
    %v857 = vand.u32 %v18, 4294901760
    %v858 = vsub.f32 %v18, %v857
    %v859 = vand.u32 %v858, 4294901760
    %860 = vmatpush1.msra.mxu0 %v859
    %861 = vmatprep.subr.mxu0 0.0
    %v862 = vand.u32 %v17, 4294901760
    %v863 = vsub.f32 %v17, %v862
    %v864 = vand.u32 %v863, 4294901760
    %865 = vmatpush1.msra.mxu0 %v864
    %866 = vmatprep.subr.mxu0 0.0
    %v867 = vand.u32 %v48, 4294901760
    %v868 = vsub.f32 %v48, %v867
    %v869 = vand.u32 %v868, 4294901760
    %870 = vmatpush2.msra.mxu0 %v869
    %871 = vmatprep.subr.mxu0 0.0
    %v872 = vand.u32 %v47, 4294901760
    %v873 = vsub.f32 %v47, %v872
    %v874 = vand.u32 %v873, 4294901760
    %875 = vmatpush2.msra.mxu0 %v874
    %876 = vmatprep.subr.mxu0 0.0
    %v877 = vand.u32 %v46, 4294901760
    %v878 = vsub.f32 %v46, %v877
    %v879 = vand.u32 %v878, 4294901760
    %880 = vmatpush2.msra.mxu0 %v879
    %881 = vmatprep.subr.mxu0 0.0
    %v882 = vand.u32 %v45, 4294901760
    %v883 = vsub.f32 %v45, %v882
    %v884 = vand.u32 %v883, 4294901760
    %885 = vmatpush2.msra.mxu0 %v884
    %886 = vmatprep.subr.mxu0 0.0
    %v887 = vand.u32 %v44, 4294901760
    %v888 = vsub.f32 %v44, %v887
    %v889 = vand.u32 %v888, 4294901760
    %890 = vmatpush2.msra.mxu0 %v889
    %891 = vmatprep.subr.mxu0 0.0
    %v892 = vand.u32 %v43, 4294901760
    %v893 = vsub.f32 %v43, %v892
    %v894 = vand.u32 %v893, 4294901760
    %895 = vmatpush2.msra.mxu0 %v894
    %896 = vmatprep.subr.mxu0 0.0
    %v897 = vand.u32 %v42, 4294901760
    %v898 = vsub.f32 %v42, %v897
    %v899 = vand.u32 %v898, 4294901760
    %900 = vmatpush2.msra.mxu0 %v899
    %901 = vmatprep.subr.mxu0 0.0
    %v902 = vand.u32 %v41, 4294901760
    %v903 = vsub.f32 %v41, %v902
    %v904 = vand.u32 %v903, 4294901760
    %905 = vmatpush2.msra.mxu0 %v904
    %906 = vmatprep.subr.mxu0 0.0
    %v907 = vand.u32 %v40, 4294901760
    %v908 = vsub.f32 %v40, %v907
    %v909 = vand.u32 %v908, 4294901760
    %910 = vmatpush2.msra.mxu0 %v909
    %911 = vmatprep.subr.mxu0 0.0
    %v912 = vand.u32 %v39, 4294901760
    %v913 = vsub.f32 %v39, %v912
    %v914 = vand.u32 %v913, 4294901760
    %915 = vmatpush2.msra.mxu0 %v914
    %916 = vmatprep.subr.mxu0 0.0
    %v917 = vand.u32 %v38, 4294901760
    %v918 = vsub.f32 %v38, %v917
    %v919 = vand.u32 %v918, 4294901760
    %920 = vmatpush2.msra.mxu0 %v919
    %921 = vmatprep.subr.mxu0 0.0
    %v922 = vand.u32 %v37, 4294901760
    %v923 = vsub.f32 %v37, %v922
    %v924 = vand.u32 %v923, 4294901760
    %925 = vmatpush2.msra.mxu0 %v924
    %926 = vmatprep.subr.mxu0 0.0
    %v927 = vand.u32 %v36, 4294901760
    %v928 = vsub.f32 %v36, %v927
    %v929 = vand.u32 %v928, 4294901760
    %930 = vmatpush2.msra.mxu0 %v929
    %931 = vmatprep.subr.mxu0 0.0
    %v932 = vand.u32 %v35, 4294901760
    %v933 = vsub.f32 %v35, %v932
    %v934 = vand.u32 %v933, 4294901760
    %935 = vmatpush2.msra.mxu0 %v934
    %936 = vmatprep.subr.mxu0 0.0
    %v937 = vand.u32 %v34, 4294901760
    %v938 = vsub.f32 %v34, %v937
    %v939 = vand.u32 %v938, 4294901760
    %940 = vmatpush2.msra.mxu0 %v939
    %941 = vmatprep.subr.mxu0 0.0
    %v942 = vand.u32 %v33, 4294901760
    %v943 = vsub.f32 %v33, %v942
    %v944 = vand.u32 %v943, 4294901760
    %945 = vmatpush2.msra.mxu0 %v944
    %v946 = vand.u32 %v169, 4294901760
    %947 = vmatprep.mubr.f32.mxu0 %v946
    %v948 = vand.u32 %v161, 4294901760
    %949 = vmatmul.mubr.f32.gmra.mxu0 %v948
    %v950 = vpop.f32.mrf.mxu0
    %v951 = vadd.f32 %v783, %v950
    %v952 = vpop.f32.mrf.mxu0
    %953 = vdwg.mxu0
    %954 = vmatprep.subr.mxu0 0.0
    %v955 = vand.u32 %v32, 4294901760
    %956 = vmatpush1.msra.mxu0 %v955
    %957 = vmatprep.subr.mxu0 0.0
    %v958 = vand.u32 %v31, 4294901760
    %959 = vmatpush1.msra.mxu0 %v958
    %960 = vmatprep.subr.mxu0 0.0
    %v961 = vand.u32 %v30, 4294901760
    %962 = vmatpush1.msra.mxu0 %v961
    %963 = vmatprep.subr.mxu0 0.0
    %v964 = vand.u32 %v29, 4294901760
    %965 = vmatpush1.msra.mxu0 %v964
    %966 = vmatprep.subr.mxu0 0.0
    %v967 = vand.u32 %v28, 4294901760
    %968 = vmatpush1.msra.mxu0 %v967
    %969 = vmatprep.subr.mxu0 0.0
    %v970 = vand.u32 %v27, 4294901760
    %971 = vmatpush1.msra.mxu0 %v970
    %972 = vmatprep.subr.mxu0 0.0
    %v973 = vand.u32 %v26, 4294901760
    %974 = vmatpush1.msra.mxu0 %v973
    %975 = vmatprep.subr.mxu0 0.0
    %v976 = vand.u32 %v25, 4294901760
    %977 = vmatpush1.msra.mxu0 %v976
    %978 = vmatprep.subr.mxu0 0.0
    %v979 = vand.u32 %v24, 4294901760
    %980 = vmatpush1.msra.mxu0 %v979
    %981 = vmatprep.subr.mxu0 0.0
    %v982 = vand.u32 %v23, 4294901760
    %983 = vmatpush1.msra.mxu0 %v982
    %984 = vmatprep.subr.mxu0 0.0
    %v985 = vand.u32 %v22, 4294901760
    %986 = vmatpush1.msra.mxu0 %v985
    %987 = vmatprep.subr.mxu0 0.0
    %v988 = vand.u32 %v21, 4294901760
    %989 = vmatpush1.msra.mxu0 %v988
    %990 = vmatprep.subr.mxu0 0.0
    %v991 = vand.u32 %v20, 4294901760
    %992 = vmatpush1.msra.mxu0 %v991
    %993 = vmatprep.subr.mxu0 0.0
    %v994 = vand.u32 %v19, 4294901760
    %995 = vmatpush1.msra.mxu0 %v994
    %996 = vmatprep.subr.mxu0 0.0
    %v997 = vand.u32 %v18, 4294901760
    %998 = vmatpush1.msra.mxu0 %v997
    %999 = vmatprep.subr.mxu0 0.0
    %v1000 = vand.u32 %v17, 4294901760
    %1001 = vmatpush1.msra.mxu0 %v1000
    %1002 = vmatprep.subr.mxu0 0.0
    %v1003 = vand.u32 %v48, 4294901760
    %1004 = vmatpush2.msra.mxu0 %v1003
    %1005 = vmatprep.subr.mxu0 0.0
    %v1006 = vand.u32 %v47, 4294901760
    %1007 = vmatpush2.msra.mxu0 %v1006
    %1008 = vmatprep.subr.mxu0 0.0
    %v1009 = vand.u32 %v46, 4294901760
    %1010 = vmatpush2.msra.mxu0 %v1009
    %1011 = vmatprep.subr.mxu0 0.0
    %v1012 = vand.u32 %v45, 4294901760
    %1013 = vmatpush2.msra.mxu0 %v1012
    %1014 = vmatprep.subr.mxu0 0.0
    %v1015 = vand.u32 %v44, 4294901760
    %1016 = vmatpush2.msra.mxu0 %v1015
    %1017 = vmatprep.subr.mxu0 0.0
    %v1018 = vand.u32 %v43, 4294901760
    %1019 = vmatpush2.msra.mxu0 %v1018
    %1020 = vmatprep.subr.mxu0 0.0
    %v1021 = vand.u32 %v42, 4294901760
    %1022 = vmatpush2.msra.mxu0 %v1021
    %1023 = vmatprep.subr.mxu0 0.0
    %v1024 = vand.u32 %v41, 4294901760
    %1025 = vmatpush2.msra.mxu0 %v1024
    %1026 = vmatprep.subr.mxu0 0.0
    %v1027 = vand.u32 %v40, 4294901760
    %1028 = vmatpush2.msra.mxu0 %v1027
    %1029 = vmatprep.subr.mxu0 0.0
    %v1030 = vand.u32 %v39, 4294901760
    %1031 = vmatpush2.msra.mxu0 %v1030
    %1032 = vmatprep.subr.mxu0 0.0
    %v1033 = vand.u32 %v38, 4294901760
    %1034 = vmatpush2.msra.mxu0 %v1033
    %1035 = vmatprep.subr.mxu0 0.0
    %v1036 = vand.u32 %v37, 4294901760
    %1037 = vmatpush2.msra.mxu0 %v1036
    %1038 = vmatprep.subr.mxu0 0.0
    %v1039 = vand.u32 %v36, 4294901760
    %1040 = vmatpush2.msra.mxu0 %v1039
    %1041 = vmatprep.subr.mxu0 0.0
    %v1042 = vand.u32 %v35, 4294901760
    %1043 = vmatpush2.msra.mxu0 %v1042
    %1044 = vmatprep.subr.mxu0 0.0
    %v1045 = vand.u32 %v34, 4294901760
    %1046 = vmatpush2.msra.mxu0 %v1045
    %1047 = vmatprep.subr.mxu0 0.0
    %v1048 = vand.u32 %v33, 4294901760
    %1049 = vmatpush2.msra.mxu0 %v1048
    %v1050 = vand.u32 %v169, 4294901760
    %1051 = vmatprep.mubr.f32.mxu0 %v1050
    %v1052 = vand.u32 %v161, 4294901760
    %1053 = vmatmul.mubr.f32.gmra.mxu0 %v1052
    %v1054 = vpop.f32.mrf.mxu0
    %v1055 = vadd.f32 %v951, %v1054
    %v1056 = vpop.f32.mrf.mxu0
    %1057 = vdwg.mxu0
    %1058 = vmatprep.subr.mxu0 0.0
    %v1059 = vand.u32 %v64, 4294901760
    %1060 = vmatpush1.msra.mxu0 %v1059
    %1061 = vmatprep.subr.mxu0 0.0
    %v1062 = vand.u32 %v63, 4294901760
    %1063 = vmatpush1.msra.mxu0 %v1062
    %1064 = vmatprep.subr.mxu0 0.0
    %v1065 = vand.u32 %v62, 4294901760
    %1066 = vmatpush1.msra.mxu0 %v1065
    %1067 = vmatprep.subr.mxu0 0.0
    %v1068 = vand.u32 %v61, 4294901760
    %1069 = vmatpush1.msra.mxu0 %v1068
    %1070 = vmatprep.subr.mxu0 0.0
    %v1071 = vand.u32 %v60, 4294901760
    %1072 = vmatpush1.msra.mxu0 %v1071
    %1073 = vmatprep.subr.mxu0 0.0
    %v1074 = vand.u32 %v59, 4294901760
    %1075 = vmatpush1.msra.mxu0 %v1074
    %1076 = vmatprep.subr.mxu0 0.0
    %v1077 = vand.u32 %v58, 4294901760
    %1078 = vmatpush1.msra.mxu0 %v1077
    %1079 = vmatprep.subr.mxu0 0.0
    %v1080 = vand.u32 %v57, 4294901760
    %1081 = vmatpush1.msra.mxu0 %v1080
    %1082 = vmatprep.subr.mxu0 0.0
    %v1083 = vand.u32 %v56, 4294901760
    %1084 = vmatpush1.msra.mxu0 %v1083
    %1085 = vmatprep.subr.mxu0 0.0
    %v1086 = vand.u32 %v55, 4294901760
    %1087 = vmatpush1.msra.mxu0 %v1086
    %1088 = vmatprep.subr.mxu0 0.0
    %v1089 = vand.u32 %v54, 4294901760
    %1090 = vmatpush1.msra.mxu0 %v1089
    %1091 = vmatprep.subr.mxu0 0.0
    %v1092 = vand.u32 %v53, 4294901760
    %1093 = vmatpush1.msra.mxu0 %v1092
    %1094 = vmatprep.subr.mxu0 0.0
    %v1095 = vand.u32 %v52, 4294901760
    %1096 = vmatpush1.msra.mxu0 %v1095
    %1097 = vmatprep.subr.mxu0 0.0
    %v1098 = vand.u32 %v51, 4294901760
    %1099 = vmatpush1.msra.mxu0 %v1098
    %1100 = vmatprep.subr.mxu0 0.0
    %v1101 = vand.u32 %v50, 4294901760
    %1102 = vmatpush1.msra.mxu0 %v1101
    %1103 = vmatprep.subr.mxu0 0.0
    %v1104 = vand.u32 %v49, 4294901760
    %1105 = vmatpush1.msra.mxu0 %v1104
    %1106 = vmatprep.subr.mxu0 0.0
    %v1107 = vand.u32 %v80, 4294901760
    %1108 = vmatpush2.msra.mxu0 %v1107
    %1109 = vmatprep.subr.mxu0 0.0
    %v1110 = vand.u32 %v79, 4294901760
    %1111 = vmatpush2.msra.mxu0 %v1110
    %1112 = vmatprep.subr.mxu0 0.0
    %v1113 = vand.u32 %v78, 4294901760
    %1114 = vmatpush2.msra.mxu0 %v1113
    %1115 = vmatprep.subr.mxu0 0.0
    %v1116 = vand.u32 %v77, 4294901760
    %1117 = vmatpush2.msra.mxu0 %v1116
    %1118 = vmatprep.subr.mxu0 0.0
    %v1119 = vand.u32 %v76, 4294901760
    %1120 = vmatpush2.msra.mxu0 %v1119
    %1121 = vmatprep.subr.mxu0 0.0
    %v1122 = vand.u32 %v75, 4294901760
    %1123 = vmatpush2.msra.mxu0 %v1122
    %1124 = vmatprep.subr.mxu0 0.0
    %v1125 = vand.u32 %v74, 4294901760
    %1126 = vmatpush2.msra.mxu0 %v1125
    %1127 = vmatprep.subr.mxu0 0.0
    %v1128 = vand.u32 %v73, 4294901760
    %1129 = vmatpush2.msra.mxu0 %v1128
    %1130 = vmatprep.subr.mxu0 0.0
    %v1131 = vand.u32 %v72, 4294901760
    %1132 = vmatpush2.msra.mxu0 %v1131
    %1133 = vmatprep.subr.mxu0 0.0
    %v1134 = vand.u32 %v71, 4294901760
    %1135 = vmatpush2.msra.mxu0 %v1134
    %1136 = vmatprep.subr.mxu0 0.0
    %v1137 = vand.u32 %v70, 4294901760
    %1138 = vmatpush2.msra.mxu0 %v1137
    %1139 = vmatprep.subr.mxu0 0.0
    %v1140 = vand.u32 %v69, 4294901760
    %1141 = vmatpush2.msra.mxu0 %v1140
    %1142 = vmatprep.subr.mxu0 0.0
    %v1143 = vand.u32 %v68, 4294901760
    %1144 = vmatpush2.msra.mxu0 %v1143
    %1145 = vmatprep.subr.mxu0 0.0
    %v1146 = vand.u32 %v67, 4294901760
    %1147 = vmatpush2.msra.mxu0 %v1146
    %1148 = vmatprep.subr.mxu0 0.0
    %v1149 = vand.u32 %v66, 4294901760
    %1150 = vmatpush2.msra.mxu0 %v1149
    %1151 = vmatprep.subr.mxu0 0.0
    %v1152 = vand.u32 %v65, 4294901760
    %1153 = vmatpush2.msra.mxu0 %v1152
    %v1154 = vand.u32 %v170, 4294901760
    %v1155 = vsub.f32 %v170, %v1154
    %v1156 = vand.u32 %v1155, 4294901760
    %v1157 = vsub.f32 %v1155, %v1156
    %v1158 = vand.u32 %v1157, 4294901760
    %1159 = vmatprep.mubr.f32.mxu0 %v1158
    %v1160 = vand.u32 %v168, 4294901760
    %v1161 = vsub.f32 %v168, %v1160
    %v1162 = vand.u32 %v1161, 4294901760
    %v1163 = vsub.f32 %v1161, %v1162
    %v1164 = vand.u32 %v1163, 4294901760
    %1165 = vmatmul.mubr.f32.gmra.mxu0 %v1164
    %v1166 = vpop.f32.mrf.mxu0
    %v1167 = vadd.f32 %v1055, %v1166
    %v1168 = vpop.f32.mrf.mxu0
    %1169 = vdwg.mxu0
    %1170 = vmatprep.subr.mxu0 0.0
    %v1171 = vand.u32 %v64, 4294901760
    %v1172 = vsub.f32 %v64, %v1171
    %v1173 = vand.u32 %v1172, 4294901760
    %v1174 = vsub.f32 %v1172, %v1173
    %v1175 = vand.u32 %v1174, 4294901760
    %1176 = vmatpush1.msra.mxu0 %v1175
    %1177 = vmatprep.subr.mxu0 0.0
    %v1178 = vand.u32 %v63, 4294901760
    %v1179 = vsub.f32 %v63, %v1178
    %v1180 = vand.u32 %v1179, 4294901760
    %v1181 = vsub.f32 %v1179, %v1180
    %v1182 = vand.u32 %v1181, 4294901760
    %1183 = vmatpush1.msra.mxu0 %v1182
    %1184 = vmatprep.subr.mxu0 0.0
    %v1185 = vand.u32 %v62, 4294901760
    %v1186 = vsub.f32 %v62, %v1185
    %v1187 = vand.u32 %v1186, 4294901760
    %v1188 = vsub.f32 %v1186, %v1187
    %v1189 = vand.u32 %v1188, 4294901760
    %1190 = vmatpush1.msra.mxu0 %v1189
    %1191 = vmatprep.subr.mxu0 0.0
    %v1192 = vand.u32 %v61, 4294901760
    %v1193 = vsub.f32 %v61, %v1192
    %v1194 = vand.u32 %v1193, 4294901760
    %v1195 = vsub.f32 %v1193, %v1194
    %v1196 = vand.u32 %v1195, 4294901760
    %1197 = vmatpush1.msra.mxu0 %v1196
    %1198 = vmatprep.subr.mxu0 0.0
    %v1199 = vand.u32 %v60, 4294901760
    %v1200 = vsub.f32 %v60, %v1199
    %v1201 = vand.u32 %v1200, 4294901760
    %v1202 = vsub.f32 %v1200, %v1201
    %v1203 = vand.u32 %v1202, 4294901760
    %1204 = vmatpush1.msra.mxu0 %v1203
    %1205 = vmatprep.subr.mxu0 0.0
    %v1206 = vand.u32 %v59, 4294901760
    %v1207 = vsub.f32 %v59, %v1206
    %v1208 = vand.u32 %v1207, 4294901760
    %v1209 = vsub.f32 %v1207, %v1208
    %v1210 = vand.u32 %v1209, 4294901760
    %1211 = vmatpush1.msra.mxu0 %v1210
    %1212 = vmatprep.subr.mxu0 0.0
    %v1213 = vand.u32 %v58, 4294901760
    %v1214 = vsub.f32 %v58, %v1213
    %v1215 = vand.u32 %v1214, 4294901760
    %v1216 = vsub.f32 %v1214, %v1215
    %v1217 = vand.u32 %v1216, 4294901760
    %1218 = vmatpush1.msra.mxu0 %v1217
    %1219 = vmatprep.subr.mxu0 0.0
    %v1220 = vand.u32 %v57, 4294901760
    %v1221 = vsub.f32 %v57, %v1220
    %v1222 = vand.u32 %v1221, 4294901760
    %v1223 = vsub.f32 %v1221, %v1222
    %v1224 = vand.u32 %v1223, 4294901760
    %1225 = vmatpush1.msra.mxu0 %v1224
    %1226 = vmatprep.subr.mxu0 0.0
    %v1227 = vand.u32 %v56, 4294901760
    %v1228 = vsub.f32 %v56, %v1227
    %v1229 = vand.u32 %v1228, 4294901760
    %v1230 = vsub.f32 %v1228, %v1229
    %v1231 = vand.u32 %v1230, 4294901760
    %1232 = vmatpush1.msra.mxu0 %v1231
    %1233 = vmatprep.subr.mxu0 0.0
    %v1234 = vand.u32 %v55, 4294901760
    %v1235 = vsub.f32 %v55, %v1234
    %v1236 = vand.u32 %v1235, 4294901760
    %v1237 = vsub.f32 %v1235, %v1236
    %v1238 = vand.u32 %v1237, 4294901760
    %1239 = vmatpush1.msra.mxu0 %v1238
    %1240 = vmatprep.subr.mxu0 0.0
    %v1241 = vand.u32 %v54, 4294901760
    %v1242 = vsub.f32 %v54, %v1241
    %v1243 = vand.u32 %v1242, 4294901760
    %v1244 = vsub.f32 %v1242, %v1243
    %v1245 = vand.u32 %v1244, 4294901760
    %1246 = vmatpush1.msra.mxu0 %v1245
    %1247 = vmatprep.subr.mxu0 0.0
    %v1248 = vand.u32 %v53, 4294901760
    %v1249 = vsub.f32 %v53, %v1248
    %v1250 = vand.u32 %v1249, 4294901760
    %v1251 = vsub.f32 %v1249, %v1250
    %v1252 = vand.u32 %v1251, 4294901760
    %1253 = vmatpush1.msra.mxu0 %v1252
    %1254 = vmatprep.subr.mxu0 0.0
    %v1255 = vand.u32 %v52, 4294901760
    %v1256 = vsub.f32 %v52, %v1255
    %v1257 = vand.u32 %v1256, 4294901760
    %v1258 = vsub.f32 %v1256, %v1257
    %v1259 = vand.u32 %v1258, 4294901760
    %1260 = vmatpush1.msra.mxu0 %v1259
    %1261 = vmatprep.subr.mxu0 0.0
    %v1262 = vand.u32 %v51, 4294901760
    %v1263 = vsub.f32 %v51, %v1262
    %v1264 = vand.u32 %v1263, 4294901760
    %v1265 = vsub.f32 %v1263, %v1264
    %v1266 = vand.u32 %v1265, 4294901760
    %1267 = vmatpush1.msra.mxu0 %v1266
    %1268 = vmatprep.subr.mxu0 0.0
    %v1269 = vand.u32 %v50, 4294901760
    %v1270 = vsub.f32 %v50, %v1269
    %v1271 = vand.u32 %v1270, 4294901760
    %v1272 = vsub.f32 %v1270, %v1271
    %v1273 = vand.u32 %v1272, 4294901760
    %1274 = vmatpush1.msra.mxu0 %v1273
    %1275 = vmatprep.subr.mxu0 0.0
    %v1276 = vand.u32 %v49, 4294901760
    %v1277 = vsub.f32 %v49, %v1276
    %v1278 = vand.u32 %v1277, 4294901760
    %v1279 = vsub.f32 %v1277, %v1278
    %v1280 = vand.u32 %v1279, 4294901760
    %1281 = vmatpush1.msra.mxu0 %v1280
    %1282 = vmatprep.subr.mxu0 0.0
    %v1283 = vand.u32 %v80, 4294901760
    %v1284 = vsub.f32 %v80, %v1283
    %v1285 = vand.u32 %v1284, 4294901760
    %v1286 = vsub.f32 %v1284, %v1285
    %v1287 = vand.u32 %v1286, 4294901760
    %1288 = vmatpush2.msra.mxu0 %v1287
    %1289 = vmatprep.subr.mxu0 0.0
    %v1290 = vand.u32 %v79, 4294901760
    %v1291 = vsub.f32 %v79, %v1290
    %v1292 = vand.u32 %v1291, 4294901760
    %v1293 = vsub.f32 %v1291, %v1292
    %v1294 = vand.u32 %v1293, 4294901760
    %1295 = vmatpush2.msra.mxu0 %v1294
    %1296 = vmatprep.subr.mxu0 0.0
    %v1297 = vand.u32 %v78, 4294901760
    %v1298 = vsub.f32 %v78, %v1297
    %v1299 = vand.u32 %v1298, 4294901760
    %v1300 = vsub.f32 %v1298, %v1299
    %v1301 = vand.u32 %v1300, 4294901760
    %1302 = vmatpush2.msra.mxu0 %v1301
    %1303 = vmatprep.subr.mxu0 0.0
    %v1304 = vand.u32 %v77, 4294901760
    %v1305 = vsub.f32 %v77, %v1304
    %v1306 = vand.u32 %v1305, 4294901760
    %v1307 = vsub.f32 %v1305, %v1306
    %v1308 = vand.u32 %v1307, 4294901760
    %1309 = vmatpush2.msra.mxu0 %v1308
    %1310 = vmatprep.subr.mxu0 0.0
    %v1311 = vand.u32 %v76, 4294901760
    %v1312 = vsub.f32 %v76, %v1311
    %v1313 = vand.u32 %v1312, 4294901760
    %v1314 = vsub.f32 %v1312, %v1313
    %v1315 = vand.u32 %v1314, 4294901760
    %1316 = vmatpush2.msra.mxu0 %v1315
    %1317 = vmatprep.subr.mxu0 0.0
    %v1318 = vand.u32 %v75, 4294901760
    %v1319 = vsub.f32 %v75, %v1318
    %v1320 = vand.u32 %v1319, 4294901760
    %v1321 = vsub.f32 %v1319, %v1320
    %v1322 = vand.u32 %v1321, 4294901760
    %1323 = vmatpush2.msra.mxu0 %v1322
    %1324 = vmatprep.subr.mxu0 0.0
    %v1325 = vand.u32 %v74, 4294901760
    %v1326 = vsub.f32 %v74, %v1325
    %v1327 = vand.u32 %v1326, 4294901760
    %v1328 = vsub.f32 %v1326, %v1327
    %v1329 = vand.u32 %v1328, 4294901760
    %1330 = vmatpush2.msra.mxu0 %v1329
    %1331 = vmatprep.subr.mxu0 0.0
    %v1332 = vand.u32 %v73, 4294901760
    %v1333 = vsub.f32 %v73, %v1332
    %v1334 = vand.u32 %v1333, 4294901760
    %v1335 = vsub.f32 %v1333, %v1334
    %v1336 = vand.u32 %v1335, 4294901760
    %1337 = vmatpush2.msra.mxu0 %v1336
    %1338 = vmatprep.subr.mxu0 0.0
    %v1339 = vand.u32 %v72, 4294901760
    %v1340 = vsub.f32 %v72, %v1339
    %v1341 = vand.u32 %v1340, 4294901760
    %v1342 = vsub.f32 %v1340, %v1341
    %v1343 = vand.u32 %v1342, 4294901760
    %1344 = vmatpush2.msra.mxu0 %v1343
    %1345 = vmatprep.subr.mxu0 0.0
    %v1346 = vand.u32 %v71, 4294901760
    %v1347 = vsub.f32 %v71, %v1346
    %v1348 = vand.u32 %v1347, 4294901760
    %v1349 = vsub.f32 %v1347, %v1348
    %v1350 = vand.u32 %v1349, 4294901760
    %1351 = vmatpush2.msra.mxu0 %v1350
    %1352 = vmatprep.subr.mxu0 0.0
    %v1353 = vand.u32 %v70, 4294901760
    %v1354 = vsub.f32 %v70, %v1353
    %v1355 = vand.u32 %v1354, 4294901760
    %v1356 = vsub.f32 %v1354, %v1355
    %v1357 = vand.u32 %v1356, 4294901760
    %1358 = vmatpush2.msra.mxu0 %v1357
    %1359 = vmatprep.subr.mxu0 0.0
    %v1360 = vand.u32 %v69, 4294901760
    %v1361 = vsub.f32 %v69, %v1360
    %v1362 = vand.u32 %v1361, 4294901760
    %v1363 = vsub.f32 %v1361, %v1362
    %v1364 = vand.u32 %v1363, 4294901760
    %1365 = vmatpush2.msra.mxu0 %v1364
    %1366 = vmatprep.subr.mxu0 0.0
    %v1367 = vand.u32 %v68, 4294901760
    %v1368 = vsub.f32 %v68, %v1367
    %v1369 = vand.u32 %v1368, 4294901760
    %v1370 = vsub.f32 %v1368, %v1369
    %v1371 = vand.u32 %v1370, 4294901760
    %1372 = vmatpush2.msra.mxu0 %v1371
    %1373 = vmatprep.subr.mxu0 0.0
    %v1374 = vand.u32 %v67, 4294901760
    %v1375 = vsub.f32 %v67, %v1374
    %v1376 = vand.u32 %v1375, 4294901760
    %v1377 = vsub.f32 %v1375, %v1376
    %v1378 = vand.u32 %v1377, 4294901760
    %1379 = vmatpush2.msra.mxu0 %v1378
    %1380 = vmatprep.subr.mxu0 0.0
    %v1381 = vand.u32 %v66, 4294901760
    %v1382 = vsub.f32 %v66, %v1381
    %v1383 = vand.u32 %v1382, 4294901760
    %v1384 = vsub.f32 %v1382, %v1383
    %v1385 = vand.u32 %v1384, 4294901760
    %1386 = vmatpush2.msra.mxu0 %v1385
    %1387 = vmatprep.subr.mxu0 0.0
    %v1388 = vand.u32 %v65, 4294901760
    %v1389 = vsub.f32 %v65, %v1388
    %v1390 = vand.u32 %v1389, 4294901760
    %v1391 = vsub.f32 %v1389, %v1390
    %v1392 = vand.u32 %v1391, 4294901760
    %1393 = vmatpush2.msra.mxu0 %v1392
    %v1394 = vand.u32 %v170, 4294901760
    %1395 = vmatprep.mubr.f32.mxu0 %v1394
    %v1396 = vand.u32 %v168, 4294901760
    %1397 = vmatmul.mubr.f32.gmra.mxu0 %v1396
    %v1398 = vpop.f32.mrf.mxu0
    %v1399 = vadd.f32 %v1167, %v1398
    %v1400 = vpop.f32.mrf.mxu0
    %1401 = vdwg.mxu0
    %1402 = vmatprep.subr.mxu0 0.0
    %v1403 = vand.u32 %v64, 4294901760
    %v1404 = vsub.f32 %v64, %v1403
    %1405 = vmatpush1.msra.mxu0 %v1404
    %1406 = vmatprep.subr.mxu0 0.0
    %v1407 = vand.u32 %v63, 4294901760
    %v1408 = vsub.f32 %v63, %v1407
    %1409 = vmatpush1.msra.mxu0 %v1408
    %1410 = vmatprep.subr.mxu0 0.0
    %v1411 = vand.u32 %v62, 4294901760
    %v1412 = vsub.f32 %v62, %v1411
    %1413 = vmatpush1.msra.mxu0 %v1412
    %1414 = vmatprep.subr.mxu0 0.0
    %v1415 = vand.u32 %v61, 4294901760
    %v1416 = vsub.f32 %v61, %v1415
    %1417 = vmatpush1.msra.mxu0 %v1416
    %1418 = vmatprep.subr.mxu0 0.0
    %v1419 = vand.u32 %v60, 4294901760
    %v1420 = vsub.f32 %v60, %v1419
    %1421 = vmatpush1.msra.mxu0 %v1420
    %1422 = vmatprep.subr.mxu0 0.0
    %v1423 = vand.u32 %v59, 4294901760
    %v1424 = vsub.f32 %v59, %v1423
    %1425 = vmatpush1.msra.mxu0 %v1424
    %1426 = vmatprep.subr.mxu0 0.0
    %v1427 = vand.u32 %v58, 4294901760
    %v1428 = vsub.f32 %v58, %v1427
    %1429 = vmatpush1.msra.mxu0 %v1428
    %1430 = vmatprep.subr.mxu0 0.0
    %v1431 = vand.u32 %v57, 4294901760
    %v1432 = vsub.f32 %v57, %v1431
    %1433 = vmatpush1.msra.mxu0 %v1432
    %1434 = vmatprep.subr.mxu0 0.0
    %v1435 = vand.u32 %v56, 4294901760
    %v1436 = vsub.f32 %v56, %v1435
    %1437 = vmatpush1.msra.mxu0 %v1436
    %1438 = vmatprep.subr.mxu0 0.0
    %v1439 = vand.u32 %v55, 4294901760
    %v1440 = vsub.f32 %v55, %v1439
    %1441 = vmatpush1.msra.mxu0 %v1440
    %1442 = vmatprep.subr.mxu0 0.0
    %v1443 = vand.u32 %v54, 4294901760
    %v1444 = vsub.f32 %v54, %v1443
    %1445 = vmatpush1.msra.mxu0 %v1444
    %1446 = vmatprep.subr.mxu0 0.0
    %v1447 = vand.u32 %v53, 4294901760
    %v1448 = vsub.f32 %v53, %v1447
    %1449 = vmatpush1.msra.mxu0 %v1448
    %1450 = vmatprep.subr.mxu0 0.0
    %v1451 = vand.u32 %v52, 4294901760
    %v1452 = vsub.f32 %v52, %v1451
    %1453 = vmatpush1.msra.mxu0 %v1452
    %1454 = vmatprep.subr.mxu0 0.0
    %v1455 = vand.u32 %v51, 4294901760
    %v1456 = vsub.f32 %v51, %v1455
    %1457 = vmatpush1.msra.mxu0 %v1456
    %1458 = vmatprep.subr.mxu0 0.0
    %v1459 = vand.u32 %v50, 4294901760
    %v1460 = vsub.f32 %v50, %v1459
    %1461 = vmatpush1.msra.mxu0 %v1460
    %1462 = vmatprep.subr.mxu0 0.0
    %v1463 = vand.u32 %v49, 4294901760
    %v1464 = vsub.f32 %v49, %v1463
    %1465 = vmatpush1.msra.mxu0 %v1464
    %1466 = vmatprep.subr.mxu0 0.0
    %v1467 = vand.u32 %v80, 4294901760
    %v1468 = vsub.f32 %v80, %v1467
    %1469 = vmatpush2.msra.mxu0 %v1468
    %1470 = vmatprep.subr.mxu0 0.0
    %v1471 = vand.u32 %v79, 4294901760
    %v1472 = vsub.f32 %v79, %v1471
    %1473 = vmatpush2.msra.mxu0 %v1472
    %1474 = vmatprep.subr.mxu0 0.0
    %v1475 = vand.u32 %v78, 4294901760
    %v1476 = vsub.f32 %v78, %v1475
    %1477 = vmatpush2.msra.mxu0 %v1476
    %1478 = vmatprep.subr.mxu0 0.0
    %v1479 = vand.u32 %v77, 4294901760
    %v1480 = vsub.f32 %v77, %v1479
    %1481 = vmatpush2.msra.mxu0 %v1480
    %1482 = vmatprep.subr.mxu0 0.0
    %v1483 = vand.u32 %v76, 4294901760
    %v1484 = vsub.f32 %v76, %v1483
    %1485 = vmatpush2.msra.mxu0 %v1484
    %1486 = vmatprep.subr.mxu0 0.0
    %v1487 = vand.u32 %v75, 4294901760
    %v1488 = vsub.f32 %v75, %v1487
    %1489 = vmatpush2.msra.mxu0 %v1488
    %1490 = vmatprep.subr.mxu0 0.0
    %v1491 = vand.u32 %v74, 4294901760
    %v1492 = vsub.f32 %v74, %v1491
    %1493 = vmatpush2.msra.mxu0 %v1492
    %1494 = vmatprep.subr.mxu0 0.0
    %v1495 = vand.u32 %v73, 4294901760
    %v1496 = vsub.f32 %v73, %v1495
    %1497 = vmatpush2.msra.mxu0 %v1496
    %1498 = vmatprep.subr.mxu0 0.0
    %v1499 = vand.u32 %v72, 4294901760
    %v1500 = vsub.f32 %v72, %v1499
    %1501 = vmatpush2.msra.mxu0 %v1500
    %1502 = vmatprep.subr.mxu0 0.0
    %v1503 = vand.u32 %v71, 4294901760
    %v1504 = vsub.f32 %v71, %v1503
    %1505 = vmatpush2.msra.mxu0 %v1504
    %1506 = vmatprep.subr.mxu0 0.0
    %v1507 = vand.u32 %v70, 4294901760
    %v1508 = vsub.f32 %v70, %v1507
    %1509 = vmatpush2.msra.mxu0 %v1508
    %1510 = vmatprep.subr.mxu0 0.0
    %v1511 = vand.u32 %v69, 4294901760
    %v1512 = vsub.f32 %v69, %v1511
    %1513 = vmatpush2.msra.mxu0 %v1512
    %1514 = vmatprep.subr.mxu0 0.0
    %v1515 = vand.u32 %v68, 4294901760
    %v1516 = vsub.f32 %v68, %v1515
    %1517 = vmatpush2.msra.mxu0 %v1516
    %1518 = vmatprep.subr.mxu0 0.0
    %v1519 = vand.u32 %v67, 4294901760
    %v1520 = vsub.f32 %v67, %v1519
    %1521 = vmatpush2.msra.mxu0 %v1520
    %1522 = vmatprep.subr.mxu0 0.0
    %v1523 = vand.u32 %v66, 4294901760
    %v1524 = vsub.f32 %v66, %v1523
    %1525 = vmatpush2.msra.mxu0 %v1524
    %1526 = vmatprep.subr.mxu0 0.0
    %v1527 = vand.u32 %v65, 4294901760
    %v1528 = vsub.f32 %v65, %v1527
    %1529 = vmatpush2.msra.mxu0 %v1528
    %v1530 = vand.u32 %v170, 4294901760
    %v1531 = vsub.f32 %v170, %v1530
    %1532 = vmatprep.mubr.f32.mxu0 %v1531
    %v1533 = vand.u32 %v168, 4294901760
    %v1534 = vsub.f32 %v168, %v1533
    %1535 = vmatmul.mubr.f32.gmra.mxu0 %v1534
    %v1536 = vpop.f32.mrf.mxu0
    %v1537 = vadd.f32 %v1399, %v1536
    %v1538 = vpop.f32.mrf.mxu0
    %1539 = vdwg.mxu0
    %1540 = vmatprep.subr.mxu0 0.0
    %v1541 = vand.u32 %v64, 4294901760
    %1542 = vmatpush1.msra.mxu0 %v1541
    %1543 = vmatprep.subr.mxu0 0.0
    %v1544 = vand.u32 %v63, 4294901760
    %1545 = vmatpush1.msra.mxu0 %v1544
    %1546 = vmatprep.subr.mxu0 0.0
    %v1547 = vand.u32 %v62, 4294901760
    %1548 = vmatpush1.msra.mxu0 %v1547
    %1549 = vmatprep.subr.mxu0 0.0
    %v1550 = vand.u32 %v61, 4294901760
    %1551 = vmatpush1.msra.mxu0 %v1550
    %1552 = vmatprep.subr.mxu0 0.0
    %v1553 = vand.u32 %v60, 4294901760
    %1554 = vmatpush1.msra.mxu0 %v1553
    %1555 = vmatprep.subr.mxu0 0.0
    %v1556 = vand.u32 %v59, 4294901760
    %1557 = vmatpush1.msra.mxu0 %v1556
    %1558 = vmatprep.subr.mxu0 0.0
    %v1559 = vand.u32 %v58, 4294901760
    %1560 = vmatpush1.msra.mxu0 %v1559
    %1561 = vmatprep.subr.mxu0 0.0
    %v1562 = vand.u32 %v57, 4294901760
    %1563 = vmatpush1.msra.mxu0 %v1562
    %1564 = vmatprep.subr.mxu0 0.0
    %v1565 = vand.u32 %v56, 4294901760
    %1566 = vmatpush1.msra.mxu0 %v1565
    %1567 = vmatprep.subr.mxu0 0.0
    %v1568 = vand.u32 %v55, 4294901760
    %1569 = vmatpush1.msra.mxu0 %v1568
    %1570 = vmatprep.subr.mxu0 0.0
    %v1571 = vand.u32 %v54, 4294901760
    %1572 = vmatpush1.msra.mxu0 %v1571
    %1573 = vmatprep.subr.mxu0 0.0
    %v1574 = vand.u32 %v53, 4294901760
    %1575 = vmatpush1.msra.mxu0 %v1574
    %1576 = vmatprep.subr.mxu0 0.0
    %v1577 = vand.u32 %v52, 4294901760
    %1578 = vmatpush1.msra.mxu0 %v1577
    %1579 = vmatprep.subr.mxu0 0.0
    %v1580 = vand.u32 %v51, 4294901760
    %1581 = vmatpush1.msra.mxu0 %v1580
    %1582 = vmatprep.subr.mxu0 0.0
    %v1583 = vand.u32 %v50, 4294901760
    %1584 = vmatpush1.msra.mxu0 %v1583
    %1585 = vmatprep.subr.mxu0 0.0
    %v1586 = vand.u32 %v49, 4294901760
    %1587 = vmatpush1.msra.mxu0 %v1586
    %1588 = vmatprep.subr.mxu0 0.0
    %v1589 = vand.u32 %v80, 4294901760
    %1590 = vmatpush2.msra.mxu0 %v1589
    %1591 = vmatprep.subr.mxu0 0.0
    %v1592 = vand.u32 %v79, 4294901760
    %1593 = vmatpush2.msra.mxu0 %v1592
    %1594 = vmatprep.subr.mxu0 0.0
    %v1595 = vand.u32 %v78, 4294901760
    %1596 = vmatpush2.msra.mxu0 %v1595
    %1597 = vmatprep.subr.mxu0 0.0
    %v1598 = vand.u32 %v77, 4294901760
    %1599 = vmatpush2.msra.mxu0 %v1598
    %1600 = vmatprep.subr.mxu0 0.0
    %v1601 = vand.u32 %v76, 4294901760
    %1602 = vmatpush2.msra.mxu0 %v1601
    %1603 = vmatprep.subr.mxu0 0.0
    %v1604 = vand.u32 %v75, 4294901760
    %1605 = vmatpush2.msra.mxu0 %v1604
    %1606 = vmatprep.subr.mxu0 0.0
    %v1607 = vand.u32 %v74, 4294901760
    %1608 = vmatpush2.msra.mxu0 %v1607
    %1609 = vmatprep.subr.mxu0 0.0
    %v1610 = vand.u32 %v73, 4294901760
    %1611 = vmatpush2.msra.mxu0 %v1610
    %1612 = vmatprep.subr.mxu0 0.0
    %v1613 = vand.u32 %v72, 4294901760
    %1614 = vmatpush2.msra.mxu0 %v1613
    %1615 = vmatprep.subr.mxu0 0.0
    %v1616 = vand.u32 %v71, 4294901760
    %1617 = vmatpush2.msra.mxu0 %v1616
    %1618 = vmatprep.subr.mxu0 0.0
    %v1619 = vand.u32 %v70, 4294901760
    %1620 = vmatpush2.msra.mxu0 %v1619
    %1621 = vmatprep.subr.mxu0 0.0
    %v1622 = vand.u32 %v69, 4294901760
    %1623 = vmatpush2.msra.mxu0 %v1622
    %1624 = vmatprep.subr.mxu0 0.0
    %v1625 = vand.u32 %v68, 4294901760
    %1626 = vmatpush2.msra.mxu0 %v1625
    %1627 = vmatprep.subr.mxu0 0.0
    %v1628 = vand.u32 %v67, 4294901760
    %1629 = vmatpush2.msra.mxu0 %v1628
    %1630 = vmatprep.subr.mxu0 0.0
    %v1631 = vand.u32 %v66, 4294901760
    %1632 = vmatpush2.msra.mxu0 %v1631
    %1633 = vmatprep.subr.mxu0 0.0
    %v1634 = vand.u32 %v65, 4294901760
    %1635 = vmatpush2.msra.mxu0 %v1634
    %v1636 = vand.u32 %v170, 4294901760
    %v1637 = vsub.f32 %v170, %v1636
    %v1638 = vand.u32 %v1637, 4294901760
    %1639 = vmatprep.mubr.f32.mxu0 %v1638
    %v1640 = vand.u32 %v168, 4294901760
    %v1641 = vsub.f32 %v168, %v1640
    %v1642 = vand.u32 %v1641, 4294901760
    %1643 = vmatmul.mubr.f32.gmra.mxu0 %v1642
    %v1644 = vpop.f32.mrf.mxu0
    %v1645 = vadd.f32 %v1537, %v1644
    %v1646 = vpop.f32.mrf.mxu0
    %1647 = vdwg.mxu0
    %1648 = vmatprep.subr.mxu0 0.0
    %v1649 = vand.u32 %v64, 4294901760
    %v1650 = vsub.f32 %v64, %v1649
    %v1651 = vand.u32 %v1650, 4294901760
    %1652 = vmatpush1.msra.mxu0 %v1651
    %1653 = vmatprep.subr.mxu0 0.0
    %v1654 = vand.u32 %v63, 4294901760
    %v1655 = vsub.f32 %v63, %v1654
    %v1656 = vand.u32 %v1655, 4294901760
    %1657 = vmatpush1.msra.mxu0 %v1656
    %1658 = vmatprep.subr.mxu0 0.0
    %v1659 = vand.u32 %v62, 4294901760
    %v1660 = vsub.f32 %v62, %v1659
    %v1661 = vand.u32 %v1660, 4294901760
    %1662 = vmatpush1.msra.mxu0 %v1661
    %1663 = vmatprep.subr.mxu0 0.0
    %v1664 = vand.u32 %v61, 4294901760
    %v1665 = vsub.f32 %v61, %v1664
    %v1666 = vand.u32 %v1665, 4294901760
    %1667 = vmatpush1.msra.mxu0 %v1666
    %1668 = vmatprep.subr.mxu0 0.0
    %v1669 = vand.u32 %v60, 4294901760
    %v1670 = vsub.f32 %v60, %v1669
    %v1671 = vand.u32 %v1670, 4294901760
    %1672 = vmatpush1.msra.mxu0 %v1671
    %1673 = vmatprep.subr.mxu0 0.0
    %v1674 = vand.u32 %v59, 4294901760
    %v1675 = vsub.f32 %v59, %v1674
    %v1676 = vand.u32 %v1675, 4294901760
    %1677 = vmatpush1.msra.mxu0 %v1676
    %1678 = vmatprep.subr.mxu0 0.0
    %v1679 = vand.u32 %v58, 4294901760
    %v1680 = vsub.f32 %v58, %v1679
    %v1681 = vand.u32 %v1680, 4294901760
    %1682 = vmatpush1.msra.mxu0 %v1681
    %1683 = vmatprep.subr.mxu0 0.0
    %v1684 = vand.u32 %v57, 4294901760
    %v1685 = vsub.f32 %v57, %v1684
    %v1686 = vand.u32 %v1685, 4294901760
    %1687 = vmatpush1.msra.mxu0 %v1686
    %1688 = vmatprep.subr.mxu0 0.0
    %v1689 = vand.u32 %v56, 4294901760
    %v1690 = vsub.f32 %v56, %v1689
    %v1691 = vand.u32 %v1690, 4294901760
    %1692 = vmatpush1.msra.mxu0 %v1691
    %1693 = vmatprep.subr.mxu0 0.0
    %v1694 = vand.u32 %v55, 4294901760
    %v1695 = vsub.f32 %v55, %v1694
    %v1696 = vand.u32 %v1695, 4294901760
    %1697 = vmatpush1.msra.mxu0 %v1696
    %1698 = vmatprep.subr.mxu0 0.0
    %v1699 = vand.u32 %v54, 4294901760
    %v1700 = vsub.f32 %v54, %v1699
    %v1701 = vand.u32 %v1700, 4294901760
    %1702 = vmatpush1.msra.mxu0 %v1701
    %1703 = vmatprep.subr.mxu0 0.0
    %v1704 = vand.u32 %v53, 4294901760
    %v1705 = vsub.f32 %v53, %v1704
    %v1706 = vand.u32 %v1705, 4294901760
    %1707 = vmatpush1.msra.mxu0 %v1706
    %1708 = vmatprep.subr.mxu0 0.0
    %v1709 = vand.u32 %v52, 4294901760
    %v1710 = vsub.f32 %v52, %v1709
    %v1711 = vand.u32 %v1710, 4294901760
    %1712 = vmatpush1.msra.mxu0 %v1711
    %1713 = vmatprep.subr.mxu0 0.0
    %v1714 = vand.u32 %v51, 4294901760
    %v1715 = vsub.f32 %v51, %v1714
    %v1716 = vand.u32 %v1715, 4294901760
    %1717 = vmatpush1.msra.mxu0 %v1716
    %1718 = vmatprep.subr.mxu0 0.0
    %v1719 = vand.u32 %v50, 4294901760
    %v1720 = vsub.f32 %v50, %v1719
    %v1721 = vand.u32 %v1720, 4294901760
    %1722 = vmatpush1.msra.mxu0 %v1721
    %1723 = vmatprep.subr.mxu0 0.0
    %v1724 = vand.u32 %v49, 4294901760
    %v1725 = vsub.f32 %v49, %v1724
    %v1726 = vand.u32 %v1725, 4294901760
    %1727 = vmatpush1.msra.mxu0 %v1726
    %1728 = vmatprep.subr.mxu0 0.0
    %v1729 = vand.u32 %v80, 4294901760
    %v1730 = vsub.f32 %v80, %v1729
    %v1731 = vand.u32 %v1730, 4294901760
    %1732 = vmatpush2.msra.mxu0 %v1731
    %1733 = vmatprep.subr.mxu0 0.0
    %v1734 = vand.u32 %v79, 4294901760
    %v1735 = vsub.f32 %v79, %v1734
    %v1736 = vand.u32 %v1735, 4294901760
    %1737 = vmatpush2.msra.mxu0 %v1736
    %1738 = vmatprep.subr.mxu0 0.0
    %v1739 = vand.u32 %v78, 4294901760
    %v1740 = vsub.f32 %v78, %v1739
    %v1741 = vand.u32 %v1740, 4294901760
    %1742 = vmatpush2.msra.mxu0 %v1741
    %1743 = vmatprep.subr.mxu0 0.0
    %v1744 = vand.u32 %v77, 4294901760
    %v1745 = vsub.f32 %v77, %v1744
    %v1746 = vand.u32 %v1745, 4294901760
    %1747 = vmatpush2.msra.mxu0 %v1746
    %1748 = vmatprep.subr.mxu0 0.0
    %v1749 = vand.u32 %v76, 4294901760
    %v1750 = vsub.f32 %v76, %v1749
    %v1751 = vand.u32 %v1750, 4294901760
    %1752 = vmatpush2.msra.mxu0 %v1751
    %1753 = vmatprep.subr.mxu0 0.0
    %v1754 = vand.u32 %v75, 4294901760
    %v1755 = vsub.f32 %v75, %v1754
    %v1756 = vand.u32 %v1755, 4294901760
    %1757 = vmatpush2.msra.mxu0 %v1756
    %1758 = vmatprep.subr.mxu0 0.0
    %v1759 = vand.u32 %v74, 4294901760
    %v1760 = vsub.f32 %v74, %v1759
    %v1761 = vand.u32 %v1760, 4294901760
    %1762 = vmatpush2.msra.mxu0 %v1761
    %1763 = vmatprep.subr.mxu0 0.0
    %v1764 = vand.u32 %v73, 4294901760
    %v1765 = vsub.f32 %v73, %v1764
    %v1766 = vand.u32 %v1765, 4294901760
    %1767 = vmatpush2.msra.mxu0 %v1766
    %1768 = vmatprep.subr.mxu0 0.0
    %v1769 = vand.u32 %v72, 4294901760
    %v1770 = vsub.f32 %v72, %v1769
    %v1771 = vand.u32 %v1770, 4294901760
    %1772 = vmatpush2.msra.mxu0 %v1771
    %1773 = vmatprep.subr.mxu0 0.0
    %v1774 = vand.u32 %v71, 4294901760
    %v1775 = vsub.f32 %v71, %v1774
    %v1776 = vand.u32 %v1775, 4294901760
    %1777 = vmatpush2.msra.mxu0 %v1776
    %1778 = vmatprep.subr.mxu0 0.0
    %v1779 = vand.u32 %v70, 4294901760
    %v1780 = vsub.f32 %v70, %v1779
    %v1781 = vand.u32 %v1780, 4294901760
    %1782 = vmatpush2.msra.mxu0 %v1781
    %1783 = vmatprep.subr.mxu0 0.0
    %v1784 = vand.u32 %v69, 4294901760
    %v1785 = vsub.f32 %v69, %v1784
    %v1786 = vand.u32 %v1785, 4294901760
    %1787 = vmatpush2.msra.mxu0 %v1786
    %1788 = vmatprep.subr.mxu0 0.0
    %v1789 = vand.u32 %v68, 4294901760
    %v1790 = vsub.f32 %v68, %v1789
    %v1791 = vand.u32 %v1790, 4294901760
    %1792 = vmatpush2.msra.mxu0 %v1791
    %1793 = vmatprep.subr.mxu0 0.0
    %v1794 = vand.u32 %v67, 4294901760
    %v1795 = vsub.f32 %v67, %v1794
    %v1796 = vand.u32 %v1795, 4294901760
    %1797 = vmatpush2.msra.mxu0 %v1796
    %1798 = vmatprep.subr.mxu0 0.0
    %v1799 = vand.u32 %v66, 4294901760
    %v1800 = vsub.f32 %v66, %v1799
    %v1801 = vand.u32 %v1800, 4294901760
    %1802 = vmatpush2.msra.mxu0 %v1801
    %1803 = vmatprep.subr.mxu0 0.0
    %v1804 = vand.u32 %v65, 4294901760
    %v1805 = vsub.f32 %v65, %v1804
    %v1806 = vand.u32 %v1805, 4294901760
    %1807 = vmatpush2.msra.mxu0 %v1806
    %v1808 = vand.u32 %v170, 4294901760
    %1809 = vmatprep.mubr.f32.mxu0 %v1808
    %v1810 = vand.u32 %v168, 4294901760
    %1811 = vmatmul.mubr.f32.gmra.mxu0 %v1810
    %v1812 = vpop.f32.mrf.mxu0
    %v1813 = vadd.f32 %v1645, %v1812
    %v1814 = vpop.f32.mrf.mxu0
    %1815 = vdwg.mxu0
    %1816 = vmatprep.subr.mxu0 0.0
    %v1817 = vand.u32 %v64, 4294901760
    %1818 = vmatpush1.msra.mxu0 %v1817
    %1819 = vmatprep.subr.mxu0 0.0
    %v1820 = vand.u32 %v63, 4294901760
    %1821 = vmatpush1.msra.mxu0 %v1820
    %1822 = vmatprep.subr.mxu0 0.0
    %v1823 = vand.u32 %v62, 4294901760
    %1824 = vmatpush1.msra.mxu0 %v1823
    %1825 = vmatprep.subr.mxu0 0.0
    %v1826 = vand.u32 %v61, 4294901760
    %1827 = vmatpush1.msra.mxu0 %v1826
    %1828 = vmatprep.subr.mxu0 0.0
    %v1829 = vand.u32 %v60, 4294901760
    %1830 = vmatpush1.msra.mxu0 %v1829
    %1831 = vmatprep.subr.mxu0 0.0
    %v1832 = vand.u32 %v59, 4294901760
    %1833 = vmatpush1.msra.mxu0 %v1832
    %1834 = vmatprep.subr.mxu0 0.0
    %v1835 = vand.u32 %v58, 4294901760
    %1836 = vmatpush1.msra.mxu0 %v1835
    %1837 = vmatprep.subr.mxu0 0.0
    %v1838 = vand.u32 %v57, 4294901760
    %1839 = vmatpush1.msra.mxu0 %v1838
    %1840 = vmatprep.subr.mxu0 0.0
    %v1841 = vand.u32 %v56, 4294901760
    %1842 = vmatpush1.msra.mxu0 %v1841
    %1843 = vmatprep.subr.mxu0 0.0
    %v1844 = vand.u32 %v55, 4294901760
    %1845 = vmatpush1.msra.mxu0 %v1844
    %1846 = vmatprep.subr.mxu0 0.0
    %v1847 = vand.u32 %v54, 4294901760
    %1848 = vmatpush1.msra.mxu0 %v1847
    %1849 = vmatprep.subr.mxu0 0.0
    %v1850 = vand.u32 %v53, 4294901760
    %1851 = vmatpush1.msra.mxu0 %v1850
    %1852 = vmatprep.subr.mxu0 0.0
    %v1853 = vand.u32 %v52, 4294901760
    %1854 = vmatpush1.msra.mxu0 %v1853
    %1855 = vmatprep.subr.mxu0 0.0
    %v1856 = vand.u32 %v51, 4294901760
    %1857 = vmatpush1.msra.mxu0 %v1856
    %1858 = vmatprep.subr.mxu0 0.0
    %v1859 = vand.u32 %v50, 4294901760
    %1860 = vmatpush1.msra.mxu0 %v1859
    %1861 = vmatprep.subr.mxu0 0.0
    %v1862 = vand.u32 %v49, 4294901760
    %1863 = vmatpush1.msra.mxu0 %v1862
    %1864 = vmatprep.subr.mxu0 0.0
    %v1865 = vand.u32 %v80, 4294901760
    %1866 = vmatpush2.msra.mxu0 %v1865
    %1867 = vmatprep.subr.mxu0 0.0
    %v1868 = vand.u32 %v79, 4294901760
    %1869 = vmatpush2.msra.mxu0 %v1868
    %1870 = vmatprep.subr.mxu0 0.0
    %v1871 = vand.u32 %v78, 4294901760
    %1872 = vmatpush2.msra.mxu0 %v1871
    %1873 = vmatprep.subr.mxu0 0.0
    %v1874 = vand.u32 %v77, 4294901760
    %1875 = vmatpush2.msra.mxu0 %v1874
    %1876 = vmatprep.subr.mxu0 0.0
    %v1877 = vand.u32 %v76, 4294901760
    %1878 = vmatpush2.msra.mxu0 %v1877
    %1879 = vmatprep.subr.mxu0 0.0
    %v1880 = vand.u32 %v75, 4294901760
    %1881 = vmatpush2.msra.mxu0 %v1880
    %1882 = vmatprep.subr.mxu0 0.0
    %v1883 = vand.u32 %v74, 4294901760
    %1884 = vmatpush2.msra.mxu0 %v1883
    %1885 = vmatprep.subr.mxu0 0.0
    %v1886 = vand.u32 %v73, 4294901760
    %1887 = vmatpush2.msra.mxu0 %v1886
    %1888 = vmatprep.subr.mxu0 0.0
    %v1889 = vand.u32 %v72, 4294901760
    %1890 = vmatpush2.msra.mxu0 %v1889
    %1891 = vmatprep.subr.mxu0 0.0
    %v1892 = vand.u32 %v71, 4294901760
    %1893 = vmatpush2.msra.mxu0 %v1892
    %1894 = vmatprep.subr.mxu0 0.0
    %v1895 = vand.u32 %v70, 4294901760
    %1896 = vmatpush2.msra.mxu0 %v1895
    %1897 = vmatprep.subr.mxu0 0.0
    %v1898 = vand.u32 %v69, 4294901760
    %1899 = vmatpush2.msra.mxu0 %v1898
    %1900 = vmatprep.subr.mxu0 0.0
    %v1901 = vand.u32 %v68, 4294901760
    %1902 = vmatpush2.msra.mxu0 %v1901
    %1903 = vmatprep.subr.mxu0 0.0
    %v1904 = vand.u32 %v67, 4294901760
    %1905 = vmatpush2.msra.mxu0 %v1904
    %1906 = vmatprep.subr.mxu0 0.0
    %v1907 = vand.u32 %v66, 4294901760
    %1908 = vmatpush2.msra.mxu0 %v1907
    %1909 = vmatprep.subr.mxu0 0.0
    %v1910 = vand.u32 %v65, 4294901760
    %1911 = vmatpush2.msra.mxu0 %v1910
    %v1912 = vand.u32 %v170, 4294901760
    %1913 = vmatprep.mubr.f32.mxu0 %v1912
    %v1914 = vand.u32 %v168, 4294901760
    %1915 = vmatmul.mubr.f32.gmra.mxu0 %v1914
    %v1916 = vpop.f32.mrf.mxu0
    %v1917 = vadd.f32 %v1813, %v1916
    %v1918 = vpop.f32.mrf.mxu0
    %1919 = vdwg.mxu0
    %1920 = vmatprep.subr.mxu0 0.0
    %v1921 = vand.u32 %v96, 4294901760
    %1922 = vmatpush1.msra.mxu0 %v1921
    %1923 = vmatprep.subr.mxu0 0.0
    %v1924 = vand.u32 %v95, 4294901760
    %1925 = vmatpush1.msra.mxu0 %v1924
    %1926 = vmatprep.subr.mxu0 0.0
    %v1927 = vand.u32 %v94, 4294901760
    %1928 = vmatpush1.msra.mxu0 %v1927
    %1929 = vmatprep.subr.mxu0 0.0
    %v1930 = vand.u32 %v93, 4294901760
    %1931 = vmatpush1.msra.mxu0 %v1930
    %1932 = vmatprep.subr.mxu0 0.0
    %v1933 = vand.u32 %v92, 4294901760
    %1934 = vmatpush1.msra.mxu0 %v1933
    %1935 = vmatprep.subr.mxu0 0.0
    %v1936 = vand.u32 %v91, 4294901760
    %1937 = vmatpush1.msra.mxu0 %v1936
    %1938 = vmatprep.subr.mxu0 0.0
    %v1939 = vand.u32 %v90, 4294901760
    %1940 = vmatpush1.msra.mxu0 %v1939
    %1941 = vmatprep.subr.mxu0 0.0
    %v1942 = vand.u32 %v89, 4294901760
    %1943 = vmatpush1.msra.mxu0 %v1942
    %1944 = vmatprep.subr.mxu0 0.0
    %v1945 = vand.u32 %v88, 4294901760
    %1946 = vmatpush1.msra.mxu0 %v1945
    %1947 = vmatprep.subr.mxu0 0.0
    %v1948 = vand.u32 %v87, 4294901760
    %1949 = vmatpush1.msra.mxu0 %v1948
    %1950 = vmatprep.subr.mxu0 0.0
    %v1951 = vand.u32 %v86, 4294901760
    %1952 = vmatpush1.msra.mxu0 %v1951
    %1953 = vmatprep.subr.mxu0 0.0
    %v1954 = vand.u32 %v85, 4294901760
    %1955 = vmatpush1.msra.mxu0 %v1954
    %1956 = vmatprep.subr.mxu0 0.0
    %v1957 = vand.u32 %v84, 4294901760
    %1958 = vmatpush1.msra.mxu0 %v1957
    %1959 = vmatprep.subr.mxu0 0.0
    %v1960 = vand.u32 %v83, 4294901760
    %1961 = vmatpush1.msra.mxu0 %v1960
    %1962 = vmatprep.subr.mxu0 0.0
    %v1963 = vand.u32 %v82, 4294901760
    %1964 = vmatpush1.msra.mxu0 %v1963
    %1965 = vmatprep.subr.mxu0 0.0
    %v1966 = vand.u32 %v81, 4294901760
    %1967 = vmatpush1.msra.mxu0 %v1966
    %1968 = vmatprep.subr.mxu0 0.0
    %v1969 = vand.u32 %v112, 4294901760
    %1970 = vmatpush2.msra.mxu0 %v1969
    %1971 = vmatprep.subr.mxu0 0.0
    %v1972 = vand.u32 %v111, 4294901760
    %1973 = vmatpush2.msra.mxu0 %v1972
    %1974 = vmatprep.subr.mxu0 0.0
    %v1975 = vand.u32 %v110, 4294901760
    %1976 = vmatpush2.msra.mxu0 %v1975
    %1977 = vmatprep.subr.mxu0 0.0
    %v1978 = vand.u32 %v109, 4294901760
    %1979 = vmatpush2.msra.mxu0 %v1978
    %1980 = vmatprep.subr.mxu0 0.0
    %v1981 = vand.u32 %v108, 4294901760
    %1982 = vmatpush2.msra.mxu0 %v1981
    %1983 = vmatprep.subr.mxu0 0.0
    %v1984 = vand.u32 %v107, 4294901760
    %1985 = vmatpush2.msra.mxu0 %v1984
    %1986 = vmatprep.subr.mxu0 0.0
    %v1987 = vand.u32 %v106, 4294901760
    %1988 = vmatpush2.msra.mxu0 %v1987
    %1989 = vmatprep.subr.mxu0 0.0
    %v1990 = vand.u32 %v105, 4294901760
    %1991 = vmatpush2.msra.mxu0 %v1990
    %1992 = vmatprep.subr.mxu0 0.0
    %v1993 = vand.u32 %v104, 4294901760
    %1994 = vmatpush2.msra.mxu0 %v1993
    %1995 = vmatprep.subr.mxu0 0.0
    %v1996 = vand.u32 %v103, 4294901760
    %1997 = vmatpush2.msra.mxu0 %v1996
    %1998 = vmatprep.subr.mxu0 0.0
    %v1999 = vand.u32 %v102, 4294901760
    %2000 = vmatpush2.msra.mxu0 %v1999
    %2001 = vmatprep.subr.mxu0 0.0
    %v2002 = vand.u32 %v101, 4294901760
    %2003 = vmatpush2.msra.mxu0 %v2002
    %2004 = vmatprep.subr.mxu0 0.0
    %v2005 = vand.u32 %v100, 4294901760
    %2006 = vmatpush2.msra.mxu0 %v2005
    %2007 = vmatprep.subr.mxu0 0.0
    %v2008 = vand.u32 %v99, 4294901760
    %2009 = vmatpush2.msra.mxu0 %v2008
    %2010 = vmatprep.subr.mxu0 0.0
    %v2011 = vand.u32 %v98, 4294901760
    %2012 = vmatpush2.msra.mxu0 %v2011
    %2013 = vmatprep.subr.mxu0 0.0
    %v2014 = vand.u32 %v97, 4294901760
    %2015 = vmatpush2.msra.mxu0 %v2014
    %v2016 = vand.u32 %v186, 4294901760
    %v2017 = vsub.f32 %v186, %v2016
    %v2018 = vand.u32 %v2017, 4294901760
    %v2019 = vsub.f32 %v2017, %v2018
    %v2020 = vand.u32 %v2019, 4294901760
    %2021 = vmatprep.mubr.f32.mxu0 %v2020
    %v2022 = vand.u32 %v178, 4294901760
    %v2023 = vsub.f32 %v178, %v2022
    %v2024 = vand.u32 %v2023, 4294901760
    %v2025 = vsub.f32 %v2023, %v2024
    %v2026 = vand.u32 %v2025, 4294901760
    %2027 = vmatmul.mubr.f32.gmra.mxu0 %v2026
    %v2028 = vpop.f32.mrf.mxu0
    %v2029 = vadd.f32 %v1917, %v2028
    %v2030 = vpop.f32.mrf.mxu0
    %2031 = vdwg.mxu0
    %2032 = vmatprep.subr.mxu0 0.0
    %v2033 = vand.u32 %v96, 4294901760
    %v2034 = vsub.f32 %v96, %v2033
    %v2035 = vand.u32 %v2034, 4294901760
    %v2036 = vsub.f32 %v2034, %v2035
    %v2037 = vand.u32 %v2036, 4294901760
    %2038 = vmatpush1.msra.mxu0 %v2037
    %2039 = vmatprep.subr.mxu0 0.0
    %v2040 = vand.u32 %v95, 4294901760
    %v2041 = vsub.f32 %v95, %v2040
    %v2042 = vand.u32 %v2041, 4294901760
    %v2043 = vsub.f32 %v2041, %v2042
    %v2044 = vand.u32 %v2043, 4294901760
    %2045 = vmatpush1.msra.mxu0 %v2044
    %2046 = vmatprep.subr.mxu0 0.0
    %v2047 = vand.u32 %v94, 4294901760
    %v2048 = vsub.f32 %v94, %v2047
    %v2049 = vand.u32 %v2048, 4294901760
    %v2050 = vsub.f32 %v2048, %v2049
    %v2051 = vand.u32 %v2050, 4294901760
    %2052 = vmatpush1.msra.mxu0 %v2051
    %2053 = vmatprep.subr.mxu0 0.0
    %v2054 = vand.u32 %v93, 4294901760
    %v2055 = vsub.f32 %v93, %v2054
    %v2056 = vand.u32 %v2055, 4294901760
    %v2057 = vsub.f32 %v2055, %v2056
    %v2058 = vand.u32 %v2057, 4294901760
    %2059 = vmatpush1.msra.mxu0 %v2058
    %2060 = vmatprep.subr.mxu0 0.0
    %v2061 = vand.u32 %v92, 4294901760
    %v2062 = vsub.f32 %v92, %v2061
    %v2063 = vand.u32 %v2062, 4294901760
    %v2064 = vsub.f32 %v2062, %v2063
    %v2065 = vand.u32 %v2064, 4294901760
    %2066 = vmatpush1.msra.mxu0 %v2065
    %2067 = vmatprep.subr.mxu0 0.0
    %v2068 = vand.u32 %v91, 4294901760
    %v2069 = vsub.f32 %v91, %v2068
    %v2070 = vand.u32 %v2069, 4294901760
    %v2071 = vsub.f32 %v2069, %v2070
    %v2072 = vand.u32 %v2071, 4294901760
    %2073 = vmatpush1.msra.mxu0 %v2072
    %2074 = vmatprep.subr.mxu0 0.0
    %v2075 = vand.u32 %v90, 4294901760
    %v2076 = vsub.f32 %v90, %v2075
    %v2077 = vand.u32 %v2076, 4294901760
    %v2078 = vsub.f32 %v2076, %v2077
    %v2079 = vand.u32 %v2078, 4294901760
    %2080 = vmatpush1.msra.mxu0 %v2079
    %2081 = vmatprep.subr.mxu0 0.0
    %v2082 = vand.u32 %v89, 4294901760
    %v2083 = vsub.f32 %v89, %v2082
    %v2084 = vand.u32 %v2083, 4294901760
    %v2085 = vsub.f32 %v2083, %v2084
    %v2086 = vand.u32 %v2085, 4294901760
    %2087 = vmatpush1.msra.mxu0 %v2086
    %2088 = vmatprep.subr.mxu0 0.0
    %v2089 = vand.u32 %v88, 4294901760
    %v2090 = vsub.f32 %v88, %v2089
    %v2091 = vand.u32 %v2090, 4294901760
    %v2092 = vsub.f32 %v2090, %v2091
    %v2093 = vand.u32 %v2092, 4294901760
    %2094 = vmatpush1.msra.mxu0 %v2093
    %2095 = vmatprep.subr.mxu0 0.0
    %v2096 = vand.u32 %v87, 4294901760
    %v2097 = vsub.f32 %v87, %v2096
    %v2098 = vand.u32 %v2097, 4294901760
    %v2099 = vsub.f32 %v2097, %v2098
    %v2100 = vand.u32 %v2099, 4294901760
    %2101 = vmatpush1.msra.mxu0 %v2100
    %2102 = vmatprep.subr.mxu0 0.0
    %v2103 = vand.u32 %v86, 4294901760
    %v2104 = vsub.f32 %v86, %v2103
    %v2105 = vand.u32 %v2104, 4294901760
    %v2106 = vsub.f32 %v2104, %v2105
    %v2107 = vand.u32 %v2106, 4294901760
    %2108 = vmatpush1.msra.mxu0 %v2107
    %2109 = vmatprep.subr.mxu0 0.0
    %v2110 = vand.u32 %v85, 4294901760
    %v2111 = vsub.f32 %v85, %v2110
    %v2112 = vand.u32 %v2111, 4294901760
    %v2113 = vsub.f32 %v2111, %v2112
    %v2114 = vand.u32 %v2113, 4294901760
    %2115 = vmatpush1.msra.mxu0 %v2114
    %2116 = vmatprep.subr.mxu0 0.0
    %v2117 = vand.u32 %v84, 4294901760
    %v2118 = vsub.f32 %v84, %v2117
    %v2119 = vand.u32 %v2118, 4294901760
    %v2120 = vsub.f32 %v2118, %v2119
    %v2121 = vand.u32 %v2120, 4294901760
    %2122 = vmatpush1.msra.mxu0 %v2121
    %2123 = vmatprep.subr.mxu0 0.0
    %v2124 = vand.u32 %v83, 4294901760
    %v2125 = vsub.f32 %v83, %v2124
    %v2126 = vand.u32 %v2125, 4294901760
    %v2127 = vsub.f32 %v2125, %v2126
    %v2128 = vand.u32 %v2127, 4294901760
    %2129 = vmatpush1.msra.mxu0 %v2128
    %2130 = vmatprep.subr.mxu0 0.0
    %v2131 = vand.u32 %v82, 4294901760
    %v2132 = vsub.f32 %v82, %v2131
    %v2133 = vand.u32 %v2132, 4294901760
    %v2134 = vsub.f32 %v2132, %v2133
    %v2135 = vand.u32 %v2134, 4294901760
    %2136 = vmatpush1.msra.mxu0 %v2135
    %2137 = vmatprep.subr.mxu0 0.0
    %v2138 = vand.u32 %v81, 4294901760
    %v2139 = vsub.f32 %v81, %v2138
    %v2140 = vand.u32 %v2139, 4294901760
    %v2141 = vsub.f32 %v2139, %v2140
    %v2142 = vand.u32 %v2141, 4294901760
    %2143 = vmatpush1.msra.mxu0 %v2142
    %2144 = vmatprep.subr.mxu0 0.0
    %v2145 = vand.u32 %v112, 4294901760
    %v2146 = vsub.f32 %v112, %v2145
    %v2147 = vand.u32 %v2146, 4294901760
    %v2148 = vsub.f32 %v2146, %v2147
    %v2149 = vand.u32 %v2148, 4294901760
    %2150 = vmatpush2.msra.mxu0 %v2149
    %2151 = vmatprep.subr.mxu0 0.0
    %v2152 = vand.u32 %v111, 4294901760
    %v2153 = vsub.f32 %v111, %v2152
    %v2154 = vand.u32 %v2153, 4294901760
    %v2155 = vsub.f32 %v2153, %v2154
    %v2156 = vand.u32 %v2155, 4294901760
    %2157 = vmatpush2.msra.mxu0 %v2156
    %2158 = vmatprep.subr.mxu0 0.0
    %v2159 = vand.u32 %v110, 4294901760
    %v2160 = vsub.f32 %v110, %v2159
    %v2161 = vand.u32 %v2160, 4294901760
    %v2162 = vsub.f32 %v2160, %v2161
    %v2163 = vand.u32 %v2162, 4294901760
    %2164 = vmatpush2.msra.mxu0 %v2163
    %2165 = vmatprep.subr.mxu0 0.0
    %v2166 = vand.u32 %v109, 4294901760
    %v2167 = vsub.f32 %v109, %v2166
    %v2168 = vand.u32 %v2167, 4294901760
    %v2169 = vsub.f32 %v2167, %v2168
    %v2170 = vand.u32 %v2169, 4294901760
    %2171 = vmatpush2.msra.mxu0 %v2170
    %2172 = vmatprep.subr.mxu0 0.0
    %v2173 = vand.u32 %v108, 4294901760
    %v2174 = vsub.f32 %v108, %v2173
    %v2175 = vand.u32 %v2174, 4294901760
    %v2176 = vsub.f32 %v2174, %v2175
    %v2177 = vand.u32 %v2176, 4294901760
    %2178 = vmatpush2.msra.mxu0 %v2177
    %2179 = vmatprep.subr.mxu0 0.0
    %v2180 = vand.u32 %v107, 4294901760
    %v2181 = vsub.f32 %v107, %v2180
    %v2182 = vand.u32 %v2181, 4294901760
    %v2183 = vsub.f32 %v2181, %v2182
    %v2184 = vand.u32 %v2183, 4294901760
    %2185 = vmatpush2.msra.mxu0 %v2184
    %2186 = vmatprep.subr.mxu0 0.0
    %v2187 = vand.u32 %v106, 4294901760
    %v2188 = vsub.f32 %v106, %v2187
    %v2189 = vand.u32 %v2188, 4294901760
    %v2190 = vsub.f32 %v2188, %v2189
    %v2191 = vand.u32 %v2190, 4294901760
    %2192 = vmatpush2.msra.mxu0 %v2191
    %2193 = vmatprep.subr.mxu0 0.0
    %v2194 = vand.u32 %v105, 4294901760
    %v2195 = vsub.f32 %v105, %v2194
    %v2196 = vand.u32 %v2195, 4294901760
    %v2197 = vsub.f32 %v2195, %v2196
    %v2198 = vand.u32 %v2197, 4294901760
    %2199 = vmatpush2.msra.mxu0 %v2198
    %2200 = vmatprep.subr.mxu0 0.0
    %v2201 = vand.u32 %v104, 4294901760
    %v2202 = vsub.f32 %v104, %v2201
    %v2203 = vand.u32 %v2202, 4294901760
    %v2204 = vsub.f32 %v2202, %v2203
    %v2205 = vand.u32 %v2204, 4294901760
    %2206 = vmatpush2.msra.mxu0 %v2205
    %2207 = vmatprep.subr.mxu0 0.0
    %v2208 = vand.u32 %v103, 4294901760
    %v2209 = vsub.f32 %v103, %v2208
    %v2210 = vand.u32 %v2209, 4294901760
    %v2211 = vsub.f32 %v2209, %v2210
    %v2212 = vand.u32 %v2211, 4294901760
    %2213 = vmatpush2.msra.mxu0 %v2212
    %2214 = vmatprep.subr.mxu0 0.0
    %v2215 = vand.u32 %v102, 4294901760
    %v2216 = vsub.f32 %v102, %v2215
    %v2217 = vand.u32 %v2216, 4294901760
    %v2218 = vsub.f32 %v2216, %v2217
    %v2219 = vand.u32 %v2218, 4294901760
    %2220 = vmatpush2.msra.mxu0 %v2219
    %2221 = vmatprep.subr.mxu0 0.0
    %v2222 = vand.u32 %v101, 4294901760
    %v2223 = vsub.f32 %v101, %v2222
    %v2224 = vand.u32 %v2223, 4294901760
    %v2225 = vsub.f32 %v2223, %v2224
    %v2226 = vand.u32 %v2225, 4294901760
    %2227 = vmatpush2.msra.mxu0 %v2226
    %2228 = vmatprep.subr.mxu0 0.0
    %v2229 = vand.u32 %v100, 4294901760
    %v2230 = vsub.f32 %v100, %v2229
    %v2231 = vand.u32 %v2230, 4294901760
    %v2232 = vsub.f32 %v2230, %v2231
    %v2233 = vand.u32 %v2232, 4294901760
    %2234 = vmatpush2.msra.mxu0 %v2233
    %2235 = vmatprep.subr.mxu0 0.0
    %v2236 = vand.u32 %v99, 4294901760
    %v2237 = vsub.f32 %v99, %v2236
    %v2238 = vand.u32 %v2237, 4294901760
    %v2239 = vsub.f32 %v2237, %v2238
    %v2240 = vand.u32 %v2239, 4294901760
    %2241 = vmatpush2.msra.mxu0 %v2240
    %2242 = vmatprep.subr.mxu0 0.0
    %v2243 = vand.u32 %v98, 4294901760
    %v2244 = vsub.f32 %v98, %v2243
    %v2245 = vand.u32 %v2244, 4294901760
    %v2246 = vsub.f32 %v2244, %v2245
    %v2247 = vand.u32 %v2246, 4294901760
    %2248 = vmatpush2.msra.mxu0 %v2247
    %2249 = vmatprep.subr.mxu0 0.0
    %v2250 = vand.u32 %v97, 4294901760
    %v2251 = vsub.f32 %v97, %v2250
    %v2252 = vand.u32 %v2251, 4294901760
    %v2253 = vsub.f32 %v2251, %v2252
    %v2254 = vand.u32 %v2253, 4294901760
    %2255 = vmatpush2.msra.mxu0 %v2254
    %v2256 = vand.u32 %v186, 4294901760
    %2257 = vmatprep.mubr.f32.mxu0 %v2256
    %v2258 = vand.u32 %v178, 4294901760
    %2259 = vmatmul.mubr.f32.gmra.mxu0 %v2258
    %v2260 = vpop.f32.mrf.mxu0
    %v2261 = vadd.f32 %v2029, %v2260
    %v2262 = vpop.f32.mrf.mxu0
    %2263 = vdwg.mxu0
    %2264 = vmatprep.subr.mxu0 0.0
    %v2265 = vand.u32 %v96, 4294901760
    %v2266 = vsub.f32 %v96, %v2265
    %2267 = vmatpush1.msra.mxu0 %v2266
    %2268 = vmatprep.subr.mxu0 0.0
    %v2269 = vand.u32 %v95, 4294901760
    %v2270 = vsub.f32 %v95, %v2269
    %2271 = vmatpush1.msra.mxu0 %v2270
    %2272 = vmatprep.subr.mxu0 0.0
    %v2273 = vand.u32 %v94, 4294901760
    %v2274 = vsub.f32 %v94, %v2273
    %2275 = vmatpush1.msra.mxu0 %v2274
    %2276 = vmatprep.subr.mxu0 0.0
    %v2277 = vand.u32 %v93, 4294901760
    %v2278 = vsub.f32 %v93, %v2277
    %2279 = vmatpush1.msra.mxu0 %v2278
    %2280 = vmatprep.subr.mxu0 0.0
    %v2281 = vand.u32 %v92, 4294901760
    %v2282 = vsub.f32 %v92, %v2281
    %2283 = vmatpush1.msra.mxu0 %v2282
    %2284 = vmatprep.subr.mxu0 0.0
    %v2285 = vand.u32 %v91, 4294901760
    %v2286 = vsub.f32 %v91, %v2285
    %2287 = vmatpush1.msra.mxu0 %v2286
    %2288 = vmatprep.subr.mxu0 0.0
    %v2289 = vand.u32 %v90, 4294901760
    %v2290 = vsub.f32 %v90, %v2289
    %2291 = vmatpush1.msra.mxu0 %v2290
    %2292 = vmatprep.subr.mxu0 0.0
    %v2293 = vand.u32 %v89, 4294901760
    %v2294 = vsub.f32 %v89, %v2293
    %2295 = vmatpush1.msra.mxu0 %v2294
    %2296 = vmatprep.subr.mxu0 0.0
    %v2297 = vand.u32 %v88, 4294901760
    %v2298 = vsub.f32 %v88, %v2297
    %2299 = vmatpush1.msra.mxu0 %v2298
    %2300 = vmatprep.subr.mxu0 0.0
    %v2301 = vand.u32 %v87, 4294901760
    %v2302 = vsub.f32 %v87, %v2301
    %2303 = vmatpush1.msra.mxu0 %v2302
    %2304 = vmatprep.subr.mxu0 0.0
    %v2305 = vand.u32 %v86, 4294901760
    %v2306 = vsub.f32 %v86, %v2305
    %2307 = vmatpush1.msra.mxu0 %v2306
    %2308 = vmatprep.subr.mxu0 0.0
    %v2309 = vand.u32 %v85, 4294901760
    %v2310 = vsub.f32 %v85, %v2309
    %2311 = vmatpush1.msra.mxu0 %v2310
    %2312 = vmatprep.subr.mxu0 0.0
    %v2313 = vand.u32 %v84, 4294901760
    %v2314 = vsub.f32 %v84, %v2313
    %2315 = vmatpush1.msra.mxu0 %v2314
    %2316 = vmatprep.subr.mxu0 0.0
    %v2317 = vand.u32 %v83, 4294901760
    %v2318 = vsub.f32 %v83, %v2317
    %2319 = vmatpush1.msra.mxu0 %v2318
    %2320 = vmatprep.subr.mxu0 0.0
    %v2321 = vand.u32 %v82, 4294901760
    %v2322 = vsub.f32 %v82, %v2321
    %2323 = vmatpush1.msra.mxu0 %v2322
    %2324 = vmatprep.subr.mxu0 0.0
    %v2325 = vand.u32 %v81, 4294901760
    %v2326 = vsub.f32 %v81, %v2325
    %2327 = vmatpush1.msra.mxu0 %v2326
    %2328 = vmatprep.subr.mxu0 0.0
    %v2329 = vand.u32 %v112, 4294901760
    %v2330 = vsub.f32 %v112, %v2329
    %2331 = vmatpush2.msra.mxu0 %v2330
    %2332 = vmatprep.subr.mxu0 0.0
    %v2333 = vand.u32 %v111, 4294901760
    %v2334 = vsub.f32 %v111, %v2333
    %2335 = vmatpush2.msra.mxu0 %v2334
    %2336 = vmatprep.subr.mxu0 0.0
    %v2337 = vand.u32 %v110, 4294901760
    %v2338 = vsub.f32 %v110, %v2337
    %2339 = vmatpush2.msra.mxu0 %v2338
    %2340 = vmatprep.subr.mxu0 0.0
    %v2341 = vand.u32 %v109, 4294901760
    %v2342 = vsub.f32 %v109, %v2341
    %2343 = vmatpush2.msra.mxu0 %v2342
    %2344 = vmatprep.subr.mxu0 0.0
    %v2345 = vand.u32 %v108, 4294901760
    %v2346 = vsub.f32 %v108, %v2345
    %2347 = vmatpush2.msra.mxu0 %v2346
    %2348 = vmatprep.subr.mxu0 0.0
    %v2349 = vand.u32 %v107, 4294901760
    %v2350 = vsub.f32 %v107, %v2349
    %2351 = vmatpush2.msra.mxu0 %v2350
    %2352 = vmatprep.subr.mxu0 0.0
    %v2353 = vand.u32 %v106, 4294901760
    %v2354 = vsub.f32 %v106, %v2353
    %2355 = vmatpush2.msra.mxu0 %v2354
    %2356 = vmatprep.subr.mxu0 0.0
    %v2357 = vand.u32 %v105, 4294901760
    %v2358 = vsub.f32 %v105, %v2357
    %2359 = vmatpush2.msra.mxu0 %v2358
    %2360 = vmatprep.subr.mxu0 0.0
    %v2361 = vand.u32 %v104, 4294901760
    %v2362 = vsub.f32 %v104, %v2361
    %2363 = vmatpush2.msra.mxu0 %v2362
    %2364 = vmatprep.subr.mxu0 0.0
    %v2365 = vand.u32 %v103, 4294901760
    %v2366 = vsub.f32 %v103, %v2365
    %2367 = vmatpush2.msra.mxu0 %v2366
    %2368 = vmatprep.subr.mxu0 0.0
    %v2369 = vand.u32 %v102, 4294901760
    %v2370 = vsub.f32 %v102, %v2369
    %2371 = vmatpush2.msra.mxu0 %v2370
    %2372 = vmatprep.subr.mxu0 0.0
    %v2373 = vand.u32 %v101, 4294901760
    %v2374 = vsub.f32 %v101, %v2373
    %2375 = vmatpush2.msra.mxu0 %v2374
    %2376 = vmatprep.subr.mxu0 0.0
    %v2377 = vand.u32 %v100, 4294901760
    %v2378 = vsub.f32 %v100, %v2377
    %2379 = vmatpush2.msra.mxu0 %v2378
    %2380 = vmatprep.subr.mxu0 0.0
    %v2381 = vand.u32 %v99, 4294901760
    %v2382 = vsub.f32 %v99, %v2381
    %2383 = vmatpush2.msra.mxu0 %v2382
    %2384 = vmatprep.subr.mxu0 0.0
    %v2385 = vand.u32 %v98, 4294901760
    %v2386 = vsub.f32 %v98, %v2385
    %2387 = vmatpush2.msra.mxu0 %v2386
    %2388 = vmatprep.subr.mxu0 0.0
    %v2389 = vand.u32 %v97, 4294901760
    %v2390 = vsub.f32 %v97, %v2389
    %2391 = vmatpush2.msra.mxu0 %v2390
    %v2392 = vand.u32 %v186, 4294901760
    %v2393 = vsub.f32 %v186, %v2392
    %2394 = vmatprep.mubr.f32.mxu0 %v2393
    %v2395 = vand.u32 %v178, 4294901760
    %v2396 = vsub.f32 %v178, %v2395
    %2397 = vmatmul.mubr.f32.gmra.mxu0 %v2396
    %v2398 = vpop.f32.mrf.mxu0
    %v2399 = vadd.f32 %v2261, %v2398
    %v2400 = vpop.f32.mrf.mxu0
    %2401 = vdwg.mxu0
    %2402 = vmatprep.subr.mxu0 0.0
    %v2403 = vand.u32 %v96, 4294901760
    %2404 = vmatpush1.msra.mxu0 %v2403
    %2405 = vmatprep.subr.mxu0 0.0
    %v2406 = vand.u32 %v95, 4294901760
    %2407 = vmatpush1.msra.mxu0 %v2406
    %2408 = vmatprep.subr.mxu0 0.0
    %v2409 = vand.u32 %v94, 4294901760
    %2410 = vmatpush1.msra.mxu0 %v2409
    %2411 = vmatprep.subr.mxu0 0.0
    %v2412 = vand.u32 %v93, 4294901760
    %2413 = vmatpush1.msra.mxu0 %v2412
    %2414 = vmatprep.subr.mxu0 0.0
    %v2415 = vand.u32 %v92, 4294901760
    %2416 = vmatpush1.msra.mxu0 %v2415
    %2417 = vmatprep.subr.mxu0 0.0
    %v2418 = vand.u32 %v91, 4294901760
    %2419 = vmatpush1.msra.mxu0 %v2418
    %2420 = vmatprep.subr.mxu0 0.0
    %v2421 = vand.u32 %v90, 4294901760
    %2422 = vmatpush1.msra.mxu0 %v2421
    %2423 = vmatprep.subr.mxu0 0.0
    %v2424 = vand.u32 %v89, 4294901760
    %2425 = vmatpush1.msra.mxu0 %v2424
    %2426 = vmatprep.subr.mxu0 0.0
    %v2427 = vand.u32 %v88, 4294901760
    %2428 = vmatpush1.msra.mxu0 %v2427
    %2429 = vmatprep.subr.mxu0 0.0
    %v2430 = vand.u32 %v87, 4294901760
    %2431 = vmatpush1.msra.mxu0 %v2430
    %2432 = vmatprep.subr.mxu0 0.0
    %v2433 = vand.u32 %v86, 4294901760
    %2434 = vmatpush1.msra.mxu0 %v2433
    %2435 = vmatprep.subr.mxu0 0.0
    %v2436 = vand.u32 %v85, 4294901760
    %2437 = vmatpush1.msra.mxu0 %v2436
    %2438 = vmatprep.subr.mxu0 0.0
    %v2439 = vand.u32 %v84, 4294901760
    %2440 = vmatpush1.msra.mxu0 %v2439
    %2441 = vmatprep.subr.mxu0 0.0
    %v2442 = vand.u32 %v83, 4294901760
    %2443 = vmatpush1.msra.mxu0 %v2442
    %2444 = vmatprep.subr.mxu0 0.0
    %v2445 = vand.u32 %v82, 4294901760
    %2446 = vmatpush1.msra.mxu0 %v2445
    %2447 = vmatprep.subr.mxu0 0.0
    %v2448 = vand.u32 %v81, 4294901760
    %2449 = vmatpush1.msra.mxu0 %v2448
    %2450 = vmatprep.subr.mxu0 0.0
    %v2451 = vand.u32 %v112, 4294901760
    %2452 = vmatpush2.msra.mxu0 %v2451
    %2453 = vmatprep.subr.mxu0 0.0
    %v2454 = vand.u32 %v111, 4294901760
    %2455 = vmatpush2.msra.mxu0 %v2454
    %2456 = vmatprep.subr.mxu0 0.0
    %v2457 = vand.u32 %v110, 4294901760
    %2458 = vmatpush2.msra.mxu0 %v2457
    %2459 = vmatprep.subr.mxu0 0.0
    %v2460 = vand.u32 %v109, 4294901760
    %2461 = vmatpush2.msra.mxu0 %v2460
    %2462 = vmatprep.subr.mxu0 0.0
    %v2463 = vand.u32 %v108, 4294901760
    %2464 = vmatpush2.msra.mxu0 %v2463
    %2465 = vmatprep.subr.mxu0 0.0
    %v2466 = vand.u32 %v107, 4294901760
    %2467 = vmatpush2.msra.mxu0 %v2466
    %2468 = vmatprep.subr.mxu0 0.0
    %v2469 = vand.u32 %v106, 4294901760
    %2470 = vmatpush2.msra.mxu0 %v2469
    %2471 = vmatprep.subr.mxu0 0.0
    %v2472 = vand.u32 %v105, 4294901760
    %2473 = vmatpush2.msra.mxu0 %v2472
    %2474 = vmatprep.subr.mxu0 0.0
    %v2475 = vand.u32 %v104, 4294901760
    %2476 = vmatpush2.msra.mxu0 %v2475
    %2477 = vmatprep.subr.mxu0 0.0
    %v2478 = vand.u32 %v103, 4294901760
    %2479 = vmatpush2.msra.mxu0 %v2478
    %2480 = vmatprep.subr.mxu0 0.0
    %v2481 = vand.u32 %v102, 4294901760
    %2482 = vmatpush2.msra.mxu0 %v2481
    %2483 = vmatprep.subr.mxu0 0.0
    %v2484 = vand.u32 %v101, 4294901760
    %2485 = vmatpush2.msra.mxu0 %v2484
    %2486 = vmatprep.subr.mxu0 0.0
    %v2487 = vand.u32 %v100, 4294901760
    %2488 = vmatpush2.msra.mxu0 %v2487
    %2489 = vmatprep.subr.mxu0 0.0
    %v2490 = vand.u32 %v99, 4294901760
    %2491 = vmatpush2.msra.mxu0 %v2490
    %2492 = vmatprep.subr.mxu0 0.0
    %v2493 = vand.u32 %v98, 4294901760
    %2494 = vmatpush2.msra.mxu0 %v2493
    %2495 = vmatprep.subr.mxu0 0.0
    %v2496 = vand.u32 %v97, 4294901760
    %2497 = vmatpush2.msra.mxu0 %v2496
    %v2498 = vand.u32 %v186, 4294901760
    %v2499 = vsub.f32 %v186, %v2498
    %v2500 = vand.u32 %v2499, 4294901760
    %2501 = vmatprep.mubr.f32.mxu0 %v2500
    %v2502 = vand.u32 %v178, 4294901760
    %v2503 = vsub.f32 %v178, %v2502
    %v2504 = vand.u32 %v2503, 4294901760
    %2505 = vmatmul.mubr.f32.gmra.mxu0 %v2504
    %v2506 = vpop.f32.mrf.mxu0
    %v2507 = vadd.f32 %v2399, %v2506
    %v2508 = vpop.f32.mrf.mxu0
    %2509 = vdwg.mxu0
    %2510 = vmatprep.subr.mxu0 0.0
    %v2511 = vand.u32 %v96, 4294901760
    %v2512 = vsub.f32 %v96, %v2511
    %v2513 = vand.u32 %v2512, 4294901760
    %2514 = vmatpush1.msra.mxu0 %v2513
    %2515 = vmatprep.subr.mxu0 0.0
    %v2516 = vand.u32 %v95, 4294901760
    %v2517 = vsub.f32 %v95, %v2516
    %v2518 = vand.u32 %v2517, 4294901760
    %2519 = vmatpush1.msra.mxu0 %v2518
    %2520 = vmatprep.subr.mxu0 0.0
    %v2521 = vand.u32 %v94, 4294901760
    %v2522 = vsub.f32 %v94, %v2521
    %v2523 = vand.u32 %v2522, 4294901760
    %2524 = vmatpush1.msra.mxu0 %v2523
    %2525 = vmatprep.subr.mxu0 0.0
    %v2526 = vand.u32 %v93, 4294901760
    %v2527 = vsub.f32 %v93, %v2526
    %v2528 = vand.u32 %v2527, 4294901760
    %2529 = vmatpush1.msra.mxu0 %v2528
    %2530 = vmatprep.subr.mxu0 0.0
    %v2531 = vand.u32 %v92, 4294901760
    %v2532 = vsub.f32 %v92, %v2531
    %v2533 = vand.u32 %v2532, 4294901760
    %2534 = vmatpush1.msra.mxu0 %v2533
    %2535 = vmatprep.subr.mxu0 0.0
    %v2536 = vand.u32 %v91, 4294901760
    %v2537 = vsub.f32 %v91, %v2536
    %v2538 = vand.u32 %v2537, 4294901760
    %2539 = vmatpush1.msra.mxu0 %v2538
    %2540 = vmatprep.subr.mxu0 0.0
    %v2541 = vand.u32 %v90, 4294901760
    %v2542 = vsub.f32 %v90, %v2541
    %v2543 = vand.u32 %v2542, 4294901760
    %2544 = vmatpush1.msra.mxu0 %v2543
    %2545 = vmatprep.subr.mxu0 0.0
    %v2546 = vand.u32 %v89, 4294901760
    %v2547 = vsub.f32 %v89, %v2546
    %v2548 = vand.u32 %v2547, 4294901760
    %2549 = vmatpush1.msra.mxu0 %v2548
    %2550 = vmatprep.subr.mxu0 0.0
    %v2551 = vand.u32 %v88, 4294901760
    %v2552 = vsub.f32 %v88, %v2551
    %v2553 = vand.u32 %v2552, 4294901760
    %2554 = vmatpush1.msra.mxu0 %v2553
    %2555 = vmatprep.subr.mxu0 0.0
    %v2556 = vand.u32 %v87, 4294901760
    %v2557 = vsub.f32 %v87, %v2556
    %v2558 = vand.u32 %v2557, 4294901760
    %2559 = vmatpush1.msra.mxu0 %v2558
    %2560 = vmatprep.subr.mxu0 0.0
    %v2561 = vand.u32 %v86, 4294901760
    %v2562 = vsub.f32 %v86, %v2561
    %v2563 = vand.u32 %v2562, 4294901760
    %2564 = vmatpush1.msra.mxu0 %v2563
    %2565 = vmatprep.subr.mxu0 0.0
    %v2566 = vand.u32 %v85, 4294901760
    %v2567 = vsub.f32 %v85, %v2566
    %v2568 = vand.u32 %v2567, 4294901760
    %2569 = vmatpush1.msra.mxu0 %v2568
    %2570 = vmatprep.subr.mxu0 0.0
    %v2571 = vand.u32 %v84, 4294901760
    %v2572 = vsub.f32 %v84, %v2571
    %v2573 = vand.u32 %v2572, 4294901760
    %2574 = vmatpush1.msra.mxu0 %v2573
    %2575 = vmatprep.subr.mxu0 0.0
    %v2576 = vand.u32 %v83, 4294901760
    %v2577 = vsub.f32 %v83, %v2576
    %v2578 = vand.u32 %v2577, 4294901760
    %2579 = vmatpush1.msra.mxu0 %v2578
    %2580 = vmatprep.subr.mxu0 0.0
    %v2581 = vand.u32 %v82, 4294901760
    %v2582 = vsub.f32 %v82, %v2581
    %v2583 = vand.u32 %v2582, 4294901760
    %2584 = vmatpush1.msra.mxu0 %v2583
    %2585 = vmatprep.subr.mxu0 0.0
    %v2586 = vand.u32 %v81, 4294901760
    %v2587 = vsub.f32 %v81, %v2586
    %v2588 = vand.u32 %v2587, 4294901760
    %2589 = vmatpush1.msra.mxu0 %v2588
    %2590 = vmatprep.subr.mxu0 0.0
    %v2591 = vand.u32 %v112, 4294901760
    %v2592 = vsub.f32 %v112, %v2591
    %v2593 = vand.u32 %v2592, 4294901760
    %2594 = vmatpush2.msra.mxu0 %v2593
    %2595 = vmatprep.subr.mxu0 0.0
    %v2596 = vand.u32 %v111, 4294901760
    %v2597 = vsub.f32 %v111, %v2596
    %v2598 = vand.u32 %v2597, 4294901760
    %2599 = vmatpush2.msra.mxu0 %v2598
    %2600 = vmatprep.subr.mxu0 0.0
    %v2601 = vand.u32 %v110, 4294901760
    %v2602 = vsub.f32 %v110, %v2601
    %v2603 = vand.u32 %v2602, 4294901760
    %2604 = vmatpush2.msra.mxu0 %v2603
    %2605 = vmatprep.subr.mxu0 0.0
    %v2606 = vand.u32 %v109, 4294901760
    %v2607 = vsub.f32 %v109, %v2606
    %v2608 = vand.u32 %v2607, 4294901760
    %2609 = vmatpush2.msra.mxu0 %v2608
    %2610 = vmatprep.subr.mxu0 0.0
    %v2611 = vand.u32 %v108, 4294901760
    %v2612 = vsub.f32 %v108, %v2611
    %v2613 = vand.u32 %v2612, 4294901760
    %2614 = vmatpush2.msra.mxu0 %v2613
    %2615 = vmatprep.subr.mxu0 0.0
    %v2616 = vand.u32 %v107, 4294901760
    %v2617 = vsub.f32 %v107, %v2616
    %v2618 = vand.u32 %v2617, 4294901760
    %2619 = vmatpush2.msra.mxu0 %v2618
    %2620 = vmatprep.subr.mxu0 0.0
    %v2621 = vand.u32 %v106, 4294901760
    %v2622 = vsub.f32 %v106, %v2621
    %v2623 = vand.u32 %v2622, 4294901760
    %2624 = vmatpush2.msra.mxu0 %v2623
    %2625 = vmatprep.subr.mxu0 0.0
    %v2626 = vand.u32 %v105, 4294901760
    %v2627 = vsub.f32 %v105, %v2626
    %v2628 = vand.u32 %v2627, 4294901760
    %2629 = vmatpush2.msra.mxu0 %v2628
    %2630 = vmatprep.subr.mxu0 0.0
    %v2631 = vand.u32 %v104, 4294901760
    %v2632 = vsub.f32 %v104, %v2631
    %v2633 = vand.u32 %v2632, 4294901760
    %2634 = vmatpush2.msra.mxu0 %v2633
    %2635 = vmatprep.subr.mxu0 0.0
    %v2636 = vand.u32 %v103, 4294901760
    %v2637 = vsub.f32 %v103, %v2636
    %v2638 = vand.u32 %v2637, 4294901760
    %2639 = vmatpush2.msra.mxu0 %v2638
    %2640 = vmatprep.subr.mxu0 0.0
    %v2641 = vand.u32 %v102, 4294901760
    %v2642 = vsub.f32 %v102, %v2641
    %v2643 = vand.u32 %v2642, 4294901760
    %2644 = vmatpush2.msra.mxu0 %v2643
    %2645 = vmatprep.subr.mxu0 0.0
    %v2646 = vand.u32 %v101, 4294901760
    %v2647 = vsub.f32 %v101, %v2646
    %v2648 = vand.u32 %v2647, 4294901760
    %2649 = vmatpush2.msra.mxu0 %v2648
    %2650 = vmatprep.subr.mxu0 0.0
    %v2651 = vand.u32 %v100, 4294901760
    %v2652 = vsub.f32 %v100, %v2651
    %v2653 = vand.u32 %v2652, 4294901760
    %2654 = vmatpush2.msra.mxu0 %v2653
    %2655 = vmatprep.subr.mxu0 0.0
    %v2656 = vand.u32 %v99, 4294901760
    %v2657 = vsub.f32 %v99, %v2656
    %v2658 = vand.u32 %v2657, 4294901760
    %2659 = vmatpush2.msra.mxu0 %v2658
    %2660 = vmatprep.subr.mxu0 0.0
    %v2661 = vand.u32 %v98, 4294901760
    %v2662 = vsub.f32 %v98, %v2661
    %v2663 = vand.u32 %v2662, 4294901760
    %2664 = vmatpush2.msra.mxu0 %v2663
    %2665 = vmatprep.subr.mxu0 0.0
    %v2666 = vand.u32 %v97, 4294901760
    %v2667 = vsub.f32 %v97, %v2666
    %v2668 = vand.u32 %v2667, 4294901760
    %2669 = vmatpush2.msra.mxu0 %v2668
    %v2670 = vand.u32 %v186, 4294901760
    %2671 = vmatprep.mubr.f32.mxu0 %v2670
    %v2672 = vand.u32 %v178, 4294901760
    %2673 = vmatmul.mubr.f32.gmra.mxu0 %v2672
    %v2674 = vpop.f32.mrf.mxu0
    %v2675 = vadd.f32 %v2507, %v2674
    %v2676 = vpop.f32.mrf.mxu0
    %2677 = vdwg.mxu0
    %2678 = vmatprep.subr.mxu0 0.0
    %v2679 = vand.u32 %v96, 4294901760
    %2680 = vmatpush1.msra.mxu0 %v2679
    %2681 = vmatprep.subr.mxu0 0.0
    %v2682 = vand.u32 %v95, 4294901760
    %2683 = vmatpush1.msra.mxu0 %v2682
    %2684 = vmatprep.subr.mxu0 0.0
    %v2685 = vand.u32 %v94, 4294901760
    %2686 = vmatpush1.msra.mxu0 %v2685
    %2687 = vmatprep.subr.mxu0 0.0
    %v2688 = vand.u32 %v93, 4294901760
    %2689 = vmatpush1.msra.mxu0 %v2688
    %2690 = vmatprep.subr.mxu0 0.0
    %v2691 = vand.u32 %v92, 4294901760
    %2692 = vmatpush1.msra.mxu0 %v2691
    %2693 = vmatprep.subr.mxu0 0.0
    %v2694 = vand.u32 %v91, 4294901760
    %2695 = vmatpush1.msra.mxu0 %v2694
    %2696 = vmatprep.subr.mxu0 0.0
    %v2697 = vand.u32 %v90, 4294901760
    %2698 = vmatpush1.msra.mxu0 %v2697
    %2699 = vmatprep.subr.mxu0 0.0
    %v2700 = vand.u32 %v89, 4294901760
    %2701 = vmatpush1.msra.mxu0 %v2700
    %2702 = vmatprep.subr.mxu0 0.0
    %v2703 = vand.u32 %v88, 4294901760
    %2704 = vmatpush1.msra.mxu0 %v2703
    %2705 = vmatprep.subr.mxu0 0.0
    %v2706 = vand.u32 %v87, 4294901760
    %2707 = vmatpush1.msra.mxu0 %v2706
    %2708 = vmatprep.subr.mxu0 0.0
    %v2709 = vand.u32 %v86, 4294901760
    %2710 = vmatpush1.msra.mxu0 %v2709
    %2711 = vmatprep.subr.mxu0 0.0
    %v2712 = vand.u32 %v85, 4294901760
    %2713 = vmatpush1.msra.mxu0 %v2712
    %2714 = vmatprep.subr.mxu0 0.0
    %v2715 = vand.u32 %v84, 4294901760
    %2716 = vmatpush1.msra.mxu0 %v2715
    %2717 = vmatprep.subr.mxu0 0.0
    %v2718 = vand.u32 %v83, 4294901760
    %2719 = vmatpush1.msra.mxu0 %v2718
    %2720 = vmatprep.subr.mxu0 0.0
    %v2721 = vand.u32 %v82, 4294901760
    %2722 = vmatpush1.msra.mxu0 %v2721
    %2723 = vmatprep.subr.mxu0 0.0
    %v2724 = vand.u32 %v81, 4294901760
    %2725 = vmatpush1.msra.mxu0 %v2724
    %2726 = vmatprep.subr.mxu0 0.0
    %v2727 = vand.u32 %v112, 4294901760
    %2728 = vmatpush2.msra.mxu0 %v2727
    %2729 = vmatprep.subr.mxu0 0.0
    %v2730 = vand.u32 %v111, 4294901760
    %2731 = vmatpush2.msra.mxu0 %v2730
    %2732 = vmatprep.subr.mxu0 0.0
    %v2733 = vand.u32 %v110, 4294901760
    %2734 = vmatpush2.msra.mxu0 %v2733
    %2735 = vmatprep.subr.mxu0 0.0
    %v2736 = vand.u32 %v109, 4294901760
    %2737 = vmatpush2.msra.mxu0 %v2736
    %2738 = vmatprep.subr.mxu0 0.0
    %v2739 = vand.u32 %v108, 4294901760
    %2740 = vmatpush2.msra.mxu0 %v2739
    %2741 = vmatprep.subr.mxu0 0.0
    %v2742 = vand.u32 %v107, 4294901760
    %2743 = vmatpush2.msra.mxu0 %v2742
    %2744 = vmatprep.subr.mxu0 0.0
    %v2745 = vand.u32 %v106, 4294901760
    %2746 = vmatpush2.msra.mxu0 %v2745
    %2747 = vmatprep.subr.mxu0 0.0
    %v2748 = vand.u32 %v105, 4294901760
    %2749 = vmatpush2.msra.mxu0 %v2748
    %2750 = vmatprep.subr.mxu0 0.0
    %v2751 = vand.u32 %v104, 4294901760
    %2752 = vmatpush2.msra.mxu0 %v2751
    %2753 = vmatprep.subr.mxu0 0.0
    %v2754 = vand.u32 %v103, 4294901760
    %2755 = vmatpush2.msra.mxu0 %v2754
    %2756 = vmatprep.subr.mxu0 0.0
    %v2757 = vand.u32 %v102, 4294901760
    %2758 = vmatpush2.msra.mxu0 %v2757
    %2759 = vmatprep.subr.mxu0 0.0
    %v2760 = vand.u32 %v101, 4294901760
    %2761 = vmatpush2.msra.mxu0 %v2760
    %2762 = vmatprep.subr.mxu0 0.0
    %v2763 = vand.u32 %v100, 4294901760
    %2764 = vmatpush2.msra.mxu0 %v2763
    %2765 = vmatprep.subr.mxu0 0.0
    %v2766 = vand.u32 %v99, 4294901760
    %2767 = vmatpush2.msra.mxu0 %v2766
    %2768 = vmatprep.subr.mxu0 0.0
    %v2769 = vand.u32 %v98, 4294901760
    %2770 = vmatpush2.msra.mxu0 %v2769
    %2771 = vmatprep.subr.mxu0 0.0
    %v2772 = vand.u32 %v97, 4294901760
    %2773 = vmatpush2.msra.mxu0 %v2772
    %v2774 = vand.u32 %v186, 4294901760
    %2775 = vmatprep.mubr.f32.mxu0 %v2774
    %v2776 = vand.u32 %v178, 4294901760
    %2777 = vmatmul.mubr.f32.gmra.mxu0 %v2776
    %v2778 = vpop.f32.mrf.mxu0
    %v2779 = vadd.f32 %v2675, %v2778
    %v2780 = vpop.f32.mrf.mxu0
    %2781 = vdwg.mxu0
    %2782 = vmatprep.subr.mxu0 0.0
    %v2783 = vand.u32 %v128, 4294901760
    %2784 = vmatpush1.msra.mxu0 %v2783
    %2785 = vmatprep.subr.mxu0 0.0
    %v2786 = vand.u32 %v127, 4294901760
    %2787 = vmatpush1.msra.mxu0 %v2786
    %2788 = vmatprep.subr.mxu0 0.0
    %v2789 = vand.u32 %v126, 4294901760
    %2790 = vmatpush1.msra.mxu0 %v2789
    %2791 = vmatprep.subr.mxu0 0.0
    %v2792 = vand.u32 %v125, 4294901760
    %2793 = vmatpush1.msra.mxu0 %v2792
    %2794 = vmatprep.subr.mxu0 0.0
    %v2795 = vand.u32 %v124, 4294901760
    %2796 = vmatpush1.msra.mxu0 %v2795
    %2797 = vmatprep.subr.mxu0 0.0
    %v2798 = vand.u32 %v123, 4294901760
    %2799 = vmatpush1.msra.mxu0 %v2798
    %2800 = vmatprep.subr.mxu0 0.0
    %v2801 = vand.u32 %v122, 4294901760
    %2802 = vmatpush1.msra.mxu0 %v2801
    %2803 = vmatprep.subr.mxu0 0.0
    %v2804 = vand.u32 %v121, 4294901760
    %2805 = vmatpush1.msra.mxu0 %v2804
    %2806 = vmatprep.subr.mxu0 0.0
    %v2807 = vand.u32 %v120, 4294901760
    %2808 = vmatpush1.msra.mxu0 %v2807
    %2809 = vmatprep.subr.mxu0 0.0
    %v2810 = vand.u32 %v119, 4294901760
    %2811 = vmatpush1.msra.mxu0 %v2810
    %2812 = vmatprep.subr.mxu0 0.0
    %v2813 = vand.u32 %v118, 4294901760
    %2814 = vmatpush1.msra.mxu0 %v2813
    %2815 = vmatprep.subr.mxu0 0.0
    %v2816 = vand.u32 %v117, 4294901760
    %2817 = vmatpush1.msra.mxu0 %v2816
    %2818 = vmatprep.subr.mxu0 0.0
    %v2819 = vand.u32 %v116, 4294901760
    %2820 = vmatpush1.msra.mxu0 %v2819
    %2821 = vmatprep.subr.mxu0 0.0
    %v2822 = vand.u32 %v115, 4294901760
    %2823 = vmatpush1.msra.mxu0 %v2822
    %2824 = vmatprep.subr.mxu0 0.0
    %v2825 = vand.u32 %v114, 4294901760
    %2826 = vmatpush1.msra.mxu0 %v2825
    %2827 = vmatprep.subr.mxu0 0.0
    %v2828 = vand.u32 %v113, 4294901760
    %2829 = vmatpush1.msra.mxu0 %v2828
    %2830 = vmatprep.subr.mxu0 0.0
    %v2831 = vand.u32 %v144, 4294901760
    %2832 = vmatpush2.msra.mxu0 %v2831
    %2833 = vmatprep.subr.mxu0 0.0
    %v2834 = vand.u32 %v143, 4294901760
    %2835 = vmatpush2.msra.mxu0 %v2834
    %2836 = vmatprep.subr.mxu0 0.0
    %v2837 = vand.u32 %v142, 4294901760
    %2838 = vmatpush2.msra.mxu0 %v2837
    %2839 = vmatprep.subr.mxu0 0.0
    %v2840 = vand.u32 %v141, 4294901760
    %2841 = vmatpush2.msra.mxu0 %v2840
    %2842 = vmatprep.subr.mxu0 0.0
    %v2843 = vand.u32 %v140, 4294901760
    %2844 = vmatpush2.msra.mxu0 %v2843
    %2845 = vmatprep.subr.mxu0 0.0
    %v2846 = vand.u32 %v139, 4294901760
    %2847 = vmatpush2.msra.mxu0 %v2846
    %2848 = vmatprep.subr.mxu0 0.0
    %v2849 = vand.u32 %v138, 4294901760
    %2850 = vmatpush2.msra.mxu0 %v2849
    %2851 = vmatprep.subr.mxu0 0.0
    %v2852 = vand.u32 %v137, 4294901760
    %2853 = vmatpush2.msra.mxu0 %v2852
    %2854 = vmatprep.subr.mxu0 0.0
    %v2855 = vand.u32 %v136, 4294901760
    %2856 = vmatpush2.msra.mxu0 %v2855
    %2857 = vmatprep.subr.mxu0 0.0
    %v2858 = vand.u32 %v135, 4294901760
    %2859 = vmatpush2.msra.mxu0 %v2858
    %2860 = vmatprep.subr.mxu0 0.0
    %v2861 = vand.u32 %v134, 4294901760
    %2862 = vmatpush2.msra.mxu0 %v2861
    %2863 = vmatprep.subr.mxu0 0.0
    %v2864 = vand.u32 %v133, 4294901760
    %2865 = vmatpush2.msra.mxu0 %v2864
    %2866 = vmatprep.subr.mxu0 0.0
    %v2867 = vand.u32 %v132, 4294901760
    %2868 = vmatpush2.msra.mxu0 %v2867
    %2869 = vmatprep.subr.mxu0 0.0
    %v2870 = vand.u32 %v131, 4294901760
    %2871 = vmatpush2.msra.mxu0 %v2870
    %2872 = vmatprep.subr.mxu0 0.0
    %v2873 = vand.u32 %v130, 4294901760
    %2874 = vmatpush2.msra.mxu0 %v2873
    %2875 = vmatprep.subr.mxu0 0.0
    %v2876 = vand.u32 %v129, 4294901760
    %2877 = vmatpush2.msra.mxu0 %v2876
    %v2878 = vand.u32 %v187, 4294901760
    %v2879 = vsub.f32 %v187, %v2878
    %v2880 = vand.u32 %v2879, 4294901760
    %v2881 = vsub.f32 %v2879, %v2880
    %v2882 = vand.u32 %v2881, 4294901760
    %2883 = vmatprep.mubr.f32.mxu0 %v2882
    %v2884 = vand.u32 %v185, 4294901760
    %v2885 = vsub.f32 %v185, %v2884
    %v2886 = vand.u32 %v2885, 4294901760
    %v2887 = vsub.f32 %v2885, %v2886
    %v2888 = vand.u32 %v2887, 4294901760
    %2889 = vmatmul.mubr.f32.gmra.mxu0 %v2888
    %v2890 = vpop.f32.mrf.mxu0
    %v2891 = vadd.f32 %v2779, %v2890
    %v2892 = vpop.f32.mrf.mxu0
    %2893 = vdwg.mxu0
    %2894 = vmatprep.subr.mxu0 0.0
    %v2895 = vand.u32 %v128, 4294901760
    %v2896 = vsub.f32 %v128, %v2895
    %v2897 = vand.u32 %v2896, 4294901760
    %v2898 = vsub.f32 %v2896, %v2897
    %v2899 = vand.u32 %v2898, 4294901760
    %2900 = vmatpush1.msra.mxu0 %v2899
    %2901 = vmatprep.subr.mxu0 0.0
    %v2902 = vand.u32 %v127, 4294901760
    %v2903 = vsub.f32 %v127, %v2902
    %v2904 = vand.u32 %v2903, 4294901760
    %v2905 = vsub.f32 %v2903, %v2904
    %v2906 = vand.u32 %v2905, 4294901760
    %2907 = vmatpush1.msra.mxu0 %v2906
    %2908 = vmatprep.subr.mxu0 0.0
    %v2909 = vand.u32 %v126, 4294901760
    %v2910 = vsub.f32 %v126, %v2909
    %v2911 = vand.u32 %v2910, 4294901760
    %v2912 = vsub.f32 %v2910, %v2911
    %v2913 = vand.u32 %v2912, 4294901760
    %2914 = vmatpush1.msra.mxu0 %v2913
    %2915 = vmatprep.subr.mxu0 0.0
    %v2916 = vand.u32 %v125, 4294901760
    %v2917 = vsub.f32 %v125, %v2916
    %v2918 = vand.u32 %v2917, 4294901760
    %v2919 = vsub.f32 %v2917, %v2918
    %v2920 = vand.u32 %v2919, 4294901760
    %2921 = vmatpush1.msra.mxu0 %v2920
    %2922 = vmatprep.subr.mxu0 0.0
    %v2923 = vand.u32 %v124, 4294901760
    %v2924 = vsub.f32 %v124, %v2923
    %v2925 = vand.u32 %v2924, 4294901760
    %v2926 = vsub.f32 %v2924, %v2925
    %v2927 = vand.u32 %v2926, 4294901760
    %2928 = vmatpush1.msra.mxu0 %v2927
    %2929 = vmatprep.subr.mxu0 0.0
    %v2930 = vand.u32 %v123, 4294901760
    %v2931 = vsub.f32 %v123, %v2930
    %v2932 = vand.u32 %v2931, 4294901760
    %v2933 = vsub.f32 %v2931, %v2932
    %v2934 = vand.u32 %v2933, 4294901760
    %2935 = vmatpush1.msra.mxu0 %v2934
    %2936 = vmatprep.subr.mxu0 0.0
    %v2937 = vand.u32 %v122, 4294901760
    %v2938 = vsub.f32 %v122, %v2937
    %v2939 = vand.u32 %v2938, 4294901760
    %v2940 = vsub.f32 %v2938, %v2939
    %v2941 = vand.u32 %v2940, 4294901760
    %2942 = vmatpush1.msra.mxu0 %v2941
    %2943 = vmatprep.subr.mxu0 0.0
    %v2944 = vand.u32 %v121, 4294901760
    %v2945 = vsub.f32 %v121, %v2944
    %v2946 = vand.u32 %v2945, 4294901760
    %v2947 = vsub.f32 %v2945, %v2946
    %v2948 = vand.u32 %v2947, 4294901760
    %2949 = vmatpush1.msra.mxu0 %v2948
    %2950 = vmatprep.subr.mxu0 0.0
    %v2951 = vand.u32 %v120, 4294901760
    %v2952 = vsub.f32 %v120, %v2951
    %v2953 = vand.u32 %v2952, 4294901760
    %v2954 = vsub.f32 %v2952, %v2953
    %v2955 = vand.u32 %v2954, 4294901760
    %2956 = vmatpush1.msra.mxu0 %v2955
    %2957 = vmatprep.subr.mxu0 0.0
    %v2958 = vand.u32 %v119, 4294901760
    %v2959 = vsub.f32 %v119, %v2958
    %v2960 = vand.u32 %v2959, 4294901760
    %v2961 = vsub.f32 %v2959, %v2960
    %v2962 = vand.u32 %v2961, 4294901760
    %2963 = vmatpush1.msra.mxu0 %v2962
    %2964 = vmatprep.subr.mxu0 0.0
    %v2965 = vand.u32 %v118, 4294901760
    %v2966 = vsub.f32 %v118, %v2965
    %v2967 = vand.u32 %v2966, 4294901760
    %v2968 = vsub.f32 %v2966, %v2967
    %v2969 = vand.u32 %v2968, 4294901760
    %2970 = vmatpush1.msra.mxu0 %v2969
    %2971 = vmatprep.subr.mxu0 0.0
    %v2972 = vand.u32 %v117, 4294901760
    %v2973 = vsub.f32 %v117, %v2972
    %v2974 = vand.u32 %v2973, 4294901760
    %v2975 = vsub.f32 %v2973, %v2974
    %v2976 = vand.u32 %v2975, 4294901760
    %2977 = vmatpush1.msra.mxu0 %v2976
    %2978 = vmatprep.subr.mxu0 0.0
    %v2979 = vand.u32 %v116, 4294901760
    %v2980 = vsub.f32 %v116, %v2979
    %v2981 = vand.u32 %v2980, 4294901760
    %v2982 = vsub.f32 %v2980, %v2981
    %v2983 = vand.u32 %v2982, 4294901760
    %2984 = vmatpush1.msra.mxu0 %v2983
    %2985 = vmatprep.subr.mxu0 0.0
    %v2986 = vand.u32 %v115, 4294901760
    %v2987 = vsub.f32 %v115, %v2986
    %v2988 = vand.u32 %v2987, 4294901760
    %v2989 = vsub.f32 %v2987, %v2988
    %v2990 = vand.u32 %v2989, 4294901760
    %2991 = vmatpush1.msra.mxu0 %v2990
    %2992 = vmatprep.subr.mxu0 0.0
    %v2993 = vand.u32 %v114, 4294901760
    %v2994 = vsub.f32 %v114, %v2993
    %v2995 = vand.u32 %v2994, 4294901760
    %v2996 = vsub.f32 %v2994, %v2995
    %v2997 = vand.u32 %v2996, 4294901760
    %2998 = vmatpush1.msra.mxu0 %v2997
    %2999 = vmatprep.subr.mxu0 0.0
    %v3000 = vand.u32 %v113, 4294901760
    %v3001 = vsub.f32 %v113, %v3000
    %v3002 = vand.u32 %v3001, 4294901760
    %v3003 = vsub.f32 %v3001, %v3002
    %v3004 = vand.u32 %v3003, 4294901760
    %3005 = vmatpush1.msra.mxu0 %v3004
    %3006 = vmatprep.subr.mxu0 0.0
    %v3007 = vand.u32 %v144, 4294901760
    %v3008 = vsub.f32 %v144, %v3007
    %v3009 = vand.u32 %v3008, 4294901760
    %v3010 = vsub.f32 %v3008, %v3009
    %v3011 = vand.u32 %v3010, 4294901760
    %3012 = vmatpush2.msra.mxu0 %v3011
    %3013 = vmatprep.subr.mxu0 0.0
    %v3014 = vand.u32 %v143, 4294901760
    %v3015 = vsub.f32 %v143, %v3014
    %v3016 = vand.u32 %v3015, 4294901760
    %v3017 = vsub.f32 %v3015, %v3016
    %v3018 = vand.u32 %v3017, 4294901760
    %3019 = vmatpush2.msra.mxu0 %v3018
    %3020 = vmatprep.subr.mxu0 0.0
    %v3021 = vand.u32 %v142, 4294901760
    %v3022 = vsub.f32 %v142, %v3021
    %v3023 = vand.u32 %v3022, 4294901760
    %v3024 = vsub.f32 %v3022, %v3023
    %v3025 = vand.u32 %v3024, 4294901760
    %3026 = vmatpush2.msra.mxu0 %v3025
    %3027 = vmatprep.subr.mxu0 0.0
    %v3028 = vand.u32 %v141, 4294901760
    %v3029 = vsub.f32 %v141, %v3028
    %v3030 = vand.u32 %v3029, 4294901760
    %v3031 = vsub.f32 %v3029, %v3030
    %v3032 = vand.u32 %v3031, 4294901760
    %3033 = vmatpush2.msra.mxu0 %v3032
    %3034 = vmatprep.subr.mxu0 0.0
    %v3035 = vand.u32 %v140, 4294901760
    %v3036 = vsub.f32 %v140, %v3035
    %v3037 = vand.u32 %v3036, 4294901760
    %v3038 = vsub.f32 %v3036, %v3037
    %v3039 = vand.u32 %v3038, 4294901760
    %3040 = vmatpush2.msra.mxu0 %v3039
    %3041 = vmatprep.subr.mxu0 0.0
    %v3042 = vand.u32 %v139, 4294901760
    %v3043 = vsub.f32 %v139, %v3042
    %v3044 = vand.u32 %v3043, 4294901760
    %v3045 = vsub.f32 %v3043, %v3044
    %v3046 = vand.u32 %v3045, 4294901760
    %3047 = vmatpush2.msra.mxu0 %v3046
    %3048 = vmatprep.subr.mxu0 0.0
    %v3049 = vand.u32 %v138, 4294901760
    %v3050 = vsub.f32 %v138, %v3049
    %v3051 = vand.u32 %v3050, 4294901760
    %v3052 = vsub.f32 %v3050, %v3051
    %v3053 = vand.u32 %v3052, 4294901760
    %3054 = vmatpush2.msra.mxu0 %v3053
    %3055 = vmatprep.subr.mxu0 0.0
    %v3056 = vand.u32 %v137, 4294901760
    %v3057 = vsub.f32 %v137, %v3056
    %v3058 = vand.u32 %v3057, 4294901760
    %v3059 = vsub.f32 %v3057, %v3058
    %v3060 = vand.u32 %v3059, 4294901760
    %3061 = vmatpush2.msra.mxu0 %v3060
    %3062 = vmatprep.subr.mxu0 0.0
    %v3063 = vand.u32 %v136, 4294901760
    %v3064 = vsub.f32 %v136, %v3063
    %v3065 = vand.u32 %v3064, 4294901760
    %v3066 = vsub.f32 %v3064, %v3065
    %v3067 = vand.u32 %v3066, 4294901760
    %3068 = vmatpush2.msra.mxu0 %v3067
    %3069 = vmatprep.subr.mxu0 0.0
    %v3070 = vand.u32 %v135, 4294901760
    %v3071 = vsub.f32 %v135, %v3070
    %v3072 = vand.u32 %v3071, 4294901760
    %v3073 = vsub.f32 %v3071, %v3072
    %v3074 = vand.u32 %v3073, 4294901760
    %3075 = vmatpush2.msra.mxu0 %v3074
    %3076 = vmatprep.subr.mxu0 0.0
    %v3077 = vand.u32 %v134, 4294901760
    %v3078 = vsub.f32 %v134, %v3077
    %v3079 = vand.u32 %v3078, 4294901760
    %v3080 = vsub.f32 %v3078, %v3079
    %v3081 = vand.u32 %v3080, 4294901760
    %3082 = vmatpush2.msra.mxu0 %v3081
    %3083 = vmatprep.subr.mxu0 0.0
    %v3084 = vand.u32 %v133, 4294901760
    %v3085 = vsub.f32 %v133, %v3084
    %v3086 = vand.u32 %v3085, 4294901760
    %v3087 = vsub.f32 %v3085, %v3086
    %v3088 = vand.u32 %v3087, 4294901760
    %3089 = vmatpush2.msra.mxu0 %v3088
    %3090 = vmatprep.subr.mxu0 0.0
    %v3091 = vand.u32 %v132, 4294901760
    %v3092 = vsub.f32 %v132, %v3091
    %v3093 = vand.u32 %v3092, 4294901760
    %v3094 = vsub.f32 %v3092, %v3093
    %v3095 = vand.u32 %v3094, 4294901760
    %3096 = vmatpush2.msra.mxu0 %v3095
    %3097 = vmatprep.subr.mxu0 0.0
    %v3098 = vand.u32 %v131, 4294901760
    %v3099 = vsub.f32 %v131, %v3098
    %v3100 = vand.u32 %v3099, 4294901760
    %v3101 = vsub.f32 %v3099, %v3100
    %v3102 = vand.u32 %v3101, 4294901760
    %3103 = vmatpush2.msra.mxu0 %v3102
    %3104 = vmatprep.subr.mxu0 0.0
    %v3105 = vand.u32 %v130, 4294901760
    %v3106 = vsub.f32 %v130, %v3105
    %v3107 = vand.u32 %v3106, 4294901760
    %v3108 = vsub.f32 %v3106, %v3107
    %v3109 = vand.u32 %v3108, 4294901760
    %3110 = vmatpush2.msra.mxu0 %v3109
    %3111 = vmatprep.subr.mxu0 0.0
    %v3112 = vand.u32 %v129, 4294901760
    %v3113 = vsub.f32 %v129, %v3112
    %v3114 = vand.u32 %v3113, 4294901760
    %v3115 = vsub.f32 %v3113, %v3114
    %v3116 = vand.u32 %v3115, 4294901760
    %3117 = vmatpush2.msra.mxu0 %v3116
    %v3118 = vand.u32 %v187, 4294901760
    %3119 = vmatprep.mubr.f32.mxu0 %v3118
    %v3120 = vand.u32 %v185, 4294901760
    %3121 = vmatmul.mubr.f32.gmra.mxu0 %v3120
    %v3122 = vpop.f32.mrf.mxu0
    %v3123 = vadd.f32 %v2891, %v3122
    %v3124 = vpop.f32.mrf.mxu0
    %3125 = vdwg.mxu0
    %3126 = vmatprep.subr.mxu0 0.0
    %v3127 = vand.u32 %v128, 4294901760
    %v3128 = vsub.f32 %v128, %v3127
    %3129 = vmatpush1.msra.mxu0 %v3128
    %3130 = vmatprep.subr.mxu0 0.0
    %v3131 = vand.u32 %v127, 4294901760
    %v3132 = vsub.f32 %v127, %v3131
    %3133 = vmatpush1.msra.mxu0 %v3132
    %3134 = vmatprep.subr.mxu0 0.0
    %v3135 = vand.u32 %v126, 4294901760
    %v3136 = vsub.f32 %v126, %v3135
    %3137 = vmatpush1.msra.mxu0 %v3136
    %3138 = vmatprep.subr.mxu0 0.0
    %v3139 = vand.u32 %v125, 4294901760
    %v3140 = vsub.f32 %v125, %v3139
    %3141 = vmatpush1.msra.mxu0 %v3140
    %3142 = vmatprep.subr.mxu0 0.0
    %v3143 = vand.u32 %v124, 4294901760
    %v3144 = vsub.f32 %v124, %v3143
    %3145 = vmatpush1.msra.mxu0 %v3144
    %3146 = vmatprep.subr.mxu0 0.0
    %v3147 = vand.u32 %v123, 4294901760
    %v3148 = vsub.f32 %v123, %v3147
    %3149 = vmatpush1.msra.mxu0 %v3148
    %3150 = vmatprep.subr.mxu0 0.0
    %v3151 = vand.u32 %v122, 4294901760
    %v3152 = vsub.f32 %v122, %v3151
    %3153 = vmatpush1.msra.mxu0 %v3152
    %3154 = vmatprep.subr.mxu0 0.0
    %v3155 = vand.u32 %v121, 4294901760
    %v3156 = vsub.f32 %v121, %v3155
    %3157 = vmatpush1.msra.mxu0 %v3156
    %3158 = vmatprep.subr.mxu0 0.0
    %v3159 = vand.u32 %v120, 4294901760
    %v3160 = vsub.f32 %v120, %v3159
    %3161 = vmatpush1.msra.mxu0 %v3160
    %3162 = vmatprep.subr.mxu0 0.0
    %v3163 = vand.u32 %v119, 4294901760
    %v3164 = vsub.f32 %v119, %v3163
    %3165 = vmatpush1.msra.mxu0 %v3164
    %3166 = vmatprep.subr.mxu0 0.0
    %v3167 = vand.u32 %v118, 4294901760
    %v3168 = vsub.f32 %v118, %v3167
    %3169 = vmatpush1.msra.mxu0 %v3168
    %3170 = vmatprep.subr.mxu0 0.0
    %v3171 = vand.u32 %v117, 4294901760
    %v3172 = vsub.f32 %v117, %v3171
    %3173 = vmatpush1.msra.mxu0 %v3172
    %3174 = vmatprep.subr.mxu0 0.0
    %v3175 = vand.u32 %v116, 4294901760
    %v3176 = vsub.f32 %v116, %v3175
    %3177 = vmatpush1.msra.mxu0 %v3176
    %3178 = vmatprep.subr.mxu0 0.0
    %v3179 = vand.u32 %v115, 4294901760
    %v3180 = vsub.f32 %v115, %v3179
    %3181 = vmatpush1.msra.mxu0 %v3180
    %3182 = vmatprep.subr.mxu0 0.0
    %v3183 = vand.u32 %v114, 4294901760
    %v3184 = vsub.f32 %v114, %v3183
    %3185 = vmatpush1.msra.mxu0 %v3184
    %3186 = vmatprep.subr.mxu0 0.0
    %v3187 = vand.u32 %v113, 4294901760
    %v3188 = vsub.f32 %v113, %v3187
    %3189 = vmatpush1.msra.mxu0 %v3188
    %3190 = vmatprep.subr.mxu0 0.0
    %v3191 = vand.u32 %v144, 4294901760
    %v3192 = vsub.f32 %v144, %v3191
    %3193 = vmatpush2.msra.mxu0 %v3192
    %3194 = vmatprep.subr.mxu0 0.0
    %v3195 = vand.u32 %v143, 4294901760
    %v3196 = vsub.f32 %v143, %v3195
    %3197 = vmatpush2.msra.mxu0 %v3196
    %3198 = vmatprep.subr.mxu0 0.0
    %v3199 = vand.u32 %v142, 4294901760
    %v3200 = vsub.f32 %v142, %v3199
    %3201 = vmatpush2.msra.mxu0 %v3200
    %3202 = vmatprep.subr.mxu0 0.0
    %v3203 = vand.u32 %v141, 4294901760
    %v3204 = vsub.f32 %v141, %v3203
    %3205 = vmatpush2.msra.mxu0 %v3204
    %3206 = vmatprep.subr.mxu0 0.0
    %v3207 = vand.u32 %v140, 4294901760
    %v3208 = vsub.f32 %v140, %v3207
    %3209 = vmatpush2.msra.mxu0 %v3208
    %3210 = vmatprep.subr.mxu0 0.0
    %v3211 = vand.u32 %v139, 4294901760
    %v3212 = vsub.f32 %v139, %v3211
    %3213 = vmatpush2.msra.mxu0 %v3212
    %3214 = vmatprep.subr.mxu0 0.0
    %v3215 = vand.u32 %v138, 4294901760
    %v3216 = vsub.f32 %v138, %v3215
    %3217 = vmatpush2.msra.mxu0 %v3216
    %3218 = vmatprep.subr.mxu0 0.0
    %v3219 = vand.u32 %v137, 4294901760
    %v3220 = vsub.f32 %v137, %v3219
    %3221 = vmatpush2.msra.mxu0 %v3220
    %3222 = vmatprep.subr.mxu0 0.0
    %v3223 = vand.u32 %v136, 4294901760
    %v3224 = vsub.f32 %v136, %v3223
    %3225 = vmatpush2.msra.mxu0 %v3224
    %3226 = vmatprep.subr.mxu0 0.0
    %v3227 = vand.u32 %v135, 4294901760
    %v3228 = vsub.f32 %v135, %v3227
    %3229 = vmatpush2.msra.mxu0 %v3228
    %3230 = vmatprep.subr.mxu0 0.0
    %v3231 = vand.u32 %v134, 4294901760
    %v3232 = vsub.f32 %v134, %v3231
    %3233 = vmatpush2.msra.mxu0 %v3232
    %3234 = vmatprep.subr.mxu0 0.0
    %v3235 = vand.u32 %v133, 4294901760
    %v3236 = vsub.f32 %v133, %v3235
    %3237 = vmatpush2.msra.mxu0 %v3236
    %3238 = vmatprep.subr.mxu0 0.0
    %v3239 = vand.u32 %v132, 4294901760
    %v3240 = vsub.f32 %v132, %v3239
    %3241 = vmatpush2.msra.mxu0 %v3240
    %3242 = vmatprep.subr.mxu0 0.0
    %v3243 = vand.u32 %v131, 4294901760
    %v3244 = vsub.f32 %v131, %v3243
    %3245 = vmatpush2.msra.mxu0 %v3244
    %3246 = vmatprep.subr.mxu0 0.0
    %v3247 = vand.u32 %v130, 4294901760
    %v3248 = vsub.f32 %v130, %v3247
    %3249 = vmatpush2.msra.mxu0 %v3248
    %3250 = vmatprep.subr.mxu0 0.0
    %v3251 = vand.u32 %v129, 4294901760
    %v3252 = vsub.f32 %v129, %v3251
    %3253 = vmatpush2.msra.mxu0 %v3252
    %v3254 = vand.u32 %v187, 4294901760
    %v3255 = vsub.f32 %v187, %v3254
    %3256 = vmatprep.mubr.f32.mxu0 %v3255
    %v3257 = vand.u32 %v185, 4294901760
    %v3258 = vsub.f32 %v185, %v3257
    %3259 = vmatmul.mubr.f32.gmra.mxu0 %v3258
    %v3260 = vpop.f32.mrf.mxu0
    %v3261 = vadd.f32 %v3123, %v3260
    %v3262 = vpop.f32.mrf.mxu0
    %3263 = vdwg.mxu0
    %3264 = vmatprep.subr.mxu0 0.0
    %v3265 = vand.u32 %v128, 4294901760
    %3266 = vmatpush1.msra.mxu0 %v3265
    %3267 = vmatprep.subr.mxu0 0.0
    %v3268 = vand.u32 %v127, 4294901760
    %3269 = vmatpush1.msra.mxu0 %v3268
    %3270 = vmatprep.subr.mxu0 0.0
    %v3271 = vand.u32 %v126, 4294901760
    %3272 = vmatpush1.msra.mxu0 %v3271
    %3273 = vmatprep.subr.mxu0 0.0
    %v3274 = vand.u32 %v125, 4294901760
    %3275 = vmatpush1.msra.mxu0 %v3274
    %3276 = vmatprep.subr.mxu0 0.0
    %v3277 = vand.u32 %v124, 4294901760
    %3278 = vmatpush1.msra.mxu0 %v3277
    %3279 = vmatprep.subr.mxu0 0.0
    %v3280 = vand.u32 %v123, 4294901760
    %3281 = vmatpush1.msra.mxu0 %v3280
    %3282 = vmatprep.subr.mxu0 0.0
    %v3283 = vand.u32 %v122, 4294901760
    %3284 = vmatpush1.msra.mxu0 %v3283
    %3285 = vmatprep.subr.mxu0 0.0
    %v3286 = vand.u32 %v121, 4294901760
    %3287 = vmatpush1.msra.mxu0 %v3286
    %3288 = vmatprep.subr.mxu0 0.0
    %v3289 = vand.u32 %v120, 4294901760
    %3290 = vmatpush1.msra.mxu0 %v3289
    %3291 = vmatprep.subr.mxu0 0.0
    %v3292 = vand.u32 %v119, 4294901760
    %3293 = vmatpush1.msra.mxu0 %v3292
    %3294 = vmatprep.subr.mxu0 0.0
    %v3295 = vand.u32 %v118, 4294901760
    %3296 = vmatpush1.msra.mxu0 %v3295
    %3297 = vmatprep.subr.mxu0 0.0
    %v3298 = vand.u32 %v117, 4294901760
    %3299 = vmatpush1.msra.mxu0 %v3298
    %3300 = vmatprep.subr.mxu0 0.0
    %v3301 = vand.u32 %v116, 4294901760
    %3302 = vmatpush1.msra.mxu0 %v3301
    %3303 = vmatprep.subr.mxu0 0.0
    %v3304 = vand.u32 %v115, 4294901760
    %3305 = vmatpush1.msra.mxu0 %v3304
    %3306 = vmatprep.subr.mxu0 0.0
    %v3307 = vand.u32 %v114, 4294901760
    %3308 = vmatpush1.msra.mxu0 %v3307
    %3309 = vmatprep.subr.mxu0 0.0
    %v3310 = vand.u32 %v113, 4294901760
    %3311 = vmatpush1.msra.mxu0 %v3310
    %3312 = vmatprep.subr.mxu0 0.0
    %v3313 = vand.u32 %v144, 4294901760
    %3314 = vmatpush2.msra.mxu0 %v3313
    %3315 = vmatprep.subr.mxu0 0.0
    %v3316 = vand.u32 %v143, 4294901760
    %3317 = vmatpush2.msra.mxu0 %v3316
    %3318 = vmatprep.subr.mxu0 0.0
    %v3319 = vand.u32 %v142, 4294901760
    %3320 = vmatpush2.msra.mxu0 %v3319
    %3321 = vmatprep.subr.mxu0 0.0
    %v3322 = vand.u32 %v141, 4294901760
    %3323 = vmatpush2.msra.mxu0 %v3322
    %3324 = vmatprep.subr.mxu0 0.0
    %v3325 = vand.u32 %v140, 4294901760
    %3326 = vmatpush2.msra.mxu0 %v3325
    %3327 = vmatprep.subr.mxu0 0.0
    %v3328 = vand.u32 %v139, 4294901760
    %3329 = vmatpush2.msra.mxu0 %v3328
    %3330 = vmatprep.subr.mxu0 0.0
    %v3331 = vand.u32 %v138, 4294901760
    %3332 = vmatpush2.msra.mxu0 %v3331
    %3333 = vmatprep.subr.mxu0 0.0
    %v3334 = vand.u32 %v137, 4294901760
    %3335 = vmatpush2.msra.mxu0 %v3334
    %3336 = vmatprep.subr.mxu0 0.0
    %v3337 = vand.u32 %v136, 4294901760
    %3338 = vmatpush2.msra.mxu0 %v3337
    %3339 = vmatprep.subr.mxu0 0.0
    %v3340 = vand.u32 %v135, 4294901760
    %3341 = vmatpush2.msra.mxu0 %v3340
    %3342 = vmatprep.subr.mxu0 0.0
    %v3343 = vand.u32 %v134, 4294901760
    %3344 = vmatpush2.msra.mxu0 %v3343
    %3345 = vmatprep.subr.mxu0 0.0
    %v3346 = vand.u32 %v133, 4294901760
    %3347 = vmatpush2.msra.mxu0 %v3346
    %3348 = vmatprep.subr.mxu0 0.0
    %v3349 = vand.u32 %v132, 4294901760
    %3350 = vmatpush2.msra.mxu0 %v3349
    %3351 = vmatprep.subr.mxu0 0.0
    %v3352 = vand.u32 %v131, 4294901760
    %3353 = vmatpush2.msra.mxu0 %v3352
    %3354 = vmatprep.subr.mxu0 0.0
    %v3355 = vand.u32 %v130, 4294901760
    %3356 = vmatpush2.msra.mxu0 %v3355
    %3357 = vmatprep.subr.mxu0 0.0
    %v3358 = vand.u32 %v129, 4294901760
    %3359 = vmatpush2.msra.mxu0 %v3358
    %v3360 = vand.u32 %v187, 4294901760
    %v3361 = vsub.f32 %v187, %v3360
    %v3362 = vand.u32 %v3361, 4294901760
    %3363 = vmatprep.mubr.f32.mxu0 %v3362
    %v3364 = vand.u32 %v185, 4294901760
    %v3365 = vsub.f32 %v185, %v3364
    %v3366 = vand.u32 %v3365, 4294901760
    %3367 = vmatmul.mubr.f32.gmra.mxu0 %v3366
    %v3368 = vpop.f32.mrf.mxu0
    %v3369 = vadd.f32 %v3261, %v3368
    %v3370 = vpop.f32.mrf.mxu0
    %3371 = vdwg.mxu0
    %3372 = vmatprep.subr.mxu0 0.0
    %v3373 = vand.u32 %v128, 4294901760
    %v3374 = vsub.f32 %v128, %v3373
    %v3375 = vand.u32 %v3374, 4294901760
    %3376 = vmatpush1.msra.mxu0 %v3375
    %3377 = vmatprep.subr.mxu0 0.0
    %v3378 = vand.u32 %v127, 4294901760
    %v3379 = vsub.f32 %v127, %v3378
    %v3380 = vand.u32 %v3379, 4294901760
    %3381 = vmatpush1.msra.mxu0 %v3380
    %3382 = vmatprep.subr.mxu0 0.0
    %v3383 = vand.u32 %v126, 4294901760
    %v3384 = vsub.f32 %v126, %v3383
    %v3385 = vand.u32 %v3384, 4294901760
    %3386 = vmatpush1.msra.mxu0 %v3385
    %3387 = vmatprep.subr.mxu0 0.0
    %v3388 = vand.u32 %v125, 4294901760
    %v3389 = vsub.f32 %v125, %v3388
    %v3390 = vand.u32 %v3389, 4294901760
    %3391 = vmatpush1.msra.mxu0 %v3390
    %3392 = vmatprep.subr.mxu0 0.0
    %v3393 = vand.u32 %v124, 4294901760
    %v3394 = vsub.f32 %v124, %v3393
    %v3395 = vand.u32 %v3394, 4294901760
    %3396 = vmatpush1.msra.mxu0 %v3395
    %3397 = vmatprep.subr.mxu0 0.0
    %v3398 = vand.u32 %v123, 4294901760
    %v3399 = vsub.f32 %v123, %v3398
    %v3400 = vand.u32 %v3399, 4294901760
    %3401 = vmatpush1.msra.mxu0 %v3400
    %3402 = vmatprep.subr.mxu0 0.0
    %v3403 = vand.u32 %v122, 4294901760
    %v3404 = vsub.f32 %v122, %v3403
    %v3405 = vand.u32 %v3404, 4294901760
    %3406 = vmatpush1.msra.mxu0 %v3405
    %3407 = vmatprep.subr.mxu0 0.0
    %v3408 = vand.u32 %v121, 4294901760
    %v3409 = vsub.f32 %v121, %v3408
    %v3410 = vand.u32 %v3409, 4294901760
    %3411 = vmatpush1.msra.mxu0 %v3410
    %3412 = vmatprep.subr.mxu0 0.0
    %v3413 = vand.u32 %v120, 4294901760
    %v3414 = vsub.f32 %v120, %v3413
    %v3415 = vand.u32 %v3414, 4294901760
    %3416 = vmatpush1.msra.mxu0 %v3415
    %3417 = vmatprep.subr.mxu0 0.0
    %v3418 = vand.u32 %v119, 4294901760
    %v3419 = vsub.f32 %v119, %v3418
    %v3420 = vand.u32 %v3419, 4294901760
    %3421 = vmatpush1.msra.mxu0 %v3420
    %3422 = vmatprep.subr.mxu0 0.0
    %v3423 = vand.u32 %v118, 4294901760
    %v3424 = vsub.f32 %v118, %v3423
    %v3425 = vand.u32 %v3424, 4294901760
    %3426 = vmatpush1.msra.mxu0 %v3425
    %3427 = vmatprep.subr.mxu0 0.0
    %v3428 = vand.u32 %v117, 4294901760
    %v3429 = vsub.f32 %v117, %v3428
    %v3430 = vand.u32 %v3429, 4294901760
    %3431 = vmatpush1.msra.mxu0 %v3430
    %3432 = vmatprep.subr.mxu0 0.0
    %v3433 = vand.u32 %v116, 4294901760
    %v3434 = vsub.f32 %v116, %v3433
    %v3435 = vand.u32 %v3434, 4294901760
    %3436 = vmatpush1.msra.mxu0 %v3435
    %3437 = vmatprep.subr.mxu0 0.0
    %v3438 = vand.u32 %v115, 4294901760
    %v3439 = vsub.f32 %v115, %v3438
    %v3440 = vand.u32 %v3439, 4294901760
    %3441 = vmatpush1.msra.mxu0 %v3440
    %3442 = vmatprep.subr.mxu0 0.0
    %v3443 = vand.u32 %v114, 4294901760
    %v3444 = vsub.f32 %v114, %v3443
    %v3445 = vand.u32 %v3444, 4294901760
    %3446 = vmatpush1.msra.mxu0 %v3445
    %3447 = vmatprep.subr.mxu0 0.0
    %v3448 = vand.u32 %v113, 4294901760
    %v3449 = vsub.f32 %v113, %v3448
    %v3450 = vand.u32 %v3449, 4294901760
    %3451 = vmatpush1.msra.mxu0 %v3450
    %3452 = vmatprep.subr.mxu0 0.0
    %v3453 = vand.u32 %v144, 4294901760
    %v3454 = vsub.f32 %v144, %v3453
    %v3455 = vand.u32 %v3454, 4294901760
    %3456 = vmatpush2.msra.mxu0 %v3455
    %3457 = vmatprep.subr.mxu0 0.0
    %v3458 = vand.u32 %v143, 4294901760
    %v3459 = vsub.f32 %v143, %v3458
    %v3460 = vand.u32 %v3459, 4294901760
    %3461 = vmatpush2.msra.mxu0 %v3460
    %3462 = vmatprep.subr.mxu0 0.0
    %v3463 = vand.u32 %v142, 4294901760
    %v3464 = vsub.f32 %v142, %v3463
    %v3465 = vand.u32 %v3464, 4294901760
    %3466 = vmatpush2.msra.mxu0 %v3465
    %3467 = vmatprep.subr.mxu0 0.0
    %v3468 = vand.u32 %v141, 4294901760
    %v3469 = vsub.f32 %v141, %v3468
    %v3470 = vand.u32 %v3469, 4294901760
    %3471 = vmatpush2.msra.mxu0 %v3470
    %3472 = vmatprep.subr.mxu0 0.0
    %v3473 = vand.u32 %v140, 4294901760
    %v3474 = vsub.f32 %v140, %v3473
    %v3475 = vand.u32 %v3474, 4294901760
    %3476 = vmatpush2.msra.mxu0 %v3475
    %3477 = vmatprep.subr.mxu0 0.0
    %v3478 = vand.u32 %v139, 4294901760
    %v3479 = vsub.f32 %v139, %v3478
    %v3480 = vand.u32 %v3479, 4294901760
    %3481 = vmatpush2.msra.mxu0 %v3480
    %3482 = vmatprep.subr.mxu0 0.0
    %v3483 = vand.u32 %v138, 4294901760
    %v3484 = vsub.f32 %v138, %v3483
    %v3485 = vand.u32 %v3484, 4294901760
    %3486 = vmatpush2.msra.mxu0 %v3485
    %3487 = vmatprep.subr.mxu0 0.0
    %v3488 = vand.u32 %v137, 4294901760
    %v3489 = vsub.f32 %v137, %v3488
    %v3490 = vand.u32 %v3489, 4294901760
    %3491 = vmatpush2.msra.mxu0 %v3490
    %3492 = vmatprep.subr.mxu0 0.0
    %v3493 = vand.u32 %v136, 4294901760
    %v3494 = vsub.f32 %v136, %v3493
    %v3495 = vand.u32 %v3494, 4294901760
    %3496 = vmatpush2.msra.mxu0 %v3495
    %3497 = vmatprep.subr.mxu0 0.0
    %v3498 = vand.u32 %v135, 4294901760
    %v3499 = vsub.f32 %v135, %v3498
    %v3500 = vand.u32 %v3499, 4294901760
    %3501 = vmatpush2.msra.mxu0 %v3500
    %3502 = vmatprep.subr.mxu0 0.0
    %v3503 = vand.u32 %v134, 4294901760
    %v3504 = vsub.f32 %v134, %v3503
    %v3505 = vand.u32 %v3504, 4294901760
    %3506 = vmatpush2.msra.mxu0 %v3505
    %3507 = vmatprep.subr.mxu0 0.0
    %v3508 = vand.u32 %v133, 4294901760
    %v3509 = vsub.f32 %v133, %v3508
    %v3510 = vand.u32 %v3509, 4294901760
    %3511 = vmatpush2.msra.mxu0 %v3510
    %3512 = vmatprep.subr.mxu0 0.0
    %v3513 = vand.u32 %v132, 4294901760
    %v3514 = vsub.f32 %v132, %v3513
    %v3515 = vand.u32 %v3514, 4294901760
    %3516 = vmatpush2.msra.mxu0 %v3515
    %3517 = vmatprep.subr.mxu0 0.0
    %v3518 = vand.u32 %v131, 4294901760
    %v3519 = vsub.f32 %v131, %v3518
    %v3520 = vand.u32 %v3519, 4294901760
    %3521 = vmatpush2.msra.mxu0 %v3520
    %3522 = vmatprep.subr.mxu0 0.0
    %v3523 = vand.u32 %v130, 4294901760
    %v3524 = vsub.f32 %v130, %v3523
    %v3525 = vand.u32 %v3524, 4294901760
    %3526 = vmatpush2.msra.mxu0 %v3525
    %3527 = vmatprep.subr.mxu0 0.0
    %v3528 = vand.u32 %v129, 4294901760
    %v3529 = vsub.f32 %v129, %v3528
    %v3530 = vand.u32 %v3529, 4294901760
    %3531 = vmatpush2.msra.mxu0 %v3530
    %v3532 = vand.u32 %v187, 4294901760
    %3533 = vmatprep.mubr.f32.mxu0 %v3532
    %v3534 = vand.u32 %v185, 4294901760
    %3535 = vmatmul.mubr.f32.gmra.mxu0 %v3534
    %v3536 = vpop.f32.mrf.mxu0
    %v3537 = vadd.f32 %v3369, %v3536
    %v3538 = vpop.f32.mrf.mxu0
    %3539 = vdwg.mxu0
    %3540 = vmatprep.subr.mxu0 0.0
    %v3541 = vand.u32 %v128, 4294901760
    %3542 = vmatpush1.msra.mxu0 %v3541
    %3543 = vmatprep.subr.mxu0 0.0
    %v3544 = vand.u32 %v127, 4294901760
    %3545 = vmatpush1.msra.mxu0 %v3544
    %3546 = vmatprep.subr.mxu0 0.0
    %v3547 = vand.u32 %v126, 4294901760
    %3548 = vmatpush1.msra.mxu0 %v3547
    %3549 = vmatprep.subr.mxu0 0.0
    %v3550 = vand.u32 %v125, 4294901760
    %3551 = vmatpush1.msra.mxu0 %v3550
    %3552 = vmatprep.subr.mxu0 0.0
    %v3553 = vand.u32 %v124, 4294901760
    %3554 = vmatpush1.msra.mxu0 %v3553
    %3555 = vmatprep.subr.mxu0 0.0
    %v3556 = vand.u32 %v123, 4294901760
    %3557 = vmatpush1.msra.mxu0 %v3556
    %3558 = vmatprep.subr.mxu0 0.0
    %v3559 = vand.u32 %v122, 4294901760
    %3560 = vmatpush1.msra.mxu0 %v3559
    %3561 = vmatprep.subr.mxu0 0.0
    %v3562 = vand.u32 %v121, 4294901760
    %3563 = vmatpush1.msra.mxu0 %v3562
    %3564 = vmatprep.subr.mxu0 0.0
    %v3565 = vand.u32 %v120, 4294901760
    %3566 = vmatpush1.msra.mxu0 %v3565
    %3567 = vmatprep.subr.mxu0 0.0
    %v3568 = vand.u32 %v119, 4294901760
    %3569 = vmatpush1.msra.mxu0 %v3568
    %3570 = vmatprep.subr.mxu0 0.0
    %v3571 = vand.u32 %v118, 4294901760
    %3572 = vmatpush1.msra.mxu0 %v3571
    %3573 = vmatprep.subr.mxu0 0.0
    %v3574 = vand.u32 %v117, 4294901760
    %3575 = vmatpush1.msra.mxu0 %v3574
    %3576 = vmatprep.subr.mxu0 0.0
    %v3577 = vand.u32 %v116, 4294901760
    %3578 = vmatpush1.msra.mxu0 %v3577
    %3579 = vmatprep.subr.mxu0 0.0
    %v3580 = vand.u32 %v115, 4294901760
    %3581 = vmatpush1.msra.mxu0 %v3580
    %3582 = vmatprep.subr.mxu0 0.0
    %v3583 = vand.u32 %v114, 4294901760
    %3584 = vmatpush1.msra.mxu0 %v3583
    %3585 = vmatprep.subr.mxu0 0.0
    %v3586 = vand.u32 %v113, 4294901760
    %3587 = vmatpush1.msra.mxu0 %v3586
    %3588 = vmatprep.subr.mxu0 0.0
    %v3589 = vand.u32 %v144, 4294901760
    %3590 = vmatpush2.msra.mxu0 %v3589
    %3591 = vmatprep.subr.mxu0 0.0
    %v3592 = vand.u32 %v143, 4294901760
    %3593 = vmatpush2.msra.mxu0 %v3592
    %3594 = vmatprep.subr.mxu0 0.0
    %v3595 = vand.u32 %v142, 4294901760
    %3596 = vmatpush2.msra.mxu0 %v3595
    %3597 = vmatprep.subr.mxu0 0.0
    %v3598 = vand.u32 %v141, 4294901760
    %3599 = vmatpush2.msra.mxu0 %v3598
    %3600 = vmatprep.subr.mxu0 0.0
    %v3601 = vand.u32 %v140, 4294901760
    %3602 = vmatpush2.msra.mxu0 %v3601
    %3603 = vmatprep.subr.mxu0 0.0
    %v3604 = vand.u32 %v139, 4294901760
    %3605 = vmatpush2.msra.mxu0 %v3604
    %3606 = vmatprep.subr.mxu0 0.0
    %v3607 = vand.u32 %v138, 4294901760
    %3608 = vmatpush2.msra.mxu0 %v3607
    %3609 = vmatprep.subr.mxu0 0.0
    %v3610 = vand.u32 %v137, 4294901760
    %3611 = vmatpush2.msra.mxu0 %v3610
    %3612 = vmatprep.subr.mxu0 0.0
    %v3613 = vand.u32 %v136, 4294901760
    %3614 = vmatpush2.msra.mxu0 %v3613
    %3615 = vmatprep.subr.mxu0 0.0
    %v3616 = vand.u32 %v135, 4294901760
    %3617 = vmatpush2.msra.mxu0 %v3616
    %3618 = vmatprep.subr.mxu0 0.0
    %v3619 = vand.u32 %v134, 4294901760
    %3620 = vmatpush2.msra.mxu0 %v3619
    %3621 = vmatprep.subr.mxu0 0.0
    %v3622 = vand.u32 %v133, 4294901760
    %3623 = vmatpush2.msra.mxu0 %v3622
    %3624 = vmatprep.subr.mxu0 0.0
    %v3625 = vand.u32 %v132, 4294901760
    %3626 = vmatpush2.msra.mxu0 %v3625
    %3627 = vmatprep.subr.mxu0 0.0
    %v3628 = vand.u32 %v131, 4294901760
    %3629 = vmatpush2.msra.mxu0 %v3628
    %3630 = vmatprep.subr.mxu0 0.0
    %v3631 = vand.u32 %v130, 4294901760
    %3632 = vmatpush2.msra.mxu0 %v3631
    %3633 = vmatprep.subr.mxu0 0.0
    %v3634 = vand.u32 %v129, 4294901760
    %3635 = vmatpush2.msra.mxu0 %v3634
    %v3636 = vand.u32 %v187, 4294901760
    %3637 = vmatprep.mubr.f32.mxu0 %v3636
    %v3638 = vand.u32 %v185, 4294901760
    %3639 = vmatmul.mubr.f32.gmra.mxu0 %v3638
    %v3640 = vpop.f32.mrf.mxu0
    %v3641 = vadd.f32 %v3537, %v3640
    %v3642 = vpop.f32.mrf.mxu0
    %3643 = vdwg.mxu0
    %vm3644 = vcmask 58368
    %v3645 = vsel %vm3644, %v3641, -inf
    %3646 = vmax.xlane.f32.xlu0 %v3645
    %v3647 = vpop.xlane.xlu0 %3646
    %v3648 = vsub.f32 %v3641, %v3647
    %v3649 = vmul.f32 %v3648, 1.442695
    %v3650 = vpow.pop %v3649
    %v3651 = vsel %vm3644, %v3650, 0.0
    %3652 = vadd.xlane.f32.xlu0 %v3651
    %v3653 = vpop.xlane.xlu0 %3652
    %v3654 = vrcp.pop %v3653
    %v3655 = vmul.f32 %v3650, %v3654
    %3656 = vst.msk [vmem:[#allocation2] sm:$0x3] %vm3644, %v3655
    // Predicated region
    $region14: #{tpu_custom_call.1} parent=1 // pred_check
      _
    $region15: #{tpu_custom_call.1} parent=1 // pred_check_branch
      %3658 = sbr.rel (0) target = $region17
    $region16: #{tpu_custom_call.1} parent=1 // pred_region
      %s3660 = ssub.s32 32, 32
      %3661 = vsyncadd [#allocation3], %s3660
      %s3663 = sshll.u32 [#allocation2], 4
      %s3664 = int_to_ptr.vmem [resolvable:$true] %s3663
      %3666 = dma.vmem_to_hbm [thread:$0]  %s3664, 32, %s3, [#allocation3]
    $region17: #{tpu_custom_call.1} parent=1 // pred_fallthru
      _
    // Predicated region
    $region18: #{tpu_custom_call.1} parent=1 // pred_check
      _
    $region19: #{tpu_custom_call.1} parent=1 // pred_check_branch
      %3668 = sbr.rel (0) target = $region21
    $region20: #{tpu_custom_call.1} parent=1 // pred_region
      %3669 = dma.done [#allocation3], 32
    $region21: #{tpu_custom_call.1} parent=1 // pred_fallthru
      _
    %3670 = vsyncpa [#allocation3], 1

</llo_original>
